<compile_context>
chip_gen: v6e
topology: v6e:2x2x1
jax: 0.10.0
libtpu: 0.0.40
codegen_flags: <defaults>
</compile_context>

<pallas_src>
import functools

import jax
import jax.numpy as jnp
from jax import lax
from jax.experimental import pallas as pl
from jax.experimental.pallas import tpu as pltpu


def _round_up(v, m):
    return (v + m - 1) // m * m


# ---------------------------------------------------------------------------
# Fused Pallas kernel: conv1+bn1+relu -> conv2+bn2+residual+relu
# One batch element per grid step; intermediate stays in VMEM.
# ---------------------------------------------------------------------------
def _basic_block_kernel(x_ref, w1_ref, b1_ref, w2_ref, b2_ref, mask_ref,
                        o_ref, y1_ref, *, npix, wpad):
    """Shapes (per grid step):
      x_ref   : (L, Cp)     bf16  zero-padded image flattened over the (H+2,W+2)
                                  grid, plus a (wpad+1)-row zero halo at both
                                  ends so every 3x3 tap is one contiguous slice.
      w1_ref  : (9, Cp, Pp) bf16  conv1 weights, tap-major, BN1 scale folded in.
      b1_ref  : (1, Pp)     f32   folded BN1 bias.
      w2_ref  : (9, Pp, Pp) bf16  conv2 weights, BN2 scale folded in.
      b2_ref  : (1, Pp)     f32   folded BN2 bias.
      mask_ref: (npix, 1)   f32   1.0 on interior pixels of the (H+2,W+2) grid.
      o_ref   : (npix, Pp)  f32   output over the padded grid (interior valid).
      y1_ref  : (L, Pp)     bf16  VMEM scratch holding the conv1 output.
    """
    halo = wpad + 1
    pp = o_ref.shape[-1]

    def conv3x3_acc(src_ref, w_ref):
        # 9 shifted MXU dots, f32 accumulation; tap 0 seeds the accumulator.
        acc = jnp.dot(src_ref[pl.ds(0, npix), :], w_ref[0],
                      preferred_element_type=jnp.float32)
        for t in range(1, 9):
            off = (t // 3) * wpad + (t % 3)          # static per-tap row offset
            acc = acc + jnp.dot(src_ref[pl.ds(off, npix), :], w_ref[t],
                                preferred_element_type=jnp.float32)
        return acc

    # ---- conv1 (+ folded BN1) + ReLU ----------------------------------------
    acc1 = conv3x3_acc(x_ref, w1_ref)
    # bias + ReLU, then zero the padded-boundary pixels so they act as conv2's
    # zero padding.
    y1 = jnp.maximum(acc1 + b1_ref[...], 0.0) * mask_ref[...]

    # Stage conv1 output in VMEM with a zero extension halo (no HBM round trip).
    # Halos are re-zeroed every step: with a "parallel" batch axis each core
    # has its own scratch, so a program_id==0 one-shot init would be unsafe.
    y1_ref[pl.ds(0, halo), :] = jnp.zeros((halo, pp), y1_ref.dtype)
    y1_ref[pl.ds(halo + npix, halo), :] = jnp.zeros((halo, pp), y1_ref.dtype)
    y1_ref[pl.ds(halo, npix), :] = y1.astype(y1_ref.dtype)

    # ---- conv2 (+ folded BN2) + residual + ReLU -----------------------------
    acc2 = conv3x3_acc(y1_ref, w2_ref)
    residual = x_ref[pl.ds(halo, npix), :].astype(jnp.float32)  # centre tap = x
    o_ref[...] = jnp.maximum(acc2 + b2_ref[...] + residual, 0.0).astype(o_ref.dtype)


# ---------------------------------------------------------------------------
# Host-side (XLA) glue: layout, channel/lane padding, BN folding
# ---------------------------------------------------------------------------
def _fold_bn_into_weight(w_oihw, gamma, beta, mean, var, cin_pad, cout_pad, eps=1e-5):
    """(Cout,Cin,3,3) -> (9, cin_pad, cout_pad) bf16 with BN scale folded in,
    plus (1, cout_pad) f32 bias."""
    cout, cin, _, _ = w_oihw.shape
    scale = gamma / jnp.sqrt(var + eps)                      # (Cout,)
    bias = beta - mean * scale                               # (Cout,)
    w = jnp.transpose(w_oihw, (2, 3, 1, 0)) * scale[None, None, None, :]  # (3,3,Cin,Cout)
    w = jnp.pad(w, ((0, 0), (0, 0), (0, cin_pad - cin), (0, cout_pad - cout)))
    w = w.reshape(9, cin_pad, cout_pad).astype(jnp.bfloat16)
    bias = jnp.pad(bias, (0, cout_pad - cout)).reshape(1, cout_pad).astype(jnp.float32)
    return w, bias


@jax.jit
def basic_block_forward(x_nchw, params):
    """BasicBlock(inplanes=planes, stride=1, downsample=None) forward. NCHW in/out."""
    B, C, H, W = x_nchw.shape
    planes = params["conv1_w"].shape[0]
    assert planes == C, "downsample=None requires inplanes == planes"

    cp = _round_up(C, 128)          # lane-dense channel padding (input)
    pp = _round_up(planes, 128)     # lane-dense channel padding (output)
    hp, wp = H + 2, W + 2           # spatially padded grid for the 3x3 convs
    npix = hp * wp
    halo = wp + 1
    L = npix + 2 * halo

    # NCHW -> NHWC, pad spatially by 1 (conv padding), pad channels to 128,
    # flatten spatial and add a halo so each tap is one contiguous row slice.
    x = jnp.transpose(x_nchw, (0, 2, 3, 1))
    x = jnp.pad(x, ((0, 0), (1, 1), (1, 1), (0, cp - C))).astype(jnp.bfloat16)
    x = x.reshape(B, npix, cp)
    x_ext = jnp.pad(x, ((0, 0), (halo, halo), (0, 0)))        # (B, L, cp)

    w1, b1 = _fold_bn_into_weight(params["conv1_w"], params["bn1_g"], params["bn1_b"],
                                  params["bn1_m"], params["bn1_v"], cp, pp)
    w2, b2 = _fold_bn_into_weight(params["conv2_w"], params["bn2_g"], params["bn2_b"],
                                  params["bn2_m"], params["bn2_v"], pp, pp)

    # Interior mask of the (hp, wp) padded grid.
    r = jnp.arange(hp)[:, None]
    c = jnp.arange(wp)[None, :]
    mask = ((r >= 1) & (r <= H) & (c >= 1) & (c <= W)).astype(jnp.float32)
    mask = mask.reshape(npix, 1)

    kernel = functools.partial(_basic_block_kernel, npix=npix, wpad=wp)

    out = pl.pallas_call(
        kernel,
        out_shape=jax.ShapeDtypeStruct((B, npix, pp), jnp.float32),
        grid_spec=pltpu.PrefetchScalarGridSpec(
            num_scalar_prefetch=0,
            grid=(B,),
            in_specs=[
                pl.BlockSpec((None, L, cp), lambda b: (b, 0, 0)),     # x (per batch)
                pl.BlockSpec((9, cp, pp), lambda b: (0, 0, 0)),       # w1 (resident)
                pl.BlockSpec((1, pp), lambda b: (0, 0)),              # b1
                pl.BlockSpec((9, pp, pp), lambda b: (0, 0, 0)),       # w2 (resident)
                pl.BlockSpec((1, pp), lambda b: (0, 0)),              # b2
                pl.BlockSpec((npix, 1), lambda b: (0, 0)),            # interior mask
            ],
            out_specs=pl.BlockSpec((None, npix, pp), lambda b: (b, 0, 0)),
            scratch_shapes=[pltpu.VMEM((L, pp), jnp.bfloat16)],       # conv1 output
        ),
        compiler_params=pltpu.CompilerParams(
            dimension_semantics=("parallel",),
            vmem_limit_bytes=64 * 1024 * 1024,
        ),
    )(x_ext, w1, b1, w2, b2, mask)

    out = out.reshape(B, hp, wp, pp)[:, 1:H + 1, 1:W + 1, :planes]
    return jnp.transpose(out, (0, 3, 1, 2))


# ---------------------------------------------------------------------------
# Pure-JAX reference (lax conv, f32) for correctness checking
# ---------------------------------------------------------------------------
def basic_block_reference(x, params, eps=1e-5):
    def conv3x3(x, w):
        return lax.conv_general_dilated(
            x, w, window_strides=(1, 1), padding=((1, 1), (1, 1)),
            dimension_numbers=("NCHW", "OIHW", "NCHW"))

    def bn(x, g, b, m, v):
        g, b, m, v = (t.reshape(1, -1, 1, 1) for t in (g, b, m, v))
        return g * (x - m) / jnp.sqrt(v + eps) + b

    out = conv3x3(x, params["conv1_w"])
    out = bn(out, params["bn1_g"], params["bn1_b"], params["bn1_m"], params["bn1_v"])
    out = jnp.maximum(out, 0.0)
    out = conv3x3(out, params["conv2_w"])
    out = bn(out, params["bn2_g"], params["bn2_b"], params["bn2_m"], params["bn2_v"])
    out = out + x
    return jnp.maximum(out, 0.0)


# ---------------------------------------------------------------------------
if __name__ == "__main__":
    B, C, H, W = 2, 4, 16, 16       # inplanes = planes = 4, stride = 1, downsample = None
    planes = C

    key = jax.random.PRNGKey(0)
    keys = jax.random.split(key, 9)

    x = jax.random.normal(keys[0], (B, C, H, W), dtype=jnp.float32)

    params = {
        "conv1_w": jax.random.normal(keys[1], (planes, C, 3, 3), jnp.float32) * 0.1,
        "conv2_w": jax.random.normal(keys[2], (planes, planes, 3, 3), jnp.float32) * 0.1,
        "bn1_g": jax.random.uniform(keys[3], (planes,), jnp.float32, 0.5, 1.5),
        "bn1_b": jax.random.normal(keys[4], (planes,), jnp.float32) * 0.1,
        "bn1_m": jax.random.normal(keys[5], (planes,), jnp.float32) * 0.1,
        "bn1_v": jax.random.uniform(keys[6], (planes,), jnp.float32, 0.5, 1.5),
        "bn2_g": jax.random.uniform(keys[7], (planes,), jnp.float32, 0.5, 1.5),
        "bn2_b": jax.random.normal(keys[8], (planes,), jnp.float32) * 0.1,
        "bn2_m": jnp.zeros((planes,), jnp.float32),
        "bn2_v": jnp.ones((planes,), jnp.float32),
    }

    out = jax.block_until_ready(basic_block_forward(x, params))
    ref = jax.block_until_ready(basic_block_reference(x, params))

    assert out.shape == (B, planes, H, W)
    err = jnp.max(jnp.abs(out - ref))
    # bf16 matmul inputs / bf16 staged intermediate (f32 accumulation) =>
    # looser tolerance than an all-f32 path.
    assert err < 7.5e-2, f"Pallas output mismatch vs reference (max abs err {err})"

    print("KERNEL_OK")
</pallas_src>

<mosaic_0001>
module attributes {stable_mosaic.version = 11 : i64} {
  func.func @_basic_block_kernel(%arg0: i32, %arg1: memref<1x362x128xbf16, #tpu.memory_space<vmem>>, %arg2: memref<9x128x128xbf16, #tpu.memory_space<vmem>>, %arg3: memref<1x128xf32, #tpu.memory_space<vmem>>, %arg4: memref<9x128x128xbf16, #tpu.memory_space<vmem>>, %arg5: memref<1x128xf32, #tpu.memory_space<vmem>>, %arg6: memref<324x1xf32, #tpu.memory_space<vmem>>, %arg7: memref<1x324x128xf32, #tpu.memory_space<vmem>>, %arg8: memref<362x128xbf16, #tpu.memory_space<vmem>>) attributes {dimension_semantics = [#tpu.dimension_semantics<parallel>], iteration_bounds = array<i64: 2>, scalar_prefetch = 0 : i64, scratch_operands = 1 : i64, tpu.core_type = #tpu.core_type<tc>, window_params = [{transform_indices = @transform_0, window_bounds = array<i64: 1, 362, 128>}, {pipeline_mode = #tpu.pipeline_mode<synchronous>, transform_indices = @transform_1, window_bounds = array<i64: 9, 128, 128>}, {pipeline_mode = #tpu.pipeline_mode<synchronous>, transform_indices = @transform_2, window_bounds = array<i64: 1, 128>}, {pipeline_mode = #tpu.pipeline_mode<synchronous>, transform_indices = @transform_3, window_bounds = array<i64: 9, 128, 128>}, {pipeline_mode = #tpu.pipeline_mode<synchronous>, transform_indices = @transform_4, window_bounds = array<i64: 1, 128>}, {pipeline_mode = #tpu.pipeline_mode<synchronous>, transform_indices = @transform_5, window_bounds = array<i64: 324, 1>}, {transform_indices = @transform_6, window_bounds = array<i64: 1, 324, 128>}]} {
    %c0 = arith.constant 0 : index
    %c0_0 = arith.constant 0 : index
    %c0_1 = arith.constant 0 : index
    %0 = vector.load %arg1[%c0, %c0_0, %c0_1] : memref<1x362x128xbf16, #tpu.memory_space<vmem>>, vector<1x324x128xbf16>
    %1 = vector.shape_cast %0 : vector<1x324x128xbf16> to vector<324x128xbf16>
    %c0_2 = arith.constant 0 : index
    %c0_3 = arith.constant 0 : index
    %c0_4 = arith.constant 0 : index
    %2 = vector.load %arg2[%c0_2, %c0_3, %c0_4] : memref<9x128x128xbf16, #tpu.memory_space<vmem>>, vector<1x128x128xbf16>
    %3 = vector.shape_cast %2 : vector<1x128x128xbf16> to vector<128x128xbf16>
    %cst = arith.constant dense<0.000000e+00> : vector<324x128xf32>
    %4 = tpu.matmul %1, %3, %cst {dimension_numbers = #tpu.dot_dimension_numbers<[1], [0], [0], [1], [0, 0, 1, 1], [], []>} : vector<324x128xbf16>, vector<128x128xbf16>, vector<324x128xf32> -> vector<324x128xf32>
    %c0_5 = arith.constant 0 : index
    %c1 = arith.constant 1 : index
    %c0_6 = arith.constant 0 : index
    %5 = vector.load %arg1[%c0_5, %c1, %c0_6] : memref<1x362x128xbf16, #tpu.memory_space<vmem>>, vector<1x324x128xbf16>
    %6 = vector.shape_cast %5 : vector<1x324x128xbf16> to vector<324x128xbf16>
    %c1_7 = arith.constant 1 : index
    %c0_8 = arith.constant 0 : index
    %c0_9 = arith.constant 0 : index
    %7 = vector.load %arg2[%c1_7, %c0_8, %c0_9] : memref<9x128x128xbf16, #tpu.memory_space<vmem>>, vector<1x128x128xbf16>
    %8 = vector.shape_cast %7 : vector<1x128x128xbf16> to vector<128x128xbf16>
    %cst_10 = arith.constant dense<0.000000e+00> : vector<324x128xf32>
    %9 = tpu.matmul %6, %8, %cst_10 {dimension_numbers = #tpu.dot_dimension_numbers<[1], [0], [0], [1], [0, 0, 1, 1], [], []>} : vector<324x128xbf16>, vector<128x128xbf16>, vector<324x128xf32> -> vector<324x128xf32>
    %10 = arith.addf %4, %9 : vector<324x128xf32>
    %c0_11 = arith.constant 0 : index
    %c2 = arith.constant 2 : index
    %c0_12 = arith.constant 0 : index
    %11 = vector.load %arg1[%c0_11, %c2, %c0_12] : memref<1x362x128xbf16, #tpu.memory_space<vmem>>, vector<1x324x128xbf16>
    %12 = vector.shape_cast %11 : vector<1x324x128xbf16> to vector<324x128xbf16>
    %c2_13 = arith.constant 2 : index
    %c0_14 = arith.constant 0 : index
    %c0_15 = arith.constant 0 : index
    %13 = vector.load %arg2[%c2_13, %c0_14, %c0_15] : memref<9x128x128xbf16, #tpu.memory_space<vmem>>, vector<1x128x128xbf16>
    %14 = vector.shape_cast %13 : vector<1x128x128xbf16> to vector<128x128xbf16>
    %cst_16 = arith.constant dense<0.000000e+00> : vector<324x128xf32>
    %15 = tpu.matmul %12, %14, %cst_16 {dimension_numbers = #tpu.dot_dimension_numbers<[1], [0], [0], [1], [0, 0, 1, 1], [], []>} : vector<324x128xbf16>, vector<128x128xbf16>, vector<324x128xf32> -> vector<324x128xf32>
    %16 = arith.addf %10, %15 : vector<324x128xf32>
    %c0_17 = arith.constant 0 : index
    %c18 = arith.constant 18 : index
    %c0_18 = arith.constant 0 : index
    %17 = vector.load %arg1[%c0_17, %c18, %c0_18] : memref<1x362x128xbf16, #tpu.memory_space<vmem>>, vector<1x324x128xbf16>
    %18 = vector.shape_cast %17 : vector<1x324x128xbf16> to vector<324x128xbf16>
    %c3 = arith.constant 3 : index
    %c0_19 = arith.constant 0 : index
    %c0_20 = arith.constant 0 : index
    %19 = vector.load %arg2[%c3, %c0_19, %c0_20] : memref<9x128x128xbf16, #tpu.memory_space<vmem>>, vector<1x128x128xbf16>
    %20 = vector.shape_cast %19 : vector<1x128x128xbf16> to vector<128x128xbf16>
    %cst_21 = arith.constant dense<0.000000e+00> : vector<324x128xf32>
    %21 = tpu.matmul %18, %20, %cst_21 {dimension_numbers = #tpu.dot_dimension_numbers<[1], [0], [0], [1], [0, 0, 1, 1], [], []>} : vector<324x128xbf16>, vector<128x128xbf16>, vector<324x128xf32> -> vector<324x128xf32>
    %22 = arith.addf %16, %21 : vector<324x128xf32>
    %c0_22 = arith.constant 0 : index
    %c19 = arith.constant 19 : index
    %c0_23 = arith.constant 0 : index
    %23 = vector.load %arg1[%c0_22, %c19, %c0_23] : memref<1x362x128xbf16, #tpu.memory_space<vmem>>, vector<1x324x128xbf16>
    %24 = vector.shape_cast %23 : vector<1x324x128xbf16> to vector<324x128xbf16>
    %c4 = arith.constant 4 : index
    %c0_24 = arith.constant 0 : index
    %c0_25 = arith.constant 0 : index
    %25 = vector.load %arg2[%c4, %c0_24, %c0_25] : memref<9x128x128xbf16, #tpu.memory_space<vmem>>, vector<1x128x128xbf16>
    %26 = vector.shape_cast %25 : vector<1x128x128xbf16> to vector<128x128xbf16>
    %cst_26 = arith.constant dense<0.000000e+00> : vector<324x128xf32>
    %27 = tpu.matmul %24, %26, %cst_26 {dimension_numbers = #tpu.dot_dimension_numbers<[1], [0], [0], [1], [0, 0, 1, 1], [], []>} : vector<324x128xbf16>, vector<128x128xbf16>, vector<324x128xf32> -> vector<324x128xf32>
    %28 = arith.addf %22, %27 : vector<324x128xf32>
    %c0_27 = arith.constant 0 : index
    %c20 = arith.constant 20 : index
    %c0_28 = arith.constant 0 : index
    %29 = vector.load %arg1[%c0_27, %c20, %c0_28] : memref<1x362x128xbf16, #tpu.memory_space<vmem>>, vector<1x324x128xbf16>
    %30 = vector.shape_cast %29 : vector<1x324x128xbf16> to vector<324x128xbf16>
    %c5 = arith.constant 5 : index
    %c0_29 = arith.constant 0 : index
    %c0_30 = arith.constant 0 : index
    %31 = vector.load %arg2[%c5, %c0_29, %c0_30] : memref<9x128x128xbf16, #tpu.memory_space<vmem>>, vector<1x128x128xbf16>
    %32 = vector.shape_cast %31 : vector<1x128x128xbf16> to vector<128x128xbf16>
    %cst_31 = arith.constant dense<0.000000e+00> : vector<324x128xf32>
    %33 = tpu.matmul %30, %32, %cst_31 {dimension_numbers = #tpu.dot_dimension_numbers<[1], [0], [0], [1], [0, 0, 1, 1], [], []>} : vector<324x128xbf16>, vector<128x128xbf16>, vector<324x128xf32> -> vector<324x128xf32>
    %34 = arith.addf %28, %33 : vector<324x128xf32>
    %c0_32 = arith.constant 0 : index
    %c36 = arith.constant 36 : index
    %c0_33 = arith.constant 0 : index
    %35 = vector.load %arg1[%c0_32, %c36, %c0_33] : memref<1x362x128xbf16, #tpu.memory_space<vmem>>, vector<1x324x128xbf16>
    %36 = vector.shape_cast %35 : vector<1x324x128xbf16> to vector<324x128xbf16>
    %c6 = arith.constant 6 : index
    %c0_34 = arith.constant 0 : index
    %c0_35 = arith.constant 0 : index
    %37 = vector.load %arg2[%c6, %c0_34, %c0_35] : memref<9x128x128xbf16, #tpu.memory_space<vmem>>, vector<1x128x128xbf16>
    %38 = vector.shape_cast %37 : vector<1x128x128xbf16> to vector<128x128xbf16>
    %cst_36 = arith.constant dense<0.000000e+00> : vector<324x128xf32>
    %39 = tpu.matmul %36, %38, %cst_36 {dimension_numbers = #tpu.dot_dimension_numbers<[1], [0], [0], [1], [0, 0, 1, 1], [], []>} : vector<324x128xbf16>, vector<128x128xbf16>, vector<324x128xf32> -> vector<324x128xf32>
    %40 = arith.addf %34, %39 : vector<324x128xf32>
    %c0_37 = arith.constant 0 : index
    %c37 = arith.constant 37 : index
    %c0_38 = arith.constant 0 : index
    %41 = vector.load %arg1[%c0_37, %c37, %c0_38] : memref<1x362x128xbf16, #tpu.memory_space<vmem>>, vector<1x324x128xbf16>
    %42 = vector.shape_cast %41 : vector<1x324x128xbf16> to vector<324x128xbf16>
    %c7 = arith.constant 7 : index
    %c0_39 = arith.constant 0 : index
    %c0_40 = arith.constant 0 : index
    %43 = vector.load %arg2[%c7, %c0_39, %c0_40] : memref<9x128x128xbf16, #tpu.memory_space<vmem>>, vector<1x128x128xbf16>
    %44 = vector.shape_cast %43 : vector<1x128x128xbf16> to vector<128x128xbf16>
    %cst_41 = arith.constant dense<0.000000e+00> : vector<324x128xf32>
    %45 = tpu.matmul %42, %44, %cst_41 {dimension_numbers = #tpu.dot_dimension_numbers<[1], [0], [0], [1], [0, 0, 1, 1], [], []>} : vector<324x128xbf16>, vector<128x128xbf16>, vector<324x128xf32> -> vector<324x128xf32>
    %46 = arith.addf %40, %45 : vector<324x128xf32>
    %c0_42 = arith.constant 0 : index
    %c38 = arith.constant 38 : index
    %c0_43 = arith.constant 0 : index
    %47 = vector.load %arg1[%c0_42, %c38, %c0_43] : memref<1x362x128xbf16, #tpu.memory_space<vmem>>, vector<1x324x128xbf16>
    %48 = vector.shape_cast %47 : vector<1x324x128xbf16> to vector<324x128xbf16>
    %c8 = arith.constant 8 : index
    %c0_44 = arith.constant 0 : index
    %c0_45 = arith.constant 0 : index
    %49 = vector.load %arg2[%c8, %c0_44, %c0_45] : memref<9x128x128xbf16, #tpu.memory_space<vmem>>, vector<1x128x128xbf16>
    %50 = vector.shape_cast %49 : vector<1x128x128xbf16> to vector<128x128xbf16>
    %cst_46 = arith.constant dense<0.000000e+00> : vector<324x128xf32>
    %51 = tpu.matmul %48, %50, %cst_46 {dimension_numbers = #tpu.dot_dimension_numbers<[1], [0], [0], [1], [0, 0, 1, 1], [], []>} : vector<324x128xbf16>, vector<128x128xbf16>, vector<324x128xf32> -> vector<324x128xf32>
    %52 = arith.addf %46, %51 : vector<324x128xf32>
    %c0_47 = arith.constant 0 : index
    %c0_48 = arith.constant 0 : index
    %53 = vector.load %arg3[%c0_47, %c0_48] : memref<1x128xf32, #tpu.memory_space<vmem>>, vector<1x128xf32>
    %54 = vector.broadcast %53 : vector<1x128xf32> to vector<324x128xf32>
    %55 = arith.addf %52, %54 : vector<324x128xf32>
    %cst_49 = arith.constant 0.000000e+00 : f32
    %56 = vector.broadcast %cst_49 : f32 to vector<324x128xf32>
    %57 = arith.maximumf %55, %56 : vector<324x128xf32>
    %c0_50 = arith.constant 0 : index
    %c0_51 = arith.constant 0 : index
    %58 = vector.load %arg6[%c0_50, %c0_51] : memref<324x1xf32, #tpu.memory_space<vmem>>, vector<324x1xf32>
    %59 = vector.broadcast %58 : vector<324x1xf32> to vector<324x128xf32>
    %60 = arith.mulf %57, %59 : vector<324x128xf32>
    %cst_52 = arith.constant 0.000000e+00 : bf16
    %61 = vector.broadcast %cst_52 : bf16 to vector<19x128xbf16>
    %c0_53 = arith.constant 0 : index
    %c0_54 = arith.constant 0 : index
    %62 = vector.load %arg8[%c0_53, %c0_54] : memref<362x128xbf16, #tpu.memory_space<vmem>>, vector<19x128xbf16>
    tpu.vector_store %arg8[%c0_53, %c0_54], %61 {strides = array<i32>} : memref<362x128xbf16, #tpu.memory_space<vmem>>, vector<19x128xbf16>,
    %cst_55 = arith.constant 0.000000e+00 : bf16
    %63 = vector.broadcast %cst_55 : bf16 to vector<19x128xbf16>
    %c343 = arith.constant 343 : index
    %c0_56 = arith.constant 0 : index
    %64 = vector.load %arg8[%c343, %c0_56] : memref<362x128xbf16, #tpu.memory_space<vmem>>, vector<19x128xbf16>
    tpu.vector_store %arg8[%c343, %c0_56], %63 {strides = array<i32>} : memref<362x128xbf16, #tpu.memory_space<vmem>>, vector<19x128xbf16>,
    %65 = arith.truncf %60 : vector<324x128xf32> to vector<324x128xbf16>
    %c19_57 = arith.constant 19 : index
    %c0_58 = arith.constant 0 : index
    %66 = vector.load %arg8[%c19_57, %c0_58] : memref<362x128xbf16, #tpu.memory_space<vmem>>, vector<324x128xbf16>
    tpu.vector_store %arg8[%c19_57, %c0_58], %65 {strides = array<i32>} : memref<362x128xbf16, #tpu.memory_space<vmem>>, vector<324x128xbf16>,
    %c0_59 = arith.constant 0 : index
    %c0_60 = arith.constant 0 : index
    %67 = vector.load %arg8[%c0_59, %c0_60] : memref<362x128xbf16, #tpu.memory_space<vmem>>, vector<324x128xbf16>
    %c0_61 = arith.constant 0 : index
    %c0_62 = arith.constant 0 : index
    %c0_63 = arith.constant 0 : index
    %68 = vector.load %arg4[%c0_61, %c0_62, %c0_63] : memref<9x128x128xbf16, #tpu.memory_space<vmem>>, vector<1x128x128xbf16>
    %69 = vector.shape_cast %68 : vector<1x128x128xbf16> to vector<128x128xbf16>
    %cst_64 = arith.constant dense<0.000000e+00> : vector<324x128xf32>
    %70 = tpu.matmul %67, %69, %cst_64 {dimension_numbers = #tpu.dot_dimension_numbers<[1], [0], [0], [1], [0, 0, 1, 1], [], []>} : vector<324x128xbf16>, vector<128x128xbf16>, vector<324x128xf32> -> vector<324x128xf32>
    %c1_65 = arith.constant 1 : index
    %c0_66 = arith.constant 0 : index
    %71 = vector.load %arg8[%c1_65, %c0_66] : memref<362x128xbf16, #tpu.memory_space<vmem>>, vector<324x128xbf16>
    %c1_67 = arith.constant 1 : index
    %c0_68 = arith.constant 0 : index
    %c0_69 = arith.constant 0 : index
    %72 = vector.load %arg4[%c1_67, %c0_68, %c0_69] : memref<9x128x128xbf16, #tpu.memory_space<vmem>>, vector<1x128x128xbf16>
    %73 = vector.shape_cast %72 : vector<1x128x128xbf16> to vector<128x128xbf16>
    %cst_70 = arith.constant dense<0.000000e+00> : vector<324x128xf32>
    %74 = tpu.matmul %71, %73, %cst_70 {dimension_numbers = #tpu.dot_dimension_numbers<[1], [0], [0], [1], [0, 0, 1, 1], [], []>} : vector<324x128xbf16>, vector<128x128xbf16>, vector<324x128xf32> -> vector<324x128xf32>
    %75 = arith.addf %70, %74 : vector<324x128xf32>
    %c2_71 = arith.constant 2 : index
    %c0_72 = arith.constant 0 : index
    %76 = vector.load %arg8[%c2_71, %c0_72] : memref<362x128xbf16, #tpu.memory_space<vmem>>, vector<324x128xbf16>
    %c2_73 = arith.constant 2 : index
    %c0_74 = arith.constant 0 : index
    %c0_75 = arith.constant 0 : index
    %77 = vector.load %arg4[%c2_73, %c0_74, %c0_75] : memref<9x128x128xbf16, #tpu.memory_space<vmem>>, vector<1x128x128xbf16>
    %78 = vector.shape_cast %77 : vector<1x128x128xbf16> to vector<128x128xbf16>
    %cst_76 = arith.constant dense<0.000000e+00> : vector<324x128xf32>
    %79 = tpu.matmul %76, %78, %cst_76 {dimension_numbers = #tpu.dot_dimension_numbers<[1], [0], [0], [1], [0, 0, 1, 1], [], []>} : vector<324x128xbf16>, vector<128x128xbf16>, vector<324x128xf32> -> vector<324x128xf32>
    %80 = arith.addf %75, %79 : vector<324x128xf32>
    %c18_77 = arith.constant 18 : index
    %c0_78 = arith.constant 0 : index
    %81 = vector.load %arg8[%c18_77, %c0_78] : memref<362x128xbf16, #tpu.memory_space<vmem>>, vector<324x128xbf16>
    %c3_79 = arith.constant 3 : index
    %c0_80 = arith.constant 0 : index
    %c0_81 = arith.constant 0 : index
    %82 = vector.load %arg4[%c3_79, %c0_80, %c0_81] : memref<9x128x128xbf16, #tpu.memory_space<vmem>>, vector<1x128x128xbf16>
    %83 = vector.shape_cast %82 : vector<1x128x128xbf16> to vector<128x128xbf16>
    %cst_82 = arith.constant dense<0.000000e+00> : vector<324x128xf32>
    %84 = tpu.matmul %81, %83, %cst_82 {dimension_numbers = #tpu.dot_dimension_numbers<[1], [0], [0], [1], [0, 0, 1, 1], [], []>} : vector<324x128xbf16>, vector<128x128xbf16>, vector<324x128xf32> -> vector<324x128xf32>
    %85 = arith.addf %80, %84 : vector<324x128xf32>
    %c19_83 = arith.constant 19 : index
    %c0_84 = arith.constant 0 : index
    %86 = vector.load %arg8[%c19_83, %c0_84] : memref<362x128xbf16, #tpu.memory_space<vmem>>, vector<324x128xbf16>
    %c4_85 = arith.constant 4 : index
    %c0_86 = arith.constant 0 : index
    %c0_87 = arith.constant 0 : index
    %87 = vector.load %arg4[%c4_85, %c0_86, %c0_87] : memref<9x128x128xbf16, #tpu.memory_space<vmem>>, vector<1x128x128xbf16>
    %88 = vector.shape_cast %87 : vector<1x128x128xbf16> to vector<128x128xbf16>
    %cst_88 = arith.constant dense<0.000000e+00> : vector<324x128xf32>
    %89 = tpu.matmul %86, %88, %cst_88 {dimension_numbers = #tpu.dot_dimension_numbers<[1], [0], [0], [1], [0, 0, 1, 1], [], []>} : vector<324x128xbf16>, vector<128x128xbf16>, vector<324x128xf32> -> vector<324x128xf32>
    %90 = arith.addf %85, %89 : vector<324x128xf32>
    %c20_89 = arith.constant 20 : index
    %c0_90 = arith.constant 0 : index
    %91 = vector.load %arg8[%c20_89, %c0_90] : memref<362x128xbf16, #tpu.memory_space<vmem>>, vector<324x128xbf16>
    %c5_91 = arith.constant 5 : index
    %c0_92 = arith.constant 0 : index
    %c0_93 = arith.constant 0 : index
    %92 = vector.load %arg4[%c5_91, %c0_92, %c0_93] : memref<9x128x128xbf16, #tpu.memory_space<vmem>>, vector<1x128x128xbf16>
    %93 = vector.shape_cast %92 : vector<1x128x128xbf16> to vector<128x128xbf16>
    %cst_94 = arith.constant dense<0.000000e+00> : vector<324x128xf32>
    %94 = tpu.matmul %91, %93, %cst_94 {dimension_numbers = #tpu.dot_dimension_numbers<[1], [0], [0], [1], [0, 0, 1, 1], [], []>} : vector<324x128xbf16>, vector<128x128xbf16>, vector<324x128xf32> -> vector<324x128xf32>
    %95 = arith.addf %90, %94 : vector<324x128xf32>
    %c36_95 = arith.constant 36 : index
    %c0_96 = arith.constant 0 : index
    %96 = vector.load %arg8[%c36_95, %c0_96] : memref<362x128xbf16, #tpu.memory_space<vmem>>, vector<324x128xbf16>
    %c6_97 = arith.constant 6 : index
    %c0_98 = arith.constant 0 : index
    %c0_99 = arith.constant 0 : index
    %97 = vector.load %arg4[%c6_97, %c0_98, %c0_99] : memref<9x128x128xbf16, #tpu.memory_space<vmem>>, vector<1x128x128xbf16>
    %98 = vector.shape_cast %97 : vector<1x128x128xbf16> to vector<128x128xbf16>
    %cst_100 = arith.constant dense<0.000000e+00> : vector<324x128xf32>
    %99 = tpu.matmul %96, %98, %cst_100 {dimension_numbers = #tpu.dot_dimension_numbers<[1], [0], [0], [1], [0, 0, 1, 1], [], []>} : vector<324x128xbf16>, vector<128x128xbf16>, vector<324x128xf32> -> vector<324x128xf32>
    %100 = arith.addf %95, %99 : vector<324x128xf32>
    %c37_101 = arith.constant 37 : index
    %c0_102 = arith.constant 0 : index
    %101 = vector.load %arg8[%c37_101, %c0_102] : memref<362x128xbf16, #tpu.memory_space<vmem>>, vector<324x128xbf16>
    %c7_103 = arith.constant 7 : index
    %c0_104 = arith.constant 0 : index
    %c0_105 = arith.constant 0 : index
    %102 = vector.load %arg4[%c7_103, %c0_104, %c0_105] : memref<9x128x128xbf16, #tpu.memory_space<vmem>>, vector<1x128x128xbf16>
    %103 = vector.shape_cast %102 : vector<1x128x128xbf16> to vector<128x128xbf16>
    %cst_106 = arith.constant dense<0.000000e+00> : vector<324x128xf32>
    %104 = tpu.matmul %101, %103, %cst_106 {dimension_numbers = #tpu.dot_dimension_numbers<[1], [0], [0], [1], [0, 0, 1, 1], [], []>} : vector<324x128xbf16>, vector<128x128xbf16>, vector<324x128xf32> -> vector<324x128xf32>
    %105 = arith.addf %100, %104 : vector<324x128xf32>
    %c38_107 = arith.constant 38 : index
    %c0_108 = arith.constant 0 : index
    %106 = vector.load %arg8[%c38_107, %c0_108] : memref<362x128xbf16, #tpu.memory_space<vmem>>, vector<324x128xbf16>
    %c8_109 = arith.constant 8 : index
    %c0_110 = arith.constant 0 : index
    %c0_111 = arith.constant 0 : index
    %107 = vector.load %arg4[%c8_109, %c0_110, %c0_111] : memref<9x128x128xbf16, #tpu.memory_space<vmem>>, vector<1x128x128xbf16>
    %108 = vector.shape_cast %107 : vector<1x128x128xbf16> to vector<128x128xbf16>
    %cst_112 = arith.constant dense<0.000000e+00> : vector<324x128xf32>
    %109 = tpu.matmul %106, %108, %cst_112 {dimension_numbers = #tpu.dot_dimension_numbers<[1], [0], [0], [1], [0, 0, 1, 1], [], []>} : vector<324x128xbf16>, vector<128x128xbf16>, vector<324x128xf32> -> vector<324x128xf32>
    %110 = arith.addf %105, %109 : vector<324x128xf32>
    %c0_113 = arith.constant 0 : index
    %c19_114 = arith.constant 19 : index
    %c0_115 = arith.constant 0 : index
    %111 = vector.load %arg1[%c0_113, %c19_114, %c0_115] : memref<1x362x128xbf16, #tpu.memory_space<vmem>>, vector<1x324x128xbf16>
    %112 = vector.shape_cast %111 : vector<1x324x128xbf16> to vector<324x128xbf16>
    %113 = arith.extf %112 : vector<324x128xbf16> to vector<324x128xf32>
    %c0_116 = arith.constant 0 : index
    %c0_117 = arith.constant 0 : index
    %114 = vector.load %arg5[%c0_116, %c0_117] : memref<1x128xf32, #tpu.memory_space<vmem>>, vector<1x128xf32>
    %115 = vector.broadcast %114 : vector<1x128xf32> to vector<324x128xf32>
    %116 = arith.addf %110, %115 : vector<324x128xf32>
    %117 = arith.addf %116, %113 : vector<324x128xf32>
    %cst_118 = arith.constant 0.000000e+00 : f32
    %118 = vector.broadcast %cst_118 : f32 to vector<324x128xf32>
    %119 = arith.maximumf %117, %118 : vector<324x128xf32>
    %c0_119 = arith.constant 0 : index
    %c0_120 = arith.constant 0 : index
    %c0_121 = arith.constant 0 : index
    %120 = vector.load %arg7[%c0_119, %c0_120, %c0_121] : memref<1x324x128xf32, #tpu.memory_space<vmem>>, vector<1x324x128xf32>
    %121 = vector.shape_cast %120 : vector<1x324x128xf32> to vector<324x128xf32>
    %122 = vector.shape_cast %119 : vector<324x128xf32> to vector<1x324x128xf32>
    tpu.vector_store %arg7[%c0_119, %c0_120, %c0_121], %122 {strides = array<i32>} : memref<1x324x128xf32, #tpu.memory_space<vmem>>, vector<1x324x128xf32>,
    return
  }
  func.func @transform_0(%arg0: i32) -> (i32, i32, i32) {
    %c0_i32 = arith.constant 0 : i32
    %c0_i32_0 = arith.constant 0 : i32
    %c0_i32_1 = arith.constant 0 : i32
    return %arg0, %c0_i32, %c0_i32_0 : i32, i32, i32
  }
  func.func @transform_1(%arg0: i32) -> (i32, i32, i32) {
    %c0_i32 = arith.constant 0 : i32
    %c0_i32_0 = arith.constant 0 : i32
    %c0_i32_1 = arith.constant 0 : i32
    %c0_i32_2 = arith.constant 0 : i32
    return %c0_i32, %c0_i32_0, %c0_i32_1 : i32, i32, i32
  }
  func.func @transform_2(%arg0: i32) -> (i32, i32) {
    %c0_i32 = arith.constant 0 : i32
    %c0_i32_0 = arith.constant 0 : i32
    %c0_i32_1 = arith.constant 0 : i32
    return %c0_i32, %c0_i32_0 : i32, i32
  }
  func.func @transform_3(%arg0: i32) -> (i32, i32, i32) {
    %c0_i32 = arith.constant 0 : i32
    %c0_i32_0 = arith.constant 0 : i32
    %c0_i32_1 = arith.constant 0 : i32
    %c0_i32_2 = arith.constant 0 : i32
    return %c0_i32, %c0_i32_0, %c0_i32_1 : i32, i32, i32
  }
  func.func @transform_4(%arg0: i32) -> (i32, i32) {
    %c0_i32 = arith.constant 0 : i32
    %c0_i32_0 = arith.constant 0 : i32
    %c0_i32_1 = arith.constant 0 : i32
    return %c0_i32, %c0_i32_0 : i32, i32
  }
  func.func @transform_5(%arg0: i32) -> (i32, i32) {
    %c0_i32 = arith.constant 0 : i32
    %c0_i32_0 = arith.constant 0 : i32
    %c0_i32_1 = arith.constant 0 : i32
    return %c0_i32, %c0_i32_0 : i32, i32
  }
  func.func @transform_6(%arg0: i32) -> (i32, i32, i32) {
    %c0_i32 = arith.constant 0 : i32
    %c0_i32_0 = arith.constant 0 : i32
    %c0_i32_1 = arith.constant 0 : i32
    return %arg0, %c0_i32, %c0_i32_0 : i32, i32, i32
  }
}

</mosaic_0001>

<llo_original>
// kernel: basic_block_forward.1
$region0: #{basic_block_forward.1}
  #allocation0 [shape = 'u32[]', space=smem, size = 0x4, offset = 0x4, fixed_abs, tag = 'smem constant byte address 0x4 - core index']
  #allocation1 [shape = 'u32[144,128]{1,0:T(1,128)}', space=vmem, size = 0x12000, scoped, tag = 'internal scratch']
  #allocation2 [shape = 'bf16[362,128]{1,0:T(8,128)(2,1)}', space=vmem, size = 0x17000, scoped, tag = 'scratch operand']
  %s0 = inlined_call_operand.vmem [shape: bf16[2,362,128], index: 0, kind: input, shape index: {}]
  %s1 = inlined_call_operand.vmem [shape: bf16[9,128,128], index: 1, kind: input, shape index: {}]
  %s2 = inlined_call_operand.vmem [shape: f32[1,128], index: 2, kind: input, shape index: {}]
  %s3 = inlined_call_operand.vmem [shape: bf16[9,128,128], index: 3, kind: input, shape index: {}]
  %s4 = inlined_call_operand.vmem [shape: f32[1,128], index: 4, kind: input, shape index: {}]
  %s5 = inlined_call_operand.vmem [shape: f32[324,1], index: 5, kind: input, shape index: {}]
  %s6 = inlined_call_operand.vmem [shape: f32[2,324,128], index: 6, kind: output, shape index: {}]
  %s7 = sld [smem:[#allocation0]]
  $region57: #{basic_block_forward.1} parent=0
    _
  %s9 = ssub.s32 1, %s7
  %s10 = scalar_select 0, %s9, %s7
  loop: start=0, step=1, limit=4
  $region2: #{basic_block_forward.1} parent=0 // loop_pre_header
    _
  $region3: #{basic_block_forward.1} parent=0 // loop_header
    %s12 = sphi 0, %s16
    %p13 = scmp.ge.s32.totalorder %s12, 4
    %s22 = sphi 0, %s24
    %s25 = sphi 0, %s22
    %s26 = sphi 0, %s25
    %s42 = sphi 0, %s26
    %s46 = sphi 0, %s46
    %s48 = sphi 0, %s46
    %s49 = sphi 0, %s48
    %s63 = sphi 0, %s49
    %s67 = sphi 0, %s67
    %s69 = sphi 0, %s67
    %s70 = sphi 0, %s69
    %s84 = sphi 0, %s70
    %s88 = sphi 0, %s88
    %s90 = sphi 0, %s88
    %s91 = sphi 0, %s90
    %s105 = sphi 0, %s91
    %s109 = sphi 0, %s109
    %s111 = sphi 0, %s109
    %s112 = sphi 0, %s111
    %s126 = sphi 0, %s112
    %s130 = sphi 0, %s130
    %s132 = sphi 0, %s130
    %s133 = sphi 0, %s132
    %s147 = sphi 0, %s133
    %s153 = sphi 0, %s155
    %s156 = sphi 0, %s153
    %s157 = sphi 0, %s156
    %s173 = sphi 0, %s157
  $region4: #{basic_block_forward.1} parent=0 // loop_header_branch
    %15 = sbr.rel (%p13) target = $region8
  $region5: #{basic_block_forward.1} parent=0 // loop_body
    %s17 = ssub.s32 %s12, 1
    %s18 = ssub.s32 %s12, 2
    %s19 = sadd.s32 %s12, 1
    %s20 = ssub.s32 %s12, %s19
    %p21 = scmp.eq.s32.totalorder %s20, 0
    %s23 = sadd.s32 %s22, 1
    %s24 = scalar_select %p21, %s22, %s23
    %p27 = pneg %p21
    %p28 = scmp.eq.s32.totalorder %s12, 1
    %p29 = por %p27, %p28
    %p30 = scmp.ne.s32.totalorder %s22, %s25
    %p31 = scmp.eq.s32.totalorder %s12, 0
    %p32 = por %p30, %p31
    %p33 = scmp.ne.s32.totalorder %s22, %s25
    %p34 = scmp.eq.s32.totalorder %s17, 1
    %p35 = por %p33, %p34
    %p36 = scmp.ne.s32.totalorder %s25, %s26
    %p37 = scmp.eq.s32.totalorder %s17, 0
    %p38 = por %p36, %p37
    %p39 = scmp.ne.s32.totalorder %s25, %s26
    %p40 = scmp.eq.s32.totalorder %s18, 1
    %p41 = por %p39, %p40
    %p43 = scmp.ne.s32.totalorder %s26, %s42
    %p44 = scmp.eq.s32.totalorder %s18, 0
    %p45 = por %p43, %p44
    %s47 = sadd.s32 %s46, 1
    %p50 = scmp.eq.s32.totalorder %s12, 1
    %p51 = scmp.ne.s32.totalorder %s46, %s48
    %p52 = scmp.eq.s32.totalorder %s12, 0
    %p53 = por %p51, %p52
    %p54 = scmp.ne.s32.totalorder %s46, %s48
    %p55 = scmp.eq.s32.totalorder %s17, 1
    %p56 = por %p54, %p55
    %p57 = scmp.ne.s32.totalorder %s48, %s49
    %p58 = scmp.eq.s32.totalorder %s17, 0
    %p59 = por %p57, %p58
    %p60 = scmp.ne.s32.totalorder %s48, %s49
    %p61 = scmp.eq.s32.totalorder %s18, 1
    %p62 = por %p60, %p61
    %p64 = scmp.ne.s32.totalorder %s49, %s63
    %p65 = scmp.eq.s32.totalorder %s18, 0
    %p66 = por %p64, %p65
    %s68 = sadd.s32 %s67, 1
    %p71 = scmp.eq.s32.totalorder %s12, 1
    %p72 = scmp.ne.s32.totalorder %s67, %s69
    %p73 = scmp.eq.s32.totalorder %s12, 0
    %p74 = por %p72, %p73
    %p75 = scmp.ne.s32.totalorder %s67, %s69
    %p76 = scmp.eq.s32.totalorder %s17, 1
    %p77 = por %p75, %p76
    %p78 = scmp.ne.s32.totalorder %s69, %s70
    %p79 = scmp.eq.s32.totalorder %s17, 0
    %p80 = por %p78, %p79
    %p81 = scmp.ne.s32.totalorder %s69, %s70
    %p82 = scmp.eq.s32.totalorder %s18, 1
    %p83 = por %p81, %p82
    %p85 = scmp.ne.s32.totalorder %s70, %s84
    %p86 = scmp.eq.s32.totalorder %s18, 0
    %p87 = por %p85, %p86
    %s89 = sadd.s32 %s88, 1
    %p92 = scmp.eq.s32.totalorder %s12, 1
    %p93 = scmp.ne.s32.totalorder %s88, %s90
    %p94 = scmp.eq.s32.totalorder %s12, 0
    %p95 = por %p93, %p94
    %p96 = scmp.ne.s32.totalorder %s88, %s90
    %p97 = scmp.eq.s32.totalorder %s17, 1
    %p98 = por %p96, %p97
    %p99 = scmp.ne.s32.totalorder %s90, %s91
    %p100 = scmp.eq.s32.totalorder %s17, 0
    %p101 = por %p99, %p100
    %p102 = scmp.ne.s32.totalorder %s90, %s91
    %p103 = scmp.eq.s32.totalorder %s18, 1
    %p104 = por %p102, %p103
    %p106 = scmp.ne.s32.totalorder %s91, %s105
    %p107 = scmp.eq.s32.totalorder %s18, 0
    %p108 = por %p106, %p107
    %s110 = sadd.s32 %s109, 1
    %p113 = scmp.eq.s32.totalorder %s12, 1
    %p114 = scmp.ne.s32.totalorder %s109, %s111
    %p115 = scmp.eq.s32.totalorder %s12, 0
    %p116 = por %p114, %p115
    %p117 = scmp.ne.s32.totalorder %s109, %s111
    %p118 = scmp.eq.s32.totalorder %s17, 1
    %p119 = por %p117, %p118
    %p120 = scmp.ne.s32.totalorder %s111, %s112
    %p121 = scmp.eq.s32.totalorder %s17, 0
    %p122 = por %p120, %p121
    %p123 = scmp.ne.s32.totalorder %s111, %s112
    %p124 = scmp.eq.s32.totalorder %s18, 1
    %p125 = por %p123, %p124
    %p127 = scmp.ne.s32.totalorder %s112, %s126
    %p128 = scmp.eq.s32.totalorder %s18, 0
    %p129 = por %p127, %p128
    %s131 = sadd.s32 %s130, 1
    %p134 = scmp.eq.s32.totalorder %s12, 1
    %p135 = scmp.ne.s32.totalorder %s130, %s132
    %p136 = scmp.eq.s32.totalorder %s12, 0
    %p137 = por %p135, %p136
    %p138 = scmp.ne.s32.totalorder %s130, %s132
    %p139 = scmp.eq.s32.totalorder %s17, 1
    %p140 = por %p138, %p139
    %p141 = scmp.ne.s32.totalorder %s132, %s133
    %p142 = scmp.eq.s32.totalorder %s17, 0
    %p143 = por %p141, %p142
    %p144 = scmp.ne.s32.totalorder %s132, %s133
    %p145 = scmp.eq.s32.totalorder %s18, 1
    %p146 = por %p144, %p145
    %p148 = scmp.ne.s32.totalorder %s133, %s147
    %p149 = scmp.eq.s32.totalorder %s18, 0
    %p150 = por %p148, %p149
    %s151 = ssub.s32 %s12, %s19
    %p152 = scmp.eq.s32.totalorder %s151, 0
    %s154 = sadd.s32 %s153, 1
    %s155 = scalar_select %p152, %s153, %s154
    %p158 = pneg %p152
    %p159 = scmp.eq.s32.totalorder %s12, 1
    %p160 = por %p158, %p159
    %p161 = scmp.ne.s32.totalorder %s153, %s156
    %p162 = scmp.eq.s32.totalorder %s12, 0
    %p163 = por %p161, %p162
    %p164 = scmp.ne.s32.totalorder %s153, %s156
    %p165 = scmp.eq.s32.totalorder %s17, 1
    %p166 = por %p164, %p165
    %p167 = scmp.ne.s32.totalorder %s156, %s157
    %p168 = scmp.eq.s32.totalorder %s17, 0
    %p169 = por %p167, %p168
    %p170 = scmp.ne.s32.totalorder %s156, %s157
    %p171 = scmp.eq.s32.totalorder %s18, 1
    %p172 = por %p170, %p171
    %p174 = scmp.ne.s32.totalorder %s157, %s173
    %p175 = scmp.eq.s32.totalorder %s18, 0
    %p176 = por %p174, %p175
    %p177 = scmp.le.s32.totalorder 1, %s12
    %p178 = scmp.lt.s32.totalorder %s12, 3
    %p179 = pnand %p177, %p178
    %p180 = pneg %p179
    // Predicated region
    $region9: #{basic_block_forward.1} parent=5 // pred_check
      _
    $region10: #{basic_block_forward.1} parent=5 // pred_check_branch
      %182 = sbr.rel (%p179) target = $region12
    $region11: #{basic_block_forward.1} parent=5 // pred_region
      %s183 = ssub.s32 %s12, 1
      // Predicated region
      $region13: #{basic_block_forward.1} parent=11 // pred_check
        %p184 = pneg %p59
      $region14: #{basic_block_forward.1} parent=11 // pred_check_branch
        %186 = sbr.rel (%p184) target = $region16
      $region15: #{basic_block_forward.1} parent=11 // pred_region
        _
      $region16: #{basic_block_forward.1} parent=11 // pred_fallthru
        _
      // Predicated region
      $region17: #{basic_block_forward.1} parent=11 // pred_check
        %p187 = pneg %p80
      $region18: #{basic_block_forward.1} parent=11 // pred_check_branch
        %189 = sbr.rel (%p187) target = $region20
      $region19: #{basic_block_forward.1} parent=11 // pred_region
        _
      $region20: #{basic_block_forward.1} parent=11 // pred_fallthru
        _
      // Predicated region
      $region21: #{basic_block_forward.1} parent=11 // pred_check
        %p190 = pneg %p101
      $region22: #{basic_block_forward.1} parent=11 // pred_check_branch
        %192 = sbr.rel (%p190) target = $region24
      $region23: #{basic_block_forward.1} parent=11 // pred_region
        _
      $region24: #{basic_block_forward.1} parent=11 // pred_fallthru
        _
      // Predicated region
      $region25: #{basic_block_forward.1} parent=11 // pred_check
        %p193 = pneg %p122
      $region26: #{basic_block_forward.1} parent=11 // pred_check_branch
        %195 = sbr.rel (%p193) target = $region28
      $region27: #{basic_block_forward.1} parent=11 // pred_region
        _
      $region28: #{basic_block_forward.1} parent=11 // pred_fallthru
        _
      // Predicated region
      $region29: #{basic_block_forward.1} parent=11 // pred_check
        %p196 = pneg %p143
      $region30: #{basic_block_forward.1} parent=11 // pred_check_branch
        %198 = sbr.rel (%p196) target = $region32
      $region31: #{basic_block_forward.1} parent=11 // pred_region
        _
      $region32: #{basic_block_forward.1} parent=11 // pred_fallthru
        _
    $region12: #{basic_block_forward.1} parent=5 // pred_fallthru
      _
    %p199 = scmp.lt.s32.totalorder %s12, 2
    // Predicated region
    $region33: #{basic_block_forward.1} parent=5 // pred_check
      %p200 = pneg %p199
    $region34: #{basic_block_forward.1} parent=5 // pred_check_branch
      %202 = sbr.rel (%p200) target = $region36
    $region35: #{basic_block_forward.1} parent=5 // pred_region
      // Predicated region
      $region37: #{basic_block_forward.1} parent=35 // pred_check
        %p203 = pneg %p32
      $region38: #{basic_block_forward.1} parent=35 // pred_check_branch
        %205 = sbr.rel (%p203) target = $region40
      $region39: #{basic_block_forward.1} parent=35 // pred_region
        %p206 = scmp.lt.s32.totalorder %s12, 1
        %s207 = scalar_select %p206, %s12, 1
        %s208 = smul.addr %s207, 46
        %s209 = smul.addr %s208, 4
        %s210 = scalar_lea.vmem %s0, %s209
      $region40: #{basic_block_forward.1} parent=35 // pred_fallthru
        _
    $region36: #{basic_block_forward.1} parent=5 // pred_fallthru
      _
    %p211 = scmp.le.s32.totalorder 1, %s12
    %p212 = scmp.lt.s32.totalorder %s12, 3
    %p213 = pnand %p211, %p212
    %p214 = pneg %p213
    // Predicated region
    $region41: #{basic_block_forward.1} parent=5 // pred_check
      _
    $region42: #{basic_block_forward.1} parent=5 // pred_check_branch
      %216 = sbr.rel (%p213) target = $region44
    $region43: #{basic_block_forward.1} parent=5 // pred_region
      %s217 = ssub.s32 %s12, 1
      %p218 = scmp.lt.s32.totalorder %s17, 1
      %s219 = scalar_select %p218, %s17, 1
      %s220 = smul.addr %s219, 46
      %s221 = smul.addr %s220, 4
      %s222 = scalar_lea.vmem %s0, %s221
      %p223 = pneg %p38
      %p224 = pneg %p35
      %p225 = pneg %p59
      %p226 = pneg %p56
      %p227 = pneg %p80
      %p228 = pneg %p77
      %p229 = pneg %p101
      %p230 = pneg %p98
      %p231 = pneg %p122
      %p232 = pneg %p119
      %p233 = pneg %p143
      %p234 = pneg %p140
      %p235 = pneg %p169
      %p236 = pneg %p166
      %p237 = scmp.lt.s32.totalorder %s17, 1
      %s238 = scalar_select %p237, %s17, 1
      %s239 = smul.addr %s238, 41
      %s240 = smul.addr %s239, 8
      %s241 = scalar_lea.vmem %s6, %s240
      %p242 = scmp.lt.s32.totalorder %s17, 1
      %s243 = scalar_select %p242, %s17, 1
      %s244 = smul.addr %s243, 46
      %s245 = smul.addr %s244, 4
      %s246 = scalar_lea.vmem %s0, %s245
      %p247 = scmp.lt.s32.totalorder %s17, 1
      %s248 = scalar_select %p247, %s17, 1
      %s249 = smul.addr %s248, 41
      %s250 = smul.addr %s249, 8
      %s251 = scalar_lea.vmem %s6, %s250
      %v253 = vld [vmem:[%s246] sm:$0xf]
      %v254 = vld [vmem:[%s246 + $0x4] sm:$0xf]
      %v255 = vld [vmem:[%s246 + $0x8] sm:$0xf]
      %v256 = vld [vmem:[%s246 + $0xc] sm:$0xf]
      %v257 = vld [vmem:[%s246 + $0x10] sm:$0xf]
      %v258 = vld [vmem:[%s246 + $0x14] sm:$0xf]
      %v259 = vld [vmem:[%s246 + $0x18] sm:$0xf]
      %v260 = vld [vmem:[%s246 + $0x1c] sm:$0xf]
      %v261 = vld [vmem:[%s246 + $0x20] sm:$0xf]
      %v262 = vld [vmem:[%s246 + $0x24] sm:$0xf]
      %v263 = vld [vmem:[%s246 + $0x28] sm:$0xf]
      %v264 = vld [vmem:[%s246 + $0x2c] sm:$0xf]
      %v265 = vld [vmem:[%s246 + $0x30] sm:$0xf]
      %v266 = vld [vmem:[%s246 + $0x34] sm:$0xf]
      %v267 = vld [vmem:[%s246 + $0x38] sm:$0xf]
      %v268 = vld [vmem:[%s246 + $0x3c] sm:$0xf]
      %v269 = vld [vmem:[%s246 + $0x40] sm:$0xf]
      %v270 = vld [vmem:[%s246 + $0x44] sm:$0xf]
      %v271 = vld [vmem:[%s246 + $0x48] sm:$0xf]
      %v272 = vld [vmem:[%s246 + $0x4c] sm:$0xf]
      %v273 = vld [vmem:[%s246 + $0x50] sm:$0xf]
      %v274 = vld [vmem:[%s246 + $0x54] sm:$0xf]
      %v275 = vld [vmem:[%s246 + $0x58] sm:$0xf]
      %v276 = vld [vmem:[%s246 + $0x5c] sm:$0xf]
      %v277 = vld [vmem:[%s246 + $0x60] sm:$0xf]
      %v278 = vld [vmem:[%s246 + $0x64] sm:$0xf]
      %v279 = vld [vmem:[%s246 + $0x68] sm:$0xf]
      %v280 = vld [vmem:[%s246 + $0x6c] sm:$0xf]
      %v281 = vld [vmem:[%s246 + $0x70] sm:$0xf]
      %v282 = vld [vmem:[%s246 + $0x74] sm:$0xf]
      %v283 = vld [vmem:[%s246 + $0x78] sm:$0xf]
      %v284 = vld [vmem:[%s246 + $0x7c] sm:$0xf]
      %v285 = vld [vmem:[%s246 + $0x80] sm:$0xf]
      %v286 = vld [vmem:[%s246 + $0x84] sm:$0xf]
      %v287 = vld [vmem:[%s246 + $0x88] sm:$0xf]
      %v288 = vld [vmem:[%s246 + $0x8c] sm:$0xf]
      %v289 = vld [vmem:[%s246 + $0x90] sm:$0xf]
      %v290 = vld [vmem:[%s246 + $0x94] sm:$0xf]
      %v291 = vld [vmem:[%s246 + $0x98] sm:$0xf]
      %v292 = vld [vmem:[%s246 + $0x9c] sm:$0xf]
      %v293 = vld [vmem:[%s246 + $0xa0] sm:$0x3]
      %v294 = vld [vmem:[%s1] sm:$0xf]
      %v295 = vld [vmem:[%s1 + $0x4] sm:$0xf]
      %v296 = vld [vmem:[%s1 + $0x8] sm:$0xf]
      %v297 = vld [vmem:[%s1 + $0xc] sm:$0xf]
      %v298 = vld [vmem:[%s1 + $0x10] sm:$0xf]
      %v299 = vld [vmem:[%s1 + $0x14] sm:$0xf]
      %v300 = vld [vmem:[%s1 + $0x18] sm:$0xf]
      %v301 = vld [vmem:[%s1 + $0x1c] sm:$0xf]
      %v302 = vld [vmem:[%s1 + $0x20] sm:$0xf]
      %v303 = vld [vmem:[%s1 + $0x24] sm:$0xf]
      %v304 = vld [vmem:[%s1 + $0x28] sm:$0xf]
      %v305 = vld [vmem:[%s1 + $0x2c] sm:$0xf]
      %v306 = vld [vmem:[%s1 + $0x30] sm:$0xf]
      %v307 = vld [vmem:[%s1 + $0x34] sm:$0xf]
      %v308 = vld [vmem:[%s1 + $0x38] sm:$0xf]
      %v309 = vld [vmem:[%s1 + $0x3c] sm:$0xf]
      %v310 = vld [vmem:[%s246 + $0xa0] sm:$0x7]
      %s311 = scalar_lea.vmem %s1, 64
      %v312 = vld [vmem:[%s311] sm:$0xf]
      %v313 = vld [vmem:[%s311 + $0x4] sm:$0xf]
      %v314 = vld [vmem:[%s311 + $0x8] sm:$0xf]
      %v315 = vld [vmem:[%s311 + $0xc] sm:$0xf]
      %v316 = vld [vmem:[%s311 + $0x10] sm:$0xf]
      %v317 = vld [vmem:[%s311 + $0x14] sm:$0xf]
      %v318 = vld [vmem:[%s311 + $0x18] sm:$0xf]
      %v319 = vld [vmem:[%s311 + $0x1c] sm:$0xf]
      %v320 = vld [vmem:[%s311 + $0x20] sm:$0xf]
      %v321 = vld [vmem:[%s311 + $0x24] sm:$0xf]
      %v322 = vld [vmem:[%s311 + $0x28] sm:$0xf]
      %v323 = vld [vmem:[%s311 + $0x2c] sm:$0xf]
      %v324 = vld [vmem:[%s311 + $0x30] sm:$0xf]
      %v325 = vld [vmem:[%s311 + $0x34] sm:$0xf]
      %v326 = vld [vmem:[%s311 + $0x38] sm:$0xf]
      %v327 = vld [vmem:[%s311 + $0x3c] sm:$0xf]
      %v369 = vunpack.c.l.b16 %v253
      %v370 = vunpack.c.l.b16 %v254
      %v371 = vunpack.c.l.b16 %v255
      %v372 = vunpack.c.l.b16 %v256
      %v373 = vunpack.c.l.b16 %v257
      %v374 = vunpack.c.l.b16 %v258
      %v375 = vunpack.c.l.b16 %v259
      %v376 = vunpack.c.l.b16 %v260
      %v377 = vunpack.c.l.b16 %v261
      %v378 = vunpack.c.l.b16 %v262
      %v379 = vunpack.c.l.b16 %v263
      %v380 = vunpack.c.l.b16 %v264
      %v381 = vunpack.c.l.b16 %v265
      %v382 = vunpack.c.l.b16 %v266
      %v383 = vunpack.c.l.b16 %v267
      %v384 = vunpack.c.l.b16 %v268
      %v385 = vunpack.c.l.b16 %v269
      %v386 = vunpack.c.l.b16 %v270
      %v387 = vunpack.c.l.b16 %v271
      %v388 = vunpack.c.l.b16 %v272
      %v389 = vunpack.c.l.b16 %v273
      %v390 = vunpack.c.l.b16 %v274
      %v391 = vunpack.c.l.b16 %v275
      %v392 = vunpack.c.l.b16 %v276
      %v393 = vunpack.c.l.b16 %v277
      %v394 = vunpack.c.l.b16 %v278
      %v395 = vunpack.c.l.b16 %v279
      %v396 = vunpack.c.l.b16 %v280
      %v397 = vunpack.c.l.b16 %v281
      %v398 = vunpack.c.l.b16 %v282
      %v399 = vunpack.c.l.b16 %v283
      %v400 = vunpack.c.l.b16 %v284
      %v401 = vunpack.c.l.b16 %v285
      %v402 = vunpack.c.l.b16 %v286
      %v403 = vunpack.c.l.b16 %v287
      %v404 = vunpack.c.l.b16 %v288
      %v405 = vunpack.c.l.b16 %v289
      %v406 = vunpack.c.l.b16 %v290
      %v407 = vunpack.c.l.b16 %v291
      %v408 = vunpack.c.l.b16 %v292
      %v409 = vunpack.c.l.b16 %v310
      %v410 = vpack.c.b16 %v370, %v369
      %v411 = vpack.c.b16 %v372, %v371
      %v412 = vpack.c.b16 %v374, %v373
      %v413 = vpack.c.b16 %v376, %v375
      %v414 = vpack.c.b16 %v378, %v377
      %v415 = vpack.c.b16 %v380, %v379
      %v416 = vpack.c.b16 %v382, %v381
      %v417 = vpack.c.b16 %v384, %v383
      %v418 = vpack.c.b16 %v386, %v385
      %v419 = vpack.c.b16 %v388, %v387
      %v420 = vpack.c.b16 %v390, %v389
      %v421 = vpack.c.b16 %v392, %v391
      %v422 = vpack.c.b16 %v394, %v393
      %v423 = vpack.c.b16 %v396, %v395
      %v424 = vpack.c.b16 %v398, %v397
      %v425 = vpack.c.b16 %v400, %v399
      %v426 = vpack.c.b16 %v402, %v401
      %v427 = vpack.c.b16 %v404, %v403
      %v428 = vpack.c.b16 %v406, %v405
      %v429 = vpack.c.b16 %v408, %v407
      %v430 = vpack.c.b16 %v409, %v409
      %vm431 = vsmask.f32 7424
      %v433 = vshrl.u32 %v410, 16
      %v435 = vshll.u32 %v410, 16
      %v437 = vrot.slane %v435, 1
      %v438 = vor.u32 %v433, %v437
      %v440 = vshll.u32 %v411, 16
      %v442 = vrot.slane %v440, 1
      %v443 = vsel %vm431, %v438, %v442
      %v444 = vshrl.u32 %v411, 16
      %v446 = vor.u32 %v444, %v442
      %v448 = vshll.u32 %v412, 16
      %v450 = vrot.slane %v448, 1
      %v451 = vsel %vm431, %v446, %v450
      %v452 = vshrl.u32 %v412, 16
      %v454 = vor.u32 %v452, %v450
      %v456 = vshll.u32 %v413, 16
      %v458 = vrot.slane %v456, 1
      %v459 = vsel %vm431, %v454, %v458
      %v460 = vshrl.u32 %v413, 16
      %v462 = vor.u32 %v460, %v458
      %v464 = vshll.u32 %v414, 16
      %v466 = vrot.slane %v464, 1
      %v467 = vsel %vm431, %v462, %v466
      %v468 = vshrl.u32 %v414, 16
      %v470 = vor.u32 %v468, %v466
      %v472 = vshll.u32 %v415, 16
      %v474 = vrot.slane %v472, 1
      %v475 = vsel %vm431, %v470, %v474
      %v476 = vshrl.u32 %v415, 16
      %v478 = vor.u32 %v476, %v474
      %v480 = vshll.u32 %v416, 16
      %v482 = vrot.slane %v480, 1
      %v483 = vsel %vm431, %v478, %v482
      %v484 = vshrl.u32 %v416, 16
      %v486 = vor.u32 %v484, %v482
      %v488 = vshll.u32 %v417, 16
      %v490 = vrot.slane %v488, 1
      %v491 = vsel %vm431, %v486, %v490
      %v492 = vshrl.u32 %v417, 16
      %v494 = vor.u32 %v492, %v490
      %v496 = vshll.u32 %v418, 16
      %v498 = vrot.slane %v496, 1
      %v499 = vsel %vm431, %v494, %v498
      %v500 = vshrl.u32 %v418, 16
      %v502 = vor.u32 %v500, %v498
      %v504 = vshll.u32 %v419, 16
      %v506 = vrot.slane %v504, 1
      %v507 = vsel %vm431, %v502, %v506
      %v508 = vshrl.u32 %v419, 16
      %v510 = vor.u32 %v508, %v506
      %v512 = vshll.u32 %v420, 16
      %v514 = vrot.slane %v512, 1
      %v515 = vsel %vm431, %v510, %v514
      %v516 = vshrl.u32 %v420, 16
      %v518 = vor.u32 %v516, %v514
      %v520 = vshll.u32 %v421, 16
      %v522 = vrot.slane %v520, 1
      %v523 = vsel %vm431, %v518, %v522
      %v524 = vshrl.u32 %v421, 16
      %v526 = vor.u32 %v524, %v522
      %v528 = vshll.u32 %v422, 16
      %v530 = vrot.slane %v528, 1
      %v531 = vsel %vm431, %v526, %v530
      %v532 = vshrl.u32 %v422, 16
      %v534 = vor.u32 %v532, %v530
      %v536 = vshll.u32 %v423, 16
      %v538 = vrot.slane %v536, 1
      %v539 = vsel %vm431, %v534, %v538
      %v540 = vshrl.u32 %v423, 16
      %v542 = vor.u32 %v540, %v538
      %v544 = vshll.u32 %v424, 16
      %v546 = vrot.slane %v544, 1
      %v547 = vsel %vm431, %v542, %v546
      %v548 = vshrl.u32 %v424, 16
      %v550 = vor.u32 %v548, %v546
      %v552 = vshll.u32 %v425, 16
      %v554 = vrot.slane %v552, 1
      %v555 = vsel %vm431, %v550, %v554
      %v556 = vshrl.u32 %v425, 16
      %v558 = vor.u32 %v556, %v554
      %v560 = vshll.u32 %v426, 16
      %v562 = vrot.slane %v560, 1
      %v563 = vsel %vm431, %v558, %v562
      %v564 = vshrl.u32 %v426, 16
      %v566 = vor.u32 %v564, %v562
      %v568 = vshll.u32 %v427, 16
      %v570 = vrot.slane %v568, 1
      %v571 = vsel %vm431, %v566, %v570
      %v572 = vshrl.u32 %v427, 16
      %v574 = vor.u32 %v572, %v570
      %v576 = vshll.u32 %v428, 16
      %v578 = vrot.slane %v576, 1
      %v579 = vsel %vm431, %v574, %v578
      %v580 = vshrl.u32 %v428, 16
      %v582 = vor.u32 %v580, %v578
      %v584 = vshll.u32 %v429, 16
      %v586 = vrot.slane %v584, 1
      %v587 = vsel %vm431, %v582, %v586
      %v588 = vshrl.u32 %v429, 16
      %v590 = vor.u32 %v588, %v586
      %v592 = vshll.u32 %v430, 16
      %v594 = vrot.slane %v592, 1
      %v595 = vsel %vm431, %v590, %v594
      %v596 = vshrl.u32 %v430, 16
      %v598 = vor.u32 %v596, %v594
      %v636 = vunpack.c.l.b16 %v312
      %v637 = vunpack.c.l.b16 %v313
      %v638 = vunpack.c.l.b16 %v314
      %v639 = vunpack.c.l.b16 %v315
      %v640 = vunpack.c.l.b16 %v316
      %v641 = vunpack.c.l.b16 %v317
      %v642 = vunpack.c.l.b16 %v318
      %v643 = vunpack.c.l.b16 %v319
      %v644 = vunpack.c.l.b16 %v320
      %v645 = vunpack.c.l.b16 %v321
      %v646 = vunpack.c.l.b16 %v322
      %v647 = vunpack.c.l.b16 %v323
      %v648 = vunpack.c.l.b16 %v324
      %v649 = vunpack.c.l.b16 %v325
      %v650 = vunpack.c.l.b16 %v326
      %v651 = vunpack.c.l.b16 %v327
      %v652 = vpack.c.b16 %v637, %v636
      %v653 = vpack.c.b16 %v639, %v638
      %v654 = vpack.c.b16 %v641, %v640
      %v655 = vpack.c.b16 %v643, %v642
      %v656 = vpack.c.b16 %v645, %v644
      %v657 = vpack.c.b16 %v647, %v646
      %v658 = vpack.c.b16 %v649, %v648
      %v659 = vpack.c.b16 %v651, %v650
      %668 = vmatprep.subr.bf16.mxu0 0
      %669 = vmatpush1.bf16.msra.mxu0 %v659
      %670 = vmatprep.subr.bf16.mxu0 0
      %671 = vmatpush1.bf16.msra.mxu0 %v658
      %672 = vmatprep.subr.bf16.mxu0 0
      %673 = vmatpush1.bf16.msra.mxu0 %v657
      %674 = vmatprep.subr.bf16.mxu0 0
      %675 = vmatpush1.bf16.msra.mxu0 %v656
      %676 = vmatprep.subr.bf16.mxu0 0
      %677 = vmatpush1.bf16.msra.mxu0 %v655
      %678 = vmatprep.subr.bf16.mxu0 0
      %679 = vmatpush1.bf16.msra.mxu0 %v654
      %680 = vmatprep.subr.bf16.mxu0 0
      %681 = vmatpush1.bf16.msra.mxu0 %v653
      %682 = vmatprep.subr.bf16.mxu0 0
      %683 = vmatpush1.bf16.msra.mxu0 %v652
      %684 = vmatprep.subr.bf16.mxu0 0
      %685 = vmatpush2.bf16.msra.mxu0 0
      %686 = vmatprep.subr.bf16.mxu0 0
      %687 = vmatpush2.bf16.msra.mxu0 0
      %688 = vmatprep.subr.bf16.mxu0 0
      %689 = vmatpush2.bf16.msra.mxu0 0
      %690 = vmatprep.subr.bf16.mxu0 0
      %691 = vmatpush2.bf16.msra.mxu0 0
      %692 = vmatprep.subr.bf16.mxu0 0
      %693 = vmatpush2.bf16.msra.mxu0 0
      %694 = vmatprep.subr.bf16.mxu0 0
      %695 = vmatpush2.bf16.msra.mxu0 0
      %696 = vmatprep.subr.bf16.mxu0 0
      %697 = vmatpush2.bf16.msra.mxu0 0
      %698 = vmatprep.subr.bf16.mxu0 0
      %699 = vmatpush2.bf16.msra.mxu0 0
      %700 = vmatprep.mubr.bf16.mxu0 0
      %701 = vmatmul.mubr.bf16.gmra.mxu0 %v443
      %v702 = vpop.f32.mrf.mxu0
      %v703 = vadd.f32 0.0, %v702
      %v704 = vpop.f32.mrf.mxu0
      %v705 = vpop.f32.mrf.mxu0
      %v706 = vadd.f32 0.0, %v705
      %v707 = vpop.f32.mrf.mxu0
      %708 = vmatprep.mubr.bf16.mxu0 0
      %709 = vmatmul.mubr.bf16.gmra.mxu0 %v451
      %v710 = vpop.f32.mrf.mxu0
      %v711 = vadd.f32 0.0, %v710
      %v712 = vpop.f32.mrf.mxu0
      %v713 = vpop.f32.mrf.mxu0
      %v714 = vadd.f32 0.0, %v713
      %v715 = vpop.f32.mrf.mxu0
      %716 = vmatprep.mubr.bf16.mxu0 0
      %717 = vmatmul.mubr.bf16.gmra.mxu0 %v459
      %v718 = vpop.f32.mrf.mxu0
      %v719 = vadd.f32 0.0, %v718
      %v720 = vpop.f32.mrf.mxu0
      %v721 = vpop.f32.mrf.mxu0
      %v722 = vadd.f32 0.0, %v721
      %v723 = vpop.f32.mrf.mxu0
      %724 = vmatprep.mubr.bf16.mxu0 0
      %725 = vmatmul.mubr.bf16.gmra.mxu0 %v467
      %v726 = vpop.f32.mrf.mxu0
      %v727 = vadd.f32 0.0, %v726
      %v728 = vpop.f32.mrf.mxu0
      %v729 = vpop.f32.mrf.mxu0
      %v730 = vadd.f32 0.0, %v729
      %v731 = vpop.f32.mrf.mxu0
      %732 = vmatprep.mubr.bf16.mxu0 0
      %733 = vmatmul.mubr.bf16.gmra.mxu0 %v475
      %v734 = vpop.f32.mrf.mxu0
      %v735 = vadd.f32 0.0, %v734
      %v736 = vpop.f32.mrf.mxu0
      %v737 = vpop.f32.mrf.mxu0
      %v738 = vadd.f32 0.0, %v737
      %v739 = vpop.f32.mrf.mxu0
      %740 = vmatprep.mubr.bf16.mxu0 0
      %741 = vmatmul.mubr.bf16.gmra.mxu0 %v483
      %v742 = vpop.f32.mrf.mxu0
      %v743 = vadd.f32 0.0, %v742
      %v744 = vpop.f32.mrf.mxu0
      %v745 = vpop.f32.mrf.mxu0
      %v746 = vadd.f32 0.0, %v745
      %v747 = vpop.f32.mrf.mxu0
      %748 = vmatprep.mubr.bf16.mxu0 0
      %749 = vmatmul.mubr.bf16.gmra.mxu0 %v491
      %v750 = vpop.f32.mrf.mxu0
      %v751 = vadd.f32 0.0, %v750
      %v752 = vpop.f32.mrf.mxu0
      %v753 = vpop.f32.mrf.mxu0
      %v754 = vadd.f32 0.0, %v753
      %v755 = vpop.f32.mrf.mxu0
      %756 = vmatprep.mubr.bf16.mxu0 0
      %757 = vmatmul.mubr.bf16.gmra.mxu0 %v499
      %v758 = vpop.f32.mrf.mxu0
      %v759 = vadd.f32 0.0, %v758
      %v760 = vpop.f32.mrf.mxu0
      %v761 = vpop.f32.mrf.mxu0
      %v762 = vadd.f32 0.0, %v761
      %v763 = vpop.f32.mrf.mxu0
      %764 = vmatprep.mubr.bf16.mxu0 0
      %765 = vmatmul.mubr.bf16.gmra.mxu0 %v507
      %v766 = vpop.f32.mrf.mxu0
      %v767 = vadd.f32 0.0, %v766
      %v768 = vpop.f32.mrf.mxu0
      %v769 = vpop.f32.mrf.mxu0
      %v770 = vadd.f32 0.0, %v769
      %v771 = vpop.f32.mrf.mxu0
      %772 = vmatprep.mubr.bf16.mxu0 0
      %773 = vmatmul.mubr.bf16.gmra.mxu0 %v515
      %v774 = vpop.f32.mrf.mxu0
      %v775 = vadd.f32 0.0, %v774
      %v776 = vpop.f32.mrf.mxu0
      %v777 = vpop.f32.mrf.mxu0
      %v778 = vadd.f32 0.0, %v777
      %v779 = vpop.f32.mrf.mxu0
      %780 = vmatprep.mubr.bf16.mxu0 0
      %781 = vmatmul.mubr.bf16.gmra.mxu0 %v523
      %v782 = vpop.f32.mrf.mxu0
      %v783 = vadd.f32 0.0, %v782
      %v784 = vpop.f32.mrf.mxu0
      %v785 = vpop.f32.mrf.mxu0
      %v786 = vadd.f32 0.0, %v785
      %v787 = vpop.f32.mrf.mxu0
      %788 = vmatprep.mubr.bf16.mxu0 0
      %789 = vmatmul.mubr.bf16.gmra.mxu0 %v531
      %v790 = vpop.f32.mrf.mxu0
      %v791 = vadd.f32 0.0, %v790
      %v792 = vpop.f32.mrf.mxu0
      %v793 = vpop.f32.mrf.mxu0
      %v794 = vadd.f32 0.0, %v793
      %v795 = vpop.f32.mrf.mxu0
      %796 = vmatprep.mubr.bf16.mxu0 0
      %797 = vmatmul.mubr.bf16.gmra.mxu0 %v539
      %v798 = vpop.f32.mrf.mxu0
      %v799 = vadd.f32 0.0, %v798
      %v800 = vpop.f32.mrf.mxu0
      %v801 = vpop.f32.mrf.mxu0
      %v802 = vadd.f32 0.0, %v801
      %v803 = vpop.f32.mrf.mxu0
      %804 = vmatprep.mubr.bf16.mxu0 0
      %805 = vmatmul.mubr.bf16.gmra.mxu0 %v547
      %v806 = vpop.f32.mrf.mxu0
      %v807 = vadd.f32 0.0, %v806
      %v808 = vpop.f32.mrf.mxu0
      %v809 = vpop.f32.mrf.mxu0
      %v810 = vadd.f32 0.0, %v809
      %v811 = vpop.f32.mrf.mxu0
      %812 = vmatprep.mubr.bf16.mxu0 0
      %813 = vmatmul.mubr.bf16.gmra.mxu0 %v555
      %v814 = vpop.f32.mrf.mxu0
      %v815 = vadd.f32 0.0, %v814
      %v816 = vpop.f32.mrf.mxu0
      %v817 = vpop.f32.mrf.mxu0
      %v818 = vadd.f32 0.0, %v817
      %v819 = vpop.f32.mrf.mxu0
      %820 = vmatprep.mubr.bf16.mxu0 0
      %821 = vmatmul.mubr.bf16.gmra.mxu0 %v563
      %v822 = vpop.f32.mrf.mxu0
      %v823 = vadd.f32 0.0, %v822
      %v824 = vpop.f32.mrf.mxu0
      %v825 = vpop.f32.mrf.mxu0
      %v826 = vadd.f32 0.0, %v825
      %v827 = vpop.f32.mrf.mxu0
      %828 = vmatprep.mubr.bf16.mxu0 0
      %829 = vmatmul.mubr.bf16.gmra.mxu0 %v571
      %v830 = vpop.f32.mrf.mxu0
      %v831 = vadd.f32 0.0, %v830
      %v832 = vpop.f32.mrf.mxu0
      %v833 = vpop.f32.mrf.mxu0
      %v834 = vadd.f32 0.0, %v833
      %v835 = vpop.f32.mrf.mxu0
      %836 = vmatprep.mubr.bf16.mxu0 0
      %837 = vmatmul.mubr.bf16.gmra.mxu0 %v579
      %v838 = vpop.f32.mrf.mxu0
      %v839 = vadd.f32 0.0, %v838
      %v840 = vpop.f32.mrf.mxu0
      %v841 = vpop.f32.mrf.mxu0
      %v842 = vadd.f32 0.0, %v841
      %v843 = vpop.f32.mrf.mxu0
      %844 = vmatprep.mubr.bf16.mxu0 0
      %845 = vmatmul.mubr.bf16.gmra.mxu0 %v587
      %v846 = vpop.f32.mrf.mxu0
      %v847 = vadd.f32 0.0, %v846
      %v848 = vpop.f32.mrf.mxu0
      %v849 = vpop.f32.mrf.mxu0
      %v850 = vadd.f32 0.0, %v849
      %v851 = vpop.f32.mrf.mxu0
      %852 = vmatprep.mubr.bf16.mxu0 0
      %853 = vmatmul.mubr.bf16.gmra.mxu0 %v595
      %v854 = vpop.f32.mrf.mxu0
      %v855 = vadd.f32 0.0, %v854
      %v856 = vpop.f32.mrf.mxu0
      %v857 = vpop.f32.mrf.mxu0
      %v858 = vadd.f32 0.0, %v857
      %v859 = vpop.f32.mrf.mxu0
      %860 = vmatprep.mubr.bf16.mxu0 0
      %861 = vmatmul.mubr.bf16.gmra.mxu0 %v598
      %v862 = vpop.f32.mrf.mxu0
      %v863 = vadd.f32 0.0, %v862
      %v864 = vpop.f32.mrf.mxu0
      %v865 = vpop.f32.mrf.mxu0
      %v866 = vpop.f32.mrf.mxu0
      %867 = vdwg.mxu0
      %v869 = vunpack.c.l.b16 %v293
      %v870 = vpack.c.b16 %v869, %v869
      %v908 = vunpack.c.l.b16 %v294
      %v909 = vunpack.c.l.b16 %v295
      %v910 = vunpack.c.l.b16 %v296
      %v911 = vunpack.c.l.b16 %v297
      %v912 = vunpack.c.l.b16 %v298
      %v913 = vunpack.c.l.b16 %v299
      %v914 = vunpack.c.l.b16 %v300
      %v915 = vunpack.c.l.b16 %v301
      %v916 = vunpack.c.l.b16 %v302
      %v917 = vunpack.c.l.b16 %v303
      %v918 = vunpack.c.l.b16 %v304
      %v919 = vunpack.c.l.b16 %v305
      %v920 = vunpack.c.l.b16 %v306
      %v921 = vunpack.c.l.b16 %v307
      %v922 = vunpack.c.l.b16 %v308
      %v923 = vunpack.c.l.b16 %v309
      %v924 = vpack.c.b16 %v909, %v908
      %v925 = vpack.c.b16 %v911, %v910
      %v926 = vpack.c.b16 %v913, %v912
      %v927 = vpack.c.b16 %v915, %v914
      %v928 = vpack.c.b16 %v917, %v916
      %v929 = vpack.c.b16 %v919, %v918
      %v930 = vpack.c.b16 %v921, %v920
      %v931 = vpack.c.b16 %v923, %v922
      %940 = vmatprep.subr.bf16.mxu0 0
      %941 = vmatpush1.bf16.msra.mxu0 %v931
      %942 = vmatprep.subr.bf16.mxu0 0
      %943 = vmatpush1.bf16.msra.mxu0 %v930
      %944 = vmatprep.subr.bf16.mxu0 0
      %945 = vmatpush1.bf16.msra.mxu0 %v929
      %946 = vmatprep.subr.bf16.mxu0 0
      %947 = vmatpush1.bf16.msra.mxu0 %v928
      %948 = vmatprep.subr.bf16.mxu0 0
      %949 = vmatpush1.bf16.msra.mxu0 %v927
      %950 = vmatprep.subr.bf16.mxu0 0
      %951 = vmatpush1.bf16.msra.mxu0 %v926
      %952 = vmatprep.subr.bf16.mxu0 0
      %953 = vmatpush1.bf16.msra.mxu0 %v925
      %954 = vmatprep.subr.bf16.mxu0 0
      %955 = vmatpush1.bf16.msra.mxu0 %v924
      %956 = vmatprep.subr.bf16.mxu0 0
      %957 = vmatpush2.bf16.msra.mxu0 0
      %958 = vmatprep.subr.bf16.mxu0 0
      %959 = vmatpush2.bf16.msra.mxu0 0
      %960 = vmatprep.subr.bf16.mxu0 0
      %961 = vmatpush2.bf16.msra.mxu0 0
      %962 = vmatprep.subr.bf16.mxu0 0
      %963 = vmatpush2.bf16.msra.mxu0 0
      %964 = vmatprep.subr.bf16.mxu0 0
      %965 = vmatpush2.bf16.msra.mxu0 0
      %966 = vmatprep.subr.bf16.mxu0 0
      %967 = vmatpush2.bf16.msra.mxu0 0
      %968 = vmatprep.subr.bf16.mxu0 0
      %969 = vmatpush2.bf16.msra.mxu0 0
      %970 = vmatprep.subr.bf16.mxu0 0
      %971 = vmatpush2.bf16.msra.mxu0 0
      %972 = vmatprep.mubr.bf16.mxu0 0
      %973 = vmatmul.mubr.bf16.gmra.mxu0 %v410
      %v974 = vpop.f32.mrf.mxu0
      %v975 = vadd.f32 %v703, %v974
      %v976 = vpop.f32.mrf.mxu0
      %v977 = vpop.f32.mrf.mxu0
      %v978 = vadd.f32 %v706, %v977
      %v979 = vpop.f32.mrf.mxu0
      %980 = vmatprep.mubr.bf16.mxu0 0
      %981 = vmatmul.mubr.bf16.gmra.mxu0 %v411
      %v982 = vpop.f32.mrf.mxu0
      %v983 = vadd.f32 %v711, %v982
      %v984 = vpop.f32.mrf.mxu0
      %v985 = vpop.f32.mrf.mxu0
      %v986 = vadd.f32 %v714, %v985
      %v987 = vpop.f32.mrf.mxu0
      %988 = vmatprep.mubr.bf16.mxu0 0
      %989 = vmatmul.mubr.bf16.gmra.mxu0 %v412
      %v990 = vpop.f32.mrf.mxu0
      %v991 = vadd.f32 %v719, %v990
      %v992 = vpop.f32.mrf.mxu0
      %v993 = vpop.f32.mrf.mxu0
      %v994 = vadd.f32 %v722, %v993
      %v995 = vpop.f32.mrf.mxu0
      %996 = vmatprep.mubr.bf16.mxu0 0
      %997 = vmatmul.mubr.bf16.gmra.mxu0 %v413
      %v998 = vpop.f32.mrf.mxu0
      %v999 = vadd.f32 %v727, %v998
      %v1000 = vpop.f32.mrf.mxu0
      %v1001 = vpop.f32.mrf.mxu0
      %v1002 = vadd.f32 %v730, %v1001
      %v1003 = vpop.f32.mrf.mxu0
      %1004 = vmatprep.mubr.bf16.mxu0 0
      %1005 = vmatmul.mubr.bf16.gmra.mxu0 %v414
      %v1006 = vpop.f32.mrf.mxu0
      %v1007 = vadd.f32 %v735, %v1006
      %v1008 = vpop.f32.mrf.mxu0
      %v1009 = vpop.f32.mrf.mxu0
      %v1010 = vadd.f32 %v738, %v1009
      %v1011 = vpop.f32.mrf.mxu0
      %1012 = vmatprep.mubr.bf16.mxu0 0
      %1013 = vmatmul.mubr.bf16.gmra.mxu0 %v415
      %v1014 = vpop.f32.mrf.mxu0
      %v1015 = vadd.f32 %v743, %v1014
      %v1016 = vpop.f32.mrf.mxu0
      %v1017 = vpop.f32.mrf.mxu0
      %v1018 = vadd.f32 %v746, %v1017
      %v1019 = vpop.f32.mrf.mxu0
      %1020 = vmatprep.mubr.bf16.mxu0 0
      %1021 = vmatmul.mubr.bf16.gmra.mxu0 %v416
      %v1022 = vpop.f32.mrf.mxu0
      %v1023 = vadd.f32 %v751, %v1022
      %v1024 = vpop.f32.mrf.mxu0
      %v1025 = vpop.f32.mrf.mxu0
      %v1026 = vadd.f32 %v754, %v1025
      %v1027 = vpop.f32.mrf.mxu0
      %1028 = vmatprep.mubr.bf16.mxu0 0
      %1029 = vmatmul.mubr.bf16.gmra.mxu0 %v417
      %v1030 = vpop.f32.mrf.mxu0
      %v1031 = vadd.f32 %v759, %v1030
      %v1032 = vpop.f32.mrf.mxu0
      %v1033 = vpop.f32.mrf.mxu0
      %v1034 = vadd.f32 %v762, %v1033
      %v1035 = vpop.f32.mrf.mxu0
      %1036 = vmatprep.mubr.bf16.mxu0 0
      %1037 = vmatmul.mubr.bf16.gmra.mxu0 %v418
      %v1038 = vpop.f32.mrf.mxu0
      %v1039 = vadd.f32 %v767, %v1038
      %v1040 = vpop.f32.mrf.mxu0
      %v1041 = vpop.f32.mrf.mxu0
      %v1042 = vadd.f32 %v770, %v1041
      %v1043 = vpop.f32.mrf.mxu0
      %1044 = vmatprep.mubr.bf16.mxu0 0
      %1045 = vmatmul.mubr.bf16.gmra.mxu0 %v419
      %v1046 = vpop.f32.mrf.mxu0
      %v1047 = vadd.f32 %v775, %v1046
      %v1048 = vpop.f32.mrf.mxu0
      %v1049 = vpop.f32.mrf.mxu0
      %v1050 = vadd.f32 %v778, %v1049
      %v1051 = vpop.f32.mrf.mxu0
      %1052 = vmatprep.mubr.bf16.mxu0 0
      %1053 = vmatmul.mubr.bf16.gmra.mxu0 %v420
      %v1054 = vpop.f32.mrf.mxu0
      %v1055 = vadd.f32 %v783, %v1054
      %v1056 = vpop.f32.mrf.mxu0
      %v1057 = vpop.f32.mrf.mxu0
      %v1058 = vadd.f32 %v786, %v1057
      %v1059 = vpop.f32.mrf.mxu0
      %1060 = vmatprep.mubr.bf16.mxu0 0
      %1061 = vmatmul.mubr.bf16.gmra.mxu0 %v421
      %v1062 = vpop.f32.mrf.mxu0
      %v1063 = vadd.f32 %v791, %v1062
      %v1064 = vpop.f32.mrf.mxu0
      %v1065 = vpop.f32.mrf.mxu0
      %v1066 = vadd.f32 %v794, %v1065
      %v1067 = vpop.f32.mrf.mxu0
      %1068 = vmatprep.mubr.bf16.mxu0 0
      %1069 = vmatmul.mubr.bf16.gmra.mxu0 %v422
      %v1070 = vpop.f32.mrf.mxu0
      %v1071 = vadd.f32 %v799, %v1070
      %v1072 = vpop.f32.mrf.mxu0
      %v1073 = vpop.f32.mrf.mxu0
      %v1074 = vadd.f32 %v802, %v1073
      %v1075 = vpop.f32.mrf.mxu0
      %1076 = vmatprep.mubr.bf16.mxu0 0
      %1077 = vmatmul.mubr.bf16.gmra.mxu0 %v423
      %v1078 = vpop.f32.mrf.mxu0
      %v1079 = vadd.f32 %v807, %v1078
      %v1080 = vpop.f32.mrf.mxu0
      %v1081 = vpop.f32.mrf.mxu0
      %v1082 = vadd.f32 %v810, %v1081
      %v1083 = vpop.f32.mrf.mxu0
      %1084 = vmatprep.mubr.bf16.mxu0 0
      %1085 = vmatmul.mubr.bf16.gmra.mxu0 %v424
      %v1086 = vpop.f32.mrf.mxu0
      %v1087 = vadd.f32 %v815, %v1086
      %v1088 = vpop.f32.mrf.mxu0
      %v1089 = vpop.f32.mrf.mxu0
      %v1090 = vadd.f32 %v818, %v1089
      %v1091 = vpop.f32.mrf.mxu0
      %1092 = vmatprep.mubr.bf16.mxu0 0
      %1093 = vmatmul.mubr.bf16.gmra.mxu0 %v425
      %v1094 = vpop.f32.mrf.mxu0
      %v1095 = vadd.f32 %v823, %v1094
      %v1096 = vpop.f32.mrf.mxu0
      %v1097 = vpop.f32.mrf.mxu0
      %v1098 = vadd.f32 %v826, %v1097
      %v1099 = vpop.f32.mrf.mxu0
      %1100 = vmatprep.mubr.bf16.mxu0 0
      %1101 = vmatmul.mubr.bf16.gmra.mxu0 %v426
      %v1102 = vpop.f32.mrf.mxu0
      %v1103 = vadd.f32 %v831, %v1102
      %v1104 = vpop.f32.mrf.mxu0
      %v1105 = vpop.f32.mrf.mxu0
      %v1106 = vadd.f32 %v834, %v1105
      %v1107 = vpop.f32.mrf.mxu0
      %1108 = vmatprep.mubr.bf16.mxu0 0
      %1109 = vmatmul.mubr.bf16.gmra.mxu0 %v427
      %v1110 = vpop.f32.mrf.mxu0
      %v1111 = vadd.f32 %v839, %v1110
      %v1112 = vpop.f32.mrf.mxu0
      %v1113 = vpop.f32.mrf.mxu0
      %v1114 = vadd.f32 %v842, %v1113
      %v1115 = vpop.f32.mrf.mxu0
      %1116 = vmatprep.mubr.bf16.mxu0 0
      %1117 = vmatmul.mubr.bf16.gmra.mxu0 %v428
      %v1118 = vpop.f32.mrf.mxu0
      %v1119 = vadd.f32 %v847, %v1118
      %v1120 = vpop.f32.mrf.mxu0
      %v1121 = vpop.f32.mrf.mxu0
      %v1122 = vadd.f32 %v850, %v1121
      %v1123 = vpop.f32.mrf.mxu0
      %1124 = vmatprep.mubr.bf16.mxu0 0
      %1125 = vmatmul.mubr.bf16.gmra.mxu0 %v429
      %v1126 = vpop.f32.mrf.mxu0
      %v1127 = vadd.f32 %v855, %v1126
      %v1128 = vpop.f32.mrf.mxu0
      %v1129 = vpop.f32.mrf.mxu0
      %v1130 = vadd.f32 %v858, %v1129
      %v1131 = vpop.f32.mrf.mxu0
      %1132 = vmatprep.mubr.bf16.mxu0 0
      %1133 = vmatmul.mubr.bf16.gmra.mxu0 %v870
      %v1134 = vpop.f32.mrf.mxu0
      %v1135 = vadd.f32 %v863, %v1134
      %v1136 = vpop.f32.mrf.mxu0
      %v1137 = vpop.f32.mrf.mxu0
      %v1138 = vpop.f32.mrf.mxu0
      %1139 = vdwg.mxu0
      %v1140 = vld [vmem:[%s246] sm:$0xe]
      %s1141 = scalar_lea.vmem %s1, 128
      %v1142 = vld [vmem:[%s1141] sm:$0xf]
      %v1143 = vld [vmem:[%s1141 + $0x4] sm:$0xf]
      %v1144 = vld [vmem:[%s1141 + $0x8] sm:$0xf]
      %v1145 = vld [vmem:[%s1141 + $0xc] sm:$0xf]
      %v1146 = vld [vmem:[%s1141 + $0x10] sm:$0xf]
      %v1147 = vld [vmem:[%s1141 + $0x14] sm:$0xf]
      %v1148 = vld [vmem:[%s1141 + $0x18] sm:$0xf]
      %v1149 = vld [vmem:[%s1141 + $0x1c] sm:$0xf]
      %v1150 = vld [vmem:[%s1141 + $0x20] sm:$0xf]
      %v1151 = vld [vmem:[%s1141 + $0x24] sm:$0xf]
      %v1152 = vld [vmem:[%s1141 + $0x28] sm:$0xf]
      %v1153 = vld [vmem:[%s1141 + $0x2c] sm:$0xf]
      %v1154 = vld [vmem:[%s1141 + $0x30] sm:$0xf]
      %v1155 = vld [vmem:[%s1141 + $0x34] sm:$0xf]
      %v1156 = vld [vmem:[%s1141 + $0x38] sm:$0xf]
      %v1157 = vld [vmem:[%s1141 + $0x3c] sm:$0xf]
      %v1159 = vunpack.c.l.b16 %v1140
      %v1160 = vpack.c.b16 %v370, %v1159
      %vm1161 = vcmask 1046528
      %v1162 = vrot.slane %v1160, 1
      %v1163 = vrot.slane %v411, 1
      %v1164 = vsel %vm1161, %v1162, %v1163
      %v1165 = vrot.slane %v412, 1
      %v1166 = vsel %vm1161, %v1163, %v1165
      %v1167 = vrot.slane %v413, 1
      %v1168 = vsel %vm1161, %v1165, %v1167
      %v1169 = vrot.slane %v414, 1
      %v1170 = vsel %vm1161, %v1167, %v1169
      %v1171 = vrot.slane %v415, 1
      %v1172 = vsel %vm1161, %v1169, %v1171
      %v1173 = vrot.slane %v416, 1
      %v1174 = vsel %vm1161, %v1171, %v1173
      %v1175 = vrot.slane %v417, 1
      %v1176 = vsel %vm1161, %v1173, %v1175
      %v1177 = vrot.slane %v418, 1
      %v1178 = vsel %vm1161, %v1175, %v1177
      %v1179 = vrot.slane %v419, 1
      %v1180 = vsel %vm1161, %v1177, %v1179
      %v1181 = vrot.slane %v420, 1
      %v1182 = vsel %vm1161, %v1179, %v1181
      %v1183 = vrot.slane %v421, 1
      %v1184 = vsel %vm1161, %v1181, %v1183
      %v1185 = vrot.slane %v422, 1
      %v1186 = vsel %vm1161, %v1183, %v1185
      %v1187 = vrot.slane %v423, 1
      %v1188 = vsel %vm1161, %v1185, %v1187
      %v1189 = vrot.slane %v424, 1
      %v1190 = vsel %vm1161, %v1187, %v1189
      %v1191 = vrot.slane %v425, 1
      %v1192 = vsel %vm1161, %v1189, %v1191
      %v1193 = vrot.slane %v426, 1
      %v1194 = vsel %vm1161, %v1191, %v1193
      %v1195 = vrot.slane %v427, 1
      %v1196 = vsel %vm1161, %v1193, %v1195
      %v1197 = vrot.slane %v428, 1
      %v1198 = vsel %vm1161, %v1195, %v1197
      %v1199 = vrot.slane %v429, 1
      %v1200 = vsel %vm1161, %v1197, %v1199
      %v1201 = vrot.slane %v430, 1
      %v1202 = vsel %vm1161, %v1199, %v1201
      %v1240 = vunpack.c.l.b16 %v1142
      %v1241 = vunpack.c.l.b16 %v1143
      %v1242 = vunpack.c.l.b16 %v1144
      %v1243 = vunpack.c.l.b16 %v1145
      %v1244 = vunpack.c.l.b16 %v1146
      %v1245 = vunpack.c.l.b16 %v1147
      %v1246 = vunpack.c.l.b16 %v1148
      %v1247 = vunpack.c.l.b16 %v1149
      %v1248 = vunpack.c.l.b16 %v1150
      %v1249 = vunpack.c.l.b16 %v1151
      %v1250 = vunpack.c.l.b16 %v1152
      %v1251 = vunpack.c.l.b16 %v1153
      %v1252 = vunpack.c.l.b16 %v1154
      %v1253 = vunpack.c.l.b16 %v1155
      %v1254 = vunpack.c.l.b16 %v1156
      %v1255 = vunpack.c.l.b16 %v1157
      %v1256 = vpack.c.b16 %v1241, %v1240
      %v1257 = vpack.c.b16 %v1243, %v1242
      %v1258 = vpack.c.b16 %v1245, %v1244
      %v1259 = vpack.c.b16 %v1247, %v1246
      %v1260 = vpack.c.b16 %v1249, %v1248
      %v1261 = vpack.c.b16 %v1251, %v1250
      %v1262 = vpack.c.b16 %v1253, %v1252
      %v1263 = vpack.c.b16 %v1255, %v1254
      %1272 = vmatprep.subr.bf16.mxu0 0
      %1273 = vmatpush1.bf16.msra.mxu0 %v1263
      %1274 = vmatprep.subr.bf16.mxu0 0
      %1275 = vmatpush1.bf16.msra.mxu0 %v1262
      %1276 = vmatprep.subr.bf16.mxu0 0
      %1277 = vmatpush1.bf16.msra.mxu0 %v1261
      %1278 = vmatprep.subr.bf16.mxu0 0
      %1279 = vmatpush1.bf16.msra.mxu0 %v1260
      %1280 = vmatprep.subr.bf16.mxu0 0
      %1281 = vmatpush1.bf16.msra.mxu0 %v1259
      %1282 = vmatprep.subr.bf16.mxu0 0
      %1283 = vmatpush1.bf16.msra.mxu0 %v1258
      %1284 = vmatprep.subr.bf16.mxu0 0
      %1285 = vmatpush1.bf16.msra.mxu0 %v1257
      %1286 = vmatprep.subr.bf16.mxu0 0
      %1287 = vmatpush1.bf16.msra.mxu0 %v1256
      %1288 = vmatprep.subr.bf16.mxu0 0
      %1289 = vmatpush2.bf16.msra.mxu0 0
      %1290 = vmatprep.subr.bf16.mxu0 0
      %1291 = vmatpush2.bf16.msra.mxu0 0
      %1292 = vmatprep.subr.bf16.mxu0 0
      %1293 = vmatpush2.bf16.msra.mxu0 0
      %1294 = vmatprep.subr.bf16.mxu0 0
      %1295 = vmatpush2.bf16.msra.mxu0 0
      %1296 = vmatprep.subr.bf16.mxu0 0
      %1297 = vmatpush2.bf16.msra.mxu0 0
      %1298 = vmatprep.subr.bf16.mxu0 0
      %1299 = vmatpush2.bf16.msra.mxu0 0
      %1300 = vmatprep.subr.bf16.mxu0 0
      %1301 = vmatpush2.bf16.msra.mxu0 0
      %1302 = vmatprep.subr.bf16.mxu0 0
      %1303 = vmatpush2.bf16.msra.mxu0 0
      %1304 = vmatprep.mubr.bf16.mxu0 0
      %1305 = vmatmul.mubr.bf16.gmra.mxu0 %v1164
      %v1306 = vpop.f32.mrf.mxu0
      %v1307 = vadd.f32 0.0, %v1306
      %v1308 = vpop.f32.mrf.mxu0
      %v1309 = vpop.f32.mrf.mxu0
      %v1310 = vadd.f32 0.0, %v1309
      %v1311 = vpop.f32.mrf.mxu0
      %1312 = vmatprep.mubr.bf16.mxu0 0
      %1313 = vmatmul.mubr.bf16.gmra.mxu0 %v1166
      %v1314 = vpop.f32.mrf.mxu0
      %v1315 = vadd.f32 0.0, %v1314
      %v1316 = vpop.f32.mrf.mxu0
      %v1317 = vpop.f32.mrf.mxu0
      %v1318 = vadd.f32 0.0, %v1317
      %v1319 = vpop.f32.mrf.mxu0
      %1320 = vmatprep.mubr.bf16.mxu0 0
      %1321 = vmatmul.mubr.bf16.gmra.mxu0 %v1168
      %v1322 = vpop.f32.mrf.mxu0
      %v1323 = vadd.f32 0.0, %v1322
      %v1324 = vpop.f32.mrf.mxu0
      %v1325 = vpop.f32.mrf.mxu0
      %v1326 = vadd.f32 0.0, %v1325
      %v1327 = vpop.f32.mrf.mxu0
      %1328 = vmatprep.mubr.bf16.mxu0 0
      %1329 = vmatmul.mubr.bf16.gmra.mxu0 %v1170
      %v1330 = vpop.f32.mrf.mxu0
      %v1331 = vadd.f32 0.0, %v1330
      %v1332 = vpop.f32.mrf.mxu0
      %v1333 = vpop.f32.mrf.mxu0
      %v1334 = vadd.f32 0.0, %v1333
      %v1335 = vpop.f32.mrf.mxu0
      %1336 = vmatprep.mubr.bf16.mxu0 0
      %1337 = vmatmul.mubr.bf16.gmra.mxu0 %v1172
      %v1338 = vpop.f32.mrf.mxu0
      %v1339 = vadd.f32 0.0, %v1338
      %v1340 = vpop.f32.mrf.mxu0
      %v1341 = vpop.f32.mrf.mxu0
      %v1342 = vadd.f32 0.0, %v1341
      %v1343 = vpop.f32.mrf.mxu0
      %1344 = vmatprep.mubr.bf16.mxu0 0
      %1345 = vmatmul.mubr.bf16.gmra.mxu0 %v1174
      %v1346 = vpop.f32.mrf.mxu0
      %v1347 = vadd.f32 0.0, %v1346
      %v1348 = vpop.f32.mrf.mxu0
      %v1349 = vpop.f32.mrf.mxu0
      %v1350 = vadd.f32 0.0, %v1349
      %v1351 = vpop.f32.mrf.mxu0
      %1352 = vmatprep.mubr.bf16.mxu0 0
      %1353 = vmatmul.mubr.bf16.gmra.mxu0 %v1176
      %v1354 = vpop.f32.mrf.mxu0
      %v1355 = vadd.f32 0.0, %v1354
      %v1356 = vpop.f32.mrf.mxu0
      %v1357 = vpop.f32.mrf.mxu0
      %v1358 = vadd.f32 0.0, %v1357
      %v1359 = vpop.f32.mrf.mxu0
      %1360 = vmatprep.mubr.bf16.mxu0 0
      %1361 = vmatmul.mubr.bf16.gmra.mxu0 %v1178
      %v1362 = vpop.f32.mrf.mxu0
      %v1363 = vadd.f32 0.0, %v1362
      %v1364 = vpop.f32.mrf.mxu0
      %v1365 = vpop.f32.mrf.mxu0
      %v1366 = vadd.f32 0.0, %v1365
      %v1367 = vpop.f32.mrf.mxu0
      %1368 = vmatprep.mubr.bf16.mxu0 0
      %1369 = vmatmul.mubr.bf16.gmra.mxu0 %v1180
      %v1370 = vpop.f32.mrf.mxu0
      %v1371 = vadd.f32 0.0, %v1370
      %v1372 = vpop.f32.mrf.mxu0
      %v1373 = vpop.f32.mrf.mxu0
      %v1374 = vadd.f32 0.0, %v1373
      %v1375 = vpop.f32.mrf.mxu0
      %1376 = vmatprep.mubr.bf16.mxu0 0
      %1377 = vmatmul.mubr.bf16.gmra.mxu0 %v1182
      %v1378 = vpop.f32.mrf.mxu0
      %v1379 = vadd.f32 0.0, %v1378
      %v1380 = vpop.f32.mrf.mxu0
      %v1381 = vpop.f32.mrf.mxu0
      %v1382 = vadd.f32 0.0, %v1381
      %v1383 = vpop.f32.mrf.mxu0
      %1384 = vmatprep.mubr.bf16.mxu0 0
      %1385 = vmatmul.mubr.bf16.gmra.mxu0 %v1184
      %v1386 = vpop.f32.mrf.mxu0
      %v1387 = vadd.f32 0.0, %v1386
      %v1388 = vpop.f32.mrf.mxu0
      %v1389 = vpop.f32.mrf.mxu0
      %v1390 = vadd.f32 0.0, %v1389
      %v1391 = vpop.f32.mrf.mxu0
      %1392 = vmatprep.mubr.bf16.mxu0 0
      %1393 = vmatmul.mubr.bf16.gmra.mxu0 %v1186
      %v1394 = vpop.f32.mrf.mxu0
      %v1395 = vadd.f32 0.0, %v1394
      %v1396 = vpop.f32.mrf.mxu0
      %v1397 = vpop.f32.mrf.mxu0
      %v1398 = vadd.f32 0.0, %v1397
      %v1399 = vpop.f32.mrf.mxu0
      %1400 = vmatprep.mubr.bf16.mxu0 0
      %1401 = vmatmul.mubr.bf16.gmra.mxu0 %v1188
      %v1402 = vpop.f32.mrf.mxu0
      %v1403 = vadd.f32 0.0, %v1402
      %v1404 = vpop.f32.mrf.mxu0
      %v1405 = vpop.f32.mrf.mxu0
      %v1406 = vadd.f32 0.0, %v1405
      %v1407 = vpop.f32.mrf.mxu0
      %1408 = vmatprep.mubr.bf16.mxu0 0
      %1409 = vmatmul.mubr.bf16.gmra.mxu0 %v1190
      %v1410 = vpop.f32.mrf.mxu0
      %v1411 = vadd.f32 0.0, %v1410
      %v1412 = vpop.f32.mrf.mxu0
      %v1413 = vpop.f32.mrf.mxu0
      %v1414 = vadd.f32 0.0, %v1413
      %v1415 = vpop.f32.mrf.mxu0
      %1416 = vmatprep.mubr.bf16.mxu0 0
      %1417 = vmatmul.mubr.bf16.gmra.mxu0 %v1192
      %v1418 = vpop.f32.mrf.mxu0
      %v1419 = vadd.f32 0.0, %v1418
      %v1420 = vpop.f32.mrf.mxu0
      %v1421 = vpop.f32.mrf.mxu0
      %v1422 = vadd.f32 0.0, %v1421
      %v1423 = vpop.f32.mrf.mxu0
      %1424 = vmatprep.mubr.bf16.mxu0 0
      %1425 = vmatmul.mubr.bf16.gmra.mxu0 %v1194
      %v1426 = vpop.f32.mrf.mxu0
      %v1427 = vadd.f32 0.0, %v1426
      %v1428 = vpop.f32.mrf.mxu0
      %v1429 = vpop.f32.mrf.mxu0
      %v1430 = vadd.f32 0.0, %v1429
      %v1431 = vpop.f32.mrf.mxu0
      %1432 = vmatprep.mubr.bf16.mxu0 0
      %1433 = vmatmul.mubr.bf16.gmra.mxu0 %v1196
      %v1434 = vpop.f32.mrf.mxu0
      %v1435 = vadd.f32 0.0, %v1434
      %v1436 = vpop.f32.mrf.mxu0
      %v1437 = vpop.f32.mrf.mxu0
      %v1438 = vadd.f32 0.0, %v1437
      %v1439 = vpop.f32.mrf.mxu0
      %1440 = vmatprep.mubr.bf16.mxu0 0
      %1441 = vmatmul.mubr.bf16.gmra.mxu0 %v1198
      %v1442 = vpop.f32.mrf.mxu0
      %v1443 = vadd.f32 0.0, %v1442
      %v1444 = vpop.f32.mrf.mxu0
      %v1445 = vpop.f32.mrf.mxu0
      %v1446 = vadd.f32 0.0, %v1445
      %v1447 = vpop.f32.mrf.mxu0
      %1448 = vmatprep.mubr.bf16.mxu0 0
      %1449 = vmatmul.mubr.bf16.gmra.mxu0 %v1200
      %v1450 = vpop.f32.mrf.mxu0
      %v1451 = vadd.f32 0.0, %v1450
      %v1452 = vpop.f32.mrf.mxu0
      %v1453 = vpop.f32.mrf.mxu0
      %v1454 = vadd.f32 0.0, %v1453
      %v1455 = vpop.f32.mrf.mxu0
      %1456 = vmatprep.mubr.bf16.mxu0 0
      %1457 = vmatmul.mubr.bf16.gmra.mxu0 %v1202
      %v1458 = vpop.f32.mrf.mxu0
      %v1459 = vadd.f32 0.0, %v1458
      %v1460 = vpop.f32.mrf.mxu0
      %v1461 = vpop.f32.mrf.mxu0
      %v1462 = vadd.f32 0.0, %v1461
      %v1463 = vpop.f32.mrf.mxu0
      %1464 = vmatprep.mubr.bf16.mxu0 0
      %1465 = vmatmul.mubr.bf16.gmra.mxu0 %v1201
      %v1466 = vpop.f32.mrf.mxu0
      %v1467 = vadd.f32 0.0, %v1466
      %v1468 = vpop.f32.mrf.mxu0
      %v1469 = vpop.f32.mrf.mxu0
      %v1470 = vpop.f32.mrf.mxu0
      %1471 = vdwg.mxu0
      %v1472 = vadd.f32 %v975, %v1307
      %v1473 = vadd.f32 %v978, %v1310
      %v1474 = vadd.f32 %v983, %v1315
      %v1475 = vadd.f32 %v986, %v1318
      %v1476 = vadd.f32 %v991, %v1323
      %v1477 = vadd.f32 %v994, %v1326
      %v1478 = vadd.f32 %v999, %v1331
      %v1479 = vadd.f32 %v1002, %v1334
      %v1480 = vadd.f32 %v1007, %v1339
      %v1481 = vadd.f32 %v1010, %v1342
      %v1482 = vadd.f32 %v1015, %v1347
      %v1483 = vadd.f32 %v1018, %v1350
      %v1484 = vadd.f32 %v1023, %v1355
      %v1485 = vadd.f32 %v1026, %v1358
      %v1486 = vadd.f32 %v1031, %v1363
      %v1487 = vadd.f32 %v1034, %v1366
      %v1488 = vadd.f32 %v1039, %v1371
      %v1489 = vadd.f32 %v1042, %v1374
      %v1490 = vadd.f32 %v1047, %v1379
      %v1491 = vadd.f32 %v1050, %v1382
      %v1492 = vadd.f32 %v1055, %v1387
      %v1493 = vadd.f32 %v1058, %v1390
      %v1494 = vadd.f32 %v1063, %v1395
      %v1495 = vadd.f32 %v1066, %v1398
      %v1496 = vadd.f32 %v1071, %v1403
      %v1497 = vadd.f32 %v1074, %v1406
      %v1498 = vadd.f32 %v1079, %v1411
      %v1499 = vadd.f32 %v1082, %v1414
      %v1500 = vadd.f32 %v1087, %v1419
      %v1501 = vadd.f32 %v1090, %v1422
      %v1502 = vadd.f32 %v1095, %v1427
      %v1503 = vadd.f32 %v1098, %v1430
      %v1504 = vadd.f32 %v1103, %v1435
      %v1505 = vadd.f32 %v1106, %v1438
      %v1506 = vadd.f32 %v1111, %v1443
      %v1507 = vadd.f32 %v1114, %v1446
      %v1508 = vadd.f32 %v1119, %v1451
      %v1509 = vadd.f32 %v1122, %v1454
      %v1510 = vadd.f32 %v1127, %v1459
      %v1511 = vadd.f32 %v1130, %v1462
      %v1512 = vadd.f32 %v1135, %v1467
      %v1513 = vld [vmem:[%s246 + $0x8] sm:$0xe]
      %v1514 = vld [vmem:[%s246 + $0xc] sm:$0xf]
      %v1515 = vld [vmem:[%s246 + $0x10] sm:$0xf]
      %v1516 = vld [vmem:[%s246 + $0x14] sm:$0xf]
      %v1517 = vld [vmem:[%s246 + $0x18] sm:$0xf]
      %v1518 = vld [vmem:[%s246 + $0x1c] sm:$0xf]
      %v1519 = vld [vmem:[%s246 + $0x20] sm:$0xf]
      %v1520 = vld [vmem:[%s246 + $0x24] sm:$0xf]
      %v1521 = vld [vmem:[%s246 + $0x28] sm:$0xf]
      %v1522 = vld [vmem:[%s246 + $0x2c] sm:$0xf]
      %v1523 = vld [vmem:[%s246 + $0x30] sm:$0xf]
      %v1524 = vld [vmem:[%s246 + $0x34] sm:$0xf]
      %v1525 = vld [vmem:[%s246 + $0x38] sm:$0xf]
      %v1526 = vld [vmem:[%s246 + $0x3c] sm:$0xf]
      %v1527 = vld [vmem:[%s246 + $0x40] sm:$0xf]
      %v1528 = vld [vmem:[%s246 + $0x44] sm:$0xf]
      %v1529 = vld [vmem:[%s246 + $0x48] sm:$0xf]
      %v1530 = vld [vmem:[%s246 + $0x4c] sm:$0xf]
      %v1531 = vld [vmem:[%s246 + $0x50] sm:$0xf]
      %v1532 = vld [vmem:[%s246 + $0x54] sm:$0xf]
      %v1533 = vld [vmem:[%s246 + $0x58] sm:$0xf]
      %v1534 = vld [vmem:[%s246 + $0x5c] sm:$0xf]
      %v1535 = vld [vmem:[%s246 + $0x60] sm:$0xf]
      %v1536 = vld [vmem:[%s246 + $0x64] sm:$0xf]
      %v1537 = vld [vmem:[%s246 + $0x68] sm:$0xf]
      %v1538 = vld [vmem:[%s246 + $0x6c] sm:$0xf]
      %v1539 = vld [vmem:[%s246 + $0x70] sm:$0xf]
      %v1540 = vld [vmem:[%s246 + $0x74] sm:$0xf]
      %v1541 = vld [vmem:[%s246 + $0x78] sm:$0xf]
      %v1542 = vld [vmem:[%s246 + $0x7c] sm:$0xf]
      %v1543 = vld [vmem:[%s246 + $0x80] sm:$0xf]
      %v1544 = vld [vmem:[%s246 + $0x84] sm:$0xf]
      %v1545 = vld [vmem:[%s246 + $0x88] sm:$0xf]
      %v1546 = vld [vmem:[%s246 + $0x8c] sm:$0xf]
      %v1547 = vld [vmem:[%s246 + $0x90] sm:$0xf]
      %v1548 = vld [vmem:[%s246 + $0x94] sm:$0xf]
      %v1549 = vld [vmem:[%s246 + $0x98] sm:$0xf]
      %v1550 = vld [vmem:[%s246 + $0x9c] sm:$0xf]
      %v1551 = vld [vmem:[%s246 + $0xa0] sm:$0xf]
      %v1552 = vld [vmem:[%s246 + $0xa4] sm:$0xf]
      %v1553 = vld [vmem:[%s246 + $0xa8] sm:$0x7]
      %s1554 = scalar_lea.vmem %s1, 192
      %v1555 = vld [vmem:[%s1554] sm:$0xf]
      %v1556 = vld [vmem:[%s1554 + $0x4] sm:$0xf]
      %v1557 = vld [vmem:[%s1554 + $0x8] sm:$0xf]
      %v1558 = vld [vmem:[%s1554 + $0xc] sm:$0xf]
      %v1559 = vld [vmem:[%s1554 + $0x10] sm:$0xf]
      %v1560 = vld [vmem:[%s1554 + $0x14] sm:$0xf]
      %v1561 = vld [vmem:[%s1554 + $0x18] sm:$0xf]
      %v1562 = vld [vmem:[%s1554 + $0x1c] sm:$0xf]
      %v1563 = vld [vmem:[%s1554 + $0x20] sm:$0xf]
      %v1564 = vld [vmem:[%s1554 + $0x24] sm:$0xf]
      %v1565 = vld [vmem:[%s1554 + $0x28] sm:$0xf]
      %v1566 = vld [vmem:[%s1554 + $0x2c] sm:$0xf]
      %v1567 = vld [vmem:[%s1554 + $0x30] sm:$0xf]
      %v1568 = vld [vmem:[%s1554 + $0x34] sm:$0xf]
      %v1569 = vld [vmem:[%s1554 + $0x38] sm:$0xf]
      %v1570 = vld [vmem:[%s1554 + $0x3c] sm:$0xf]
      %v1612 = vunpack.c.l.b16 %v1513
      %v1613 = vunpack.c.l.b16 %v1514
      %v1614 = vunpack.c.l.b16 %v1515
      %v1615 = vunpack.c.l.b16 %v1516
      %v1616 = vunpack.c.l.b16 %v1517
      %v1617 = vunpack.c.l.b16 %v1518
      %v1618 = vunpack.c.l.b16 %v1519
      %v1619 = vunpack.c.l.b16 %v1520
      %v1620 = vunpack.c.l.b16 %v1521
      %v1621 = vunpack.c.l.b16 %v1522
      %v1622 = vunpack.c.l.b16 %v1523
      %v1623 = vunpack.c.l.b16 %v1524
      %v1624 = vunpack.c.l.b16 %v1525
      %v1625 = vunpack.c.l.b16 %v1526
      %v1626 = vunpack.c.l.b16 %v1527
      %v1627 = vunpack.c.l.b16 %v1528
      %v1628 = vunpack.c.l.b16 %v1529
      %v1629 = vunpack.c.l.b16 %v1530
      %v1630 = vunpack.c.l.b16 %v1531
      %v1631 = vunpack.c.l.b16 %v1532
      %v1632 = vunpack.c.l.b16 %v1533
      %v1633 = vunpack.c.l.b16 %v1534
      %v1634 = vunpack.c.l.b16 %v1535
      %v1635 = vunpack.c.l.b16 %v1536
      %v1636 = vunpack.c.l.b16 %v1537
      %v1637 = vunpack.c.l.b16 %v1538
      %v1638 = vunpack.c.l.b16 %v1539
      %v1639 = vunpack.c.l.b16 %v1540
      %v1640 = vunpack.c.l.b16 %v1541
      %v1641 = vunpack.c.l.b16 %v1542
      %v1642 = vunpack.c.l.b16 %v1543
      %v1643 = vunpack.c.l.b16 %v1544
      %v1644 = vunpack.c.l.b16 %v1545
      %v1645 = vunpack.c.l.b16 %v1546
      %v1646 = vunpack.c.l.b16 %v1547
      %v1647 = vunpack.c.l.b16 %v1548
      %v1648 = vunpack.c.l.b16 %v1549
      %v1649 = vunpack.c.l.b16 %v1550
      %v1650 = vunpack.c.l.b16 %v1551
      %v1651 = vunpack.c.l.b16 %v1552
      %v1652 = vunpack.c.l.b16 %v1553
      %v1653 = vpack.c.b16 %v1613, %v1612
      %v1654 = vpack.c.b16 %v1615, %v1614
      %v1655 = vpack.c.b16 %v1617, %v1616
      %v1656 = vpack.c.b16 %v1619, %v1618
      %v1657 = vpack.c.b16 %v1621, %v1620
      %v1658 = vpack.c.b16 %v1623, %v1622
      %v1659 = vpack.c.b16 %v1625, %v1624
      %v1660 = vpack.c.b16 %v1627, %v1626
      %v1661 = vpack.c.b16 %v1629, %v1628
      %v1662 = vpack.c.b16 %v1631, %v1630
      %v1663 = vpack.c.b16 %v1633, %v1632
      %v1664 = vpack.c.b16 %v1635, %v1634
      %v1665 = vpack.c.b16 %v1637, %v1636
      %v1666 = vpack.c.b16 %v1639, %v1638
      %v1667 = vpack.c.b16 %v1641, %v1640
      %v1668 = vpack.c.b16 %v1643, %v1642
      %v1669 = vpack.c.b16 %v1645, %v1644
      %v1670 = vpack.c.b16 %v1647, %v1646
      %v1671 = vpack.c.b16 %v1649, %v1648
      %v1672 = vpack.c.b16 %v1651, %v1650
      %v1673 = vpack.c.b16 %v1652, %v1652
      %v1674 = vrot.slane %v1653, 1
      %v1675 = vrot.slane %v1654, 1
      %v1676 = vsel %vm1161, %v1674, %v1675
      %v1677 = vrot.slane %v1655, 1
      %v1678 = vsel %vm1161, %v1675, %v1677
      %v1679 = vrot.slane %v1656, 1
      %v1680 = vsel %vm1161, %v1677, %v1679
      %v1681 = vrot.slane %v1657, 1
      %v1682 = vsel %vm1161, %v1679, %v1681
      %v1683 = vrot.slane %v1658, 1
      %v1684 = vsel %vm1161, %v1681, %v1683
      %v1685 = vrot.slane %v1659, 1
      %v1686 = vsel %vm1161, %v1683, %v1685
      %v1687 = vrot.slane %v1660, 1
      %v1688 = vsel %vm1161, %v1685, %v1687
      %v1689 = vrot.slane %v1661, 1
      %v1690 = vsel %vm1161, %v1687, %v1689
      %v1691 = vrot.slane %v1662, 1
      %v1692 = vsel %vm1161, %v1689, %v1691
      %v1693 = vrot.slane %v1663, 1
      %v1694 = vsel %vm1161, %v1691, %v1693
      %v1695 = vrot.slane %v1664, 1
      %v1696 = vsel %vm1161, %v1693, %v1695
      %v1697 = vrot.slane %v1665, 1
      %v1698 = vsel %vm1161, %v1695, %v1697
      %v1699 = vrot.slane %v1666, 1
      %v1700 = vsel %vm1161, %v1697, %v1699
      %v1701 = vrot.slane %v1667, 1
      %v1702 = vsel %vm1161, %v1699, %v1701
      %v1703 = vrot.slane %v1668, 1
      %v1704 = vsel %vm1161, %v1701, %v1703
      %v1705 = vrot.slane %v1669, 1
      %v1706 = vsel %vm1161, %v1703, %v1705
      %v1707 = vrot.slane %v1670, 1
      %v1708 = vsel %vm1161, %v1705, %v1707
      %v1709 = vrot.slane %v1671, 1
      %v1710 = vsel %vm1161, %v1707, %v1709
      %v1711 = vrot.slane %v1672, 1
      %v1712 = vsel %vm1161, %v1709, %v1711
      %v1713 = vrot.slane %v1673, 1
      %v1714 = vsel %vm1161, %v1711, %v1713
      %v1752 = vunpack.c.l.b16 %v1555
      %v1753 = vunpack.c.l.b16 %v1556
      %v1754 = vunpack.c.l.b16 %v1557
      %v1755 = vunpack.c.l.b16 %v1558
      %v1756 = vunpack.c.l.b16 %v1559
      %v1757 = vunpack.c.l.b16 %v1560
      %v1758 = vunpack.c.l.b16 %v1561
      %v1759 = vunpack.c.l.b16 %v1562
      %v1760 = vunpack.c.l.b16 %v1563
      %v1761 = vunpack.c.l.b16 %v1564
      %v1762 = vunpack.c.l.b16 %v1565
      %v1763 = vunpack.c.l.b16 %v1566
      %v1764 = vunpack.c.l.b16 %v1567
      %v1765 = vunpack.c.l.b16 %v1568
      %v1766 = vunpack.c.l.b16 %v1569
      %v1767 = vunpack.c.l.b16 %v1570
      %v1768 = vpack.c.b16 %v1753, %v1752
      %v1769 = vpack.c.b16 %v1755, %v1754
      %v1770 = vpack.c.b16 %v1757, %v1756
      %v1771 = vpack.c.b16 %v1759, %v1758
      %v1772 = vpack.c.b16 %v1761, %v1760
      %v1773 = vpack.c.b16 %v1763, %v1762
      %v1774 = vpack.c.b16 %v1765, %v1764
      %v1775 = vpack.c.b16 %v1767, %v1766
      %1784 = vmatprep.subr.bf16.mxu0 0
      %1785 = vmatpush1.bf16.msra.mxu0 %v1775
      %1786 = vmatprep.subr.bf16.mxu0 0
      %1787 = vmatpush1.bf16.msra.mxu0 %v1774
      %1788 = vmatprep.subr.bf16.mxu0 0
      %1789 = vmatpush1.bf16.msra.mxu0 %v1773
      %1790 = vmatprep.subr.bf16.mxu0 0
      %1791 = vmatpush1.bf16.msra.mxu0 %v1772
      %1792 = vmatprep.subr.bf16.mxu0 0
      %1793 = vmatpush1.bf16.msra.mxu0 %v1771
      %1794 = vmatprep.subr.bf16.mxu0 0
      %1795 = vmatpush1.bf16.msra.mxu0 %v1770
      %1796 = vmatprep.subr.bf16.mxu0 0
      %1797 = vmatpush1.bf16.msra.mxu0 %v1769
      %1798 = vmatprep.subr.bf16.mxu0 0
      %1799 = vmatpush1.bf16.msra.mxu0 %v1768
      %1800 = vmatprep.subr.bf16.mxu0 0
      %1801 = vmatpush2.bf16.msra.mxu0 0
      %1802 = vmatprep.subr.bf16.mxu0 0
      %1803 = vmatpush2.bf16.msra.mxu0 0
      %1804 = vmatprep.subr.bf16.mxu0 0
      %1805 = vmatpush2.bf16.msra.mxu0 0
      %1806 = vmatprep.subr.bf16.mxu0 0
      %1807 = vmatpush2.bf16.msra.mxu0 0
      %1808 = vmatprep.subr.bf16.mxu0 0
      %1809 = vmatpush2.bf16.msra.mxu0 0
      %1810 = vmatprep.subr.bf16.mxu0 0
      %1811 = vmatpush2.bf16.msra.mxu0 0
      %1812 = vmatprep.subr.bf16.mxu0 0
      %1813 = vmatpush2.bf16.msra.mxu0 0
      %1814 = vmatprep.subr.bf16.mxu0 0
      %1815 = vmatpush2.bf16.msra.mxu0 0
      %1816 = vmatprep.mubr.bf16.mxu0 0
      %1817 = vmatmul.mubr.bf16.gmra.mxu0 %v1676
      %v1818 = vpop.f32.mrf.mxu0
      %v1819 = vadd.f32 0.0, %v1818
      %v1820 = vpop.f32.mrf.mxu0
      %v1821 = vpop.f32.mrf.mxu0
      %v1822 = vadd.f32 0.0, %v1821
      %v1823 = vpop.f32.mrf.mxu0
      %1824 = vmatprep.mubr.bf16.mxu0 0
      %1825 = vmatmul.mubr.bf16.gmra.mxu0 %v1678
      %v1826 = vpop.f32.mrf.mxu0
      %v1827 = vadd.f32 0.0, %v1826
      %v1828 = vpop.f32.mrf.mxu0
      %v1829 = vpop.f32.mrf.mxu0
      %v1830 = vadd.f32 0.0, %v1829
      %v1831 = vpop.f32.mrf.mxu0
      %1832 = vmatprep.mubr.bf16.mxu0 0
      %1833 = vmatmul.mubr.bf16.gmra.mxu0 %v1680
      %v1834 = vpop.f32.mrf.mxu0
      %v1835 = vadd.f32 0.0, %v1834
      %v1836 = vpop.f32.mrf.mxu0
      %v1837 = vpop.f32.mrf.mxu0
      %v1838 = vadd.f32 0.0, %v1837
      %v1839 = vpop.f32.mrf.mxu0
      %1840 = vmatprep.mubr.bf16.mxu0 0
      %1841 = vmatmul.mubr.bf16.gmra.mxu0 %v1682
      %v1842 = vpop.f32.mrf.mxu0
      %v1843 = vadd.f32 0.0, %v1842
      %v1844 = vpop.f32.mrf.mxu0
      %v1845 = vpop.f32.mrf.mxu0
      %v1846 = vadd.f32 0.0, %v1845
      %v1847 = vpop.f32.mrf.mxu0
      %1848 = vmatprep.mubr.bf16.mxu0 0
      %1849 = vmatmul.mubr.bf16.gmra.mxu0 %v1684
      %v1850 = vpop.f32.mrf.mxu0
      %v1851 = vadd.f32 0.0, %v1850
      %v1852 = vpop.f32.mrf.mxu0
      %v1853 = vpop.f32.mrf.mxu0
      %v1854 = vadd.f32 0.0, %v1853
      %v1855 = vpop.f32.mrf.mxu0
      %1856 = vmatprep.mubr.bf16.mxu0 0
      %1857 = vmatmul.mubr.bf16.gmra.mxu0 %v1686
      %v1858 = vpop.f32.mrf.mxu0
      %v1859 = vadd.f32 0.0, %v1858
      %v1860 = vpop.f32.mrf.mxu0
      %v1861 = vpop.f32.mrf.mxu0
      %v1862 = vadd.f32 0.0, %v1861
      %v1863 = vpop.f32.mrf.mxu0
      %1864 = vmatprep.mubr.bf16.mxu0 0
      %1865 = vmatmul.mubr.bf16.gmra.mxu0 %v1688
      %v1866 = vpop.f32.mrf.mxu0
      %v1867 = vadd.f32 0.0, %v1866
      %v1868 = vpop.f32.mrf.mxu0
      %v1869 = vpop.f32.mrf.mxu0
      %v1870 = vadd.f32 0.0, %v1869
      %v1871 = vpop.f32.mrf.mxu0
      %1872 = vmatprep.mubr.bf16.mxu0 0
      %1873 = vmatmul.mubr.bf16.gmra.mxu0 %v1690
      %v1874 = vpop.f32.mrf.mxu0
      %v1875 = vadd.f32 0.0, %v1874
      %v1876 = vpop.f32.mrf.mxu0
      %v1877 = vpop.f32.mrf.mxu0
      %v1878 = vadd.f32 0.0, %v1877
      %v1879 = vpop.f32.mrf.mxu0
      %1880 = vmatprep.mubr.bf16.mxu0 0
      %1881 = vmatmul.mubr.bf16.gmra.mxu0 %v1692
      %v1882 = vpop.f32.mrf.mxu0
      %v1883 = vadd.f32 0.0, %v1882
      %v1884 = vpop.f32.mrf.mxu0
      %v1885 = vpop.f32.mrf.mxu0
      %v1886 = vadd.f32 0.0, %v1885
      %v1887 = vpop.f32.mrf.mxu0
      %1888 = vmatprep.mubr.bf16.mxu0 0
      %1889 = vmatmul.mubr.bf16.gmra.mxu0 %v1694
      %v1890 = vpop.f32.mrf.mxu0
      %v1891 = vadd.f32 0.0, %v1890
      %v1892 = vpop.f32.mrf.mxu0
      %v1893 = vpop.f32.mrf.mxu0
      %v1894 = vadd.f32 0.0, %v1893
      %v1895 = vpop.f32.mrf.mxu0
      %1896 = vmatprep.mubr.bf16.mxu0 0
      %1897 = vmatmul.mubr.bf16.gmra.mxu0 %v1696
      %v1898 = vpop.f32.mrf.mxu0
      %v1899 = vadd.f32 0.0, %v1898
      %v1900 = vpop.f32.mrf.mxu0
      %v1901 = vpop.f32.mrf.mxu0
      %v1902 = vadd.f32 0.0, %v1901
      %v1903 = vpop.f32.mrf.mxu0
      %1904 = vmatprep.mubr.bf16.mxu0 0
      %1905 = vmatmul.mubr.bf16.gmra.mxu0 %v1698
      %v1906 = vpop.f32.mrf.mxu0
      %v1907 = vadd.f32 0.0, %v1906
      %v1908 = vpop.f32.mrf.mxu0
      %v1909 = vpop.f32.mrf.mxu0
      %v1910 = vadd.f32 0.0, %v1909
      %v1911 = vpop.f32.mrf.mxu0
      %1912 = vmatprep.mubr.bf16.mxu0 0
      %1913 = vmatmul.mubr.bf16.gmra.mxu0 %v1700
      %v1914 = vpop.f32.mrf.mxu0
      %v1915 = vadd.f32 0.0, %v1914
      %v1916 = vpop.f32.mrf.mxu0
      %v1917 = vpop.f32.mrf.mxu0
      %v1918 = vadd.f32 0.0, %v1917
      %v1919 = vpop.f32.mrf.mxu0
      %1920 = vmatprep.mubr.bf16.mxu0 0
      %1921 = vmatmul.mubr.bf16.gmra.mxu0 %v1702
      %v1922 = vpop.f32.mrf.mxu0
      %v1923 = vadd.f32 0.0, %v1922
      %v1924 = vpop.f32.mrf.mxu0
      %v1925 = vpop.f32.mrf.mxu0
      %v1926 = vadd.f32 0.0, %v1925
      %v1927 = vpop.f32.mrf.mxu0
      %1928 = vmatprep.mubr.bf16.mxu0 0
      %1929 = vmatmul.mubr.bf16.gmra.mxu0 %v1704
      %v1930 = vpop.f32.mrf.mxu0
      %v1931 = vadd.f32 0.0, %v1930
      %v1932 = vpop.f32.mrf.mxu0
      %v1933 = vpop.f32.mrf.mxu0
      %v1934 = vadd.f32 0.0, %v1933
      %v1935 = vpop.f32.mrf.mxu0
      %1936 = vmatprep.mubr.bf16.mxu0 0
      %1937 = vmatmul.mubr.bf16.gmra.mxu0 %v1706
      %v1938 = vpop.f32.mrf.mxu0
      %v1939 = vadd.f32 0.0, %v1938
      %v1940 = vpop.f32.mrf.mxu0
      %v1941 = vpop.f32.mrf.mxu0
      %v1942 = vadd.f32 0.0, %v1941
      %v1943 = vpop.f32.mrf.mxu0
      %1944 = vmatprep.mubr.bf16.mxu0 0
      %1945 = vmatmul.mubr.bf16.gmra.mxu0 %v1708
      %v1946 = vpop.f32.mrf.mxu0
      %v1947 = vadd.f32 0.0, %v1946
      %v1948 = vpop.f32.mrf.mxu0
      %v1949 = vpop.f32.mrf.mxu0
      %v1950 = vadd.f32 0.0, %v1949
      %v1951 = vpop.f32.mrf.mxu0
      %1952 = vmatprep.mubr.bf16.mxu0 0
      %1953 = vmatmul.mubr.bf16.gmra.mxu0 %v1710
      %v1954 = vpop.f32.mrf.mxu0
      %v1955 = vadd.f32 0.0, %v1954
      %v1956 = vpop.f32.mrf.mxu0
      %v1957 = vpop.f32.mrf.mxu0
      %v1958 = vadd.f32 0.0, %v1957
      %v1959 = vpop.f32.mrf.mxu0
      %1960 = vmatprep.mubr.bf16.mxu0 0
      %1961 = vmatmul.mubr.bf16.gmra.mxu0 %v1712
      %v1962 = vpop.f32.mrf.mxu0
      %v1963 = vadd.f32 0.0, %v1962
      %v1964 = vpop.f32.mrf.mxu0
      %v1965 = vpop.f32.mrf.mxu0
      %v1966 = vadd.f32 0.0, %v1965
      %v1967 = vpop.f32.mrf.mxu0
      %1968 = vmatprep.mubr.bf16.mxu0 0
      %1969 = vmatmul.mubr.bf16.gmra.mxu0 %v1714
      %v1970 = vpop.f32.mrf.mxu0
      %v1971 = vadd.f32 0.0, %v1970
      %v1972 = vpop.f32.mrf.mxu0
      %v1973 = vpop.f32.mrf.mxu0
      %v1974 = vadd.f32 0.0, %v1973
      %v1975 = vpop.f32.mrf.mxu0
      %1976 = vmatprep.mubr.bf16.mxu0 0
      %1977 = vmatmul.mubr.bf16.gmra.mxu0 %v1713
      %v1978 = vpop.f32.mrf.mxu0
      %v1979 = vadd.f32 0.0, %v1978
      %v1980 = vpop.f32.mrf.mxu0
      %v1981 = vpop.f32.mrf.mxu0
      %v1982 = vpop.f32.mrf.mxu0
      %1983 = vdwg.mxu0
      %v1984 = vadd.f32 %v1472, %v1819
      %v1985 = vadd.f32 %v1473, %v1822
      %v1986 = vadd.f32 %v1474, %v1827
      %v1987 = vadd.f32 %v1475, %v1830
      %v1988 = vadd.f32 %v1476, %v1835
      %v1989 = vadd.f32 %v1477, %v1838
      %v1990 = vadd.f32 %v1478, %v1843
      %v1991 = vadd.f32 %v1479, %v1846
      %v1992 = vadd.f32 %v1480, %v1851
      %v1993 = vadd.f32 %v1481, %v1854
      %v1994 = vadd.f32 %v1482, %v1859
      %v1995 = vadd.f32 %v1483, %v1862
      %v1996 = vadd.f32 %v1484, %v1867
      %v1997 = vadd.f32 %v1485, %v1870
      %v1998 = vadd.f32 %v1486, %v1875
      %v1999 = vadd.f32 %v1487, %v1878
      %v2000 = vadd.f32 %v1488, %v1883
      %v2001 = vadd.f32 %v1489, %v1886
      %v2002 = vadd.f32 %v1490, %v1891
      %v2003 = vadd.f32 %v1491, %v1894
      %v2004 = vadd.f32 %v1492, %v1899
      %v2005 = vadd.f32 %v1493, %v1902
      %v2006 = vadd.f32 %v1494, %v1907
      %v2007 = vadd.f32 %v1495, %v1910
      %v2008 = vadd.f32 %v1496, %v1915
      %v2009 = vadd.f32 %v1497, %v1918
      %v2010 = vadd.f32 %v1498, %v1923
      %v2011 = vadd.f32 %v1499, %v1926
      %v2012 = vadd.f32 %v1500, %v1931
      %v2013 = vadd.f32 %v1501, %v1934
      %v2014 = vadd.f32 %v1502, %v1939
      %v2015 = vadd.f32 %v1503, %v1942
      %v2016 = vadd.f32 %v1504, %v1947
      %v2017 = vadd.f32 %v1505, %v1950
      %v2018 = vadd.f32 %v1506, %v1955
      %v2019 = vadd.f32 %v1507, %v1958
      %v2020 = vadd.f32 %v1508, %v1963
      %v2021 = vadd.f32 %v1509, %v1966
      %v2022 = vadd.f32 %v1510, %v1971
      %v2023 = vadd.f32 %v1511, %v1974
      %v2024 = vadd.f32 %v1512, %v1979
      %v2025 = vld [vmem:[%s246 + $0xa8] sm:$0xf]
      %s2026 = scalar_lea.vmem %s1, 256
      %v2027 = vld [vmem:[%s2026] sm:$0xf]
      %v2028 = vld [vmem:[%s2026 + $0x4] sm:$0xf]
      %v2029 = vld [vmem:[%s2026 + $0x8] sm:$0xf]
      %v2030 = vld [vmem:[%s2026 + $0xc] sm:$0xf]
      %v2031 = vld [vmem:[%s2026 + $0x10] sm:$0xf]
      %v2032 = vld [vmem:[%s2026 + $0x14] sm:$0xf]
      %v2033 = vld [vmem:[%s2026 + $0x18] sm:$0xf]
      %v2034 = vld [vmem:[%s2026 + $0x1c] sm:$0xf]
      %v2035 = vld [vmem:[%s2026 + $0x20] sm:$0xf]
      %v2036 = vld [vmem:[%s2026 + $0x24] sm:$0xf]
      %v2037 = vld [vmem:[%s2026 + $0x28] sm:$0xf]
      %v2038 = vld [vmem:[%s2026 + $0x2c] sm:$0xf]
      %v2039 = vld [vmem:[%s2026 + $0x30] sm:$0xf]
      %v2040 = vld [vmem:[%s2026 + $0x34] sm:$0xf]
      %v2041 = vld [vmem:[%s2026 + $0x38] sm:$0xf]
      %v2042 = vld [vmem:[%s2026 + $0x3c] sm:$0xf]
      %v2044 = vunpack.c.l.b16 %v2025
      %v2045 = vpack.c.b16 %v2044, %v2044
      %vm2046 = vsmask.f32 6400
      %v2048 = vshrl.u32 %v1653, 16
      %v2050 = vrot.slane %v2048, 1
      %v2051 = vshll.u32 %v1653, 16
      %v2053 = vrot.slane %v2051, 2
      %v2054 = vor.u32 %v2050, %v2053
      %v2056 = vshrl.u32 %v1654, 16
      %v2058 = vrot.slane %v2056, 1
      %v2059 = vshll.u32 %v1654, 16
      %v2061 = vrot.slane %v2059, 2
      %v2062 = vor.u32 %v2058, %v2061
      %v2063 = vsel %vm2046, %v2054, %v2062
      %v2065 = vshrl.u32 %v1655, 16
      %v2067 = vrot.slane %v2065, 1
      %v2068 = vshll.u32 %v1655, 16
      %v2070 = vrot.slane %v2068, 2
      %v2071 = vor.u32 %v2067, %v2070
      %v2072 = vsel %vm2046, %v2062, %v2071
      %v2074 = vshrl.u32 %v1656, 16
      %v2076 = vrot.slane %v2074, 1
      %v2077 = vshll.u32 %v1656, 16
      %v2079 = vrot.slane %v2077, 2
      %v2080 = vor.u32 %v2076, %v2079
      %v2081 = vsel %vm2046, %v2071, %v2080
      %v2083 = vshrl.u32 %v1657, 16
      %v2085 = vrot.slane %v2083, 1
      %v2086 = vshll.u32 %v1657, 16
      %v2088 = vrot.slane %v2086, 2
      %v2089 = vor.u32 %v2085, %v2088
      %v2090 = vsel %vm2046, %v2080, %v2089
      %v2092 = vshrl.u32 %v1658, 16
      %v2094 = vrot.slane %v2092, 1
      %v2095 = vshll.u32 %v1658, 16
      %v2097 = vrot.slane %v2095, 2
      %v2098 = vor.u32 %v2094, %v2097
      %v2099 = vsel %vm2046, %v2089, %v2098
      %v2101 = vshrl.u32 %v1659, 16
      %v2103 = vrot.slane %v2101, 1
      %v2104 = vshll.u32 %v1659, 16
      %v2106 = vrot.slane %v2104, 2
      %v2107 = vor.u32 %v2103, %v2106
      %v2108 = vsel %vm2046, %v2098, %v2107
      %v2110 = vshrl.u32 %v1660, 16
      %v2112 = vrot.slane %v2110, 1
      %v2113 = vshll.u32 %v1660, 16
      %v2115 = vrot.slane %v2113, 2
      %v2116 = vor.u32 %v2112, %v2115
      %v2117 = vsel %vm2046, %v2107, %v2116
      %v2119 = vshrl.u32 %v1661, 16
      %v2121 = vrot.slane %v2119, 1
      %v2122 = vshll.u32 %v1661, 16
      %v2124 = vrot.slane %v2122, 2
      %v2125 = vor.u32 %v2121, %v2124
      %v2126 = vsel %vm2046, %v2116, %v2125
      %v2128 = vshrl.u32 %v1662, 16
      %v2130 = vrot.slane %v2128, 1
      %v2131 = vshll.u32 %v1662, 16
      %v2133 = vrot.slane %v2131, 2
      %v2134 = vor.u32 %v2130, %v2133
      %v2135 = vsel %vm2046, %v2125, %v2134
      %v2137 = vshrl.u32 %v1663, 16
      %v2139 = vrot.slane %v2137, 1
      %v2140 = vshll.u32 %v1663, 16
      %v2142 = vrot.slane %v2140, 2
      %v2143 = vor.u32 %v2139, %v2142
      %v2144 = vsel %vm2046, %v2134, %v2143
      %v2146 = vshrl.u32 %v1664, 16
      %v2148 = vrot.slane %v2146, 1
      %v2149 = vshll.u32 %v1664, 16
      %v2151 = vrot.slane %v2149, 2
      %v2152 = vor.u32 %v2148, %v2151
      %v2153 = vsel %vm2046, %v2143, %v2152
      %v2155 = vshrl.u32 %v1665, 16
      %v2157 = vrot.slane %v2155, 1
      %v2158 = vshll.u32 %v1665, 16
      %v2160 = vrot.slane %v2158, 2
      %v2161 = vor.u32 %v2157, %v2160
      %v2162 = vsel %vm2046, %v2152, %v2161
      %v2164 = vshrl.u32 %v1666, 16
      %v2166 = vrot.slane %v2164, 1
      %v2167 = vshll.u32 %v1666, 16
      %v2169 = vrot.slane %v2167, 2
      %v2170 = vor.u32 %v2166, %v2169
      %v2171 = vsel %vm2046, %v2161, %v2170
      %v2173 = vshrl.u32 %v1667, 16
      %v2175 = vrot.slane %v2173, 1
      %v2176 = vshll.u32 %v1667, 16
      %v2178 = vrot.slane %v2176, 2
      %v2179 = vor.u32 %v2175, %v2178
      %v2180 = vsel %vm2046, %v2170, %v2179
      %v2182 = vshrl.u32 %v1668, 16
      %v2184 = vrot.slane %v2182, 1
      %v2185 = vshll.u32 %v1668, 16
      %v2187 = vrot.slane %v2185, 2
      %v2188 = vor.u32 %v2184, %v2187
      %v2189 = vsel %vm2046, %v2179, %v2188
      %v2191 = vshrl.u32 %v1669, 16
      %v2193 = vrot.slane %v2191, 1
      %v2194 = vshll.u32 %v1669, 16
      %v2196 = vrot.slane %v2194, 2
      %v2197 = vor.u32 %v2193, %v2196
      %v2198 = vsel %vm2046, %v2188, %v2197
      %v2200 = vshrl.u32 %v1670, 16
      %v2202 = vrot.slane %v2200, 1
      %v2203 = vshll.u32 %v1670, 16
      %v2205 = vrot.slane %v2203, 2
      %v2206 = vor.u32 %v2202, %v2205
      %v2207 = vsel %vm2046, %v2197, %v2206
      %v2209 = vshrl.u32 %v1671, 16
      %v2211 = vrot.slane %v2209, 1
      %v2212 = vshll.u32 %v1671, 16
      %v2214 = vrot.slane %v2212, 2
      %v2215 = vor.u32 %v2211, %v2214
      %v2216 = vsel %vm2046, %v2206, %v2215
      %v2218 = vshrl.u32 %v1672, 16
      %v2220 = vrot.slane %v2218, 1
      %v2221 = vshll.u32 %v1672, 16
      %v2223 = vrot.slane %v2221, 2
      %v2224 = vor.u32 %v2220, %v2223
      %v2225 = vsel %vm2046, %v2215, %v2224
      %v2227 = vshrl.u32 %v2045, 16
      %v2229 = vrot.slane %v2227, 1
      %v2230 = vshll.u32 %v2045, 16
      %v2232 = vrot.slane %v2230, 2
      %v2233 = vor.u32 %v2229, %v2232
      %v2234 = vsel %vm2046, %v2224, %v2233
      %v2272 = vunpack.c.l.b16 %v2027
      %v2273 = vunpack.c.l.b16 %v2028
      %v2274 = vunpack.c.l.b16 %v2029
      %v2275 = vunpack.c.l.b16 %v2030
      %v2276 = vunpack.c.l.b16 %v2031
      %v2277 = vunpack.c.l.b16 %v2032
      %v2278 = vunpack.c.l.b16 %v2033
      %v2279 = vunpack.c.l.b16 %v2034
      %v2280 = vunpack.c.l.b16 %v2035
      %v2281 = vunpack.c.l.b16 %v2036
      %v2282 = vunpack.c.l.b16 %v2037
      %v2283 = vunpack.c.l.b16 %v2038
      %v2284 = vunpack.c.l.b16 %v2039
      %v2285 = vunpack.c.l.b16 %v2040
      %v2286 = vunpack.c.l.b16 %v2041
      %v2287 = vunpack.c.l.b16 %v2042
      %v2288 = vpack.c.b16 %v2273, %v2272
      %v2289 = vpack.c.b16 %v2275, %v2274
      %v2290 = vpack.c.b16 %v2277, %v2276
      %v2291 = vpack.c.b16 %v2279, %v2278
      %v2292 = vpack.c.b16 %v2281, %v2280
      %v2293 = vpack.c.b16 %v2283, %v2282
      %v2294 = vpack.c.b16 %v2285, %v2284
      %v2295 = vpack.c.b16 %v2287, %v2286
      %2304 = vmatprep.subr.bf16.mxu0 0
      %2305 = vmatpush1.bf16.msra.mxu0 %v2295
      %2306 = vmatprep.subr.bf16.mxu0 0
      %2307 = vmatpush1.bf16.msra.mxu0 %v2294
      %2308 = vmatprep.subr.bf16.mxu0 0
      %2309 = vmatpush1.bf16.msra.mxu0 %v2293
      %2310 = vmatprep.subr.bf16.mxu0 0
      %2311 = vmatpush1.bf16.msra.mxu0 %v2292
      %2312 = vmatprep.subr.bf16.mxu0 0
      %2313 = vmatpush1.bf16.msra.mxu0 %v2291
      %2314 = vmatprep.subr.bf16.mxu0 0
      %2315 = vmatpush1.bf16.msra.mxu0 %v2290
      %2316 = vmatprep.subr.bf16.mxu0 0
      %2317 = vmatpush1.bf16.msra.mxu0 %v2289
      %2318 = vmatprep.subr.bf16.mxu0 0
      %2319 = vmatpush1.bf16.msra.mxu0 %v2288
      %2320 = vmatprep.subr.bf16.mxu0 0
      %2321 = vmatpush2.bf16.msra.mxu0 0
      %2322 = vmatprep.subr.bf16.mxu0 0
      %2323 = vmatpush2.bf16.msra.mxu0 0
      %2324 = vmatprep.subr.bf16.mxu0 0
      %2325 = vmatpush2.bf16.msra.mxu0 0
      %2326 = vmatprep.subr.bf16.mxu0 0
      %2327 = vmatpush2.bf16.msra.mxu0 0
      %2328 = vmatprep.subr.bf16.mxu0 0
      %2329 = vmatpush2.bf16.msra.mxu0 0
      %2330 = vmatprep.subr.bf16.mxu0 0
      %2331 = vmatpush2.bf16.msra.mxu0 0
      %2332 = vmatprep.subr.bf16.mxu0 0
      %2333 = vmatpush2.bf16.msra.mxu0 0
      %2334 = vmatprep.subr.bf16.mxu0 0
      %2335 = vmatpush2.bf16.msra.mxu0 0
      %2336 = vmatprep.mubr.bf16.mxu0 0
      %2337 = vmatmul.mubr.bf16.gmra.mxu0 %v2063
      %v2338 = vpop.f32.mrf.mxu0
      %v2339 = vadd.f32 0.0, %v2338
      %v2340 = vpop.f32.mrf.mxu0
      %v2341 = vpop.f32.mrf.mxu0
      %v2342 = vadd.f32 0.0, %v2341
      %v2343 = vpop.f32.mrf.mxu0
      %2344 = vmatprep.mubr.bf16.mxu0 0
      %2345 = vmatmul.mubr.bf16.gmra.mxu0 %v2072
      %v2346 = vpop.f32.mrf.mxu0
      %v2347 = vadd.f32 0.0, %v2346
      %v2348 = vpop.f32.mrf.mxu0
      %v2349 = vpop.f32.mrf.mxu0
      %v2350 = vadd.f32 0.0, %v2349
      %v2351 = vpop.f32.mrf.mxu0
      %2352 = vmatprep.mubr.bf16.mxu0 0
      %2353 = vmatmul.mubr.bf16.gmra.mxu0 %v2081
      %v2354 = vpop.f32.mrf.mxu0
      %v2355 = vadd.f32 0.0, %v2354
      %v2356 = vpop.f32.mrf.mxu0
      %v2357 = vpop.f32.mrf.mxu0
      %v2358 = vadd.f32 0.0, %v2357
      %v2359 = vpop.f32.mrf.mxu0
      %2360 = vmatprep.mubr.bf16.mxu0 0
      %2361 = vmatmul.mubr.bf16.gmra.mxu0 %v2090
      %v2362 = vpop.f32.mrf.mxu0
      %v2363 = vadd.f32 0.0, %v2362
      %v2364 = vpop.f32.mrf.mxu0
      %v2365 = vpop.f32.mrf.mxu0
      %v2366 = vadd.f32 0.0, %v2365
      %v2367 = vpop.f32.mrf.mxu0
      %2368 = vmatprep.mubr.bf16.mxu0 0
      %2369 = vmatmul.mubr.bf16.gmra.mxu0 %v2099
      %v2370 = vpop.f32.mrf.mxu0
      %v2371 = vadd.f32 0.0, %v2370
      %v2372 = vpop.f32.mrf.mxu0
      %v2373 = vpop.f32.mrf.mxu0
      %v2374 = vadd.f32 0.0, %v2373
      %v2375 = vpop.f32.mrf.mxu0
      %2376 = vmatprep.mubr.bf16.mxu0 0
      %2377 = vmatmul.mubr.bf16.gmra.mxu0 %v2108
      %v2378 = vpop.f32.mrf.mxu0
      %v2379 = vadd.f32 0.0, %v2378
      %v2380 = vpop.f32.mrf.mxu0
      %v2381 = vpop.f32.mrf.mxu0
      %v2382 = vadd.f32 0.0, %v2381
      %v2383 = vpop.f32.mrf.mxu0
      %2384 = vmatprep.mubr.bf16.mxu0 0
      %2385 = vmatmul.mubr.bf16.gmra.mxu0 %v2117
      %v2386 = vpop.f32.mrf.mxu0
      %v2387 = vadd.f32 0.0, %v2386
      %v2388 = vpop.f32.mrf.mxu0
      %v2389 = vpop.f32.mrf.mxu0
      %v2390 = vadd.f32 0.0, %v2389
      %v2391 = vpop.f32.mrf.mxu0
      %2392 = vmatprep.mubr.bf16.mxu0 0
      %2393 = vmatmul.mubr.bf16.gmra.mxu0 %v2126
      %v2394 = vpop.f32.mrf.mxu0
      %v2395 = vadd.f32 0.0, %v2394
      %v2396 = vpop.f32.mrf.mxu0
      %v2397 = vpop.f32.mrf.mxu0
      %v2398 = vadd.f32 0.0, %v2397
      %v2399 = vpop.f32.mrf.mxu0
      %2400 = vmatprep.mubr.bf16.mxu0 0
      %2401 = vmatmul.mubr.bf16.gmra.mxu0 %v2135
      %v2402 = vpop.f32.mrf.mxu0
      %v2403 = vadd.f32 0.0, %v2402
      %v2404 = vpop.f32.mrf.mxu0
      %v2405 = vpop.f32.mrf.mxu0
      %v2406 = vadd.f32 0.0, %v2405
      %v2407 = vpop.f32.mrf.mxu0
      %2408 = vmatprep.mubr.bf16.mxu0 0
      %2409 = vmatmul.mubr.bf16.gmra.mxu0 %v2144
      %v2410 = vpop.f32.mrf.mxu0
      %v2411 = vadd.f32 0.0, %v2410
      %v2412 = vpop.f32.mrf.mxu0
      %v2413 = vpop.f32.mrf.mxu0
      %v2414 = vadd.f32 0.0, %v2413
      %v2415 = vpop.f32.mrf.mxu0
      %2416 = vmatprep.mubr.bf16.mxu0 0
      %2417 = vmatmul.mubr.bf16.gmra.mxu0 %v2153
      %v2418 = vpop.f32.mrf.mxu0
      %v2419 = vadd.f32 0.0, %v2418
      %v2420 = vpop.f32.mrf.mxu0
      %v2421 = vpop.f32.mrf.mxu0
      %v2422 = vadd.f32 0.0, %v2421
      %v2423 = vpop.f32.mrf.mxu0
      %2424 = vmatprep.mubr.bf16.mxu0 0
      %2425 = vmatmul.mubr.bf16.gmra.mxu0 %v2162
      %v2426 = vpop.f32.mrf.mxu0
      %v2427 = vadd.f32 0.0, %v2426
      %v2428 = vpop.f32.mrf.mxu0
      %v2429 = vpop.f32.mrf.mxu0
      %v2430 = vadd.f32 0.0, %v2429
      %v2431 = vpop.f32.mrf.mxu0
      %2432 = vmatprep.mubr.bf16.mxu0 0
      %2433 = vmatmul.mubr.bf16.gmra.mxu0 %v2171
      %v2434 = vpop.f32.mrf.mxu0
      %v2435 = vadd.f32 0.0, %v2434
      %v2436 = vpop.f32.mrf.mxu0
      %v2437 = vpop.f32.mrf.mxu0
      %v2438 = vadd.f32 0.0, %v2437
      %v2439 = vpop.f32.mrf.mxu0
      %2440 = vmatprep.mubr.bf16.mxu0 0
      %2441 = vmatmul.mubr.bf16.gmra.mxu0 %v2180
      %v2442 = vpop.f32.mrf.mxu0
      %v2443 = vadd.f32 0.0, %v2442
      %v2444 = vpop.f32.mrf.mxu0
      %v2445 = vpop.f32.mrf.mxu0
      %v2446 = vadd.f32 0.0, %v2445
      %v2447 = vpop.f32.mrf.mxu0
      %2448 = vmatprep.mubr.bf16.mxu0 0
      %2449 = vmatmul.mubr.bf16.gmra.mxu0 %v2189
      %v2450 = vpop.f32.mrf.mxu0
      %v2451 = vadd.f32 0.0, %v2450
      %v2452 = vpop.f32.mrf.mxu0
      %v2453 = vpop.f32.mrf.mxu0
      %v2454 = vadd.f32 0.0, %v2453
      %v2455 = vpop.f32.mrf.mxu0
      %2456 = vmatprep.mubr.bf16.mxu0 0
      %2457 = vmatmul.mubr.bf16.gmra.mxu0 %v2198
      %v2458 = vpop.f32.mrf.mxu0
      %v2459 = vadd.f32 0.0, %v2458
      %v2460 = vpop.f32.mrf.mxu0
      %v2461 = vpop.f32.mrf.mxu0
      %v2462 = vadd.f32 0.0, %v2461
      %v2463 = vpop.f32.mrf.mxu0
      %2464 = vmatprep.mubr.bf16.mxu0 0
      %2465 = vmatmul.mubr.bf16.gmra.mxu0 %v2207
      %v2466 = vpop.f32.mrf.mxu0
      %v2467 = vadd.f32 0.0, %v2466
      %v2468 = vpop.f32.mrf.mxu0
      %v2469 = vpop.f32.mrf.mxu0
      %v2470 = vadd.f32 0.0, %v2469
      %v2471 = vpop.f32.mrf.mxu0
      %2472 = vmatprep.mubr.bf16.mxu0 0
      %2473 = vmatmul.mubr.bf16.gmra.mxu0 %v2216
      %v2474 = vpop.f32.mrf.mxu0
      %v2475 = vadd.f32 0.0, %v2474
      %v2476 = vpop.f32.mrf.mxu0
      %v2477 = vpop.f32.mrf.mxu0
      %v2478 = vadd.f32 0.0, %v2477
      %v2479 = vpop.f32.mrf.mxu0
      %2480 = vmatprep.mubr.bf16.mxu0 0
      %2481 = vmatmul.mubr.bf16.gmra.mxu0 %v2225
      %v2482 = vpop.f32.mrf.mxu0
      %v2483 = vadd.f32 0.0, %v2482
      %v2484 = vpop.f32.mrf.mxu0
      %v2485 = vpop.f32.mrf.mxu0
      %v2486 = vadd.f32 0.0, %v2485
      %v2487 = vpop.f32.mrf.mxu0
      %2488 = vmatprep.mubr.bf16.mxu0 0
      %2489 = vmatmul.mubr.bf16.gmra.mxu0 %v2234
      %v2490 = vpop.f32.mrf.mxu0
      %v2491 = vadd.f32 0.0, %v2490
      %v2492 = vpop.f32.mrf.mxu0
      %v2493 = vpop.f32.mrf.mxu0
      %v2494 = vadd.f32 0.0, %v2493
      %v2495 = vpop.f32.mrf.mxu0
      %2496 = vmatprep.mubr.bf16.mxu0 0
      %2497 = vmatmul.mubr.bf16.gmra.mxu0 %v2233
      %v2498 = vpop.f32.mrf.mxu0
      %v2499 = vadd.f32 0.0, %v2498
      %v2500 = vpop.f32.mrf.mxu0
      %v2501 = vpop.f32.mrf.mxu0
      %v2502 = vpop.f32.mrf.mxu0
      %2503 = vdwg.mxu0
      %v2504 = vadd.f32 %v1984, %v2339
      %v2505 = vadd.f32 %v1985, %v2342
      %v2506 = vadd.f32 %v1986, %v2347
      %v2507 = vadd.f32 %v1987, %v2350
      %v2508 = vadd.f32 %v1988, %v2355
      %v2509 = vadd.f32 %v1989, %v2358
      %v2510 = vadd.f32 %v1990, %v2363
      %v2511 = vadd.f32 %v1991, %v2366
      %v2512 = vadd.f32 %v1992, %v2371
      %v2513 = vadd.f32 %v1993, %v2374
      %v2514 = vadd.f32 %v1994, %v2379
      %v2515 = vadd.f32 %v1995, %v2382
      %v2516 = vadd.f32 %v1996, %v2387
      %v2517 = vadd.f32 %v1997, %v2390
      %v2518 = vadd.f32 %v1998, %v2395
      %v2519 = vadd.f32 %v1999, %v2398
      %v2520 = vadd.f32 %v2000, %v2403
      %v2521 = vadd.f32 %v2001, %v2406
      %v2522 = vadd.f32 %v2002, %v2411
      %v2523 = vadd.f32 %v2003, %v2414
      %v2524 = vadd.f32 %v2004, %v2419
      %v2525 = vadd.f32 %v2005, %v2422
      %v2526 = vadd.f32 %v2006, %v2427
      %v2527 = vadd.f32 %v2007, %v2430
      %v2528 = vadd.f32 %v2008, %v2435
      %v2529 = vadd.f32 %v2009, %v2438
      %v2530 = vadd.f32 %v2010, %v2443
      %v2531 = vadd.f32 %v2011, %v2446
      %v2532 = vadd.f32 %v2012, %v2451
      %v2533 = vadd.f32 %v2013, %v2454
      %v2534 = vadd.f32 %v2014, %v2459
      %v2535 = vadd.f32 %v2015, %v2462
      %v2536 = vadd.f32 %v2016, %v2467
      %v2537 = vadd.f32 %v2017, %v2470
      %v2538 = vadd.f32 %v2018, %v2475
      %v2539 = vadd.f32 %v2019, %v2478
      %v2540 = vadd.f32 %v2020, %v2483
      %v2541 = vadd.f32 %v2021, %v2486
      %v2542 = vadd.f32 %v2022, %v2491
      %v2543 = vadd.f32 %v2023, %v2494
      %v2544 = vadd.f32 %v2024, %v2499
      %v2545 = vld [vmem:[%s246 + $0x8] sm:$0xc]
      %s2546 = scalar_lea.vmem %s1, 320
      %v2547 = vld [vmem:[%s2546] sm:$0xf]
      %v2548 = vld [vmem:[%s2546 + $0x4] sm:$0xf]
      %v2549 = vld [vmem:[%s2546 + $0x8] sm:$0xf]
      %v2550 = vld [vmem:[%s2546 + $0xc] sm:$0xf]
      %v2551 = vld [vmem:[%s2546 + $0x10] sm:$0xf]
      %v2552 = vld [vmem:[%s2546 + $0x14] sm:$0xf]
      %v2553 = vld [vmem:[%s2546 + $0x18] sm:$0xf]
      %v2554 = vld [vmem:[%s2546 + $0x1c] sm:$0xf]
      %v2555 = vld [vmem:[%s2546 + $0x20] sm:$0xf]
      %v2556 = vld [vmem:[%s2546 + $0x24] sm:$0xf]
      %v2557 = vld [vmem:[%s2546 + $0x28] sm:$0xf]
      %v2558 = vld [vmem:[%s2546 + $0x2c] sm:$0xf]
      %v2559 = vld [vmem:[%s2546 + $0x30] sm:$0xf]
      %v2560 = vld [vmem:[%s2546 + $0x34] sm:$0xf]
      %v2561 = vld [vmem:[%s2546 + $0x38] sm:$0xf]
      %v2562 = vld [vmem:[%s2546 + $0x3c] sm:$0xf]
      %v2564 = vunpack.c.l.b16 %v2545
      %v2565 = vpack.c.b16 %v1613, %v2564
      %vm2566 = vcmask 1045504
      %v2567 = vrot.slane %v2565, 2
      %v2568 = vrot.slane %v1654, 2
      %v2569 = vsel %vm2566, %v2567, %v2568
      %v2570 = vrot.slane %v1655, 2
      %v2571 = vsel %vm2566, %v2568, %v2570
      %v2572 = vrot.slane %v1656, 2
      %v2573 = vsel %vm2566, %v2570, %v2572
      %v2574 = vrot.slane %v1657, 2
      %v2575 = vsel %vm2566, %v2572, %v2574
      %v2576 = vrot.slane %v1658, 2
      %v2577 = vsel %vm2566, %v2574, %v2576
      %v2578 = vrot.slane %v1659, 2
      %v2579 = vsel %vm2566, %v2576, %v2578
      %v2580 = vrot.slane %v1660, 2
      %v2581 = vsel %vm2566, %v2578, %v2580
      %v2582 = vrot.slane %v1661, 2
      %v2583 = vsel %vm2566, %v2580, %v2582
      %v2584 = vrot.slane %v1662, 2
      %v2585 = vsel %vm2566, %v2582, %v2584
      %v2586 = vrot.slane %v1663, 2
      %v2587 = vsel %vm2566, %v2584, %v2586
      %v2588 = vrot.slane %v1664, 2
      %v2589 = vsel %vm2566, %v2586, %v2588
      %v2590 = vrot.slane %v1665, 2
      %v2591 = vsel %vm2566, %v2588, %v2590
      %v2592 = vrot.slane %v1666, 2
      %v2593 = vsel %vm2566, %v2590, %v2592
      %v2594 = vrot.slane %v1667, 2
      %v2595 = vsel %vm2566, %v2592, %v2594
      %v2596 = vrot.slane %v1668, 2
      %v2597 = vsel %vm2566, %v2594, %v2596
      %v2598 = vrot.slane %v1669, 2
      %v2599 = vsel %vm2566, %v2596, %v2598
      %v2600 = vrot.slane %v1670, 2
      %v2601 = vsel %vm2566, %v2598, %v2600
      %v2602 = vrot.slane %v1671, 2
      %v2603 = vsel %vm2566, %v2600, %v2602
      %v2604 = vrot.slane %v1672, 2
      %v2605 = vsel %vm2566, %v2602, %v2604
      %v2606 = vrot.slane %v2045, 2
      %v2607 = vsel %vm2566, %v2604, %v2606
      %v2645 = vunpack.c.l.b16 %v2547
      %v2646 = vunpack.c.l.b16 %v2548
      %v2647 = vunpack.c.l.b16 %v2549
      %v2648 = vunpack.c.l.b16 %v2550
      %v2649 = vunpack.c.l.b16 %v2551
      %v2650 = vunpack.c.l.b16 %v2552
      %v2651 = vunpack.c.l.b16 %v2553
      %v2652 = vunpack.c.l.b16 %v2554
      %v2653 = vunpack.c.l.b16 %v2555
      %v2654 = vunpack.c.l.b16 %v2556
      %v2655 = vunpack.c.l.b16 %v2557
      %v2656 = vunpack.c.l.b16 %v2558
      %v2657 = vunpack.c.l.b16 %v2559
      %v2658 = vunpack.c.l.b16 %v2560
      %v2659 = vunpack.c.l.b16 %v2561
      %v2660 = vunpack.c.l.b16 %v2562
      %v2661 = vpack.c.b16 %v2646, %v2645
      %v2662 = vpack.c.b16 %v2648, %v2647
      %v2663 = vpack.c.b16 %v2650, %v2649
      %v2664 = vpack.c.b16 %v2652, %v2651
      %v2665 = vpack.c.b16 %v2654, %v2653
      %v2666 = vpack.c.b16 %v2656, %v2655
      %v2667 = vpack.c.b16 %v2658, %v2657
      %v2668 = vpack.c.b16 %v2660, %v2659
      %2677 = vmatprep.subr.bf16.mxu0 0
      %2678 = vmatpush1.bf16.msra.mxu0 %v2668
      %2679 = vmatprep.subr.bf16.mxu0 0
      %2680 = vmatpush1.bf16.msra.mxu0 %v2667
      %2681 = vmatprep.subr.bf16.mxu0 0
      %2682 = vmatpush1.bf16.msra.mxu0 %v2666
      %2683 = vmatprep.subr.bf16.mxu0 0
      %2684 = vmatpush1.bf16.msra.mxu0 %v2665
      %2685 = vmatprep.subr.bf16.mxu0 0
      %2686 = vmatpush1.bf16.msra.mxu0 %v2664
      %2687 = vmatprep.subr.bf16.mxu0 0
      %2688 = vmatpush1.bf16.msra.mxu0 %v2663
      %2689 = vmatprep.subr.bf16.mxu0 0
      %2690 = vmatpush1.bf16.msra.mxu0 %v2662
      %2691 = vmatprep.subr.bf16.mxu0 0
      %2692 = vmatpush1.bf16.msra.mxu0 %v2661
      %2693 = vmatprep.subr.bf16.mxu0 0
      %2694 = vmatpush2.bf16.msra.mxu0 0
      %2695 = vmatprep.subr.bf16.mxu0 0
      %2696 = vmatpush2.bf16.msra.mxu0 0
      %2697 = vmatprep.subr.bf16.mxu0 0
      %2698 = vmatpush2.bf16.msra.mxu0 0
      %2699 = vmatprep.subr.bf16.mxu0 0
      %2700 = vmatpush2.bf16.msra.mxu0 0
      %2701 = vmatprep.subr.bf16.mxu0 0
      %2702 = vmatpush2.bf16.msra.mxu0 0
      %2703 = vmatprep.subr.bf16.mxu0 0
      %2704 = vmatpush2.bf16.msra.mxu0 0
      %2705 = vmatprep.subr.bf16.mxu0 0
      %2706 = vmatpush2.bf16.msra.mxu0 0
      %2707 = vmatprep.subr.bf16.mxu0 0
      %2708 = vmatpush2.bf16.msra.mxu0 0
      %2709 = vmatprep.mubr.bf16.mxu0 0
      %2710 = vmatmul.mubr.bf16.gmra.mxu0 %v2569
      %v2711 = vpop.f32.mrf.mxu0
      %v2712 = vadd.f32 0.0, %v2711
      %v2713 = vpop.f32.mrf.mxu0
      %v2714 = vpop.f32.mrf.mxu0
      %v2715 = vadd.f32 0.0, %v2714
      %v2716 = vpop.f32.mrf.mxu0
      %2717 = vmatprep.mubr.bf16.mxu0 0
      %2718 = vmatmul.mubr.bf16.gmra.mxu0 %v2571
      %v2719 = vpop.f32.mrf.mxu0
      %v2720 = vadd.f32 0.0, %v2719
      %v2721 = vpop.f32.mrf.mxu0
      %v2722 = vpop.f32.mrf.mxu0
      %v2723 = vadd.f32 0.0, %v2722
      %v2724 = vpop.f32.mrf.mxu0
      %2725 = vmatprep.mubr.bf16.mxu0 0
      %2726 = vmatmul.mubr.bf16.gmra.mxu0 %v2573
      %v2727 = vpop.f32.mrf.mxu0
      %v2728 = vadd.f32 0.0, %v2727
      %v2729 = vpop.f32.mrf.mxu0
      %v2730 = vpop.f32.mrf.mxu0
      %v2731 = vadd.f32 0.0, %v2730
      %v2732 = vpop.f32.mrf.mxu0
      %2733 = vmatprep.mubr.bf16.mxu0 0
      %2734 = vmatmul.mubr.bf16.gmra.mxu0 %v2575
      %v2735 = vpop.f32.mrf.mxu0
      %v2736 = vadd.f32 0.0, %v2735
      %v2737 = vpop.f32.mrf.mxu0
      %v2738 = vpop.f32.mrf.mxu0
      %v2739 = vadd.f32 0.0, %v2738
      %v2740 = vpop.f32.mrf.mxu0
      %2741 = vmatprep.mubr.bf16.mxu0 0
      %2742 = vmatmul.mubr.bf16.gmra.mxu0 %v2577
      %v2743 = vpop.f32.mrf.mxu0
      %v2744 = vadd.f32 0.0, %v2743
      %v2745 = vpop.f32.mrf.mxu0
      %v2746 = vpop.f32.mrf.mxu0
      %v2747 = vadd.f32 0.0, %v2746
      %v2748 = vpop.f32.mrf.mxu0
      %2749 = vmatprep.mubr.bf16.mxu0 0
      %2750 = vmatmul.mubr.bf16.gmra.mxu0 %v2579
      %v2751 = vpop.f32.mrf.mxu0
      %v2752 = vadd.f32 0.0, %v2751
      %v2753 = vpop.f32.mrf.mxu0
      %v2754 = vpop.f32.mrf.mxu0
      %v2755 = vadd.f32 0.0, %v2754
      %v2756 = vpop.f32.mrf.mxu0
      %2757 = vmatprep.mubr.bf16.mxu0 0
      %2758 = vmatmul.mubr.bf16.gmra.mxu0 %v2581
      %v2759 = vpop.f32.mrf.mxu0
      %v2760 = vadd.f32 0.0, %v2759
      %v2761 = vpop.f32.mrf.mxu0
      %v2762 = vpop.f32.mrf.mxu0
      %v2763 = vadd.f32 0.0, %v2762
      %v2764 = vpop.f32.mrf.mxu0
      %2765 = vmatprep.mubr.bf16.mxu0 0
      %2766 = vmatmul.mubr.bf16.gmra.mxu0 %v2583
      %v2767 = vpop.f32.mrf.mxu0
      %v2768 = vadd.f32 0.0, %v2767
      %v2769 = vpop.f32.mrf.mxu0
      %v2770 = vpop.f32.mrf.mxu0
      %v2771 = vadd.f32 0.0, %v2770
      %v2772 = vpop.f32.mrf.mxu0
      %2773 = vmatprep.mubr.bf16.mxu0 0
      %2774 = vmatmul.mubr.bf16.gmra.mxu0 %v2585
      %v2775 = vpop.f32.mrf.mxu0
      %v2776 = vadd.f32 0.0, %v2775
      %v2777 = vpop.f32.mrf.mxu0
      %v2778 = vpop.f32.mrf.mxu0
      %v2779 = vadd.f32 0.0, %v2778
      %v2780 = vpop.f32.mrf.mxu0
      %2781 = vmatprep.mubr.bf16.mxu0 0
      %2782 = vmatmul.mubr.bf16.gmra.mxu0 %v2587
      %v2783 = vpop.f32.mrf.mxu0
      %v2784 = vadd.f32 0.0, %v2783
      %v2785 = vpop.f32.mrf.mxu0
      %v2786 = vpop.f32.mrf.mxu0
      %v2787 = vadd.f32 0.0, %v2786
      %v2788 = vpop.f32.mrf.mxu0
      %2789 = vmatprep.mubr.bf16.mxu0 0
      %2790 = vmatmul.mubr.bf16.gmra.mxu0 %v2589
      %v2791 = vpop.f32.mrf.mxu0
      %v2792 = vadd.f32 0.0, %v2791
      %v2793 = vpop.f32.mrf.mxu0
      %v2794 = vpop.f32.mrf.mxu0
      %v2795 = vadd.f32 0.0, %v2794
      %v2796 = vpop.f32.mrf.mxu0
      %2797 = vmatprep.mubr.bf16.mxu0 0
      %2798 = vmatmul.mubr.bf16.gmra.mxu0 %v2591
      %v2799 = vpop.f32.mrf.mxu0
      %v2800 = vadd.f32 0.0, %v2799
      %v2801 = vpop.f32.mrf.mxu0
      %v2802 = vpop.f32.mrf.mxu0
      %v2803 = vadd.f32 0.0, %v2802
      %v2804 = vpop.f32.mrf.mxu0
      %2805 = vmatprep.mubr.bf16.mxu0 0
      %2806 = vmatmul.mubr.bf16.gmra.mxu0 %v2593
      %v2807 = vpop.f32.mrf.mxu0
      %v2808 = vadd.f32 0.0, %v2807
      %v2809 = vpop.f32.mrf.mxu0
      %v2810 = vpop.f32.mrf.mxu0
      %v2811 = vadd.f32 0.0, %v2810
      %v2812 = vpop.f32.mrf.mxu0
      %2813 = vmatprep.mubr.bf16.mxu0 0
      %2814 = vmatmul.mubr.bf16.gmra.mxu0 %v2595
      %v2815 = vpop.f32.mrf.mxu0
      %v2816 = vadd.f32 0.0, %v2815
      %v2817 = vpop.f32.mrf.mxu0
      %v2818 = vpop.f32.mrf.mxu0
      %v2819 = vadd.f32 0.0, %v2818
      %v2820 = vpop.f32.mrf.mxu0
      %2821 = vmatprep.mubr.bf16.mxu0 0
      %2822 = vmatmul.mubr.bf16.gmra.mxu0 %v2597
      %v2823 = vpop.f32.mrf.mxu0
      %v2824 = vadd.f32 0.0, %v2823
      %v2825 = vpop.f32.mrf.mxu0
      %v2826 = vpop.f32.mrf.mxu0
      %v2827 = vadd.f32 0.0, %v2826
      %v2828 = vpop.f32.mrf.mxu0
      %2829 = vmatprep.mubr.bf16.mxu0 0
      %2830 = vmatmul.mubr.bf16.gmra.mxu0 %v2599
      %v2831 = vpop.f32.mrf.mxu0
      %v2832 = vadd.f32 0.0, %v2831
      %v2833 = vpop.f32.mrf.mxu0
      %v2834 = vpop.f32.mrf.mxu0
      %v2835 = vadd.f32 0.0, %v2834
      %v2836 = vpop.f32.mrf.mxu0
      %2837 = vmatprep.mubr.bf16.mxu0 0
      %2838 = vmatmul.mubr.bf16.gmra.mxu0 %v2601
      %v2839 = vpop.f32.mrf.mxu0
      %v2840 = vadd.f32 0.0, %v2839
      %v2841 = vpop.f32.mrf.mxu0
      %v2842 = vpop.f32.mrf.mxu0
      %v2843 = vadd.f32 0.0, %v2842
      %v2844 = vpop.f32.mrf.mxu0
      %2845 = vmatprep.mubr.bf16.mxu0 0
      %2846 = vmatmul.mubr.bf16.gmra.mxu0 %v2603
      %v2847 = vpop.f32.mrf.mxu0
      %v2848 = vadd.f32 0.0, %v2847
      %v2849 = vpop.f32.mrf.mxu0
      %v2850 = vpop.f32.mrf.mxu0
      %v2851 = vadd.f32 0.0, %v2850
      %v2852 = vpop.f32.mrf.mxu0
      %2853 = vmatprep.mubr.bf16.mxu0 0
      %2854 = vmatmul.mubr.bf16.gmra.mxu0 %v2605
      %v2855 = vpop.f32.mrf.mxu0
      %v2856 = vadd.f32 0.0, %v2855
      %v2857 = vpop.f32.mrf.mxu0
      %v2858 = vpop.f32.mrf.mxu0
      %v2859 = vadd.f32 0.0, %v2858
      %v2860 = vpop.f32.mrf.mxu0
      %2861 = vmatprep.mubr.bf16.mxu0 0
      %2862 = vmatmul.mubr.bf16.gmra.mxu0 %v2607
      %v2863 = vpop.f32.mrf.mxu0
      %v2864 = vadd.f32 0.0, %v2863
      %v2865 = vpop.f32.mrf.mxu0
      %v2866 = vpop.f32.mrf.mxu0
      %v2867 = vadd.f32 0.0, %v2866
      %v2868 = vpop.f32.mrf.mxu0
      %2869 = vmatprep.mubr.bf16.mxu0 0
      %2870 = vmatmul.mubr.bf16.gmra.mxu0 %v2606
      %v2871 = vpop.f32.mrf.mxu0
      %v2872 = vadd.f32 0.0, %v2871
      %v2873 = vpop.f32.mrf.mxu0
      %v2874 = vpop.f32.mrf.mxu0
      %v2875 = vpop.f32.mrf.mxu0
      %2876 = vdwg.mxu0
      %v2877 = vadd.f32 %v2504, %v2712
      %v2878 = vadd.f32 %v2505, %v2715
      %v2879 = vadd.f32 %v2506, %v2720
      %v2880 = vadd.f32 %v2507, %v2723
      %v2881 = vadd.f32 %v2508, %v2728
      %v2882 = vadd.f32 %v2509, %v2731
      %v2883 = vadd.f32 %v2510, %v2736
      %v2884 = vadd.f32 %v2511, %v2739
      %v2885 = vadd.f32 %v2512, %v2744
      %v2886 = vadd.f32 %v2513, %v2747
      %v2887 = vadd.f32 %v2514, %v2752
      %v2888 = vadd.f32 %v2515, %v2755
      %v2889 = vadd.f32 %v2516, %v2760
      %v2890 = vadd.f32 %v2517, %v2763
      %v2891 = vadd.f32 %v2518, %v2768
      %v2892 = vadd.f32 %v2519, %v2771
      %v2893 = vadd.f32 %v2520, %v2776
      %v2894 = vadd.f32 %v2521, %v2779
      %v2895 = vadd.f32 %v2522, %v2784
      %v2896 = vadd.f32 %v2523, %v2787
      %v2897 = vadd.f32 %v2524, %v2792
      %v2898 = vadd.f32 %v2525, %v2795
      %v2899 = vadd.f32 %v2526, %v2800
      %v2900 = vadd.f32 %v2527, %v2803
      %v2901 = vadd.f32 %v2528, %v2808
      %v2902 = vadd.f32 %v2529, %v2811
      %v2903 = vadd.f32 %v2530, %v2816
      %v2904 = vadd.f32 %v2531, %v2819
      %v2905 = vadd.f32 %v2532, %v2824
      %v2906 = vadd.f32 %v2533, %v2827
      %v2907 = vadd.f32 %v2534, %v2832
      %v2908 = vadd.f32 %v2535, %v2835
      %v2909 = vadd.f32 %v2536, %v2840
      %v2910 = vadd.f32 %v2537, %v2843
      %v2911 = vadd.f32 %v2538, %v2848
      %v2912 = vadd.f32 %v2539, %v2851
      %v2913 = vadd.f32 %v2540, %v2856
      %v2914 = vadd.f32 %v2541, %v2859
      %v2915 = vadd.f32 %v2542, %v2864
      %v2916 = vadd.f32 %v2543, %v2867
      %v2917 = vadd.f32 %v2544, %v2872
      %v2918 = vld [vmem:[%s246 + $0x10] sm:$0xc]
      %v2919 = vld [vmem:[%s246 + $0x14] sm:$0xf]
      %v2920 = vld [vmem:[%s246 + $0x18] sm:$0xf]
      %v2921 = vld [vmem:[%s246 + $0x1c] sm:$0xf]
      %v2922 = vld [vmem:[%s246 + $0x20] sm:$0xf]
      %v2923 = vld [vmem:[%s246 + $0x24] sm:$0xf]
      %v2924 = vld [vmem:[%s246 + $0x28] sm:$0xf]
      %v2925 = vld [vmem:[%s246 + $0x2c] sm:$0xf]
      %v2926 = vld [vmem:[%s246 + $0x30] sm:$0xf]
      %v2927 = vld [vmem:[%s246 + $0x34] sm:$0xf]
      %v2928 = vld [vmem:[%s246 + $0x38] sm:$0xf]
      %v2929 = vld [vmem:[%s246 + $0x3c] sm:$0xf]
      %v2930 = vld [vmem:[%s246 + $0x40] sm:$0xf]
      %v2931 = vld [vmem:[%s246 + $0x44] sm:$0xf]
      %v2932 = vld [vmem:[%s246 + $0x48] sm:$0xf]
      %v2933 = vld [vmem:[%s246 + $0x4c] sm:$0xf]
      %v2934 = vld [vmem:[%s246 + $0x50] sm:$0xf]
      %v2935 = vld [vmem:[%s246 + $0x54] sm:$0xf]
      %v2936 = vld [vmem:[%s246 + $0x58] sm:$0xf]
      %v2937 = vld [vmem:[%s246 + $0x5c] sm:$0xf]
      %v2938 = vld [vmem:[%s246 + $0x60] sm:$0xf]
      %v2939 = vld [vmem:[%s246 + $0x64] sm:$0xf]
      %v2940 = vld [vmem:[%s246 + $0x68] sm:$0xf]
      %v2941 = vld [vmem:[%s246 + $0x6c] sm:$0xf]
      %v2942 = vld [vmem:[%s246 + $0x70] sm:$0xf]
      %v2943 = vld [vmem:[%s246 + $0x74] sm:$0xf]
      %v2944 = vld [vmem:[%s246 + $0x78] sm:$0xf]
      %v2945 = vld [vmem:[%s246 + $0x7c] sm:$0xf]
      %v2946 = vld [vmem:[%s246 + $0x80] sm:$0xf]
      %v2947 = vld [vmem:[%s246 + $0x84] sm:$0xf]
      %v2948 = vld [vmem:[%s246 + $0x88] sm:$0xf]
      %v2949 = vld [vmem:[%s246 + $0x8c] sm:$0xf]
      %v2950 = vld [vmem:[%s246 + $0x90] sm:$0xf]
      %v2951 = vld [vmem:[%s246 + $0x94] sm:$0xf]
      %v2952 = vld [vmem:[%s246 + $0x98] sm:$0xf]
      %v2953 = vld [vmem:[%s246 + $0x9c] sm:$0xf]
      %v2954 = vld [vmem:[%s246 + $0xa0] sm:$0xf]
      %v2955 = vld [vmem:[%s246 + $0xa4] sm:$0xf]
      %v2956 = vld [vmem:[%s246 + $0xa8] sm:$0xf]
      %v2957 = vld [vmem:[%s246 + $0xac] sm:$0xf]
      %v2958 = vld [vmem:[%s246 + $0xb0] sm:$0xf]
      %s2959 = scalar_lea.vmem %s1, 384
      %v2960 = vld [vmem:[%s2959] sm:$0xf]
      %v2961 = vld [vmem:[%s2959 + $0x4] sm:$0xf]
      %v2962 = vld [vmem:[%s2959 + $0x8] sm:$0xf]
      %v2963 = vld [vmem:[%s2959 + $0xc] sm:$0xf]
      %v2964 = vld [vmem:[%s2959 + $0x10] sm:$0xf]
      %v2965 = vld [vmem:[%s2959 + $0x14] sm:$0xf]
      %v2966 = vld [vmem:[%s2959 + $0x18] sm:$0xf]
      %v2967 = vld [vmem:[%s2959 + $0x1c] sm:$0xf]
      %v2968 = vld [vmem:[%s2959 + $0x20] sm:$0xf]
      %v2969 = vld [vmem:[%s2959 + $0x24] sm:$0xf]
      %v2970 = vld [vmem:[%s2959 + $0x28] sm:$0xf]
      %v2971 = vld [vmem:[%s2959 + $0x2c] sm:$0xf]
      %v2972 = vld [vmem:[%s2959 + $0x30] sm:$0xf]
      %v2973 = vld [vmem:[%s2959 + $0x34] sm:$0xf]
      %v2974 = vld [vmem:[%s2959 + $0x38] sm:$0xf]
      %v2975 = vld [vmem:[%s2959 + $0x3c] sm:$0xf]
      %v3017 = vunpack.c.l.b16 %v2918
      %v3018 = vunpack.c.l.b16 %v2919
      %v3019 = vunpack.c.l.b16 %v2920
      %v3020 = vunpack.c.l.b16 %v2921
      %v3021 = vunpack.c.l.b16 %v2922
      %v3022 = vunpack.c.l.b16 %v2923
      %v3023 = vunpack.c.l.b16 %v2924
      %v3024 = vunpack.c.l.b16 %v2925
      %v3025 = vunpack.c.l.b16 %v2926
      %v3026 = vunpack.c.l.b16 %v2927
      %v3027 = vunpack.c.l.b16 %v2928
      %v3028 = vunpack.c.l.b16 %v2929
      %v3029 = vunpack.c.l.b16 %v2930
      %v3030 = vunpack.c.l.b16 %v2931
      %v3031 = vunpack.c.l.b16 %v2932
      %v3032 = vunpack.c.l.b16 %v2933
      %v3033 = vunpack.c.l.b16 %v2934
      %v3034 = vunpack.c.l.b16 %v2935
      %v3035 = vunpack.c.l.b16 %v2936
      %v3036 = vunpack.c.l.b16 %v2937
      %v3037 = vunpack.c.l.b16 %v2938
      %v3038 = vunpack.c.l.b16 %v2939
      %v3039 = vunpack.c.l.b16 %v2940
      %v3040 = vunpack.c.l.b16 %v2941
      %v3041 = vunpack.c.l.b16 %v2942
      %v3042 = vunpack.c.l.b16 %v2943
      %v3043 = vunpack.c.l.b16 %v2944
      %v3044 = vunpack.c.l.b16 %v2945
      %v3045 = vunpack.c.l.b16 %v2946
      %v3046 = vunpack.c.l.b16 %v2947
      %v3047 = vunpack.c.l.b16 %v2948
      %v3048 = vunpack.c.l.b16 %v2949
      %v3049 = vunpack.c.l.b16 %v2950
      %v3050 = vunpack.c.l.b16 %v2951
      %v3051 = vunpack.c.l.b16 %v2952
      %v3052 = vunpack.c.l.b16 %v2953
      %v3053 = vunpack.c.l.b16 %v2954
      %v3054 = vunpack.c.l.b16 %v2955
      %v3055 = vunpack.c.l.b16 %v2956
      %v3056 = vunpack.c.l.b16 %v2957
      %v3057 = vunpack.c.l.b16 %v2958
      %v3058 = vpack.c.b16 %v3018, %v3017
      %v3059 = vpack.c.b16 %v3020, %v3019
      %v3060 = vpack.c.b16 %v3022, %v3021
      %v3061 = vpack.c.b16 %v3024, %v3023
      %v3062 = vpack.c.b16 %v3026, %v3025
      %v3063 = vpack.c.b16 %v3028, %v3027
      %v3064 = vpack.c.b16 %v3030, %v3029
      %v3065 = vpack.c.b16 %v3032, %v3031
      %v3066 = vpack.c.b16 %v3034, %v3033
      %v3067 = vpack.c.b16 %v3036, %v3035
      %v3068 = vpack.c.b16 %v3038, %v3037
      %v3069 = vpack.c.b16 %v3040, %v3039
      %v3070 = vpack.c.b16 %v3042, %v3041
      %v3071 = vpack.c.b16 %v3044, %v3043
      %v3072 = vpack.c.b16 %v3046, %v3045
      %v3073 = vpack.c.b16 %v3048, %v3047
      %v3074 = vpack.c.b16 %v3050, %v3049
      %v3075 = vpack.c.b16 %v3052, %v3051
      %v3076 = vpack.c.b16 %v3054, %v3053
      %v3077 = vpack.c.b16 %v3056, %v3055
      %v3078 = vpack.c.b16 %v3057, %v3057
      %v3079 = vrot.slane %v3058, 2
      %v3080 = vrot.slane %v3059, 2
      %v3081 = vsel %vm2566, %v3079, %v3080
      %v3082 = vrot.slane %v3060, 2
      %v3083 = vsel %vm2566, %v3080, %v3082
      %v3084 = vrot.slane %v3061, 2
      %v3085 = vsel %vm2566, %v3082, %v3084
      %v3086 = vrot.slane %v3062, 2
      %v3087 = vsel %vm2566, %v3084, %v3086
      %v3088 = vrot.slane %v3063, 2
      %v3089 = vsel %vm2566, %v3086, %v3088
      %v3090 = vrot.slane %v3064, 2
      %v3091 = vsel %vm2566, %v3088, %v3090
      %v3092 = vrot.slane %v3065, 2
      %v3093 = vsel %vm2566, %v3090, %v3092
      %v3094 = vrot.slane %v3066, 2
      %v3095 = vsel %vm2566, %v3092, %v3094
      %v3096 = vrot.slane %v3067, 2
      %v3097 = vsel %vm2566, %v3094, %v3096
      %v3098 = vrot.slane %v3068, 2
      %v3099 = vsel %vm2566, %v3096, %v3098
      %v3100 = vrot.slane %v3069, 2
      %v3101 = vsel %vm2566, %v3098, %v3100
      %v3102 = vrot.slane %v3070, 2
      %v3103 = vsel %vm2566, %v3100, %v3102
      %v3104 = vrot.slane %v3071, 2
      %v3105 = vsel %vm2566, %v3102, %v3104
      %v3106 = vrot.slane %v3072, 2
      %v3107 = vsel %vm2566, %v3104, %v3106
      %v3108 = vrot.slane %v3073, 2
      %v3109 = vsel %vm2566, %v3106, %v3108
      %v3110 = vrot.slane %v3074, 2
      %v3111 = vsel %vm2566, %v3108, %v3110
      %v3112 = vrot.slane %v3075, 2
      %v3113 = vsel %vm2566, %v3110, %v3112
      %v3114 = vrot.slane %v3076, 2
      %v3115 = vsel %vm2566, %v3112, %v3114
      %v3116 = vrot.slane %v3077, 2
      %v3117 = vsel %vm2566, %v3114, %v3116
      %v3118 = vrot.slane %v3078, 2
      %v3119 = vsel %vm2566, %v3116, %v3118
      %v3157 = vunpack.c.l.b16 %v2960
      %v3158 = vunpack.c.l.b16 %v2961
      %v3159 = vunpack.c.l.b16 %v2962
      %v3160 = vunpack.c.l.b16 %v2963
      %v3161 = vunpack.c.l.b16 %v2964
      %v3162 = vunpack.c.l.b16 %v2965
      %v3163 = vunpack.c.l.b16 %v2966
      %v3164 = vunpack.c.l.b16 %v2967
      %v3165 = vunpack.c.l.b16 %v2968
      %v3166 = vunpack.c.l.b16 %v2969
      %v3167 = vunpack.c.l.b16 %v2970
      %v3168 = vunpack.c.l.b16 %v2971
      %v3169 = vunpack.c.l.b16 %v2972
      %v3170 = vunpack.c.l.b16 %v2973
      %v3171 = vunpack.c.l.b16 %v2974
      %v3172 = vunpack.c.l.b16 %v2975
      %v3173 = vpack.c.b16 %v3158, %v3157
      %v3174 = vpack.c.b16 %v3160, %v3159
      %v3175 = vpack.c.b16 %v3162, %v3161
      %v3176 = vpack.c.b16 %v3164, %v3163
      %v3177 = vpack.c.b16 %v3166, %v3165
      %v3178 = vpack.c.b16 %v3168, %v3167
      %v3179 = vpack.c.b16 %v3170, %v3169
      %v3180 = vpack.c.b16 %v3172, %v3171
      %3189 = vmatprep.subr.bf16.mxu0 0
      %3190 = vmatpush1.bf16.msra.mxu0 %v3180
      %3191 = vmatprep.subr.bf16.mxu0 0
      %3192 = vmatpush1.bf16.msra.mxu0 %v3179
      %3193 = vmatprep.subr.bf16.mxu0 0
      %3194 = vmatpush1.bf16.msra.mxu0 %v3178
      %3195 = vmatprep.subr.bf16.mxu0 0
      %3196 = vmatpush1.bf16.msra.mxu0 %v3177
      %3197 = vmatprep.subr.bf16.mxu0 0
      %3198 = vmatpush1.bf16.msra.mxu0 %v3176
      %3199 = vmatprep.subr.bf16.mxu0 0
      %3200 = vmatpush1.bf16.msra.mxu0 %v3175
      %3201 = vmatprep.subr.bf16.mxu0 0
      %3202 = vmatpush1.bf16.msra.mxu0 %v3174
      %3203 = vmatprep.subr.bf16.mxu0 0
      %3204 = vmatpush1.bf16.msra.mxu0 %v3173
      %3205 = vmatprep.subr.bf16.mxu0 0
      %3206 = vmatpush2.bf16.msra.mxu0 0
      %3207 = vmatprep.subr.bf16.mxu0 0
      %3208 = vmatpush2.bf16.msra.mxu0 0
      %3209 = vmatprep.subr.bf16.mxu0 0
      %3210 = vmatpush2.bf16.msra.mxu0 0
      %3211 = vmatprep.subr.bf16.mxu0 0
      %3212 = vmatpush2.bf16.msra.mxu0 0
      %3213 = vmatprep.subr.bf16.mxu0 0
      %3214 = vmatpush2.bf16.msra.mxu0 0
      %3215 = vmatprep.subr.bf16.mxu0 0
      %3216 = vmatpush2.bf16.msra.mxu0 0
      %3217 = vmatprep.subr.bf16.mxu0 0
      %3218 = vmatpush2.bf16.msra.mxu0 0
      %3219 = vmatprep.subr.bf16.mxu0 0
      %3220 = vmatpush2.bf16.msra.mxu0 0
      %3221 = vmatprep.mubr.bf16.mxu0 0
      %3222 = vmatmul.mubr.bf16.gmra.mxu0 %v3081
      %v3223 = vpop.f32.mrf.mxu0
      %v3224 = vadd.f32 0.0, %v3223
      %v3225 = vpop.f32.mrf.mxu0
      %v3226 = vpop.f32.mrf.mxu0
      %v3227 = vadd.f32 0.0, %v3226
      %v3228 = vpop.f32.mrf.mxu0
      %3229 = vmatprep.mubr.bf16.mxu0 0
      %3230 = vmatmul.mubr.bf16.gmra.mxu0 %v3083
      %v3231 = vpop.f32.mrf.mxu0
      %v3232 = vadd.f32 0.0, %v3231
      %v3233 = vpop.f32.mrf.mxu0
      %v3234 = vpop.f32.mrf.mxu0
      %v3235 = vadd.f32 0.0, %v3234
      %v3236 = vpop.f32.mrf.mxu0
      %3237 = vmatprep.mubr.bf16.mxu0 0
      %3238 = vmatmul.mubr.bf16.gmra.mxu0 %v3085
      %v3239 = vpop.f32.mrf.mxu0
      %v3240 = vadd.f32 0.0, %v3239
      %v3241 = vpop.f32.mrf.mxu0
      %v3242 = vpop.f32.mrf.mxu0
      %v3243 = vadd.f32 0.0, %v3242
      %v3244 = vpop.f32.mrf.mxu0
      %3245 = vmatprep.mubr.bf16.mxu0 0
      %3246 = vmatmul.mubr.bf16.gmra.mxu0 %v3087
      %v3247 = vpop.f32.mrf.mxu0
      %v3248 = vadd.f32 0.0, %v3247
      %v3249 = vpop.f32.mrf.mxu0
      %v3250 = vpop.f32.mrf.mxu0
      %v3251 = vadd.f32 0.0, %v3250
      %v3252 = vpop.f32.mrf.mxu0
      %3253 = vmatprep.mubr.bf16.mxu0 0
      %3254 = vmatmul.mubr.bf16.gmra.mxu0 %v3089
      %v3255 = vpop.f32.mrf.mxu0
      %v3256 = vadd.f32 0.0, %v3255
      %v3257 = vpop.f32.mrf.mxu0
      %v3258 = vpop.f32.mrf.mxu0
      %v3259 = vadd.f32 0.0, %v3258
      %v3260 = vpop.f32.mrf.mxu0
      %3261 = vmatprep.mubr.bf16.mxu0 0
      %3262 = vmatmul.mubr.bf16.gmra.mxu0 %v3091
      %v3263 = vpop.f32.mrf.mxu0
      %v3264 = vadd.f32 0.0, %v3263
      %v3265 = vpop.f32.mrf.mxu0
      %v3266 = vpop.f32.mrf.mxu0
      %v3267 = vadd.f32 0.0, %v3266
      %v3268 = vpop.f32.mrf.mxu0
      %3269 = vmatprep.mubr.bf16.mxu0 0
      %3270 = vmatmul.mubr.bf16.gmra.mxu0 %v3093
      %v3271 = vpop.f32.mrf.mxu0
      %v3272 = vadd.f32 0.0, %v3271
      %v3273 = vpop.f32.mrf.mxu0
      %v3274 = vpop.f32.mrf.mxu0
      %v3275 = vadd.f32 0.0, %v3274
      %v3276 = vpop.f32.mrf.mxu0
      %3277 = vmatprep.mubr.bf16.mxu0 0
      %3278 = vmatmul.mubr.bf16.gmra.mxu0 %v3095
      %v3279 = vpop.f32.mrf.mxu0
      %v3280 = vadd.f32 0.0, %v3279
      %v3281 = vpop.f32.mrf.mxu0
      %v3282 = vpop.f32.mrf.mxu0
      %v3283 = vadd.f32 0.0, %v3282
      %v3284 = vpop.f32.mrf.mxu0
      %3285 = vmatprep.mubr.bf16.mxu0 0
      %3286 = vmatmul.mubr.bf16.gmra.mxu0 %v3097
      %v3287 = vpop.f32.mrf.mxu0
      %v3288 = vadd.f32 0.0, %v3287
      %v3289 = vpop.f32.mrf.mxu0
      %v3290 = vpop.f32.mrf.mxu0
      %v3291 = vadd.f32 0.0, %v3290
      %v3292 = vpop.f32.mrf.mxu0
      %3293 = vmatprep.mubr.bf16.mxu0 0
      %3294 = vmatmul.mubr.bf16.gmra.mxu0 %v3099
      %v3295 = vpop.f32.mrf.mxu0
      %v3296 = vadd.f32 0.0, %v3295
      %v3297 = vpop.f32.mrf.mxu0
      %v3298 = vpop.f32.mrf.mxu0
      %v3299 = vadd.f32 0.0, %v3298
      %v3300 = vpop.f32.mrf.mxu0
      %3301 = vmatprep.mubr.bf16.mxu0 0
      %3302 = vmatmul.mubr.bf16.gmra.mxu0 %v3101
      %v3303 = vpop.f32.mrf.mxu0
      %v3304 = vadd.f32 0.0, %v3303
      %v3305 = vpop.f32.mrf.mxu0
      %v3306 = vpop.f32.mrf.mxu0
      %v3307 = vadd.f32 0.0, %v3306
      %v3308 = vpop.f32.mrf.mxu0
      %3309 = vmatprep.mubr.bf16.mxu0 0
      %3310 = vmatmul.mubr.bf16.gmra.mxu0 %v3103
      %v3311 = vpop.f32.mrf.mxu0
      %v3312 = vadd.f32 0.0, %v3311
      %v3313 = vpop.f32.mrf.mxu0
      %v3314 = vpop.f32.mrf.mxu0
      %v3315 = vadd.f32 0.0, %v3314
      %v3316 = vpop.f32.mrf.mxu0
      %3317 = vmatprep.mubr.bf16.mxu0 0
      %3318 = vmatmul.mubr.bf16.gmra.mxu0 %v3105
      %v3319 = vpop.f32.mrf.mxu0
      %v3320 = vadd.f32 0.0, %v3319
      %v3321 = vpop.f32.mrf.mxu0
      %v3322 = vpop.f32.mrf.mxu0
      %v3323 = vadd.f32 0.0, %v3322
      %v3324 = vpop.f32.mrf.mxu0
      %3325 = vmatprep.mubr.bf16.mxu0 0
      %3326 = vmatmul.mubr.bf16.gmra.mxu0 %v3107
      %v3327 = vpop.f32.mrf.mxu0
      %v3328 = vadd.f32 0.0, %v3327
      %v3329 = vpop.f32.mrf.mxu0
      %v3330 = vpop.f32.mrf.mxu0
      %v3331 = vadd.f32 0.0, %v3330
      %v3332 = vpop.f32.mrf.mxu0
      %3333 = vmatprep.mubr.bf16.mxu0 0
      %3334 = vmatmul.mubr.bf16.gmra.mxu0 %v3109
      %v3335 = vpop.f32.mrf.mxu0
      %v3336 = vadd.f32 0.0, %v3335
      %v3337 = vpop.f32.mrf.mxu0
      %v3338 = vpop.f32.mrf.mxu0
      %v3339 = vadd.f32 0.0, %v3338
      %v3340 = vpop.f32.mrf.mxu0
      %3341 = vmatprep.mubr.bf16.mxu0 0
      %3342 = vmatmul.mubr.bf16.gmra.mxu0 %v3111
      %v3343 = vpop.f32.mrf.mxu0
      %v3344 = vadd.f32 0.0, %v3343
      %v3345 = vpop.f32.mrf.mxu0
      %v3346 = vpop.f32.mrf.mxu0
      %v3347 = vadd.f32 0.0, %v3346
      %v3348 = vpop.f32.mrf.mxu0
      %3349 = vmatprep.mubr.bf16.mxu0 0
      %3350 = vmatmul.mubr.bf16.gmra.mxu0 %v3113
      %v3351 = vpop.f32.mrf.mxu0
      %v3352 = vadd.f32 0.0, %v3351
      %v3353 = vpop.f32.mrf.mxu0
      %v3354 = vpop.f32.mrf.mxu0
      %v3355 = vadd.f32 0.0, %v3354
      %v3356 = vpop.f32.mrf.mxu0
      %3357 = vmatprep.mubr.bf16.mxu0 0
      %3358 = vmatmul.mubr.bf16.gmra.mxu0 %v3115
      %v3359 = vpop.f32.mrf.mxu0
      %v3360 = vadd.f32 0.0, %v3359
      %v3361 = vpop.f32.mrf.mxu0
      %v3362 = vpop.f32.mrf.mxu0
      %v3363 = vadd.f32 0.0, %v3362
      %v3364 = vpop.f32.mrf.mxu0
      %3365 = vmatprep.mubr.bf16.mxu0 0
      %3366 = vmatmul.mubr.bf16.gmra.mxu0 %v3117
      %v3367 = vpop.f32.mrf.mxu0
      %v3368 = vadd.f32 0.0, %v3367
      %v3369 = vpop.f32.mrf.mxu0
      %v3370 = vpop.f32.mrf.mxu0
      %v3371 = vadd.f32 0.0, %v3370
      %v3372 = vpop.f32.mrf.mxu0
      %3373 = vmatprep.mubr.bf16.mxu0 0
      %3374 = vmatmul.mubr.bf16.gmra.mxu0 %v3119
      %v3375 = vpop.f32.mrf.mxu0
      %v3376 = vadd.f32 0.0, %v3375
      %v3377 = vpop.f32.mrf.mxu0
      %v3378 = vpop.f32.mrf.mxu0
      %v3379 = vadd.f32 0.0, %v3378
      %v3380 = vpop.f32.mrf.mxu0
      %3381 = vmatprep.mubr.bf16.mxu0 0
      %3382 = vmatmul.mubr.bf16.gmra.mxu0 %v3118
      %v3383 = vpop.f32.mrf.mxu0
      %v3384 = vadd.f32 0.0, %v3383
      %v3385 = vpop.f32.mrf.mxu0
      %v3386 = vpop.f32.mrf.mxu0
      %v3387 = vpop.f32.mrf.mxu0
      %3388 = vdwg.mxu0
      %v3389 = vadd.f32 %v2877, %v3224
      %v3390 = vadd.f32 %v2878, %v3227
      %v3391 = vadd.f32 %v2879, %v3232
      %v3392 = vadd.f32 %v2880, %v3235
      %v3393 = vadd.f32 %v2881, %v3240
      %v3394 = vadd.f32 %v2882, %v3243
      %v3395 = vadd.f32 %v2883, %v3248
      %v3396 = vadd.f32 %v2884, %v3251
      %v3397 = vadd.f32 %v2885, %v3256
      %v3398 = vadd.f32 %v2886, %v3259
      %v3399 = vadd.f32 %v2887, %v3264
      %v3400 = vadd.f32 %v2888, %v3267
      %v3401 = vadd.f32 %v2889, %v3272
      %v3402 = vadd.f32 %v2890, %v3275
      %v3403 = vadd.f32 %v2891, %v3280
      %v3404 = vadd.f32 %v2892, %v3283
      %v3405 = vadd.f32 %v2893, %v3288
      %v3406 = vadd.f32 %v2894, %v3291
      %v3407 = vadd.f32 %v2895, %v3296
      %v3408 = vadd.f32 %v2896, %v3299
      %v3409 = vadd.f32 %v2897, %v3304
      %v3410 = vadd.f32 %v2898, %v3307
      %v3411 = vadd.f32 %v2899, %v3312
      %v3412 = vadd.f32 %v2900, %v3315
      %v3413 = vadd.f32 %v2901, %v3320
      %v3414 = vadd.f32 %v2902, %v3323
      %v3415 = vadd.f32 %v2903, %v3328
      %v3416 = vadd.f32 %v2904, %v3331
      %v3417 = vadd.f32 %v2905, %v3336
      %v3418 = vadd.f32 %v2906, %v3339
      %v3419 = vadd.f32 %v2907, %v3344
      %v3420 = vadd.f32 %v2908, %v3347
      %v3421 = vadd.f32 %v2909, %v3352
      %v3422 = vadd.f32 %v2910, %v3355
      %v3423 = vadd.f32 %v2911, %v3360
      %v3424 = vadd.f32 %v2912, %v3363
      %v3425 = vadd.f32 %v2913, %v3368
      %v3426 = vadd.f32 %v2914, %v3371
      %v3427 = vadd.f32 %v2915, %v3376
      %v3428 = vadd.f32 %v2916, %v3379
      %v3429 = vadd.f32 %v2917, %v3384
      %v3430 = vld [vmem:[%s246 + $0x10] sm:$0xc]
      %v3431 = vld [vmem:[%s246 + $0x14] sm:$0xf]
      %v3432 = vld [vmem:[%s246 + $0x18] sm:$0xf]
      %v3433 = vld [vmem:[%s246 + $0x1c] sm:$0xf]
      %v3434 = vld [vmem:[%s246 + $0x20] sm:$0xf]
      %v3435 = vld [vmem:[%s246 + $0x24] sm:$0xf]
      %v3436 = vld [vmem:[%s246 + $0x28] sm:$0xf]
      %v3437 = vld [vmem:[%s246 + $0x2c] sm:$0xf]
      %v3438 = vld [vmem:[%s246 + $0x30] sm:$0xf]
      %v3439 = vld [vmem:[%s246 + $0x34] sm:$0xf]
      %v3440 = vld [vmem:[%s246 + $0x38] sm:$0xf]
      %v3441 = vld [vmem:[%s246 + $0x3c] sm:$0xf]
      %v3442 = vld [vmem:[%s246 + $0x40] sm:$0xf]
      %v3443 = vld [vmem:[%s246 + $0x44] sm:$0xf]
      %v3444 = vld [vmem:[%s246 + $0x48] sm:$0xf]
      %v3445 = vld [vmem:[%s246 + $0x4c] sm:$0xf]
      %v3446 = vld [vmem:[%s246 + $0x50] sm:$0xf]
      %v3447 = vld [vmem:[%s246 + $0x54] sm:$0xf]
      %v3448 = vld [vmem:[%s246 + $0x58] sm:$0xf]
      %v3449 = vld [vmem:[%s246 + $0x5c] sm:$0xf]
      %v3450 = vld [vmem:[%s246 + $0x60] sm:$0xf]
      %v3451 = vld [vmem:[%s246 + $0x64] sm:$0xf]
      %v3452 = vld [vmem:[%s246 + $0x68] sm:$0xf]
      %v3453 = vld [vmem:[%s246 + $0x6c] sm:$0xf]
      %v3454 = vld [vmem:[%s246 + $0x70] sm:$0xf]
      %v3455 = vld [vmem:[%s246 + $0x74] sm:$0xf]
      %v3456 = vld [vmem:[%s246 + $0x78] sm:$0xf]
      %v3457 = vld [vmem:[%s246 + $0x7c] sm:$0xf]
      %v3458 = vld [vmem:[%s246 + $0x80] sm:$0xf]
      %v3459 = vld [vmem:[%s246 + $0x84] sm:$0xf]
      %v3460 = vld [vmem:[%s246 + $0x88] sm:$0xf]
      %v3461 = vld [vmem:[%s246 + $0x8c] sm:$0xf]
      %v3462 = vld [vmem:[%s246 + $0x90] sm:$0xf]
      %v3463 = vld [vmem:[%s246 + $0x94] sm:$0xf]
      %v3464 = vld [vmem:[%s246 + $0x98] sm:$0xf]
      %v3465 = vld [vmem:[%s246 + $0x9c] sm:$0xf]
      %v3466 = vld [vmem:[%s246 + $0xa0] sm:$0xf]
      %v3467 = vld [vmem:[%s246 + $0xa4] sm:$0xf]
      %v3468 = vld [vmem:[%s246 + $0xa8] sm:$0xf]
      %v3469 = vld [vmem:[%s246 + $0xac] sm:$0xf]
      %v3470 = vld [vmem:[%s246 + $0xb0] sm:$0xf]
      %v3471 = vld [vmem:[%s246 + $0xb4] sm:$0x1]
      %s3472 = scalar_lea.vmem %s1, 448
      %v3473 = vld [vmem:[%s3472] sm:$0xf]
      %v3474 = vld [vmem:[%s3472 + $0x4] sm:$0xf]
      %v3475 = vld [vmem:[%s3472 + $0x8] sm:$0xf]
      %v3476 = vld [vmem:[%s3472 + $0xc] sm:$0xf]
      %v3477 = vld [vmem:[%s3472 + $0x10] sm:$0xf]
      %v3478 = vld [vmem:[%s3472 + $0x14] sm:$0xf]
      %v3479 = vld [vmem:[%s3472 + $0x18] sm:$0xf]
      %v3480 = vld [vmem:[%s3472 + $0x1c] sm:$0xf]
      %v3481 = vld [vmem:[%s3472 + $0x20] sm:$0xf]
      %v3482 = vld [vmem:[%s3472 + $0x24] sm:$0xf]
      %v3483 = vld [vmem:[%s3472 + $0x28] sm:$0xf]
      %v3484 = vld [vmem:[%s3472 + $0x2c] sm:$0xf]
      %v3485 = vld [vmem:[%s3472 + $0x30] sm:$0xf]
      %v3486 = vld [vmem:[%s3472 + $0x34] sm:$0xf]
      %v3487 = vld [vmem:[%s3472 + $0x38] sm:$0xf]
      %v3488 = vld [vmem:[%s3472 + $0x3c] sm:$0xf]
      %v3531 = vunpack.c.l.b16 %v3430
      %v3532 = vunpack.c.l.b16 %v3431
      %v3533 = vunpack.c.l.b16 %v3432
      %v3534 = vunpack.c.l.b16 %v3433
      %v3535 = vunpack.c.l.b16 %v3434
      %v3536 = vunpack.c.l.b16 %v3435
      %v3537 = vunpack.c.l.b16 %v3436
      %v3538 = vunpack.c.l.b16 %v3437
      %v3539 = vunpack.c.l.b16 %v3438
      %v3540 = vunpack.c.l.b16 %v3439
      %v3541 = vunpack.c.l.b16 %v3440
      %v3542 = vunpack.c.l.b16 %v3441
      %v3543 = vunpack.c.l.b16 %v3442
      %v3544 = vunpack.c.l.b16 %v3443
      %v3545 = vunpack.c.l.b16 %v3444
      %v3546 = vunpack.c.l.b16 %v3445
      %v3547 = vunpack.c.l.b16 %v3446
      %v3548 = vunpack.c.l.b16 %v3447
      %v3549 = vunpack.c.l.b16 %v3448
      %v3550 = vunpack.c.l.b16 %v3449
      %v3551 = vunpack.c.l.b16 %v3450
      %v3552 = vunpack.c.l.b16 %v3451
      %v3553 = vunpack.c.l.b16 %v3452
      %v3554 = vunpack.c.l.b16 %v3453
      %v3555 = vunpack.c.l.b16 %v3454
      %v3556 = vunpack.c.l.b16 %v3455
      %v3557 = vunpack.c.l.b16 %v3456
      %v3558 = vunpack.c.l.b16 %v3457
      %v3559 = vunpack.c.l.b16 %v3458
      %v3560 = vunpack.c.l.b16 %v3459
      %v3561 = vunpack.c.l.b16 %v3460
      %v3562 = vunpack.c.l.b16 %v3461
      %v3563 = vunpack.c.l.b16 %v3462
      %v3564 = vunpack.c.l.b16 %v3463
      %v3565 = vunpack.c.l.b16 %v3464
      %v3566 = vunpack.c.l.b16 %v3465
      %v3567 = vunpack.c.l.b16 %v3466
      %v3568 = vunpack.c.l.b16 %v3467
      %v3569 = vunpack.c.l.b16 %v3468
      %v3570 = vunpack.c.l.b16 %v3469
      %v3571 = vunpack.c.l.b16 %v3470
      %v3572 = vunpack.c.l.b16 %v3471
      %v3573 = vpack.c.b16 %v3532, %v3531
      %v3574 = vpack.c.b16 %v3534, %v3533
      %v3575 = vpack.c.b16 %v3536, %v3535
      %v3576 = vpack.c.b16 %v3538, %v3537
      %v3577 = vpack.c.b16 %v3540, %v3539
      %v3578 = vpack.c.b16 %v3542, %v3541
      %v3579 = vpack.c.b16 %v3544, %v3543
      %v3580 = vpack.c.b16 %v3546, %v3545
      %v3581 = vpack.c.b16 %v3548, %v3547
      %v3582 = vpack.c.b16 %v3550, %v3549
      %v3583 = vpack.c.b16 %v3552, %v3551
      %v3584 = vpack.c.b16 %v3554, %v3553
      %v3585 = vpack.c.b16 %v3556, %v3555
      %v3586 = vpack.c.b16 %v3558, %v3557
      %v3587 = vpack.c.b16 %v3560, %v3559
      %v3588 = vpack.c.b16 %v3562, %v3561
      %v3589 = vpack.c.b16 %v3564, %v3563
      %v3590 = vpack.c.b16 %v3566, %v3565
      %v3591 = vpack.c.b16 %v3568, %v3567
      %v3592 = vpack.c.b16 %v3570, %v3569
      %v3593 = vpack.c.b16 %v3572, %v3571
      %vm3594 = vsmask.f32 5376
      %v3596 = vshrl.u32 %v3573, 16
      %v3598 = vrot.slane %v3596, 2
      %v3599 = vshll.u32 %v3573, 16
      %v3601 = vrot.slane %v3599, 3
      %v3602 = vor.u32 %v3598, %v3601
      %v3604 = vshrl.u32 %v3574, 16
      %v3606 = vrot.slane %v3604, 2
      %v3607 = vshll.u32 %v3574, 16
      %v3609 = vrot.slane %v3607, 3
      %v3610 = vor.u32 %v3606, %v3609
      %v3611 = vsel %vm3594, %v3602, %v3610
      %v3613 = vshrl.u32 %v3575, 16
      %v3615 = vrot.slane %v3613, 2
      %v3616 = vshll.u32 %v3575, 16
      %v3618 = vrot.slane %v3616, 3
      %v3619 = vor.u32 %v3615, %v3618
      %v3620 = vsel %vm3594, %v3610, %v3619
      %v3622 = vshrl.u32 %v3576, 16
      %v3624 = vrot.slane %v3622, 2
      %v3625 = vshll.u32 %v3576, 16
      %v3627 = vrot.slane %v3625, 3
      %v3628 = vor.u32 %v3624, %v3627
      %v3629 = vsel %vm3594, %v3619, %v3628
      %v3631 = vshrl.u32 %v3577, 16
      %v3633 = vrot.slane %v3631, 2
      %v3634 = vshll.u32 %v3577, 16
      %v3636 = vrot.slane %v3634, 3
      %v3637 = vor.u32 %v3633, %v3636
      %v3638 = vsel %vm3594, %v3628, %v3637
      %v3640 = vshrl.u32 %v3578, 16
      %v3642 = vrot.slane %v3640, 2
      %v3643 = vshll.u32 %v3578, 16
      %v3645 = vrot.slane %v3643, 3
      %v3646 = vor.u32 %v3642, %v3645
      %v3647 = vsel %vm3594, %v3637, %v3646
      %v3649 = vshrl.u32 %v3579, 16
      %v3651 = vrot.slane %v3649, 2
      %v3652 = vshll.u32 %v3579, 16
      %v3654 = vrot.slane %v3652, 3
      %v3655 = vor.u32 %v3651, %v3654
      %v3656 = vsel %vm3594, %v3646, %v3655
      %v3658 = vshrl.u32 %v3580, 16
      %v3660 = vrot.slane %v3658, 2
      %v3661 = vshll.u32 %v3580, 16
      %v3663 = vrot.slane %v3661, 3
      %v3664 = vor.u32 %v3660, %v3663
      %v3665 = vsel %vm3594, %v3655, %v3664
      %v3667 = vshrl.u32 %v3581, 16
      %v3669 = vrot.slane %v3667, 2
      %v3670 = vshll.u32 %v3581, 16
      %v3672 = vrot.slane %v3670, 3
      %v3673 = vor.u32 %v3669, %v3672
      %v3674 = vsel %vm3594, %v3664, %v3673
      %v3676 = vshrl.u32 %v3582, 16
      %v3678 = vrot.slane %v3676, 2
      %v3679 = vshll.u32 %v3582, 16
      %v3681 = vrot.slane %v3679, 3
      %v3682 = vor.u32 %v3678, %v3681
      %v3683 = vsel %vm3594, %v3673, %v3682
      %v3685 = vshrl.u32 %v3583, 16
      %v3687 = vrot.slane %v3685, 2
      %v3688 = vshll.u32 %v3583, 16
      %v3690 = vrot.slane %v3688, 3
      %v3691 = vor.u32 %v3687, %v3690
      %v3692 = vsel %vm3594, %v3682, %v3691
      %v3694 = vshrl.u32 %v3584, 16
      %v3696 = vrot.slane %v3694, 2
      %v3697 = vshll.u32 %v3584, 16
      %v3699 = vrot.slane %v3697, 3
      %v3700 = vor.u32 %v3696, %v3699
      %v3701 = vsel %vm3594, %v3691, %v3700
      %v3703 = vshrl.u32 %v3585, 16
      %v3705 = vrot.slane %v3703, 2
      %v3706 = vshll.u32 %v3585, 16
      %v3708 = vrot.slane %v3706, 3
      %v3709 = vor.u32 %v3705, %v3708
      %v3710 = vsel %vm3594, %v3700, %v3709
      %v3712 = vshrl.u32 %v3586, 16
      %v3714 = vrot.slane %v3712, 2
      %v3715 = vshll.u32 %v3586, 16
      %v3717 = vrot.slane %v3715, 3
      %v3718 = vor.u32 %v3714, %v3717
      %v3719 = vsel %vm3594, %v3709, %v3718
      %v3721 = vshrl.u32 %v3587, 16
      %v3723 = vrot.slane %v3721, 2
      %v3724 = vshll.u32 %v3587, 16
      %v3726 = vrot.slane %v3724, 3
      %v3727 = vor.u32 %v3723, %v3726
      %v3728 = vsel %vm3594, %v3718, %v3727
      %v3730 = vshrl.u32 %v3588, 16
      %v3732 = vrot.slane %v3730, 2
      %v3733 = vshll.u32 %v3588, 16
      %v3735 = vrot.slane %v3733, 3
      %v3736 = vor.u32 %v3732, %v3735
      %v3737 = vsel %vm3594, %v3727, %v3736
      %v3739 = vshrl.u32 %v3589, 16
      %v3741 = vrot.slane %v3739, 2
      %v3742 = vshll.u32 %v3589, 16
      %v3744 = vrot.slane %v3742, 3
      %v3745 = vor.u32 %v3741, %v3744
      %v3746 = vsel %vm3594, %v3736, %v3745
      %v3748 = vshrl.u32 %v3590, 16
      %v3750 = vrot.slane %v3748, 2
      %v3751 = vshll.u32 %v3590, 16
      %v3753 = vrot.slane %v3751, 3
      %v3754 = vor.u32 %v3750, %v3753
      %v3755 = vsel %vm3594, %v3745, %v3754
      %v3757 = vshrl.u32 %v3591, 16
      %v3759 = vrot.slane %v3757, 2
      %v3760 = vshll.u32 %v3591, 16
      %v3762 = vrot.slane %v3760, 3
      %v3763 = vor.u32 %v3759, %v3762
      %v3764 = vsel %vm3594, %v3754, %v3763
      %v3766 = vshrl.u32 %v3592, 16
      %v3768 = vrot.slane %v3766, 2
      %v3769 = vshll.u32 %v3592, 16
      %v3771 = vrot.slane %v3769, 3
      %v3772 = vor.u32 %v3768, %v3771
      %v3773 = vsel %vm3594, %v3763, %v3772
      %v3775 = vshrl.u32 %v3593, 16
      %v3777 = vrot.slane %v3775, 2
      %v3778 = vshll.u32 %v3593, 16
      %v3780 = vrot.slane %v3778, 3
      %v3781 = vor.u32 %v3777, %v3780
      %v3782 = vsel %vm3594, %v3772, %v3781
      %v3820 = vunpack.c.l.b16 %v3473
      %v3821 = vunpack.c.l.b16 %v3474
      %v3822 = vunpack.c.l.b16 %v3475
      %v3823 = vunpack.c.l.b16 %v3476
      %v3824 = vunpack.c.l.b16 %v3477
      %v3825 = vunpack.c.l.b16 %v3478
      %v3826 = vunpack.c.l.b16 %v3479
      %v3827 = vunpack.c.l.b16 %v3480
      %v3828 = vunpack.c.l.b16 %v3481
      %v3829 = vunpack.c.l.b16 %v3482
      %v3830 = vunpack.c.l.b16 %v3483
      %v3831 = vunpack.c.l.b16 %v3484
      %v3832 = vunpack.c.l.b16 %v3485
      %v3833 = vunpack.c.l.b16 %v3486
      %v3834 = vunpack.c.l.b16 %v3487
      %v3835 = vunpack.c.l.b16 %v3488
      %v3836 = vpack.c.b16 %v3821, %v3820
      %v3837 = vpack.c.b16 %v3823, %v3822
      %v3838 = vpack.c.b16 %v3825, %v3824
      %v3839 = vpack.c.b16 %v3827, %v3826
      %v3840 = vpack.c.b16 %v3829, %v3828
      %v3841 = vpack.c.b16 %v3831, %v3830
      %v3842 = vpack.c.b16 %v3833, %v3832
      %v3843 = vpack.c.b16 %v3835, %v3834
      %3852 = vmatprep.subr.bf16.mxu0 0
      %3853 = vmatpush1.bf16.msra.mxu0 %v3843
      %3854 = vmatprep.subr.bf16.mxu0 0
      %3855 = vmatpush1.bf16.msra.mxu0 %v3842
      %3856 = vmatprep.subr.bf16.mxu0 0
      %3857 = vmatpush1.bf16.msra.mxu0 %v3841
      %3858 = vmatprep.subr.bf16.mxu0 0
      %3859 = vmatpush1.bf16.msra.mxu0 %v3840
      %3860 = vmatprep.subr.bf16.mxu0 0
      %3861 = vmatpush1.bf16.msra.mxu0 %v3839
      %3862 = vmatprep.subr.bf16.mxu0 0
      %3863 = vmatpush1.bf16.msra.mxu0 %v3838
      %3864 = vmatprep.subr.bf16.mxu0 0
      %3865 = vmatpush1.bf16.msra.mxu0 %v3837
      %3866 = vmatprep.subr.bf16.mxu0 0
      %3867 = vmatpush1.bf16.msra.mxu0 %v3836
      %3868 = vmatprep.subr.bf16.mxu0 0
      %3869 = vmatpush2.bf16.msra.mxu0 0
      %3870 = vmatprep.subr.bf16.mxu0 0
      %3871 = vmatpush2.bf16.msra.mxu0 0
      %3872 = vmatprep.subr.bf16.mxu0 0
      %3873 = vmatpush2.bf16.msra.mxu0 0
      %3874 = vmatprep.subr.bf16.mxu0 0
      %3875 = vmatpush2.bf16.msra.mxu0 0
      %3876 = vmatprep.subr.bf16.mxu0 0
      %3877 = vmatpush2.bf16.msra.mxu0 0
      %3878 = vmatprep.subr.bf16.mxu0 0
      %3879 = vmatpush2.bf16.msra.mxu0 0
      %3880 = vmatprep.subr.bf16.mxu0 0
      %3881 = vmatpush2.bf16.msra.mxu0 0
      %3882 = vmatprep.subr.bf16.mxu0 0
      %3883 = vmatpush2.bf16.msra.mxu0 0
      %3884 = vmatprep.mubr.bf16.mxu0 0
      %3885 = vmatmul.mubr.bf16.gmra.mxu0 %v3611
      %v3886 = vpop.f32.mrf.mxu0
      %v3887 = vadd.f32 0.0, %v3886
      %v3888 = vpop.f32.mrf.mxu0
      %v3889 = vpop.f32.mrf.mxu0
      %v3890 = vadd.f32 0.0, %v3889
      %v3891 = vpop.f32.mrf.mxu0
      %3892 = vmatprep.mubr.bf16.mxu0 0
      %3893 = vmatmul.mubr.bf16.gmra.mxu0 %v3620
      %v3894 = vpop.f32.mrf.mxu0
      %v3895 = vadd.f32 0.0, %v3894
      %v3896 = vpop.f32.mrf.mxu0
      %v3897 = vpop.f32.mrf.mxu0
      %v3898 = vadd.f32 0.0, %v3897
      %v3899 = vpop.f32.mrf.mxu0
      %3900 = vmatprep.mubr.bf16.mxu0 0
      %3901 = vmatmul.mubr.bf16.gmra.mxu0 %v3629
      %v3902 = vpop.f32.mrf.mxu0
      %v3903 = vadd.f32 0.0, %v3902
      %v3904 = vpop.f32.mrf.mxu0
      %v3905 = vpop.f32.mrf.mxu0
      %v3906 = vadd.f32 0.0, %v3905
      %v3907 = vpop.f32.mrf.mxu0
      %3908 = vmatprep.mubr.bf16.mxu0 0
      %3909 = vmatmul.mubr.bf16.gmra.mxu0 %v3638
      %v3910 = vpop.f32.mrf.mxu0
      %v3911 = vadd.f32 0.0, %v3910
      %v3912 = vpop.f32.mrf.mxu0
      %v3913 = vpop.f32.mrf.mxu0
      %v3914 = vadd.f32 0.0, %v3913
      %v3915 = vpop.f32.mrf.mxu0
      %3916 = vmatprep.mubr.bf16.mxu0 0
      %3917 = vmatmul.mubr.bf16.gmra.mxu0 %v3647
      %v3918 = vpop.f32.mrf.mxu0
      %v3919 = vadd.f32 0.0, %v3918
      %v3920 = vpop.f32.mrf.mxu0
      %v3921 = vpop.f32.mrf.mxu0
      %v3922 = vadd.f32 0.0, %v3921
      %v3923 = vpop.f32.mrf.mxu0
      %3924 = vmatprep.mubr.bf16.mxu0 0
      %3925 = vmatmul.mubr.bf16.gmra.mxu0 %v3656
      %v3926 = vpop.f32.mrf.mxu0
      %v3927 = vadd.f32 0.0, %v3926
      %v3928 = vpop.f32.mrf.mxu0
      %v3929 = vpop.f32.mrf.mxu0
      %v3930 = vadd.f32 0.0, %v3929
      %v3931 = vpop.f32.mrf.mxu0
      %3932 = vmatprep.mubr.bf16.mxu0 0
      %3933 = vmatmul.mubr.bf16.gmra.mxu0 %v3665
      %v3934 = vpop.f32.mrf.mxu0
      %v3935 = vadd.f32 0.0, %v3934
      %v3936 = vpop.f32.mrf.mxu0
      %v3937 = vpop.f32.mrf.mxu0
      %v3938 = vadd.f32 0.0, %v3937
      %v3939 = vpop.f32.mrf.mxu0
      %3940 = vmatprep.mubr.bf16.mxu0 0
      %3941 = vmatmul.mubr.bf16.gmra.mxu0 %v3674
      %v3942 = vpop.f32.mrf.mxu0
      %v3943 = vadd.f32 0.0, %v3942
      %v3944 = vpop.f32.mrf.mxu0
      %v3945 = vpop.f32.mrf.mxu0
      %v3946 = vadd.f32 0.0, %v3945
      %v3947 = vpop.f32.mrf.mxu0
      %3948 = vmatprep.mubr.bf16.mxu0 0
      %3949 = vmatmul.mubr.bf16.gmra.mxu0 %v3683
      %v3950 = vpop.f32.mrf.mxu0
      %v3951 = vadd.f32 0.0, %v3950
      %v3952 = vpop.f32.mrf.mxu0
      %v3953 = vpop.f32.mrf.mxu0
      %v3954 = vadd.f32 0.0, %v3953
      %v3955 = vpop.f32.mrf.mxu0
      %3956 = vmatprep.mubr.bf16.mxu0 0
      %3957 = vmatmul.mubr.bf16.gmra.mxu0 %v3692
      %v3958 = vpop.f32.mrf.mxu0
      %v3959 = vadd.f32 0.0, %v3958
      %v3960 = vpop.f32.mrf.mxu0
      %v3961 = vpop.f32.mrf.mxu0
      %v3962 = vadd.f32 0.0, %v3961
      %v3963 = vpop.f32.mrf.mxu0
      %3964 = vmatprep.mubr.bf16.mxu0 0
      %3965 = vmatmul.mubr.bf16.gmra.mxu0 %v3701
      %v3966 = vpop.f32.mrf.mxu0
      %v3967 = vadd.f32 0.0, %v3966
      %v3968 = vpop.f32.mrf.mxu0
      %v3969 = vpop.f32.mrf.mxu0
      %v3970 = vadd.f32 0.0, %v3969
      %v3971 = vpop.f32.mrf.mxu0
      %3972 = vmatprep.mubr.bf16.mxu0 0
      %3973 = vmatmul.mubr.bf16.gmra.mxu0 %v3710
      %v3974 = vpop.f32.mrf.mxu0
      %v3975 = vadd.f32 0.0, %v3974
      %v3976 = vpop.f32.mrf.mxu0
      %v3977 = vpop.f32.mrf.mxu0
      %v3978 = vadd.f32 0.0, %v3977
      %v3979 = vpop.f32.mrf.mxu0
      %3980 = vmatprep.mubr.bf16.mxu0 0
      %3981 = vmatmul.mubr.bf16.gmra.mxu0 %v3719
      %v3982 = vpop.f32.mrf.mxu0
      %v3983 = vadd.f32 0.0, %v3982
      %v3984 = vpop.f32.mrf.mxu0
      %v3985 = vpop.f32.mrf.mxu0
      %v3986 = vadd.f32 0.0, %v3985
      %v3987 = vpop.f32.mrf.mxu0
      %3988 = vmatprep.mubr.bf16.mxu0 0
      %3989 = vmatmul.mubr.bf16.gmra.mxu0 %v3728
      %v3990 = vpop.f32.mrf.mxu0
      %v3991 = vadd.f32 0.0, %v3990
      %v3992 = vpop.f32.mrf.mxu0
      %v3993 = vpop.f32.mrf.mxu0
      %v3994 = vadd.f32 0.0, %v3993
      %v3995 = vpop.f32.mrf.mxu0
      %3996 = vmatprep.mubr.bf16.mxu0 0
      %3997 = vmatmul.mubr.bf16.gmra.mxu0 %v3737
      %v3998 = vpop.f32.mrf.mxu0
      %v3999 = vadd.f32 0.0, %v3998
      %v4000 = vpop.f32.mrf.mxu0
      %v4001 = vpop.f32.mrf.mxu0
      %v4002 = vadd.f32 0.0, %v4001
      %v4003 = vpop.f32.mrf.mxu0
      %4004 = vmatprep.mubr.bf16.mxu0 0
      %4005 = vmatmul.mubr.bf16.gmra.mxu0 %v3746
      %v4006 = vpop.f32.mrf.mxu0
      %v4007 = vadd.f32 0.0, %v4006
      %v4008 = vpop.f32.mrf.mxu0
      %v4009 = vpop.f32.mrf.mxu0
      %v4010 = vadd.f32 0.0, %v4009
      %v4011 = vpop.f32.mrf.mxu0
      %4012 = vmatprep.mubr.bf16.mxu0 0
      %4013 = vmatmul.mubr.bf16.gmra.mxu0 %v3755
      %v4014 = vpop.f32.mrf.mxu0
      %v4015 = vadd.f32 0.0, %v4014
      %v4016 = vpop.f32.mrf.mxu0
      %v4017 = vpop.f32.mrf.mxu0
      %v4018 = vadd.f32 0.0, %v4017
      %v4019 = vpop.f32.mrf.mxu0
      %4020 = vmatprep.mubr.bf16.mxu0 0
      %4021 = vmatmul.mubr.bf16.gmra.mxu0 %v3764
      %v4022 = vpop.f32.mrf.mxu0
      %v4023 = vadd.f32 0.0, %v4022
      %v4024 = vpop.f32.mrf.mxu0
      %v4025 = vpop.f32.mrf.mxu0
      %v4026 = vadd.f32 0.0, %v4025
      %v4027 = vpop.f32.mrf.mxu0
      %4028 = vmatprep.mubr.bf16.mxu0 0
      %4029 = vmatmul.mubr.bf16.gmra.mxu0 %v3773
      %v4030 = vpop.f32.mrf.mxu0
      %v4031 = vadd.f32 0.0, %v4030
      %v4032 = vpop.f32.mrf.mxu0
      %v4033 = vpop.f32.mrf.mxu0
      %v4034 = vadd.f32 0.0, %v4033
      %v4035 = vpop.f32.mrf.mxu0
      %4036 = vmatprep.mubr.bf16.mxu0 0
      %4037 = vmatmul.mubr.bf16.gmra.mxu0 %v3782
      %v4038 = vpop.f32.mrf.mxu0
      %v4039 = vadd.f32 0.0, %v4038
      %v4040 = vpop.f32.mrf.mxu0
      %v4041 = vpop.f32.mrf.mxu0
      %v4042 = vadd.f32 0.0, %v4041
      %v4043 = vpop.f32.mrf.mxu0
      %4044 = vmatprep.mubr.bf16.mxu0 0
      %4045 = vmatmul.mubr.bf16.gmra.mxu0 %v3781
      %v4046 = vpop.f32.mrf.mxu0
      %v4047 = vadd.f32 0.0, %v4046
      %v4048 = vpop.f32.mrf.mxu0
      %v4049 = vpop.f32.mrf.mxu0
      %v4050 = vpop.f32.mrf.mxu0
      %4051 = vdwg.mxu0
      %v4052 = vadd.f32 %v3389, %v3887
      %v4053 = vadd.f32 %v3390, %v3890
      %v4054 = vadd.f32 %v3391, %v3895
      %v4055 = vadd.f32 %v3392, %v3898
      %v4056 = vadd.f32 %v3393, %v3903
      %v4057 = vadd.f32 %v3394, %v3906
      %v4058 = vadd.f32 %v3395, %v3911
      %v4059 = vadd.f32 %v3396, %v3914
      %v4060 = vadd.f32 %v3397, %v3919
      %v4061 = vadd.f32 %v3398, %v3922
      %v4062 = vadd.f32 %v3399, %v3927
      %v4063 = vadd.f32 %v3400, %v3930
      %v4064 = vadd.f32 %v3401, %v3935
      %v4065 = vadd.f32 %v3402, %v3938
      %v4066 = vadd.f32 %v3403, %v3943
      %v4067 = vadd.f32 %v3404, %v3946
      %v4068 = vadd.f32 %v3405, %v3951
      %v4069 = vadd.f32 %v3406, %v3954
      %v4070 = vadd.f32 %v3407, %v3959
      %v4071 = vadd.f32 %v3408, %v3962
      %v4072 = vadd.f32 %v3409, %v3967
      %v4073 = vadd.f32 %v3410, %v3970
      %v4074 = vadd.f32 %v3411, %v3975
      %v4075 = vadd.f32 %v3412, %v3978
      %v4076 = vadd.f32 %v3413, %v3983
      %v4077 = vadd.f32 %v3414, %v3986
      %v4078 = vadd.f32 %v3415, %v3991
      %v4079 = vadd.f32 %v3416, %v3994
      %v4080 = vadd.f32 %v3417, %v3999
      %v4081 = vadd.f32 %v3418, %v4002
      %v4082 = vadd.f32 %v3419, %v4007
      %v4083 = vadd.f32 %v3420, %v4010
      %v4084 = vadd.f32 %v3421, %v4015
      %v4085 = vadd.f32 %v3422, %v4018
      %v4086 = vadd.f32 %v3423, %v4023
      %v4087 = vadd.f32 %v3424, %v4026
      %v4088 = vadd.f32 %v3425, %v4031
      %v4089 = vadd.f32 %v3426, %v4034
      %v4090 = vadd.f32 %v3427, %v4039
      %v4091 = vadd.f32 %v3428, %v4042
      %v4092 = vadd.f32 %v3429, %v4047
      %v4093 = vld [vmem:[%s246 + $0x10] sm:$0x8]
      %s4094 = scalar_lea.vmem %s1, 512
      %v4095 = vld [vmem:[%s4094] sm:$0xf]
      %v4096 = vld [vmem:[%s4094 + $0x4] sm:$0xf]
      %v4097 = vld [vmem:[%s4094 + $0x8] sm:$0xf]
      %v4098 = vld [vmem:[%s4094 + $0xc] sm:$0xf]
      %v4099 = vld [vmem:[%s4094 + $0x10] sm:$0xf]
      %v4100 = vld [vmem:[%s4094 + $0x14] sm:$0xf]
      %v4101 = vld [vmem:[%s4094 + $0x18] sm:$0xf]
      %v4102 = vld [vmem:[%s4094 + $0x1c] sm:$0xf]
      %v4103 = vld [vmem:[%s4094 + $0x20] sm:$0xf]
      %v4104 = vld [vmem:[%s4094 + $0x24] sm:$0xf]
      %v4105 = vld [vmem:[%s4094 + $0x28] sm:$0xf]
      %v4106 = vld [vmem:[%s4094 + $0x2c] sm:$0xf]
      %v4107 = vld [vmem:[%s4094 + $0x30] sm:$0xf]
      %v4108 = vld [vmem:[%s4094 + $0x34] sm:$0xf]
      %v4109 = vld [vmem:[%s4094 + $0x38] sm:$0xf]
      %v4110 = vld [vmem:[%s4094 + $0x3c] sm:$0xf]
      %v4112 = vunpack.c.l.b16 %v4093
      %v4113 = vpack.c.b16 %v3532, %v4112
      %vm4114 = vcmask 1044480
      %v4115 = vrot.slane %v4113, 3
      %v4116 = vrot.slane %v3574, 3
      %v4117 = vsel %vm4114, %v4115, %v4116
      %v4118 = vrot.slane %v3575, 3
      %v4119 = vsel %vm4114, %v4116, %v4118
      %v4120 = vrot.slane %v3576, 3
      %v4121 = vsel %vm4114, %v4118, %v4120
      %v4122 = vrot.slane %v3577, 3
      %v4123 = vsel %vm4114, %v4120, %v4122
      %v4124 = vrot.slane %v3578, 3
      %v4125 = vsel %vm4114, %v4122, %v4124
      %v4126 = vrot.slane %v3579, 3
      %v4127 = vsel %vm4114, %v4124, %v4126
      %v4128 = vrot.slane %v3580, 3
      %v4129 = vsel %vm4114, %v4126, %v4128
      %v4130 = vrot.slane %v3581, 3
      %v4131 = vsel %vm4114, %v4128, %v4130
      %v4132 = vrot.slane %v3582, 3
      %v4133 = vsel %vm4114, %v4130, %v4132
      %v4134 = vrot.slane %v3583, 3
      %v4135 = vsel %vm4114, %v4132, %v4134
      %v4136 = vrot.slane %v3584, 3
      %v4137 = vsel %vm4114, %v4134, %v4136
      %v4138 = vrot.slane %v3585, 3
      %v4139 = vsel %vm4114, %v4136, %v4138
      %v4140 = vrot.slane %v3586, 3
      %v4141 = vsel %vm4114, %v4138, %v4140
      %v4142 = vrot.slane %v3587, 3
      %v4143 = vsel %vm4114, %v4140, %v4142
      %v4144 = vrot.slane %v3588, 3
      %v4145 = vsel %vm4114, %v4142, %v4144
      %v4146 = vrot.slane %v3589, 3
      %v4147 = vsel %vm4114, %v4144, %v4146
      %v4148 = vrot.slane %v3590, 3
      %v4149 = vsel %vm4114, %v4146, %v4148
      %v4150 = vrot.slane %v3591, 3
      %v4151 = vsel %vm4114, %v4148, %v4150
      %v4152 = vrot.slane %v3592, 3
      %v4153 = vsel %vm4114, %v4150, %v4152
      %v4154 = vrot.slane %v3593, 3
      %v4155 = vsel %vm4114, %v4152, %v4154
      %v4193 = vunpack.c.l.b16 %v4095
      %v4194 = vunpack.c.l.b16 %v4096
      %v4195 = vunpack.c.l.b16 %v4097
      %v4196 = vunpack.c.l.b16 %v4098
      %v4197 = vunpack.c.l.b16 %v4099
      %v4198 = vunpack.c.l.b16 %v4100
      %v4199 = vunpack.c.l.b16 %v4101
      %v4200 = vunpack.c.l.b16 %v4102
      %v4201 = vunpack.c.l.b16 %v4103
      %v4202 = vunpack.c.l.b16 %v4104
      %v4203 = vunpack.c.l.b16 %v4105
      %v4204 = vunpack.c.l.b16 %v4106
      %v4205 = vunpack.c.l.b16 %v4107
      %v4206 = vunpack.c.l.b16 %v4108
      %v4207 = vunpack.c.l.b16 %v4109
      %v4208 = vunpack.c.l.b16 %v4110
      %v4209 = vpack.c.b16 %v4194, %v4193
      %v4210 = vpack.c.b16 %v4196, %v4195
      %v4211 = vpack.c.b16 %v4198, %v4197
      %v4212 = vpack.c.b16 %v4200, %v4199
      %v4213 = vpack.c.b16 %v4202, %v4201
      %v4214 = vpack.c.b16 %v4204, %v4203
      %v4215 = vpack.c.b16 %v4206, %v4205
      %v4216 = vpack.c.b16 %v4208, %v4207
      %4225 = vmatprep.subr.bf16.mxu0 0
      %4226 = vmatpush1.bf16.msra.mxu0 %v4216
      %4227 = vmatprep.subr.bf16.mxu0 0
      %4228 = vmatpush1.bf16.msra.mxu0 %v4215
      %4229 = vmatprep.subr.bf16.mxu0 0
      %4230 = vmatpush1.bf16.msra.mxu0 %v4214
      %4231 = vmatprep.subr.bf16.mxu0 0
      %4232 = vmatpush1.bf16.msra.mxu0 %v4213
      %4233 = vmatprep.subr.bf16.mxu0 0
      %4234 = vmatpush1.bf16.msra.mxu0 %v4212
      %4235 = vmatprep.subr.bf16.mxu0 0
      %4236 = vmatpush1.bf16.msra.mxu0 %v4211
      %4237 = vmatprep.subr.bf16.mxu0 0
      %4238 = vmatpush1.bf16.msra.mxu0 %v4210
      %4239 = vmatprep.subr.bf16.mxu0 0
      %4240 = vmatpush1.bf16.msra.mxu0 %v4209
      %4241 = vmatprep.subr.bf16.mxu0 0
      %4242 = vmatpush2.bf16.msra.mxu0 0
      %4243 = vmatprep.subr.bf16.mxu0 0
      %4244 = vmatpush2.bf16.msra.mxu0 0
      %4245 = vmatprep.subr.bf16.mxu0 0
      %4246 = vmatpush2.bf16.msra.mxu0 0
      %4247 = vmatprep.subr.bf16.mxu0 0
      %4248 = vmatpush2.bf16.msra.mxu0 0
      %4249 = vmatprep.subr.bf16.mxu0 0
      %4250 = vmatpush2.bf16.msra.mxu0 0
      %4251 = vmatprep.subr.bf16.mxu0 0
      %4252 = vmatpush2.bf16.msra.mxu0 0
      %4253 = vmatprep.subr.bf16.mxu0 0
      %4254 = vmatpush2.bf16.msra.mxu0 0
      %4255 = vmatprep.subr.bf16.mxu0 0
      %4256 = vmatpush2.bf16.msra.mxu0 0
      %4257 = vmatprep.mubr.bf16.mxu0 0
      %4258 = vmatmul.mubr.bf16.gmra.mxu0 %v4117
      %v4259 = vpop.f32.mrf.mxu0
      %v4260 = vadd.f32 0.0, %v4259
      %v4261 = vpop.f32.mrf.mxu0
      %v4262 = vpop.f32.mrf.mxu0
      %v4263 = vadd.f32 0.0, %v4262
      %v4264 = vpop.f32.mrf.mxu0
      %4265 = vmatprep.mubr.bf16.mxu0 0
      %4266 = vmatmul.mubr.bf16.gmra.mxu0 %v4119
      %v4267 = vpop.f32.mrf.mxu0
      %v4268 = vadd.f32 0.0, %v4267
      %v4269 = vpop.f32.mrf.mxu0
      %v4270 = vpop.f32.mrf.mxu0
      %v4271 = vadd.f32 0.0, %v4270
      %v4272 = vpop.f32.mrf.mxu0
      %4273 = vmatprep.mubr.bf16.mxu0 0
      %4274 = vmatmul.mubr.bf16.gmra.mxu0 %v4121
      %v4275 = vpop.f32.mrf.mxu0
      %v4276 = vadd.f32 0.0, %v4275
      %v4277 = vpop.f32.mrf.mxu0
      %v4278 = vpop.f32.mrf.mxu0
      %v4279 = vadd.f32 0.0, %v4278
      %v4280 = vpop.f32.mrf.mxu0
      %4281 = vmatprep.mubr.bf16.mxu0 0
      %4282 = vmatmul.mubr.bf16.gmra.mxu0 %v4123
      %v4283 = vpop.f32.mrf.mxu0
      %v4284 = vadd.f32 0.0, %v4283
      %v4285 = vpop.f32.mrf.mxu0
      %v4286 = vpop.f32.mrf.mxu0
      %v4287 = vadd.f32 0.0, %v4286
      %v4288 = vpop.f32.mrf.mxu0
      %4289 = vmatprep.mubr.bf16.mxu0 0
      %4290 = vmatmul.mubr.bf16.gmra.mxu0 %v4125
      %v4291 = vpop.f32.mrf.mxu0
      %v4292 = vadd.f32 0.0, %v4291
      %v4293 = vpop.f32.mrf.mxu0
      %v4294 = vpop.f32.mrf.mxu0
      %v4295 = vadd.f32 0.0, %v4294
      %v4296 = vpop.f32.mrf.mxu0
      %4297 = vmatprep.mubr.bf16.mxu0 0
      %4298 = vmatmul.mubr.bf16.gmra.mxu0 %v4127
      %v4299 = vpop.f32.mrf.mxu0
      %v4300 = vadd.f32 0.0, %v4299
      %v4301 = vpop.f32.mrf.mxu0
      %v4302 = vpop.f32.mrf.mxu0
      %v4303 = vadd.f32 0.0, %v4302
      %v4304 = vpop.f32.mrf.mxu0
      %4305 = vmatprep.mubr.bf16.mxu0 0
      %4306 = vmatmul.mubr.bf16.gmra.mxu0 %v4129
      %v4307 = vpop.f32.mrf.mxu0
      %v4308 = vadd.f32 0.0, %v4307
      %v4309 = vpop.f32.mrf.mxu0
      %v4310 = vpop.f32.mrf.mxu0
      %v4311 = vadd.f32 0.0, %v4310
      %v4312 = vpop.f32.mrf.mxu0
      %4313 = vmatprep.mubr.bf16.mxu0 0
      %4314 = vmatmul.mubr.bf16.gmra.mxu0 %v4131
      %v4315 = vpop.f32.mrf.mxu0
      %v4316 = vadd.f32 0.0, %v4315
      %v4317 = vpop.f32.mrf.mxu0
      %v4318 = vpop.f32.mrf.mxu0
      %v4319 = vadd.f32 0.0, %v4318
      %v4320 = vpop.f32.mrf.mxu0
      %4321 = vmatprep.mubr.bf16.mxu0 0
      %4322 = vmatmul.mubr.bf16.gmra.mxu0 %v4133
      %v4323 = vpop.f32.mrf.mxu0
      %v4324 = vadd.f32 0.0, %v4323
      %v4325 = vpop.f32.mrf.mxu0
      %v4326 = vpop.f32.mrf.mxu0
      %v4327 = vadd.f32 0.0, %v4326
      %v4328 = vpop.f32.mrf.mxu0
      %4329 = vmatprep.mubr.bf16.mxu0 0
      %4330 = vmatmul.mubr.bf16.gmra.mxu0 %v4135
      %v4331 = vpop.f32.mrf.mxu0
      %v4332 = vadd.f32 0.0, %v4331
      %v4333 = vpop.f32.mrf.mxu0
      %v4334 = vpop.f32.mrf.mxu0
      %v4335 = vadd.f32 0.0, %v4334
      %v4336 = vpop.f32.mrf.mxu0
      %4337 = vmatprep.mubr.bf16.mxu0 0
      %4338 = vmatmul.mubr.bf16.gmra.mxu0 %v4137
      %v4339 = vpop.f32.mrf.mxu0
      %v4340 = vadd.f32 0.0, %v4339
      %v4341 = vpop.f32.mrf.mxu0
      %v4342 = vpop.f32.mrf.mxu0
      %v4343 = vadd.f32 0.0, %v4342
      %v4344 = vpop.f32.mrf.mxu0
      %4345 = vmatprep.mubr.bf16.mxu0 0
      %4346 = vmatmul.mubr.bf16.gmra.mxu0 %v4139
      %v4347 = vpop.f32.mrf.mxu0
      %v4348 = vadd.f32 0.0, %v4347
      %v4349 = vpop.f32.mrf.mxu0
      %v4350 = vpop.f32.mrf.mxu0
      %v4351 = vadd.f32 0.0, %v4350
      %v4352 = vpop.f32.mrf.mxu0
      %4353 = vmatprep.mubr.bf16.mxu0 0
      %4354 = vmatmul.mubr.bf16.gmra.mxu0 %v4141
      %v4355 = vpop.f32.mrf.mxu0
      %v4356 = vadd.f32 0.0, %v4355
      %v4357 = vpop.f32.mrf.mxu0
      %v4358 = vpop.f32.mrf.mxu0
      %v4359 = vadd.f32 0.0, %v4358
      %v4360 = vpop.f32.mrf.mxu0
      %4361 = vmatprep.mubr.bf16.mxu0 0
      %4362 = vmatmul.mubr.bf16.gmra.mxu0 %v4143
      %v4363 = vpop.f32.mrf.mxu0
      %v4364 = vadd.f32 0.0, %v4363
      %v4365 = vpop.f32.mrf.mxu0
      %v4366 = vpop.f32.mrf.mxu0
      %v4367 = vadd.f32 0.0, %v4366
      %v4368 = vpop.f32.mrf.mxu0
      %4369 = vmatprep.mubr.bf16.mxu0 0
      %4370 = vmatmul.mubr.bf16.gmra.mxu0 %v4145
      %v4371 = vpop.f32.mrf.mxu0
      %v4372 = vadd.f32 0.0, %v4371
      %v4373 = vpop.f32.mrf.mxu0
      %v4374 = vpop.f32.mrf.mxu0
      %v4375 = vadd.f32 0.0, %v4374
      %v4376 = vpop.f32.mrf.mxu0
      %4377 = vmatprep.mubr.bf16.mxu0 0
      %4378 = vmatmul.mubr.bf16.gmra.mxu0 %v4147
      %v4379 = vpop.f32.mrf.mxu0
      %v4380 = vadd.f32 0.0, %v4379
      %v4381 = vpop.f32.mrf.mxu0
      %v4382 = vpop.f32.mrf.mxu0
      %v4383 = vadd.f32 0.0, %v4382
      %v4384 = vpop.f32.mrf.mxu0
      %4385 = vmatprep.mubr.bf16.mxu0 0
      %4386 = vmatmul.mubr.bf16.gmra.mxu0 %v4149
      %v4387 = vpop.f32.mrf.mxu0
      %v4388 = vadd.f32 0.0, %v4387
      %v4389 = vpop.f32.mrf.mxu0
      %v4390 = vpop.f32.mrf.mxu0
      %v4391 = vadd.f32 0.0, %v4390
      %v4392 = vpop.f32.mrf.mxu0
      %4393 = vmatprep.mubr.bf16.mxu0 0
      %4394 = vmatmul.mubr.bf16.gmra.mxu0 %v4151
      %v4395 = vpop.f32.mrf.mxu0
      %v4396 = vadd.f32 0.0, %v4395
      %v4397 = vpop.f32.mrf.mxu0
      %v4398 = vpop.f32.mrf.mxu0
      %v4399 = vadd.f32 0.0, %v4398
      %v4400 = vpop.f32.mrf.mxu0
      %4401 = vmatprep.mubr.bf16.mxu0 0
      %4402 = vmatmul.mubr.bf16.gmra.mxu0 %v4153
      %v4403 = vpop.f32.mrf.mxu0
      %v4404 = vadd.f32 0.0, %v4403
      %v4405 = vpop.f32.mrf.mxu0
      %v4406 = vpop.f32.mrf.mxu0
      %v4407 = vadd.f32 0.0, %v4406
      %v4408 = vpop.f32.mrf.mxu0
      %4409 = vmatprep.mubr.bf16.mxu0 0
      %4410 = vmatmul.mubr.bf16.gmra.mxu0 %v4155
      %v4411 = vpop.f32.mrf.mxu0
      %v4412 = vadd.f32 0.0, %v4411
      %v4413 = vpop.f32.mrf.mxu0
      %v4414 = vpop.f32.mrf.mxu0
      %v4415 = vadd.f32 0.0, %v4414
      %v4416 = vpop.f32.mrf.mxu0
      %4417 = vmatprep.mubr.bf16.mxu0 0
      %4418 = vmatmul.mubr.bf16.gmra.mxu0 %v4154
      %v4419 = vpop.f32.mrf.mxu0
      %v4420 = vadd.f32 0.0, %v4419
      %v4421 = vpop.f32.mrf.mxu0
      %v4422 = vpop.f32.mrf.mxu0
      %v4423 = vpop.f32.mrf.mxu0
      %4424 = vdwg.mxu0
      %v4425 = vadd.f32 %v4052, %v4260
      %v4426 = vadd.f32 %v4053, %v4263
      %v4427 = vadd.f32 %v4054, %v4268
      %v4428 = vadd.f32 %v4055, %v4271
      %v4429 = vadd.f32 %v4056, %v4276
      %v4430 = vadd.f32 %v4057, %v4279
      %v4431 = vadd.f32 %v4058, %v4284
      %v4432 = vadd.f32 %v4059, %v4287
      %v4433 = vadd.f32 %v4060, %v4292
      %v4434 = vadd.f32 %v4061, %v4295
      %v4435 = vadd.f32 %v4062, %v4300
      %v4436 = vadd.f32 %v4063, %v4303
      %v4437 = vadd.f32 %v4064, %v4308
      %v4438 = vadd.f32 %v4065, %v4311
      %v4439 = vadd.f32 %v4066, %v4316
      %v4440 = vadd.f32 %v4067, %v4319
      %v4441 = vadd.f32 %v4068, %v4324
      %v4442 = vadd.f32 %v4069, %v4327
      %v4443 = vadd.f32 %v4070, %v4332
      %v4444 = vadd.f32 %v4071, %v4335
      %v4445 = vadd.f32 %v4072, %v4340
      %v4446 = vadd.f32 %v4073, %v4343
      %v4447 = vadd.f32 %v4074, %v4348
      %v4448 = vadd.f32 %v4075, %v4351
      %v4449 = vadd.f32 %v4076, %v4356
      %v4450 = vadd.f32 %v4077, %v4359
      %v4451 = vadd.f32 %v4078, %v4364
      %v4452 = vadd.f32 %v4079, %v4367
      %v4453 = vadd.f32 %v4080, %v4372
      %v4454 = vadd.f32 %v4081, %v4375
      %v4455 = vadd.f32 %v4082, %v4380
      %v4456 = vadd.f32 %v4083, %v4383
      %v4457 = vadd.f32 %v4084, %v4388
      %v4458 = vadd.f32 %v4085, %v4391
      %v4459 = vadd.f32 %v4086, %v4396
      %v4460 = vadd.f32 %v4087, %v4399
      %v4461 = vadd.f32 %v4088, %v4404
      %v4462 = vadd.f32 %v4089, %v4407
      %v4463 = vadd.f32 %v4090, %v4412
      %v4464 = vadd.f32 %v4091, %v4415
      %v4465 = vadd.f32 %v4092, %v4420
      %v4466 = vld [vmem:[%s2] sm:$0x1]
      %v4468 = vlaneseq
      %v4469 = vshrl.u32 %v4468, 7
      %v4470 = vsub.s32 0, %v4469
      %v4471 = vrot.slane %v4466, %v4470
      %v4473 = vadd.f32 %v4425, %v4471
      %v4474 = vadd.f32 %v4426, %v4471
      %v4475 = vadd.f32 %v4427, %v4471
      %v4476 = vadd.f32 %v4428, %v4471
      %v4477 = vadd.f32 %v4429, %v4471
      %v4478 = vadd.f32 %v4430, %v4471
      %v4479 = vadd.f32 %v4431, %v4471
      %v4480 = vadd.f32 %v4432, %v4471
      %v4481 = vadd.f32 %v4433, %v4471
      %v4482 = vadd.f32 %v4434, %v4471
      %v4483 = vadd.f32 %v4435, %v4471
      %v4484 = vadd.f32 %v4436, %v4471
      %v4485 = vadd.f32 %v4437, %v4471
      %v4486 = vadd.f32 %v4438, %v4471
      %v4487 = vadd.f32 %v4439, %v4471
      %v4488 = vadd.f32 %v4440, %v4471
      %v4489 = vadd.f32 %v4441, %v4471
      %v4490 = vadd.f32 %v4442, %v4471
      %v4491 = vadd.f32 %v4443, %v4471
      %v4492 = vadd.f32 %v4444, %v4471
      %v4493 = vadd.f32 %v4445, %v4471
      %v4494 = vadd.f32 %v4446, %v4471
      %v4495 = vadd.f32 %v4447, %v4471
      %v4496 = vadd.f32 %v4448, %v4471
      %v4497 = vadd.f32 %v4449, %v4471
      %v4498 = vadd.f32 %v4450, %v4471
      %v4499 = vadd.f32 %v4451, %v4471
      %v4500 = vadd.f32 %v4452, %v4471
      %v4501 = vadd.f32 %v4453, %v4471
      %v4502 = vadd.f32 %v4454, %v4471
      %v4503 = vadd.f32 %v4455, %v4471
      %v4504 = vadd.f32 %v4456, %v4471
      %v4505 = vadd.f32 %v4457, %v4471
      %v4506 = vadd.f32 %v4458, %v4471
      %v4507 = vadd.f32 %v4459, %v4471
      %v4508 = vadd.f32 %v4460, %v4471
      %v4509 = vadd.f32 %v4461, %v4471
      %v4510 = vadd.f32 %v4462, %v4471
      %v4511 = vadd.f32 %v4463, %v4471
      %v4512 = vadd.f32 %v4464, %v4471
      %v4513 = vadd.f32 %v4465, %v4471
      %v4514 = vmax.f32 %v4473, 0.0
      %v4515 = vmax.f32 %v4474, 0.0
      %v4516 = vmax.f32 %v4475, 0.0
      %v4517 = vmax.f32 %v4476, 0.0
      %v4518 = vmax.f32 %v4477, 0.0
      %v4519 = vmax.f32 %v4478, 0.0
      %v4520 = vmax.f32 %v4479, 0.0
      %v4521 = vmax.f32 %v4480, 0.0
      %v4522 = vmax.f32 %v4481, 0.0
      %v4523 = vmax.f32 %v4482, 0.0
      %v4524 = vmax.f32 %v4483, 0.0
      %v4525 = vmax.f32 %v4484, 0.0
      %v4526 = vmax.f32 %v4485, 0.0
      %v4527 = vmax.f32 %v4486, 0.0
      %v4528 = vmax.f32 %v4487, 0.0
      %v4529 = vmax.f32 %v4488, 0.0
      %v4530 = vmax.f32 %v4489, 0.0
      %v4531 = vmax.f32 %v4490, 0.0
      %v4532 = vmax.f32 %v4491, 0.0
      %v4533 = vmax.f32 %v4492, 0.0
      %v4534 = vmax.f32 %v4493, 0.0
      %v4535 = vmax.f32 %v4494, 0.0
      %v4536 = vmax.f32 %v4495, 0.0
      %v4537 = vmax.f32 %v4496, 0.0
      %v4538 = vmax.f32 %v4497, 0.0
      %v4539 = vmax.f32 %v4498, 0.0
      %v4540 = vmax.f32 %v4499, 0.0
      %v4541 = vmax.f32 %v4500, 0.0
      %v4542 = vmax.f32 %v4501, 0.0
      %v4543 = vmax.f32 %v4502, 0.0
      %v4544 = vmax.f32 %v4503, 0.0
      %v4545 = vmax.f32 %v4504, 0.0
      %v4546 = vmax.f32 %v4505, 0.0
      %v4547 = vmax.f32 %v4506, 0.0
      %v4548 = vmax.f32 %v4507, 0.0
      %v4549 = vmax.f32 %v4508, 0.0
      %v4550 = vmax.f32 %v4509, 0.0
      %v4551 = vmax.f32 %v4510, 0.0
      %v4552 = vmax.f32 %v4511, 0.0
      %v4553 = vmax.f32 %v4512, 0.0
      %v4554 = vmax.f32 %v4513, 0.0
      %v4555 = vld [vmem:[%s5] sm:$0xff]
      %v4556 = vld [vmem:[%s5 + $0x8] sm:$0xff]
      %v4557 = vld [vmem:[%s5 + $0x10] sm:$0xff]
      %v4558 = vld [vmem:[%s5 + $0x18] sm:$0xff]
      %v4559 = vld [vmem:[%s5 + $0x20] sm:$0xff]
      %v4560 = vld [vmem:[%s5 + $0x28] sm:$0xff]
      %v4561 = vld [vmem:[%s5 + $0x30] sm:$0xff]
      %v4562 = vld [vmem:[%s5 + $0x38] sm:$0xff]
      %v4563 = vld [vmem:[%s5 + $0x40] sm:$0xff]
      %v4564 = vld [vmem:[%s5 + $0x48] sm:$0xff]
      %v4565 = vld [vmem:[%s5 + $0x50] sm:$0xff]
      %v4566 = vld [vmem:[%s5 + $0x58] sm:$0xff]
      %v4567 = vld [vmem:[%s5 + $0x60] sm:$0xff]
      %v4568 = vld [vmem:[%s5 + $0x68] sm:$0xff]
      %v4569 = vld [vmem:[%s5 + $0x70] sm:$0xff]
      %v4570 = vld [vmem:[%s5 + $0x78] sm:$0xff]
      %v4571 = vld [vmem:[%s5 + $0x80] sm:$0xff]
      %v4572 = vld [vmem:[%s5 + $0x88] sm:$0xff]
      %v4573 = vld [vmem:[%s5 + $0x90] sm:$0xff]
      %v4574 = vld [vmem:[%s5 + $0x98] sm:$0xff]
      %v4575 = vld [vmem:[%s5 + $0xa0] sm:$0xff]
      %v4576 = vld [vmem:[%s5 + $0xa8] sm:$0xff]
      %v4577 = vld [vmem:[%s5 + $0xb0] sm:$0xff]
      %v4578 = vld [vmem:[%s5 + $0xb8] sm:$0xff]
      %v4579 = vld [vmem:[%s5 + $0xc0] sm:$0xff]
      %v4580 = vld [vmem:[%s5 + $0xc8] sm:$0xff]
      %v4581 = vld [vmem:[%s5 + $0xd0] sm:$0xff]
      %v4582 = vld [vmem:[%s5 + $0xd8] sm:$0xff]
      %v4583 = vld [vmem:[%s5 + $0xe0] sm:$0xff]
      %v4584 = vld [vmem:[%s5 + $0xe8] sm:$0xff]
      %v4585 = vld [vmem:[%s5 + $0xf0] sm:$0xff]
      %v4586 = vld [vmem:[%s5 + $0xf8] sm:$0xff]
      %v4587 = vld [vmem:[%s5 + $0x100] sm:$0xff]
      %v4588 = vld [vmem:[%s5 + $0x108] sm:$0xff]
      %v4589 = vld [vmem:[%s5 + $0x110] sm:$0xff]
      %v4590 = vld [vmem:[%s5 + $0x118] sm:$0xff]
      %v4591 = vld [vmem:[%s5 + $0x120] sm:$0xff]
      %v4592 = vld [vmem:[%s5 + $0x128] sm:$0xff]
      %v4593 = vld [vmem:[%s5 + $0x130] sm:$0xff]
      %v4594 = vld [vmem:[%s5 + $0x138] sm:$0xff]
      %v4595 = vld [vmem:[%s5 + $0x140] sm:$0xf]
      %4597 = vset.pattern.permute.xlu0 0
      %4598 = vperm.xlu0 %4597, %v4555
      %v4599 = vpop.permute.xlu0 %4598
      %4602 = vset.pattern.permute.xlu0 0
      %4603 = vperm.xlu0 %4602, %v4556
      %v4604 = vpop.permute.xlu0 %4603
      %4607 = vset.pattern.permute.xlu0 0
      %4608 = vperm.xlu0 %4607, %v4557
      %v4609 = vpop.permute.xlu0 %4608
      %4612 = vset.pattern.permute.xlu0 0
      %4613 = vperm.xlu0 %4612, %v4558
      %v4614 = vpop.permute.xlu0 %4613
      %4617 = vset.pattern.permute.xlu0 0
      %4618 = vperm.xlu0 %4617, %v4559
      %v4619 = vpop.permute.xlu0 %4618
      %4622 = vset.pattern.permute.xlu0 0
      %4623 = vperm.xlu0 %4622, %v4560
      %v4624 = vpop.permute.xlu0 %4623
      %4627 = vset.pattern.permute.xlu0 0
      %4628 = vperm.xlu0 %4627, %v4561
      %v4629 = vpop.permute.xlu0 %4628
      %4632 = vset.pattern.permute.xlu0 0
      %4633 = vperm.xlu0 %4632, %v4562
      %v4634 = vpop.permute.xlu0 %4633
      %4637 = vset.pattern.permute.xlu0 0
      %4638 = vperm.xlu0 %4637, %v4563
      %v4639 = vpop.permute.xlu0 %4638
      %4642 = vset.pattern.permute.xlu0 0
      %4643 = vperm.xlu0 %4642, %v4564
      %v4644 = vpop.permute.xlu0 %4643
      %4647 = vset.pattern.permute.xlu0 0
      %4648 = vperm.xlu0 %4647, %v4565
      %v4649 = vpop.permute.xlu0 %4648
      %4652 = vset.pattern.permute.xlu0 0
      %4653 = vperm.xlu0 %4652, %v4566
      %v4654 = vpop.permute.xlu0 %4653
      %4657 = vset.pattern.permute.xlu0 0
      %4658 = vperm.xlu0 %4657, %v4567
      %v4659 = vpop.permute.xlu0 %4658
      %4662 = vset.pattern.permute.xlu0 0
      %4663 = vperm.xlu0 %4662, %v4568
      %v4664 = vpop.permute.xlu0 %4663
      %4667 = vset.pattern.permute.xlu0 0
      %4668 = vperm.xlu0 %4667, %v4569
      %v4669 = vpop.permute.xlu0 %4668
      %4672 = vset.pattern.permute.xlu0 0
      %4673 = vperm.xlu0 %4672, %v4570
      %v4674 = vpop.permute.xlu0 %4673
      %4677 = vset.pattern.permute.xlu0 0
      %4678 = vperm.xlu0 %4677, %v4571
      %v4679 = vpop.permute.xlu0 %4678
      %4682 = vset.pattern.permute.xlu0 0
      %4683 = vperm.xlu0 %4682, %v4572
      %v4684 = vpop.permute.xlu0 %4683
      %4687 = vset.pattern.permute.xlu0 0
      %4688 = vperm.xlu0 %4687, %v4573
      %v4689 = vpop.permute.xlu0 %4688
      %4692 = vset.pattern.permute.xlu0 0
      %4693 = vperm.xlu0 %4692, %v4574
      %v4694 = vpop.permute.xlu0 %4693
      %4697 = vset.pattern.permute.xlu0 0
      %4698 = vperm.xlu0 %4697, %v4575
      %v4699 = vpop.permute.xlu0 %4698
      %4702 = vset.pattern.permute.xlu0 0
      %4703 = vperm.xlu0 %4702, %v4576
      %v4704 = vpop.permute.xlu0 %4703
      %4707 = vset.pattern.permute.xlu0 0
      %4708 = vperm.xlu0 %4707, %v4577
      %v4709 = vpop.permute.xlu0 %4708
      %4712 = vset.pattern.permute.xlu0 0
      %4713 = vperm.xlu0 %4712, %v4578
      %v4714 = vpop.permute.xlu0 %4713
      %4717 = vset.pattern.permute.xlu0 0
      %4718 = vperm.xlu0 %4717, %v4579
      %v4719 = vpop.permute.xlu0 %4718
      %4722 = vset.pattern.permute.xlu0 0
      %4723 = vperm.xlu0 %4722, %v4580
      %v4724 = vpop.permute.xlu0 %4723
      %4727 = vset.pattern.permute.xlu0 0
      %4728 = vperm.xlu0 %4727, %v4581
      %v4729 = vpop.permute.xlu0 %4728
      %4732 = vset.pattern.permute.xlu0 0
      %4733 = vperm.xlu0 %4732, %v4582
      %v4734 = vpop.permute.xlu0 %4733
      %4737 = vset.pattern.permute.xlu0 0
      %4738 = vperm.xlu0 %4737, %v4583
      %v4739 = vpop.permute.xlu0 %4738
      %4742 = vset.pattern.permute.xlu0 0
      %4743 = vperm.xlu0 %4742, %v4584
      %v4744 = vpop.permute.xlu0 %4743
      %4747 = vset.pattern.permute.xlu0 0
      %4748 = vperm.xlu0 %4747, %v4585
      %v4749 = vpop.permute.xlu0 %4748
      %4752 = vset.pattern.permute.xlu0 0
      %4753 = vperm.xlu0 %4752, %v4586
      %v4754 = vpop.permute.xlu0 %4753
      %4757 = vset.pattern.permute.xlu0 0
      %4758 = vperm.xlu0 %4757, %v4587
      %v4759 = vpop.permute.xlu0 %4758
      %4762 = vset.pattern.permute.xlu0 0
      %4763 = vperm.xlu0 %4762, %v4588
      %v4764 = vpop.permute.xlu0 %4763
      %4767 = vset.pattern.permute.xlu0 0
      %4768 = vperm.xlu0 %4767, %v4589
      %v4769 = vpop.permute.xlu0 %4768
      %4772 = vset.pattern.permute.xlu0 0
      %4773 = vperm.xlu0 %4772, %v4590
      %v4774 = vpop.permute.xlu0 %4773
      %4777 = vset.pattern.permute.xlu0 0
      %4778 = vperm.xlu0 %4777, %v4591
      %v4779 = vpop.permute.xlu0 %4778
      %4782 = vset.pattern.permute.xlu0 0
      %4783 = vperm.xlu0 %4782, %v4592
      %v4784 = vpop.permute.xlu0 %4783
      %4787 = vset.pattern.permute.xlu0 0
      %4788 = vperm.xlu0 %4787, %v4593
      %v4789 = vpop.permute.xlu0 %4788
      %4792 = vset.pattern.permute.xlu0 0
      %4793 = vperm.xlu0 %4792, %v4594
      %v4794 = vpop.permute.xlu0 %4793
      %4797 = vset.pattern.permute.xlu0 0
      %4798 = vperm.xlu0 %4797, %v4595
      %v4799 = vpop.permute.xlu0 %4798
      %v4801 = vmul.f32 %v4514, %v4599
      %v4802 = vmul.f32 %v4515, %v4604
      %v4803 = vmul.f32 %v4516, %v4609
      %v4804 = vmul.f32 %v4517, %v4614
      %v4805 = vmul.f32 %v4518, %v4619
      %v4806 = vmul.f32 %v4519, %v4624
      %v4807 = vmul.f32 %v4520, %v4629
      %v4808 = vmul.f32 %v4521, %v4634
      %v4809 = vmul.f32 %v4522, %v4639
      %v4810 = vmul.f32 %v4523, %v4644
      %v4811 = vmul.f32 %v4524, %v4649
      %v4812 = vmul.f32 %v4525, %v4654
      %v4813 = vmul.f32 %v4526, %v4659
      %v4814 = vmul.f32 %v4527, %v4664
      %v4815 = vmul.f32 %v4528, %v4669
      %v4816 = vmul.f32 %v4529, %v4674
      %v4817 = vmul.f32 %v4530, %v4679
      %v4818 = vmul.f32 %v4531, %v4684
      %v4819 = vmul.f32 %v4532, %v4689
      %v4820 = vmul.f32 %v4533, %v4694
      %v4821 = vmul.f32 %v4534, %v4699
      %v4822 = vmul.f32 %v4535, %v4704
      %v4823 = vmul.f32 %v4536, %v4709
      %v4824 = vmul.f32 %v4537, %v4714
      %v4825 = vmul.f32 %v4538, %v4719
      %v4826 = vmul.f32 %v4539, %v4724
      %v4827 = vmul.f32 %v4540, %v4729
      %v4828 = vmul.f32 %v4541, %v4734
      %v4829 = vmul.f32 %v4542, %v4739
      %v4830 = vmul.f32 %v4543, %v4744
      %v4831 = vmul.f32 %v4544, %v4749
      %v4832 = vmul.f32 %v4545, %v4754
      %v4833 = vmul.f32 %v4546, %v4759
      %v4834 = vmul.f32 %v4547, %v4764
      %v4835 = vmul.f32 %v4548, %v4769
      %v4836 = vmul.f32 %v4549, %v4774
      %v4837 = vmul.f32 %v4550, %v4779
      %v4838 = vmul.f32 %v4551, %v4784
      %v4839 = vmul.f32 %v4552, %v4789
      %v4840 = vmul.f32 %v4553, %v4794
      %v4841 = vmul.f32 %v4554, %v4799
      %4842 = vst [vmem:[#allocation2] sm:$0xf] 0
      %4843 = vst [vmem:[#allocation2 + $0x4] sm:$0xf] 0
      %vm4844 = vcmask 1041408
      %vm4845 = vsmask.f32 1280
      %vm4846 = vmand %vm4844, %vm4845
      %v4847 = vld [vmem:[#allocation2 + $0x8] sm:$0x3]
      %v4848 = vsel %vm4846, 0, %v4847
      %4849 = vst [vmem:[#allocation2 + $0x8] sm:$0x3] %v4848
      %vm4850 = vcmask 1043459
      %vm4851 = vsmask.f32 7950
      %vm4852 = vmand %vm4850, %vm4851
      %v4853 = vld [vmem:[#allocation2 + $0xa8] sm:$0x8]
      %v4854 = vsel %vm4852, 0, %v4853
      %4855 = vst [vmem:[#allocation2 + $0xa8] sm:$0x8] %v4854
      %4856 = vst [vmem:[#allocation2 + $0xac] sm:$0xf] 0
      %4857 = vst [vmem:[#allocation2 + $0xb0] sm:$0xf] 0
      %4858 = vst [vmem:[#allocation2 + $0xb4] sm:$0x1] 0
      %v4859 = vpack.c.bf16 %v4802, %v4801
      %v4860 = vpack.c.bf16 %v4804, %v4803
      %v4861 = vpack.c.bf16 %v4806, %v4805
      %v4862 = vpack.c.bf16 %v4808, %v4807
      %v4863 = vpack.c.bf16 %v4810, %v4809
      %v4864 = vpack.c.bf16 %v4812, %v4811
      %v4865 = vpack.c.bf16 %v4814, %v4813
      %v4866 = vpack.c.bf16 %v4816, %v4815
      %v4867 = vpack.c.bf16 %v4818, %v4817
      %v4868 = vpack.c.bf16 %v4820, %v4819
      %v4869 = vpack.c.bf16 %v4822, %v4821
      %v4870 = vpack.c.bf16 %v4824, %v4823
      %v4871 = vpack.c.bf16 %v4826, %v4825
      %v4872 = vpack.c.bf16 %v4828, %v4827
      %v4873 = vpack.c.bf16 %v4830, %v4829
      %v4874 = vpack.c.bf16 %v4832, %v4831
      %v4875 = vpack.c.bf16 %v4834, %v4833
      %v4876 = vpack.c.bf16 %v4836, %v4835
      %v4877 = vpack.c.bf16 %v4838, %v4837
      %v4878 = vpack.c.bf16 %v4840, %v4839
      %v4879 = vpack.c.bf16 %v4841, %v4841
      %v4901 = vunpack.c.l.b16 %v4859
      %v4902 = vunpack.c.h.b16 %v4859
      %v4903 = vunpack.c.l.b16 %v4860
      %v4904 = vunpack.c.h.b16 %v4860
      %v4905 = vunpack.c.l.b16 %v4861
      %v4906 = vunpack.c.h.b16 %v4861
      %v4907 = vunpack.c.l.b16 %v4862
      %v4908 = vunpack.c.h.b16 %v4862
      %v4909 = vunpack.c.l.b16 %v4863
      %v4910 = vunpack.c.h.b16 %v4863
      %v4911 = vunpack.c.l.b16 %v4864
      %v4912 = vunpack.c.h.b16 %v4864
      %v4913 = vunpack.c.l.b16 %v4865
      %v4914 = vunpack.c.h.b16 %v4865
      %v4915 = vunpack.c.l.b16 %v4866
      %v4916 = vunpack.c.h.b16 %v4866
      %v4917 = vunpack.c.l.b16 %v4867
      %v4918 = vunpack.c.h.b16 %v4867
      %v4919 = vunpack.c.l.b16 %v4868
      %v4920 = vunpack.c.h.b16 %v4868
      %v4921 = vunpack.c.l.b16 %v4869
      %v4922 = vunpack.c.h.b16 %v4869
      %v4923 = vunpack.c.l.b16 %v4870
      %v4924 = vunpack.c.h.b16 %v4870
      %v4925 = vunpack.c.l.b16 %v4871
      %v4926 = vunpack.c.h.b16 %v4871
      %v4927 = vunpack.c.l.b16 %v4872
      %v4928 = vunpack.c.h.b16 %v4872
      %v4929 = vunpack.c.l.b16 %v4873
      %v4930 = vunpack.c.h.b16 %v4873
      %v4931 = vunpack.c.l.b16 %v4874
      %v4932 = vunpack.c.h.b16 %v4874
      %v4933 = vunpack.c.l.b16 %v4875
      %v4934 = vunpack.c.h.b16 %v4875
      %v4935 = vunpack.c.l.b16 %v4876
      %v4936 = vunpack.c.h.b16 %v4876
      %v4937 = vunpack.c.l.b16 %v4877
      %v4938 = vunpack.c.h.b16 %v4877
      %v4939 = vunpack.c.l.b16 %v4878
      %v4940 = vunpack.c.h.b16 %v4878
      %v4941 = vunpack.c.l.b16 %v4879
      %v4942 = vpack.c.b16 %v4901, %v4901
      %v4943 = vpack.c.b16 %v4902, %v4902
      %v4944 = vpack.c.b16 %v4903, %v4903
      %v4945 = vpack.c.b16 %v4904, %v4904
      %v4946 = vpack.c.b16 %v4905, %v4905
      %v4947 = vpack.c.b16 %v4906, %v4906
      %v4948 = vpack.c.b16 %v4907, %v4907
      %v4949 = vpack.c.b16 %v4908, %v4908
      %v4950 = vpack.c.b16 %v4909, %v4909
      %v4951 = vpack.c.b16 %v4910, %v4910
      %v4952 = vpack.c.b16 %v4911, %v4911
      %v4953 = vpack.c.b16 %v4912, %v4912
      %v4954 = vpack.c.b16 %v4913, %v4913
      %v4955 = vpack.c.b16 %v4914, %v4914
      %v4956 = vpack.c.b16 %v4915, %v4915
      %v4957 = vpack.c.b16 %v4916, %v4916
      %v4958 = vpack.c.b16 %v4917, %v4917
      %v4959 = vpack.c.b16 %v4918, %v4918
      %v4960 = vpack.c.b16 %v4919, %v4919
      %v4961 = vpack.c.b16 %v4920, %v4920
      %v4962 = vpack.c.b16 %v4921, %v4921
      %v4963 = vpack.c.b16 %v4922, %v4922
      %v4964 = vpack.c.b16 %v4923, %v4923
      %v4965 = vpack.c.b16 %v4924, %v4924
      %v4966 = vpack.c.b16 %v4925, %v4925
      %v4967 = vpack.c.b16 %v4926, %v4926
      %v4968 = vpack.c.b16 %v4927, %v4927
      %v4969 = vpack.c.b16 %v4928, %v4928
      %v4970 = vpack.c.b16 %v4929, %v4929
      %v4971 = vpack.c.b16 %v4930, %v4930
      %v4972 = vpack.c.b16 %v4931, %v4931
      %v4973 = vpack.c.b16 %v4932, %v4932
      %v4974 = vpack.c.b16 %v4933, %v4933
      %v4975 = vpack.c.b16 %v4934, %v4934
      %v4976 = vpack.c.b16 %v4935, %v4935
      %v4977 = vpack.c.b16 %v4936, %v4936
      %v4978 = vpack.c.b16 %v4937, %v4937
      %v4979 = vpack.c.b16 %v4938, %v4938
      %v4980 = vpack.c.b16 %v4939, %v4939
      %v4981 = vpack.c.b16 %v4940, %v4940
      %v4982 = vpack.c.b16 %v4941, %v4941
      %vm4983 = vsmask.f32 5392
      %vm4984 = vmor %vm4845, %vm4983
      %v4986 = vshrl.u32 %v4942, 16
      %v4988 = vrot.slane %v4986, 6
      %v4989 = vshll.u32 %v4942, 16
      %v4991 = vrot.slane %v4989, 7
      %v4992 = vor.u32 %v4988, %v4991
      %v4993 = vrot.slane %v4992, 4
      %v4995 = vshrl.u32 %v4943, 16
      %v4997 = vrot.slane %v4995, 6
      %v4998 = vshll.u32 %v4943, 16
      %v5000 = vrot.slane %v4998, 7
      %v5001 = vor.u32 %v4997, %v5000
      %v5002 = vsel %vm4984, %v4993, %v5001
      %v5003 = vrot.slane %v5001, 4
      %v5005 = vshrl.u32 %v4944, 16
      %v5007 = vrot.slane %v5005, 6
      %v5008 = vshll.u32 %v4944, 16
      %v5010 = vrot.slane %v5008, 7
      %v5011 = vor.u32 %v5007, %v5010
      %v5012 = vsel %vm4984, %v5003, %v5011
      %v5013 = vrot.slane %v5011, 4
      %v5015 = vshrl.u32 %v4945, 16
      %v5017 = vrot.slane %v5015, 6
      %v5018 = vshll.u32 %v4945, 16
      %v5020 = vrot.slane %v5018, 7
      %v5021 = vor.u32 %v5017, %v5020
      %v5022 = vsel %vm4984, %v5013, %v5021
      %v5023 = vrot.slane %v5021, 4
      %v5025 = vshrl.u32 %v4946, 16
      %v5027 = vrot.slane %v5025, 6
      %v5028 = vshll.u32 %v4946, 16
      %v5030 = vrot.slane %v5028, 7
      %v5031 = vor.u32 %v5027, %v5030
      %v5032 = vsel %vm4984, %v5023, %v5031
      %v5033 = vrot.slane %v5031, 4
      %v5035 = vshrl.u32 %v4947, 16
      %v5037 = vrot.slane %v5035, 6
      %v5038 = vshll.u32 %v4947, 16
      %v5040 = vrot.slane %v5038, 7
      %v5041 = vor.u32 %v5037, %v5040
      %v5042 = vsel %vm4984, %v5033, %v5041
      %v5043 = vrot.slane %v5041, 4
      %v5045 = vshrl.u32 %v4948, 16
      %v5047 = vrot.slane %v5045, 6
      %v5048 = vshll.u32 %v4948, 16
      %v5050 = vrot.slane %v5048, 7
      %v5051 = vor.u32 %v5047, %v5050
      %v5052 = vsel %vm4984, %v5043, %v5051
      %v5053 = vrot.slane %v5051, 4
      %v5055 = vshrl.u32 %v4949, 16
      %v5057 = vrot.slane %v5055, 6
      %v5058 = vshll.u32 %v4949, 16
      %v5060 = vrot.slane %v5058, 7
      %v5061 = vor.u32 %v5057, %v5060
      %v5062 = vsel %vm4984, %v5053, %v5061
      %v5063 = vrot.slane %v5061, 4
      %v5065 = vshrl.u32 %v4950, 16
      %v5067 = vrot.slane %v5065, 6
      %v5068 = vshll.u32 %v4950, 16
      %v5070 = vrot.slane %v5068, 7
      %v5071 = vor.u32 %v5067, %v5070
      %v5072 = vsel %vm4984, %v5063, %v5071
      %v5073 = vrot.slane %v5071, 4
      %v5075 = vshrl.u32 %v4951, 16
      %v5077 = vrot.slane %v5075, 6
      %v5078 = vshll.u32 %v4951, 16
      %v5080 = vrot.slane %v5078, 7
      %v5081 = vor.u32 %v5077, %v5080
      %v5082 = vsel %vm4984, %v5073, %v5081
      %v5083 = vrot.slane %v5081, 4
      %v5085 = vshrl.u32 %v4952, 16
      %v5087 = vrot.slane %v5085, 6
      %v5088 = vshll.u32 %v4952, 16
      %v5090 = vrot.slane %v5088, 7
      %v5091 = vor.u32 %v5087, %v5090
      %v5092 = vsel %vm4984, %v5083, %v5091
      %v5093 = vrot.slane %v5091, 4
      %v5095 = vshrl.u32 %v4953, 16
      %v5097 = vrot.slane %v5095, 6
      %v5098 = vshll.u32 %v4953, 16
      %v5100 = vrot.slane %v5098, 7
      %v5101 = vor.u32 %v5097, %v5100
      %v5102 = vsel %vm4984, %v5093, %v5101
      %v5103 = vrot.slane %v5101, 4
      %v5105 = vshrl.u32 %v4954, 16
      %v5107 = vrot.slane %v5105, 6
      %v5108 = vshll.u32 %v4954, 16
      %v5110 = vrot.slane %v5108, 7
      %v5111 = vor.u32 %v5107, %v5110
      %v5112 = vsel %vm4984, %v5103, %v5111
      %v5113 = vrot.slane %v5111, 4
      %v5115 = vshrl.u32 %v4955, 16
      %v5117 = vrot.slane %v5115, 6
      %v5118 = vshll.u32 %v4955, 16
      %v5120 = vrot.slane %v5118, 7
      %v5121 = vor.u32 %v5117, %v5120
      %v5122 = vsel %vm4984, %v5113, %v5121
      %v5123 = vrot.slane %v5121, 4
      %v5125 = vshrl.u32 %v4956, 16
      %v5127 = vrot.slane %v5125, 6
      %v5128 = vshll.u32 %v4956, 16
      %v5130 = vrot.slane %v5128, 7
      %v5131 = vor.u32 %v5127, %v5130
      %v5132 = vsel %vm4984, %v5123, %v5131
      %v5133 = vrot.slane %v5131, 4
      %v5135 = vshrl.u32 %v4957, 16
      %v5137 = vrot.slane %v5135, 6
      %v5138 = vshll.u32 %v4957, 16
      %v5140 = vrot.slane %v5138, 7
      %v5141 = vor.u32 %v5137, %v5140
      %v5142 = vsel %vm4984, %v5133, %v5141
      %v5143 = vrot.slane %v5141, 4
      %v5145 = vshrl.u32 %v4958, 16
      %v5147 = vrot.slane %v5145, 6
      %v5148 = vshll.u32 %v4958, 16
      %v5150 = vrot.slane %v5148, 7
      %v5151 = vor.u32 %v5147, %v5150
      %v5152 = vsel %vm4984, %v5143, %v5151
      %v5153 = vrot.slane %v5151, 4
      %v5155 = vshrl.u32 %v4959, 16
      %v5157 = vrot.slane %v5155, 6
      %v5158 = vshll.u32 %v4959, 16
      %v5160 = vrot.slane %v5158, 7
      %v5161 = vor.u32 %v5157, %v5160
      %v5162 = vsel %vm4984, %v5153, %v5161
      %v5163 = vrot.slane %v5161, 4
      %v5165 = vshrl.u32 %v4960, 16
      %v5167 = vrot.slane %v5165, 6
      %v5168 = vshll.u32 %v4960, 16
      %v5170 = vrot.slane %v5168, 7
      %v5171 = vor.u32 %v5167, %v5170
      %v5172 = vsel %vm4984, %v5163, %v5171
      %v5173 = vrot.slane %v5171, 4
      %v5175 = vshrl.u32 %v4961, 16
      %v5177 = vrot.slane %v5175, 6
      %v5178 = vshll.u32 %v4961, 16
      %v5180 = vrot.slane %v5178, 7
      %v5181 = vor.u32 %v5177, %v5180
      %v5182 = vsel %vm4984, %v5173, %v5181
      %v5183 = vrot.slane %v5181, 4
      %v5185 = vshrl.u32 %v4962, 16
      %v5187 = vrot.slane %v5185, 6
      %v5188 = vshll.u32 %v4962, 16
      %v5190 = vrot.slane %v5188, 7
      %v5191 = vor.u32 %v5187, %v5190
      %v5192 = vsel %vm4984, %v5183, %v5191
      %v5193 = vrot.slane %v5191, 4
      %v5195 = vshrl.u32 %v4963, 16
      %v5197 = vrot.slane %v5195, 6
      %v5198 = vshll.u32 %v4963, 16
      %v5200 = vrot.slane %v5198, 7
      %v5201 = vor.u32 %v5197, %v5200
      %v5202 = vsel %vm4984, %v5193, %v5201
      %v5203 = vrot.slane %v5201, 4
      %v5205 = vshrl.u32 %v4964, 16
      %v5207 = vrot.slane %v5205, 6
      %v5208 = vshll.u32 %v4964, 16
      %v5210 = vrot.slane %v5208, 7
      %v5211 = vor.u32 %v5207, %v5210
      %v5212 = vsel %vm4984, %v5203, %v5211
      %v5213 = vrot.slane %v5211, 4
      %v5215 = vshrl.u32 %v4965, 16
      %v5217 = vrot.slane %v5215, 6
      %v5218 = vshll.u32 %v4965, 16
      %v5220 = vrot.slane %v5218, 7
      %v5221 = vor.u32 %v5217, %v5220
      %v5222 = vsel %vm4984, %v5213, %v5221
      %v5223 = vrot.slane %v5221, 4
      %v5225 = vshrl.u32 %v4966, 16
      %v5227 = vrot.slane %v5225, 6
      %v5228 = vshll.u32 %v4966, 16
      %v5230 = vrot.slane %v5228, 7
      %v5231 = vor.u32 %v5227, %v5230
      %v5232 = vsel %vm4984, %v5223, %v5231
      %v5233 = vrot.slane %v5231, 4
      %v5235 = vshrl.u32 %v4967, 16
      %v5237 = vrot.slane %v5235, 6
      %v5238 = vshll.u32 %v4967, 16
      %v5240 = vrot.slane %v5238, 7
      %v5241 = vor.u32 %v5237, %v5240
      %v5242 = vsel %vm4984, %v5233, %v5241
      %v5243 = vrot.slane %v5241, 4
      %v5245 = vshrl.u32 %v4968, 16
      %v5247 = vrot.slane %v5245, 6
      %v5248 = vshll.u32 %v4968, 16
      %v5250 = vrot.slane %v5248, 7
      %v5251 = vor.u32 %v5247, %v5250
      %v5252 = vsel %vm4984, %v5243, %v5251
      %v5253 = vrot.slane %v5251, 4
      %v5255 = vshrl.u32 %v4969, 16
      %v5257 = vrot.slane %v5255, 6
      %v5258 = vshll.u32 %v4969, 16
      %v5260 = vrot.slane %v5258, 7
      %v5261 = vor.u32 %v5257, %v5260
      %v5262 = vsel %vm4984, %v5253, %v5261
      %v5263 = vrot.slane %v5261, 4
      %v5265 = vshrl.u32 %v4970, 16
      %v5267 = vrot.slane %v5265, 6
      %v5268 = vshll.u32 %v4970, 16
      %v5270 = vrot.slane %v5268, 7
      %v5271 = vor.u32 %v5267, %v5270
      %v5272 = vsel %vm4984, %v5263, %v5271
      %v5273 = vrot.slane %v5271, 4
      %v5275 = vshrl.u32 %v4971, 16
      %v5277 = vrot.slane %v5275, 6
      %v5278 = vshll.u32 %v4971, 16
      %v5280 = vrot.slane %v5278, 7
      %v5281 = vor.u32 %v5277, %v5280
      %v5282 = vsel %vm4984, %v5273, %v5281
      %v5283 = vrot.slane %v5281, 4
      %v5285 = vshrl.u32 %v4972, 16
      %v5287 = vrot.slane %v5285, 6
      %v5288 = vshll.u32 %v4972, 16
      %v5290 = vrot.slane %v5288, 7
      %v5291 = vor.u32 %v5287, %v5290
      %v5292 = vsel %vm4984, %v5283, %v5291
      %v5293 = vrot.slane %v5291, 4
      %v5295 = vshrl.u32 %v4973, 16
      %v5297 = vrot.slane %v5295, 6
      %v5298 = vshll.u32 %v4973, 16
      %v5300 = vrot.slane %v5298, 7
      %v5301 = vor.u32 %v5297, %v5300
      %v5302 = vsel %vm4984, %v5293, %v5301
      %v5303 = vrot.slane %v5301, 4
      %v5305 = vshrl.u32 %v4974, 16
      %v5307 = vrot.slane %v5305, 6
      %v5308 = vshll.u32 %v4974, 16
      %v5310 = vrot.slane %v5308, 7
      %v5311 = vor.u32 %v5307, %v5310
      %v5312 = vsel %vm4984, %v5303, %v5311
      %v5313 = vrot.slane %v5311, 4
      %v5315 = vshrl.u32 %v4975, 16
      %v5317 = vrot.slane %v5315, 6
      %v5318 = vshll.u32 %v4975, 16
      %v5320 = vrot.slane %v5318, 7
      %v5321 = vor.u32 %v5317, %v5320
      %v5322 = vsel %vm4984, %v5313, %v5321
      %v5323 = vrot.slane %v5321, 4
      %v5325 = vshrl.u32 %v4976, 16
      %v5327 = vrot.slane %v5325, 6
      %v5328 = vshll.u32 %v4976, 16
      %v5330 = vrot.slane %v5328, 7
      %v5331 = vor.u32 %v5327, %v5330
      %v5332 = vsel %vm4984, %v5323, %v5331
      %v5333 = vrot.slane %v5331, 4
      %v5335 = vshrl.u32 %v4977, 16
      %v5337 = vrot.slane %v5335, 6
      %v5338 = vshll.u32 %v4977, 16
      %v5340 = vrot.slane %v5338, 7
      %v5341 = vor.u32 %v5337, %v5340
      %v5342 = vsel %vm4984, %v5333, %v5341
      %v5343 = vrot.slane %v5341, 4
      %v5345 = vshrl.u32 %v4978, 16
      %v5347 = vrot.slane %v5345, 6
      %v5348 = vshll.u32 %v4978, 16
      %v5350 = vrot.slane %v5348, 7
      %v5351 = vor.u32 %v5347, %v5350
      %v5352 = vsel %vm4984, %v5343, %v5351
      %v5353 = vrot.slane %v5351, 4
      %v5355 = vshrl.u32 %v4979, 16
      %v5357 = vrot.slane %v5355, 6
      %v5358 = vshll.u32 %v4979, 16
      %v5360 = vrot.slane %v5358, 7
      %v5361 = vor.u32 %v5357, %v5360
      %v5362 = vsel %vm4984, %v5353, %v5361
      %v5363 = vrot.slane %v5361, 4
      %v5365 = vshrl.u32 %v4980, 16
      %v5367 = vrot.slane %v5365, 6
      %v5368 = vshll.u32 %v4980, 16
      %v5370 = vrot.slane %v5368, 7
      %v5371 = vor.u32 %v5367, %v5370
      %v5372 = vsel %vm4984, %v5363, %v5371
      %v5373 = vrot.slane %v5371, 4
      %v5375 = vshrl.u32 %v4981, 16
      %v5377 = vrot.slane %v5375, 6
      %v5378 = vshll.u32 %v4981, 16
      %v5380 = vrot.slane %v5378, 7
      %v5381 = vor.u32 %v5377, %v5380
      %v5382 = vsel %vm4984, %v5373, %v5381
      %v5383 = vrot.slane %v5381, 4
      %v5385 = vshrl.u32 %v4982, 16
      %v5387 = vrot.slane %v5385, 6
      %v5388 = vshll.u32 %v4982, 16
      %v5390 = vrot.slane %v5388, 7
      %v5391 = vor.u32 %v5387, %v5390
      %v5392 = vsel %vm4984, %v5383, %v5391
      %vm5434 = vcmask 1043457
      %vm5435 = vsmask.f32 7942
      %vm5436 = vmand %vm5434, %vm5435
      %v5437 = vld [vmem:[#allocation2 + $0x8] sm:$0xe]
      %v5438 = vsel %vm5436, %v4992, %v5437
      %5439 = vst [vmem:[#allocation2 + $0x8] sm:$0xe] %v5438
      %5440 = vst [vmem:[#allocation2 + $0xc] sm:$0xf] %v5002
      %5441 = vst [vmem:[#allocation2 + $0x10] sm:$0xf] %v5012
      %5442 = vst [vmem:[#allocation2 + $0x14] sm:$0xf] %v5022
      %5443 = vst [vmem:[#allocation2 + $0x18] sm:$0xf] %v5032
      %5444 = vst [vmem:[#allocation2 + $0x1c] sm:$0xf] %v5042
      %5445 = vst [vmem:[#allocation2 + $0x20] sm:$0xf] %v5052
      %5446 = vst [vmem:[#allocation2 + $0x24] sm:$0xf] %v5062
      %5447 = vst [vmem:[#allocation2 + $0x28] sm:$0xf] %v5072
      %5448 = vst [vmem:[#allocation2 + $0x2c] sm:$0xf] %v5082
      %5449 = vst [vmem:[#allocation2 + $0x30] sm:$0xf] %v5092
      %5450 = vst [vmem:[#allocation2 + $0x34] sm:$0xf] %v5102
      %5451 = vst [vmem:[#allocation2 + $0x38] sm:$0xf] %v5112
      %5452 = vst [vmem:[#allocation2 + $0x3c] sm:$0xf] %v5122
      %5453 = vst [vmem:[#allocation2 + $0x40] sm:$0xf] %v5132
      %5454 = vst [vmem:[#allocation2 + $0x44] sm:$0xf] %v5142
      %5455 = vst [vmem:[#allocation2 + $0x48] sm:$0xf] %v5152
      %5456 = vst [vmem:[#allocation2 + $0x4c] sm:$0xf] %v5162
      %5457 = vst [vmem:[#allocation2 + $0x50] sm:$0xf] %v5172
      %5458 = vst [vmem:[#allocation2 + $0x54] sm:$0xf] %v5182
      %5459 = vst [vmem:[#allocation2 + $0x58] sm:$0xf] %v5192
      %5460 = vst [vmem:[#allocation2 + $0x5c] sm:$0xf] %v5202
      %5461 = vst [vmem:[#allocation2 + $0x60] sm:$0xf] %v5212
      %5462 = vst [vmem:[#allocation2 + $0x64] sm:$0xf] %v5222
      %5463 = vst [vmem:[#allocation2 + $0x68] sm:$0xf] %v5232
      %5464 = vst [vmem:[#allocation2 + $0x6c] sm:$0xf] %v5242
      %5465 = vst [vmem:[#allocation2 + $0x70] sm:$0xf] %v5252
      %5466 = vst [vmem:[#allocation2 + $0x74] sm:$0xf] %v5262
      %5467 = vst [vmem:[#allocation2 + $0x78] sm:$0xf] %v5272
      %5468 = vst [vmem:[#allocation2 + $0x7c] sm:$0xf] %v5282
      %5469 = vst [vmem:[#allocation2 + $0x80] sm:$0xf] %v5292
      %5470 = vst [vmem:[#allocation2 + $0x84] sm:$0xf] %v5302
      %5471 = vst [vmem:[#allocation2 + $0x88] sm:$0xf] %v5312
      %5472 = vst [vmem:[#allocation2 + $0x8c] sm:$0xf] %v5322
      %5473 = vst [vmem:[#allocation2 + $0x90] sm:$0xf] %v5332
      %5474 = vst [vmem:[#allocation2 + $0x94] sm:$0xf] %v5342
      %5475 = vst [vmem:[#allocation2 + $0x98] sm:$0xf] %v5352
      %5476 = vst [vmem:[#allocation2 + $0x9c] sm:$0xf] %v5362
      %5477 = vst [vmem:[#allocation2 + $0xa0] sm:$0xf] %v5372
      %5478 = vst [vmem:[#allocation2 + $0xa4] sm:$0xf] %v5382
      %vm5479 = vcmask 1043456
      %vm5480 = vsmask.f32 3328
      %vm5481 = vmand %vm5479, %vm5480
      %v5482 = vld [vmem:[#allocation2 + $0xa8] sm:$0xf]
      %v5483 = vsel %vm5481, %v5392, %v5482
      %5484 = vst [vmem:[#allocation2 + $0xa8] sm:$0xf] %v5483
      %v5485 = vld [vmem:[#allocation2] sm:$0xf]
      %v5486 = vld [vmem:[#allocation2 + $0x4] sm:$0xf]
      %v5487 = vld [vmem:[#allocation2 + $0x8] sm:$0xf]
      %v5488 = vld [vmem:[#allocation2 + $0xc] sm:$0xf]
      %v5489 = vld [vmem:[#allocation2 + $0x10] sm:$0xf]
      %v5490 = vld [vmem:[#allocation2 + $0x14] sm:$0xf]
      %v5491 = vld [vmem:[#allocation2 + $0x18] sm:$0xf]
      %v5492 = vld [vmem:[#allocation2 + $0x1c] sm:$0xf]
      %v5493 = vld [vmem:[#allocation2 + $0x20] sm:$0xf]
      %v5494 = vld [vmem:[#allocation2 + $0x24] sm:$0xf]
      %v5495 = vld [vmem:[#allocation2 + $0x28] sm:$0xf]
      %v5496 = vld [vmem:[#allocation2 + $0x2c] sm:$0xf]
      %v5497 = vld [vmem:[#allocation2 + $0x30] sm:$0xf]
      %v5498 = vld [vmem:[#allocation2 + $0x34] sm:$0xf]
      %v5499 = vld [vmem:[#allocation2 + $0x38] sm:$0xf]
      %v5500 = vld [vmem:[#allocation2 + $0x3c] sm:$0xf]
      %v5501 = vld [vmem:[#allocation2 + $0x40] sm:$0xf]
      %v5502 = vld [vmem:[#allocation2 + $0x44] sm:$0xf]
      %v5503 = vld [vmem:[#allocation2 + $0x48] sm:$0xf]
      %v5504 = vld [vmem:[#allocation2 + $0x4c] sm:$0xf]
      %v5505 = vld [vmem:[#allocation2 + $0x50] sm:$0xf]
      %v5506 = vld [vmem:[#allocation2 + $0x54] sm:$0xf]
      %v5507 = vld [vmem:[#allocation2 + $0x58] sm:$0xf]
      %v5508 = vld [vmem:[#allocation2 + $0x5c] sm:$0xf]
      %v5509 = vld [vmem:[#allocation2 + $0x60] sm:$0xf]
      %v5510 = vld [vmem:[#allocation2 + $0x64] sm:$0xf]
      %v5511 = vld [vmem:[#allocation2 + $0x68] sm:$0xf]
      %v5512 = vld [vmem:[#allocation2 + $0x6c] sm:$0xf]
      %v5513 = vld [vmem:[#allocation2 + $0x70] sm:$0xf]
      %v5514 = vld [vmem:[#allocation2 + $0x74] sm:$0xf]
      %v5515 = vld [vmem:[#allocation2 + $0x78] sm:$0xf]
      %v5516 = vld [vmem:[#allocation2 + $0x7c] sm:$0xf]
      %v5517 = vld [vmem:[#allocation2 + $0x80] sm:$0xf]
      %v5518 = vld [vmem:[#allocation2 + $0x84] sm:$0xf]
      %v5519 = vld [vmem:[#allocation2 + $0x88] sm:$0xf]
      %v5520 = vld [vmem:[#allocation2 + $0x8c] sm:$0xf]
      %v5521 = vld [vmem:[#allocation2 + $0x90] sm:$0xf]
      %v5522 = vld [vmem:[#allocation2 + $0x94] sm:$0xf]
      %v5523 = vld [vmem:[#allocation2 + $0x98] sm:$0xf]
      %v5524 = vld [vmem:[#allocation2 + $0x9c] sm:$0xf]
      %v5525 = vld [vmem:[#allocation2 + $0xa0] sm:$0x3]
      %v5526 = vld [vmem:[%s3] sm:$0xf]
      %v5527 = vld [vmem:[%s3 + $0x4] sm:$0xf]
      %v5528 = vld [vmem:[%s3 + $0x8] sm:$0xf]
      %v5529 = vld [vmem:[%s3 + $0xc] sm:$0xf]
      %v5530 = vld [vmem:[%s3 + $0x10] sm:$0xf]
      %v5531 = vld [vmem:[%s3 + $0x14] sm:$0xf]
      %v5532 = vld [vmem:[%s3 + $0x18] sm:$0xf]
      %v5533 = vld [vmem:[%s3 + $0x1c] sm:$0xf]
      %v5534 = vld [vmem:[%s3 + $0x20] sm:$0xf]
      %v5535 = vld [vmem:[%s3 + $0x24] sm:$0xf]
      %v5536 = vld [vmem:[%s3 + $0x28] sm:$0xf]
      %v5537 = vld [vmem:[%s3 + $0x2c] sm:$0xf]
      %v5538 = vld [vmem:[%s3 + $0x30] sm:$0xf]
      %v5539 = vld [vmem:[%s3 + $0x34] sm:$0xf]
      %v5540 = vld [vmem:[%s3 + $0x38] sm:$0xf]
      %v5541 = vld [vmem:[%s3 + $0x3c] sm:$0xf]
      %v5542 = vld [vmem:[#allocation2 + $0xa0] sm:$0x7]
      %s5543 = scalar_lea.vmem %s3, 64
      %v5544 = vld [vmem:[%s5543] sm:$0xf]
      %v5545 = vld [vmem:[%s5543 + $0x4] sm:$0xf]
      %v5546 = vld [vmem:[%s5543 + $0x8] sm:$0xf]
      %v5547 = vld [vmem:[%s5543 + $0xc] sm:$0xf]
      %v5548 = vld [vmem:[%s5543 + $0x10] sm:$0xf]
      %v5549 = vld [vmem:[%s5543 + $0x14] sm:$0xf]
      %v5550 = vld [vmem:[%s5543 + $0x18] sm:$0xf]
      %v5551 = vld [vmem:[%s5543 + $0x1c] sm:$0xf]
      %v5552 = vld [vmem:[%s5543 + $0x20] sm:$0xf]
      %v5553 = vld [vmem:[%s5543 + $0x24] sm:$0xf]
      %v5554 = vld [vmem:[%s5543 + $0x28] sm:$0xf]
      %v5555 = vld [vmem:[%s5543 + $0x2c] sm:$0xf]
      %v5556 = vld [vmem:[%s5543 + $0x30] sm:$0xf]
      %v5557 = vld [vmem:[%s5543 + $0x34] sm:$0xf]
      %v5558 = vld [vmem:[%s5543 + $0x38] sm:$0xf]
      %v5559 = vld [vmem:[%s5543 + $0x3c] sm:$0xf]
      %v5601 = vunpack.c.l.b16 %v5485
      %v5602 = vunpack.c.l.b16 %v5486
      %v5603 = vunpack.c.l.b16 %v5487
      %v5604 = vunpack.c.l.b16 %v5488
      %v5605 = vunpack.c.l.b16 %v5489
      %v5606 = vunpack.c.l.b16 %v5490
      %v5607 = vunpack.c.l.b16 %v5491
      %v5608 = vunpack.c.l.b16 %v5492
      %v5609 = vunpack.c.l.b16 %v5493
      %v5610 = vunpack.c.l.b16 %v5494
      %v5611 = vunpack.c.l.b16 %v5495
      %v5612 = vunpack.c.l.b16 %v5496
      %v5613 = vunpack.c.l.b16 %v5497
      %v5614 = vunpack.c.l.b16 %v5498
      %v5615 = vunpack.c.l.b16 %v5499
      %v5616 = vunpack.c.l.b16 %v5500
      %v5617 = vunpack.c.l.b16 %v5501
      %v5618 = vunpack.c.l.b16 %v5502
      %v5619 = vunpack.c.l.b16 %v5503
      %v5620 = vunpack.c.l.b16 %v5504
      %v5621 = vunpack.c.l.b16 %v5505
      %v5622 = vunpack.c.l.b16 %v5506
      %v5623 = vunpack.c.l.b16 %v5507
      %v5624 = vunpack.c.l.b16 %v5508
      %v5625 = vunpack.c.l.b16 %v5509
      %v5626 = vunpack.c.l.b16 %v5510
      %v5627 = vunpack.c.l.b16 %v5511
      %v5628 = vunpack.c.l.b16 %v5512
      %v5629 = vunpack.c.l.b16 %v5513
      %v5630 = vunpack.c.l.b16 %v5514
      %v5631 = vunpack.c.l.b16 %v5515
      %v5632 = vunpack.c.l.b16 %v5516
      %v5633 = vunpack.c.l.b16 %v5517
      %v5634 = vunpack.c.l.b16 %v5518
      %v5635 = vunpack.c.l.b16 %v5519
      %v5636 = vunpack.c.l.b16 %v5520
      %v5637 = vunpack.c.l.b16 %v5521
      %v5638 = vunpack.c.l.b16 %v5522
      %v5639 = vunpack.c.l.b16 %v5523
      %v5640 = vunpack.c.l.b16 %v5524
      %v5641 = vunpack.c.l.b16 %v5542
      %v5642 = vpack.c.b16 %v5602, %v5601
      %v5643 = vpack.c.b16 %v5604, %v5603
      %v5644 = vpack.c.b16 %v5606, %v5605
      %v5645 = vpack.c.b16 %v5608, %v5607
      %v5646 = vpack.c.b16 %v5610, %v5609
      %v5647 = vpack.c.b16 %v5612, %v5611
      %v5648 = vpack.c.b16 %v5614, %v5613
      %v5649 = vpack.c.b16 %v5616, %v5615
      %v5650 = vpack.c.b16 %v5618, %v5617
      %v5651 = vpack.c.b16 %v5620, %v5619
      %v5652 = vpack.c.b16 %v5622, %v5621
      %v5653 = vpack.c.b16 %v5624, %v5623
      %v5654 = vpack.c.b16 %v5626, %v5625
      %v5655 = vpack.c.b16 %v5628, %v5627
      %v5656 = vpack.c.b16 %v5630, %v5629
      %v5657 = vpack.c.b16 %v5632, %v5631
      %v5658 = vpack.c.b16 %v5634, %v5633
      %v5659 = vpack.c.b16 %v5636, %v5635
      %v5660 = vpack.c.b16 %v5638, %v5637
      %v5661 = vpack.c.b16 %v5640, %v5639
      %v5662 = vpack.c.b16 %v5641, %v5641
      %v5664 = vshrl.u32 %v5642, 16
      %v5666 = vshll.u32 %v5642, 16
      %v5668 = vrot.slane %v5666, 1
      %v5669 = vor.u32 %v5664, %v5668
      %v5671 = vshll.u32 %v5643, 16
      %v5673 = vrot.slane %v5671, 1
      %v5674 = vsel %vm431, %v5669, %v5673
      %v5675 = vshrl.u32 %v5643, 16
      %v5677 = vor.u32 %v5675, %v5673
      %v5679 = vshll.u32 %v5644, 16
      %v5681 = vrot.slane %v5679, 1
      %v5682 = vsel %vm431, %v5677, %v5681
      %v5683 = vshrl.u32 %v5644, 16
      %v5685 = vor.u32 %v5683, %v5681
      %v5687 = vshll.u32 %v5645, 16
      %v5689 = vrot.slane %v5687, 1
      %v5690 = vsel %vm431, %v5685, %v5689
      %v5691 = vshrl.u32 %v5645, 16
      %v5693 = vor.u32 %v5691, %v5689
      %v5695 = vshll.u32 %v5646, 16
      %v5697 = vrot.slane %v5695, 1
      %v5698 = vsel %vm431, %v5693, %v5697
      %v5699 = vshrl.u32 %v5646, 16
      %v5701 = vor.u32 %v5699, %v5697
      %v5703 = vshll.u32 %v5647, 16
      %v5705 = vrot.slane %v5703, 1
      %v5706 = vsel %vm431, %v5701, %v5705
      %v5707 = vshrl.u32 %v5647, 16
      %v5709 = vor.u32 %v5707, %v5705
      %v5711 = vshll.u32 %v5648, 16
      %v5713 = vrot.slane %v5711, 1
      %v5714 = vsel %vm431, %v5709, %v5713
      %v5715 = vshrl.u32 %v5648, 16
      %v5717 = vor.u32 %v5715, %v5713
      %v5719 = vshll.u32 %v5649, 16
      %v5721 = vrot.slane %v5719, 1
      %v5722 = vsel %vm431, %v5717, %v5721
      %v5723 = vshrl.u32 %v5649, 16
      %v5725 = vor.u32 %v5723, %v5721
      %v5727 = vshll.u32 %v5650, 16
      %v5729 = vrot.slane %v5727, 1
      %v5730 = vsel %vm431, %v5725, %v5729
      %v5731 = vshrl.u32 %v5650, 16
      %v5733 = vor.u32 %v5731, %v5729
      %v5735 = vshll.u32 %v5651, 16
      %v5737 = vrot.slane %v5735, 1
      %v5738 = vsel %vm431, %v5733, %v5737
      %v5739 = vshrl.u32 %v5651, 16
      %v5741 = vor.u32 %v5739, %v5737
      %v5743 = vshll.u32 %v5652, 16
      %v5745 = vrot.slane %v5743, 1
      %v5746 = vsel %vm431, %v5741, %v5745
      %v5747 = vshrl.u32 %v5652, 16
      %v5749 = vor.u32 %v5747, %v5745
      %v5751 = vshll.u32 %v5653, 16
      %v5753 = vrot.slane %v5751, 1
      %v5754 = vsel %vm431, %v5749, %v5753
      %v5755 = vshrl.u32 %v5653, 16
      %v5757 = vor.u32 %v5755, %v5753
      %v5759 = vshll.u32 %v5654, 16
      %v5761 = vrot.slane %v5759, 1
      %v5762 = vsel %vm431, %v5757, %v5761
      %v5763 = vshrl.u32 %v5654, 16
      %v5765 = vor.u32 %v5763, %v5761
      %v5767 = vshll.u32 %v5655, 16
      %v5769 = vrot.slane %v5767, 1
      %v5770 = vsel %vm431, %v5765, %v5769
      %v5771 = vshrl.u32 %v5655, 16
      %v5773 = vor.u32 %v5771, %v5769
      %v5775 = vshll.u32 %v5656, 16
      %v5777 = vrot.slane %v5775, 1
      %v5778 = vsel %vm431, %v5773, %v5777
      %v5779 = vshrl.u32 %v5656, 16
      %v5781 = vor.u32 %v5779, %v5777
      %v5783 = vshll.u32 %v5657, 16
      %v5785 = vrot.slane %v5783, 1
      %v5786 = vsel %vm431, %v5781, %v5785
      %v5787 = vshrl.u32 %v5657, 16
      %v5789 = vor.u32 %v5787, %v5785
      %v5791 = vshll.u32 %v5658, 16
      %v5793 = vrot.slane %v5791, 1
      %v5794 = vsel %vm431, %v5789, %v5793
      %v5795 = vshrl.u32 %v5658, 16
      %v5797 = vor.u32 %v5795, %v5793
      %v5799 = vshll.u32 %v5659, 16
      %v5801 = vrot.slane %v5799, 1
      %v5802 = vsel %vm431, %v5797, %v5801
      %v5803 = vshrl.u32 %v5659, 16
      %v5805 = vor.u32 %v5803, %v5801
      %v5807 = vshll.u32 %v5660, 16
      %v5809 = vrot.slane %v5807, 1
      %v5810 = vsel %vm431, %v5805, %v5809
      %v5811 = vshrl.u32 %v5660, 16
      %v5813 = vor.u32 %v5811, %v5809
      %v5815 = vshll.u32 %v5661, 16
      %v5817 = vrot.slane %v5815, 1
      %v5818 = vsel %vm431, %v5813, %v5817
      %v5819 = vshrl.u32 %v5661, 16
      %v5821 = vor.u32 %v5819, %v5817
      %v5823 = vshll.u32 %v5662, 16
      %v5825 = vrot.slane %v5823, 1
      %v5826 = vsel %vm431, %v5821, %v5825
      %v5827 = vshrl.u32 %v5662, 16
      %v5829 = vor.u32 %v5827, %v5825
      %v5867 = vunpack.c.l.b16 %v5544
      %v5868 = vunpack.c.l.b16 %v5545
      %v5869 = vunpack.c.l.b16 %v5546
      %v5870 = vunpack.c.l.b16 %v5547
      %v5871 = vunpack.c.l.b16 %v5548
      %v5872 = vunpack.c.l.b16 %v5549
      %v5873 = vunpack.c.l.b16 %v5550
      %v5874 = vunpack.c.l.b16 %v5551
      %v5875 = vunpack.c.l.b16 %v5552
      %v5876 = vunpack.c.l.b16 %v5553
      %v5877 = vunpack.c.l.b16 %v5554
      %v5878 = vunpack.c.l.b16 %v5555
      %v5879 = vunpack.c.l.b16 %v5556
      %v5880 = vunpack.c.l.b16 %v5557
      %v5881 = vunpack.c.l.b16 %v5558
      %v5882 = vunpack.c.l.b16 %v5559
      %v5883 = vpack.c.b16 %v5868, %v5867
      %v5884 = vpack.c.b16 %v5870, %v5869
      %v5885 = vpack.c.b16 %v5872, %v5871
      %v5886 = vpack.c.b16 %v5874, %v5873
      %v5887 = vpack.c.b16 %v5876, %v5875
      %v5888 = vpack.c.b16 %v5878, %v5877
      %v5889 = vpack.c.b16 %v5880, %v5879
      %v5890 = vpack.c.b16 %v5882, %v5881
      %5899 = vmatprep.subr.bf16.mxu0 0
      %5900 = vmatpush1.bf16.msra.mxu0 %v5890
      %5901 = vmatprep.subr.bf16.mxu0 0
      %5902 = vmatpush1.bf16.msra.mxu0 %v5889
      %5903 = vmatprep.subr.bf16.mxu0 0
      %5904 = vmatpush1.bf16.msra.mxu0 %v5888
      %5905 = vmatprep.subr.bf16.mxu0 0
      %5906 = vmatpush1.bf16.msra.mxu0 %v5887
      %5907 = vmatprep.subr.bf16.mxu0 0
      %5908 = vmatpush1.bf16.msra.mxu0 %v5886
      %5909 = vmatprep.subr.bf16.mxu0 0
      %5910 = vmatpush1.bf16.msra.mxu0 %v5885
      %5911 = vmatprep.subr.bf16.mxu0 0
      %5912 = vmatpush1.bf16.msra.mxu0 %v5884
      %5913 = vmatprep.subr.bf16.mxu0 0
      %5914 = vmatpush1.bf16.msra.mxu0 %v5883
      %5915 = vmatprep.subr.bf16.mxu0 0
      %5916 = vmatpush2.bf16.msra.mxu0 0
      %5917 = vmatprep.subr.bf16.mxu0 0
      %5918 = vmatpush2.bf16.msra.mxu0 0
      %5919 = vmatprep.subr.bf16.mxu0 0
      %5920 = vmatpush2.bf16.msra.mxu0 0
      %5921 = vmatprep.subr.bf16.mxu0 0
      %5922 = vmatpush2.bf16.msra.mxu0 0
      %5923 = vmatprep.subr.bf16.mxu0 0
      %5924 = vmatpush2.bf16.msra.mxu0 0
      %5925 = vmatprep.subr.bf16.mxu0 0
      %5926 = vmatpush2.bf16.msra.mxu0 0
      %5927 = vmatprep.subr.bf16.mxu0 0
      %5928 = vmatpush2.bf16.msra.mxu0 0
      %5929 = vmatprep.subr.bf16.mxu0 0
      %5930 = vmatpush2.bf16.msra.mxu0 0
      %5931 = vmatprep.mubr.bf16.mxu0 0
      %5932 = vmatmul.mubr.bf16.gmra.mxu0 %v5674
      %v5933 = vpop.f32.mrf.mxu0
      %v5934 = vadd.f32 0.0, %v5933
      %v5935 = vpop.f32.mrf.mxu0
      %v5936 = vpop.f32.mrf.mxu0
      %v5937 = vadd.f32 0.0, %v5936
      %v5938 = vpop.f32.mrf.mxu0
      %5939 = vmatprep.mubr.bf16.mxu0 0
      %5940 = vmatmul.mubr.bf16.gmra.mxu0 %v5682
      %v5941 = vpop.f32.mrf.mxu0
      %v5942 = vadd.f32 0.0, %v5941
      %v5943 = vpop.f32.mrf.mxu0
      %v5944 = vpop.f32.mrf.mxu0
      %v5945 = vadd.f32 0.0, %v5944
      %v5946 = vpop.f32.mrf.mxu0
      %5947 = vmatprep.mubr.bf16.mxu0 0
      %5948 = vmatmul.mubr.bf16.gmra.mxu0 %v5690
      %v5949 = vpop.f32.mrf.mxu0
      %v5950 = vadd.f32 0.0, %v5949
      %v5951 = vpop.f32.mrf.mxu0
      %v5952 = vpop.f32.mrf.mxu0
      %v5953 = vadd.f32 0.0, %v5952
      %v5954 = vpop.f32.mrf.mxu0
      %5955 = vmatprep.mubr.bf16.mxu0 0
      %5956 = vmatmul.mubr.bf16.gmra.mxu0 %v5698
      %v5957 = vpop.f32.mrf.mxu0
      %v5958 = vadd.f32 0.0, %v5957
      %v5959 = vpop.f32.mrf.mxu0
      %v5960 = vpop.f32.mrf.mxu0
      %v5961 = vadd.f32 0.0, %v5960
      %v5962 = vpop.f32.mrf.mxu0
      %5963 = vmatprep.mubr.bf16.mxu0 0
      %5964 = vmatmul.mubr.bf16.gmra.mxu0 %v5706
      %v5965 = vpop.f32.mrf.mxu0
      %v5966 = vadd.f32 0.0, %v5965
      %v5967 = vpop.f32.mrf.mxu0
      %v5968 = vpop.f32.mrf.mxu0
      %v5969 = vadd.f32 0.0, %v5968
      %v5970 = vpop.f32.mrf.mxu0
      %5971 = vmatprep.mubr.bf16.mxu0 0
      %5972 = vmatmul.mubr.bf16.gmra.mxu0 %v5714
      %v5973 = vpop.f32.mrf.mxu0
      %v5974 = vadd.f32 0.0, %v5973
      %v5975 = vpop.f32.mrf.mxu0
      %v5976 = vpop.f32.mrf.mxu0
      %v5977 = vadd.f32 0.0, %v5976
      %v5978 = vpop.f32.mrf.mxu0
      %5979 = vmatprep.mubr.bf16.mxu0 0
      %5980 = vmatmul.mubr.bf16.gmra.mxu0 %v5722
      %v5981 = vpop.f32.mrf.mxu0
      %v5982 = vadd.f32 0.0, %v5981
      %v5983 = vpop.f32.mrf.mxu0
      %v5984 = vpop.f32.mrf.mxu0
      %v5985 = vadd.f32 0.0, %v5984
      %v5986 = vpop.f32.mrf.mxu0
      %5987 = vmatprep.mubr.bf16.mxu0 0
      %5988 = vmatmul.mubr.bf16.gmra.mxu0 %v5730
      %v5989 = vpop.f32.mrf.mxu0
      %v5990 = vadd.f32 0.0, %v5989
      %v5991 = vpop.f32.mrf.mxu0
      %v5992 = vpop.f32.mrf.mxu0
      %v5993 = vadd.f32 0.0, %v5992
      %v5994 = vpop.f32.mrf.mxu0
      %5995 = vmatprep.mubr.bf16.mxu0 0
      %5996 = vmatmul.mubr.bf16.gmra.mxu0 %v5738
      %v5997 = vpop.f32.mrf.mxu0
      %v5998 = vadd.f32 0.0, %v5997
      %v5999 = vpop.f32.mrf.mxu0
      %v6000 = vpop.f32.mrf.mxu0
      %v6001 = vadd.f32 0.0, %v6000
      %v6002 = vpop.f32.mrf.mxu0
      %6003 = vmatprep.mubr.bf16.mxu0 0
      %6004 = vmatmul.mubr.bf16.gmra.mxu0 %v5746
      %v6005 = vpop.f32.mrf.mxu0
      %v6006 = vadd.f32 0.0, %v6005
      %v6007 = vpop.f32.mrf.mxu0
      %v6008 = vpop.f32.mrf.mxu0
      %v6009 = vadd.f32 0.0, %v6008
      %v6010 = vpop.f32.mrf.mxu0
      %6011 = vmatprep.mubr.bf16.mxu0 0
      %6012 = vmatmul.mubr.bf16.gmra.mxu0 %v5754
      %v6013 = vpop.f32.mrf.mxu0
      %v6014 = vadd.f32 0.0, %v6013
      %v6015 = vpop.f32.mrf.mxu0
      %v6016 = vpop.f32.mrf.mxu0
      %v6017 = vadd.f32 0.0, %v6016
      %v6018 = vpop.f32.mrf.mxu0
      %6019 = vmatprep.mubr.bf16.mxu0 0
      %6020 = vmatmul.mubr.bf16.gmra.mxu0 %v5762
      %v6021 = vpop.f32.mrf.mxu0
      %v6022 = vadd.f32 0.0, %v6021
      %v6023 = vpop.f32.mrf.mxu0
      %v6024 = vpop.f32.mrf.mxu0
      %v6025 = vadd.f32 0.0, %v6024
      %v6026 = vpop.f32.mrf.mxu0
      %6027 = vmatprep.mubr.bf16.mxu0 0
      %6028 = vmatmul.mubr.bf16.gmra.mxu0 %v5770
      %v6029 = vpop.f32.mrf.mxu0
      %v6030 = vadd.f32 0.0, %v6029
      %v6031 = vpop.f32.mrf.mxu0
      %v6032 = vpop.f32.mrf.mxu0
      %v6033 = vadd.f32 0.0, %v6032
      %v6034 = vpop.f32.mrf.mxu0
      %6035 = vmatprep.mubr.bf16.mxu0 0
      %6036 = vmatmul.mubr.bf16.gmra.mxu0 %v5778
      %v6037 = vpop.f32.mrf.mxu0
      %v6038 = vadd.f32 0.0, %v6037
      %v6039 = vpop.f32.mrf.mxu0
      %v6040 = vpop.f32.mrf.mxu0
      %v6041 = vadd.f32 0.0, %v6040
      %v6042 = vpop.f32.mrf.mxu0
      %6043 = vmatprep.mubr.bf16.mxu0 0
      %6044 = vmatmul.mubr.bf16.gmra.mxu0 %v5786
      %v6045 = vpop.f32.mrf.mxu0
      %v6046 = vadd.f32 0.0, %v6045
      %v6047 = vpop.f32.mrf.mxu0
      %v6048 = vpop.f32.mrf.mxu0
      %v6049 = vadd.f32 0.0, %v6048
      %v6050 = vpop.f32.mrf.mxu0
      %6051 = vmatprep.mubr.bf16.mxu0 0
      %6052 = vmatmul.mubr.bf16.gmra.mxu0 %v5794
      %v6053 = vpop.f32.mrf.mxu0
      %v6054 = vadd.f32 0.0, %v6053
      %v6055 = vpop.f32.mrf.mxu0
      %v6056 = vpop.f32.mrf.mxu0
      %v6057 = vadd.f32 0.0, %v6056
      %v6058 = vpop.f32.mrf.mxu0
      %6059 = vmatprep.mubr.bf16.mxu0 0
      %6060 = vmatmul.mubr.bf16.gmra.mxu0 %v5802
      %v6061 = vpop.f32.mrf.mxu0
      %v6062 = vadd.f32 0.0, %v6061
      %v6063 = vpop.f32.mrf.mxu0
      %v6064 = vpop.f32.mrf.mxu0
      %v6065 = vadd.f32 0.0, %v6064
      %v6066 = vpop.f32.mrf.mxu0
      %6067 = vmatprep.mubr.bf16.mxu0 0
      %6068 = vmatmul.mubr.bf16.gmra.mxu0 %v5810
      %v6069 = vpop.f32.mrf.mxu0
      %v6070 = vadd.f32 0.0, %v6069
      %v6071 = vpop.f32.mrf.mxu0
      %v6072 = vpop.f32.mrf.mxu0
      %v6073 = vadd.f32 0.0, %v6072
      %v6074 = vpop.f32.mrf.mxu0
      %6075 = vmatprep.mubr.bf16.mxu0 0
      %6076 = vmatmul.mubr.bf16.gmra.mxu0 %v5818
      %v6077 = vpop.f32.mrf.mxu0
      %v6078 = vadd.f32 0.0, %v6077
      %v6079 = vpop.f32.mrf.mxu0
      %v6080 = vpop.f32.mrf.mxu0
      %v6081 = vadd.f32 0.0, %v6080
      %v6082 = vpop.f32.mrf.mxu0
      %6083 = vmatprep.mubr.bf16.mxu0 0
      %6084 = vmatmul.mubr.bf16.gmra.mxu0 %v5826
      %v6085 = vpop.f32.mrf.mxu0
      %v6086 = vadd.f32 0.0, %v6085
      %v6087 = vpop.f32.mrf.mxu0
      %v6088 = vpop.f32.mrf.mxu0
      %v6089 = vadd.f32 0.0, %v6088
      %v6090 = vpop.f32.mrf.mxu0
      %6091 = vmatprep.mubr.bf16.mxu0 0
      %6092 = vmatmul.mubr.bf16.gmra.mxu0 %v5829
      %v6093 = vpop.f32.mrf.mxu0
      %v6094 = vadd.f32 0.0, %v6093
      %v6095 = vpop.f32.mrf.mxu0
      %v6096 = vpop.f32.mrf.mxu0
      %v6097 = vpop.f32.mrf.mxu0
      %6098 = vdwg.mxu0
      %v6100 = vunpack.c.l.b16 %v5525
      %v6101 = vpack.c.b16 %v6100, %v6100
      %v6139 = vunpack.c.l.b16 %v5526
      %v6140 = vunpack.c.l.b16 %v5527
      %v6141 = vunpack.c.l.b16 %v5528
      %v6142 = vunpack.c.l.b16 %v5529
      %v6143 = vunpack.c.l.b16 %v5530
      %v6144 = vunpack.c.l.b16 %v5531
      %v6145 = vunpack.c.l.b16 %v5532
      %v6146 = vunpack.c.l.b16 %v5533
      %v6147 = vunpack.c.l.b16 %v5534
      %v6148 = vunpack.c.l.b16 %v5535
      %v6149 = vunpack.c.l.b16 %v5536
      %v6150 = vunpack.c.l.b16 %v5537
      %v6151 = vunpack.c.l.b16 %v5538
      %v6152 = vunpack.c.l.b16 %v5539
      %v6153 = vunpack.c.l.b16 %v5540
      %v6154 = vunpack.c.l.b16 %v5541
      %v6155 = vpack.c.b16 %v6140, %v6139
      %v6156 = vpack.c.b16 %v6142, %v6141
      %v6157 = vpack.c.b16 %v6144, %v6143
      %v6158 = vpack.c.b16 %v6146, %v6145
      %v6159 = vpack.c.b16 %v6148, %v6147
      %v6160 = vpack.c.b16 %v6150, %v6149
      %v6161 = vpack.c.b16 %v6152, %v6151
      %v6162 = vpack.c.b16 %v6154, %v6153
      %6171 = vmatprep.subr.bf16.mxu0 0
      %6172 = vmatpush1.bf16.msra.mxu0 %v6162
      %6173 = vmatprep.subr.bf16.mxu0 0
      %6174 = vmatpush1.bf16.msra.mxu0 %v6161
      %6175 = vmatprep.subr.bf16.mxu0 0
      %6176 = vmatpush1.bf16.msra.mxu0 %v6160
      %6177 = vmatprep.subr.bf16.mxu0 0
      %6178 = vmatpush1.bf16.msra.mxu0 %v6159
      %6179 = vmatprep.subr.bf16.mxu0 0
      %6180 = vmatpush1.bf16.msra.mxu0 %v6158
      %6181 = vmatprep.subr.bf16.mxu0 0
      %6182 = vmatpush1.bf16.msra.mxu0 %v6157
      %6183 = vmatprep.subr.bf16.mxu0 0
      %6184 = vmatpush1.bf16.msra.mxu0 %v6156
      %6185 = vmatprep.subr.bf16.mxu0 0
      %6186 = vmatpush1.bf16.msra.mxu0 %v6155
      %6187 = vmatprep.subr.bf16.mxu0 0
      %6188 = vmatpush2.bf16.msra.mxu0 0
      %6189 = vmatprep.subr.bf16.mxu0 0
      %6190 = vmatpush2.bf16.msra.mxu0 0
      %6191 = vmatprep.subr.bf16.mxu0 0
      %6192 = vmatpush2.bf16.msra.mxu0 0
      %6193 = vmatprep.subr.bf16.mxu0 0
      %6194 = vmatpush2.bf16.msra.mxu0 0
      %6195 = vmatprep.subr.bf16.mxu0 0
      %6196 = vmatpush2.bf16.msra.mxu0 0
      %6197 = vmatprep.subr.bf16.mxu0 0
      %6198 = vmatpush2.bf16.msra.mxu0 0
      %6199 = vmatprep.subr.bf16.mxu0 0
      %6200 = vmatpush2.bf16.msra.mxu0 0
      %6201 = vmatprep.subr.bf16.mxu0 0
      %6202 = vmatpush2.bf16.msra.mxu0 0
      %6203 = vmatprep.mubr.bf16.mxu0 0
      %6204 = vmatmul.mubr.bf16.gmra.mxu0 %v5642
      %v6205 = vpop.f32.mrf.mxu0
      %v6206 = vadd.f32 %v5934, %v6205
      %v6207 = vpop.f32.mrf.mxu0
      %v6208 = vpop.f32.mrf.mxu0
      %v6209 = vadd.f32 %v5937, %v6208
      %v6210 = vpop.f32.mrf.mxu0
      %6211 = vmatprep.mubr.bf16.mxu0 0
      %6212 = vmatmul.mubr.bf16.gmra.mxu0 %v5643
      %v6213 = vpop.f32.mrf.mxu0
      %v6214 = vadd.f32 %v5942, %v6213
      %v6215 = vpop.f32.mrf.mxu0
      %v6216 = vpop.f32.mrf.mxu0
      %v6217 = vadd.f32 %v5945, %v6216
      %v6218 = vpop.f32.mrf.mxu0
      %6219 = vmatprep.mubr.bf16.mxu0 0
      %6220 = vmatmul.mubr.bf16.gmra.mxu0 %v5644
      %v6221 = vpop.f32.mrf.mxu0
      %v6222 = vadd.f32 %v5950, %v6221
      %v6223 = vpop.f32.mrf.mxu0
      %v6224 = vpop.f32.mrf.mxu0
      %v6225 = vadd.f32 %v5953, %v6224
      %v6226 = vpop.f32.mrf.mxu0
      %6227 = vmatprep.mubr.bf16.mxu0 0
      %6228 = vmatmul.mubr.bf16.gmra.mxu0 %v5645
      %v6229 = vpop.f32.mrf.mxu0
      %v6230 = vadd.f32 %v5958, %v6229
      %v6231 = vpop.f32.mrf.mxu0
      %v6232 = vpop.f32.mrf.mxu0
      %v6233 = vadd.f32 %v5961, %v6232
      %v6234 = vpop.f32.mrf.mxu0
      %6235 = vmatprep.mubr.bf16.mxu0 0
      %6236 = vmatmul.mubr.bf16.gmra.mxu0 %v5646
      %v6237 = vpop.f32.mrf.mxu0
      %v6238 = vadd.f32 %v5966, %v6237
      %v6239 = vpop.f32.mrf.mxu0
      %v6240 = vpop.f32.mrf.mxu0
      %v6241 = vadd.f32 %v5969, %v6240
      %v6242 = vpop.f32.mrf.mxu0
      %6243 = vmatprep.mubr.bf16.mxu0 0
      %6244 = vmatmul.mubr.bf16.gmra.mxu0 %v5647
      %v6245 = vpop.f32.mrf.mxu0
      %v6246 = vadd.f32 %v5974, %v6245
      %v6247 = vpop.f32.mrf.mxu0
      %v6248 = vpop.f32.mrf.mxu0
      %v6249 = vadd.f32 %v5977, %v6248
      %v6250 = vpop.f32.mrf.mxu0
      %6251 = vmatprep.mubr.bf16.mxu0 0
      %6252 = vmatmul.mubr.bf16.gmra.mxu0 %v5648
      %v6253 = vpop.f32.mrf.mxu0
      %v6254 = vadd.f32 %v5982, %v6253
      %v6255 = vpop.f32.mrf.mxu0
      %v6256 = vpop.f32.mrf.mxu0
      %v6257 = vadd.f32 %v5985, %v6256
      %v6258 = vpop.f32.mrf.mxu0
      %6259 = vmatprep.mubr.bf16.mxu0 0
      %6260 = vmatmul.mubr.bf16.gmra.mxu0 %v5649
      %v6261 = vpop.f32.mrf.mxu0
      %v6262 = vadd.f32 %v5990, %v6261
      %v6263 = vpop.f32.mrf.mxu0
      %v6264 = vpop.f32.mrf.mxu0
      %v6265 = vadd.f32 %v5993, %v6264
      %v6266 = vpop.f32.mrf.mxu0
      %6267 = vmatprep.mubr.bf16.mxu0 0
      %6268 = vmatmul.mubr.bf16.gmra.mxu0 %v5650
      %v6269 = vpop.f32.mrf.mxu0
      %v6270 = vadd.f32 %v5998, %v6269
      %v6271 = vpop.f32.mrf.mxu0
      %v6272 = vpop.f32.mrf.mxu0
      %v6273 = vadd.f32 %v6001, %v6272
      %v6274 = vpop.f32.mrf.mxu0
      %6275 = vmatprep.mubr.bf16.mxu0 0
      %6276 = vmatmul.mubr.bf16.gmra.mxu0 %v5651
      %v6277 = vpop.f32.mrf.mxu0
      %v6278 = vadd.f32 %v6006, %v6277
      %v6279 = vpop.f32.mrf.mxu0
      %v6280 = vpop.f32.mrf.mxu0
      %v6281 = vadd.f32 %v6009, %v6280
      %v6282 = vpop.f32.mrf.mxu0
      %6283 = vmatprep.mubr.bf16.mxu0 0
      %6284 = vmatmul.mubr.bf16.gmra.mxu0 %v5652
      %v6285 = vpop.f32.mrf.mxu0
      %v6286 = vadd.f32 %v6014, %v6285
      %v6287 = vpop.f32.mrf.mxu0
      %v6288 = vpop.f32.mrf.mxu0
      %v6289 = vadd.f32 %v6017, %v6288
      %v6290 = vpop.f32.mrf.mxu0
      %6291 = vmatprep.mubr.bf16.mxu0 0
      %6292 = vmatmul.mubr.bf16.gmra.mxu0 %v5653
      %v6293 = vpop.f32.mrf.mxu0
      %v6294 = vadd.f32 %v6022, %v6293
      %v6295 = vpop.f32.mrf.mxu0
      %v6296 = vpop.f32.mrf.mxu0
      %v6297 = vadd.f32 %v6025, %v6296
      %v6298 = vpop.f32.mrf.mxu0
      %6299 = vmatprep.mubr.bf16.mxu0 0
      %6300 = vmatmul.mubr.bf16.gmra.mxu0 %v5654
      %v6301 = vpop.f32.mrf.mxu0
      %v6302 = vadd.f32 %v6030, %v6301
      %v6303 = vpop.f32.mrf.mxu0
      %v6304 = vpop.f32.mrf.mxu0
      %v6305 = vadd.f32 %v6033, %v6304
      %v6306 = vpop.f32.mrf.mxu0
      %6307 = vmatprep.mubr.bf16.mxu0 0
      %6308 = vmatmul.mubr.bf16.gmra.mxu0 %v5655
      %v6309 = vpop.f32.mrf.mxu0
      %v6310 = vadd.f32 %v6038, %v6309
      %v6311 = vpop.f32.mrf.mxu0
      %v6312 = vpop.f32.mrf.mxu0
      %v6313 = vadd.f32 %v6041, %v6312
      %v6314 = vpop.f32.mrf.mxu0
      %6315 = vmatprep.mubr.bf16.mxu0 0
      %6316 = vmatmul.mubr.bf16.gmra.mxu0 %v5656
      %v6317 = vpop.f32.mrf.mxu0
      %v6318 = vadd.f32 %v6046, %v6317
      %v6319 = vpop.f32.mrf.mxu0
      %v6320 = vpop.f32.mrf.mxu0
      %v6321 = vadd.f32 %v6049, %v6320
      %v6322 = vpop.f32.mrf.mxu0
      %6323 = vmatprep.mubr.bf16.mxu0 0
      %6324 = vmatmul.mubr.bf16.gmra.mxu0 %v5657
      %v6325 = vpop.f32.mrf.mxu0
      %v6326 = vadd.f32 %v6054, %v6325
      %v6327 = vpop.f32.mrf.mxu0
      %v6328 = vpop.f32.mrf.mxu0
      %v6329 = vadd.f32 %v6057, %v6328
      %v6330 = vpop.f32.mrf.mxu0
      %6331 = vmatprep.mubr.bf16.mxu0 0
      %6332 = vmatmul.mubr.bf16.gmra.mxu0 %v5658
      %v6333 = vpop.f32.mrf.mxu0
      %v6334 = vadd.f32 %v6062, %v6333
      %v6335 = vpop.f32.mrf.mxu0
      %v6336 = vpop.f32.mrf.mxu0
      %v6337 = vadd.f32 %v6065, %v6336
      %v6338 = vpop.f32.mrf.mxu0
      %6339 = vmatprep.mubr.bf16.mxu0 0
      %6340 = vmatmul.mubr.bf16.gmra.mxu0 %v5659
      %v6341 = vpop.f32.mrf.mxu0
      %v6342 = vadd.f32 %v6070, %v6341
      %v6343 = vpop.f32.mrf.mxu0
      %v6344 = vpop.f32.mrf.mxu0
      %v6345 = vadd.f32 %v6073, %v6344
      %v6346 = vpop.f32.mrf.mxu0
      %6347 = vmatprep.mubr.bf16.mxu0 0
      %6348 = vmatmul.mubr.bf16.gmra.mxu0 %v5660
      %v6349 = vpop.f32.mrf.mxu0
      %v6350 = vadd.f32 %v6078, %v6349
      %v6351 = vpop.f32.mrf.mxu0
      %v6352 = vpop.f32.mrf.mxu0
      %v6353 = vadd.f32 %v6081, %v6352
      %v6354 = vpop.f32.mrf.mxu0
      %6355 = vmatprep.mubr.bf16.mxu0 0
      %6356 = vmatmul.mubr.bf16.gmra.mxu0 %v5661
      %v6357 = vpop.f32.mrf.mxu0
      %v6358 = vadd.f32 %v6086, %v6357
      %v6359 = vpop.f32.mrf.mxu0
      %v6360 = vpop.f32.mrf.mxu0
      %v6361 = vadd.f32 %v6089, %v6360
      %v6362 = vpop.f32.mrf.mxu0
      %6363 = vmatprep.mubr.bf16.mxu0 0
      %6364 = vmatmul.mubr.bf16.gmra.mxu0 %v6101
      %v6365 = vpop.f32.mrf.mxu0
      %v6366 = vadd.f32 %v6094, %v6365
      %v6367 = vpop.f32.mrf.mxu0
      %v6368 = vpop.f32.mrf.mxu0
      %v6369 = vpop.f32.mrf.mxu0
      %6370 = vdwg.mxu0
      %v6371 = vld [vmem:[#allocation2] sm:$0xe]
      %s6372 = scalar_lea.vmem %s3, 128
      %v6373 = vld [vmem:[%s6372] sm:$0xf]
      %v6374 = vld [vmem:[%s6372 + $0x4] sm:$0xf]
      %v6375 = vld [vmem:[%s6372 + $0x8] sm:$0xf]
      %v6376 = vld [vmem:[%s6372 + $0xc] sm:$0xf]
      %v6377 = vld [vmem:[%s6372 + $0x10] sm:$0xf]
      %v6378 = vld [vmem:[%s6372 + $0x14] sm:$0xf]
      %v6379 = vld [vmem:[%s6372 + $0x18] sm:$0xf]
      %v6380 = vld [vmem:[%s6372 + $0x1c] sm:$0xf]
      %v6381 = vld [vmem:[%s6372 + $0x20] sm:$0xf]
      %v6382 = vld [vmem:[%s6372 + $0x24] sm:$0xf]
      %v6383 = vld [vmem:[%s6372 + $0x28] sm:$0xf]
      %v6384 = vld [vmem:[%s6372 + $0x2c] sm:$0xf]
      %v6385 = vld [vmem:[%s6372 + $0x30] sm:$0xf]
      %v6386 = vld [vmem:[%s6372 + $0x34] sm:$0xf]
      %v6387 = vld [vmem:[%s6372 + $0x38] sm:$0xf]
      %v6388 = vld [vmem:[%s6372 + $0x3c] sm:$0xf]
      %v6390 = vunpack.c.l.b16 %v6371
      %v6391 = vpack.c.b16 %v5602, %v6390
      %v6392 = vrot.slane %v6391, 1
      %v6393 = vrot.slane %v5643, 1
      %v6394 = vsel %vm1161, %v6392, %v6393
      %v6395 = vrot.slane %v5644, 1
      %v6396 = vsel %vm1161, %v6393, %v6395
      %v6397 = vrot.slane %v5645, 1
      %v6398 = vsel %vm1161, %v6395, %v6397
      %v6399 = vrot.slane %v5646, 1
      %v6400 = vsel %vm1161, %v6397, %v6399
      %v6401 = vrot.slane %v5647, 1
      %v6402 = vsel %vm1161, %v6399, %v6401
      %v6403 = vrot.slane %v5648, 1
      %v6404 = vsel %vm1161, %v6401, %v6403
      %v6405 = vrot.slane %v5649, 1
      %v6406 = vsel %vm1161, %v6403, %v6405
      %v6407 = vrot.slane %v5650, 1
      %v6408 = vsel %vm1161, %v6405, %v6407
      %v6409 = vrot.slane %v5651, 1
      %v6410 = vsel %vm1161, %v6407, %v6409
      %v6411 = vrot.slane %v5652, 1
      %v6412 = vsel %vm1161, %v6409, %v6411
      %v6413 = vrot.slane %v5653, 1
      %v6414 = vsel %vm1161, %v6411, %v6413
      %v6415 = vrot.slane %v5654, 1
      %v6416 = vsel %vm1161, %v6413, %v6415
      %v6417 = vrot.slane %v5655, 1
      %v6418 = vsel %vm1161, %v6415, %v6417
      %v6419 = vrot.slane %v5656, 1
      %v6420 = vsel %vm1161, %v6417, %v6419
      %v6421 = vrot.slane %v5657, 1
      %v6422 = vsel %vm1161, %v6419, %v6421
      %v6423 = vrot.slane %v5658, 1
      %v6424 = vsel %vm1161, %v6421, %v6423
      %v6425 = vrot.slane %v5659, 1
      %v6426 = vsel %vm1161, %v6423, %v6425
      %v6427 = vrot.slane %v5660, 1
      %v6428 = vsel %vm1161, %v6425, %v6427
      %v6429 = vrot.slane %v5661, 1
      %v6430 = vsel %vm1161, %v6427, %v6429
      %v6431 = vrot.slane %v5662, 1
      %v6432 = vsel %vm1161, %v6429, %v6431
      %v6470 = vunpack.c.l.b16 %v6373
      %v6471 = vunpack.c.l.b16 %v6374
      %v6472 = vunpack.c.l.b16 %v6375
      %v6473 = vunpack.c.l.b16 %v6376
      %v6474 = vunpack.c.l.b16 %v6377
      %v6475 = vunpack.c.l.b16 %v6378
      %v6476 = vunpack.c.l.b16 %v6379
      %v6477 = vunpack.c.l.b16 %v6380
      %v6478 = vunpack.c.l.b16 %v6381
      %v6479 = vunpack.c.l.b16 %v6382
      %v6480 = vunpack.c.l.b16 %v6383
      %v6481 = vunpack.c.l.b16 %v6384
      %v6482 = vunpack.c.l.b16 %v6385
      %v6483 = vunpack.c.l.b16 %v6386
      %v6484 = vunpack.c.l.b16 %v6387
      %v6485 = vunpack.c.l.b16 %v6388
      %v6486 = vpack.c.b16 %v6471, %v6470
      %v6487 = vpack.c.b16 %v6473, %v6472
      %v6488 = vpack.c.b16 %v6475, %v6474
      %v6489 = vpack.c.b16 %v6477, %v6476
      %v6490 = vpack.c.b16 %v6479, %v6478
      %v6491 = vpack.c.b16 %v6481, %v6480
      %v6492 = vpack.c.b16 %v6483, %v6482
      %v6493 = vpack.c.b16 %v6485, %v6484
      %6502 = vmatprep.subr.bf16.mxu0 0
      %6503 = vmatpush1.bf16.msra.mxu0 %v6493
      %6504 = vmatprep.subr.bf16.mxu0 0
      %6505 = vmatpush1.bf16.msra.mxu0 %v6492
      %6506 = vmatprep.subr.bf16.mxu0 0
      %6507 = vmatpush1.bf16.msra.mxu0 %v6491
      %6508 = vmatprep.subr.bf16.mxu0 0
      %6509 = vmatpush1.bf16.msra.mxu0 %v6490
      %6510 = vmatprep.subr.bf16.mxu0 0
      %6511 = vmatpush1.bf16.msra.mxu0 %v6489
      %6512 = vmatprep.subr.bf16.mxu0 0
      %6513 = vmatpush1.bf16.msra.mxu0 %v6488
      %6514 = vmatprep.subr.bf16.mxu0 0
      %6515 = vmatpush1.bf16.msra.mxu0 %v6487
      %6516 = vmatprep.subr.bf16.mxu0 0
      %6517 = vmatpush1.bf16.msra.mxu0 %v6486
      %6518 = vmatprep.subr.bf16.mxu0 0
      %6519 = vmatpush2.bf16.msra.mxu0 0
      %6520 = vmatprep.subr.bf16.mxu0 0
      %6521 = vmatpush2.bf16.msra.mxu0 0
      %6522 = vmatprep.subr.bf16.mxu0 0
      %6523 = vmatpush2.bf16.msra.mxu0 0
      %6524 = vmatprep.subr.bf16.mxu0 0
      %6525 = vmatpush2.bf16.msra.mxu0 0
      %6526 = vmatprep.subr.bf16.mxu0 0
      %6527 = vmatpush2.bf16.msra.mxu0 0
      %6528 = vmatprep.subr.bf16.mxu0 0
      %6529 = vmatpush2.bf16.msra.mxu0 0
      %6530 = vmatprep.subr.bf16.mxu0 0
      %6531 = vmatpush2.bf16.msra.mxu0 0
      %6532 = vmatprep.subr.bf16.mxu0 0
      %6533 = vmatpush2.bf16.msra.mxu0 0
      %6534 = vmatprep.mubr.bf16.mxu0 0
      %6535 = vmatmul.mubr.bf16.gmra.mxu0 %v6394
      %v6536 = vpop.f32.mrf.mxu0
      %v6537 = vadd.f32 0.0, %v6536
      %v6538 = vpop.f32.mrf.mxu0
      %v6539 = vpop.f32.mrf.mxu0
      %v6540 = vadd.f32 0.0, %v6539
      %v6541 = vpop.f32.mrf.mxu0
      %6542 = vmatprep.mubr.bf16.mxu0 0
      %6543 = vmatmul.mubr.bf16.gmra.mxu0 %v6396
      %v6544 = vpop.f32.mrf.mxu0
      %v6545 = vadd.f32 0.0, %v6544
      %v6546 = vpop.f32.mrf.mxu0
      %v6547 = vpop.f32.mrf.mxu0
      %v6548 = vadd.f32 0.0, %v6547
      %v6549 = vpop.f32.mrf.mxu0
      %6550 = vmatprep.mubr.bf16.mxu0 0
      %6551 = vmatmul.mubr.bf16.gmra.mxu0 %v6398
      %v6552 = vpop.f32.mrf.mxu0
      %v6553 = vadd.f32 0.0, %v6552
      %v6554 = vpop.f32.mrf.mxu0
      %v6555 = vpop.f32.mrf.mxu0
      %v6556 = vadd.f32 0.0, %v6555
      %v6557 = vpop.f32.mrf.mxu0
      %6558 = vmatprep.mubr.bf16.mxu0 0
      %6559 = vmatmul.mubr.bf16.gmra.mxu0 %v6400
      %v6560 = vpop.f32.mrf.mxu0
      %v6561 = vadd.f32 0.0, %v6560
      %v6562 = vpop.f32.mrf.mxu0
      %v6563 = vpop.f32.mrf.mxu0
      %v6564 = vadd.f32 0.0, %v6563
      %v6565 = vpop.f32.mrf.mxu0
      %6566 = vmatprep.mubr.bf16.mxu0 0
      %6567 = vmatmul.mubr.bf16.gmra.mxu0 %v6402
      %v6568 = vpop.f32.mrf.mxu0
      %v6569 = vadd.f32 0.0, %v6568
      %v6570 = vpop.f32.mrf.mxu0
      %v6571 = vpop.f32.mrf.mxu0
      %v6572 = vadd.f32 0.0, %v6571
      %v6573 = vpop.f32.mrf.mxu0
      %6574 = vmatprep.mubr.bf16.mxu0 0
      %6575 = vmatmul.mubr.bf16.gmra.mxu0 %v6404
      %v6576 = vpop.f32.mrf.mxu0
      %v6577 = vadd.f32 0.0, %v6576
      %v6578 = vpop.f32.mrf.mxu0
      %v6579 = vpop.f32.mrf.mxu0
      %v6580 = vadd.f32 0.0, %v6579
      %v6581 = vpop.f32.mrf.mxu0
      %6582 = vmatprep.mubr.bf16.mxu0 0
      %6583 = vmatmul.mubr.bf16.gmra.mxu0 %v6406
      %v6584 = vpop.f32.mrf.mxu0
      %v6585 = vadd.f32 0.0, %v6584
      %v6586 = vpop.f32.mrf.mxu0
      %v6587 = vpop.f32.mrf.mxu0
      %v6588 = vadd.f32 0.0, %v6587
      %v6589 = vpop.f32.mrf.mxu0
      %6590 = vmatprep.mubr.bf16.mxu0 0
      %6591 = vmatmul.mubr.bf16.gmra.mxu0 %v6408
      %v6592 = vpop.f32.mrf.mxu0
      %v6593 = vadd.f32 0.0, %v6592
      %v6594 = vpop.f32.mrf.mxu0
      %v6595 = vpop.f32.mrf.mxu0
      %v6596 = vadd.f32 0.0, %v6595
      %v6597 = vpop.f32.mrf.mxu0
      %6598 = vmatprep.mubr.bf16.mxu0 0
      %6599 = vmatmul.mubr.bf16.gmra.mxu0 %v6410
      %v6600 = vpop.f32.mrf.mxu0
      %v6601 = vadd.f32 0.0, %v6600
      %v6602 = vpop.f32.mrf.mxu0
      %v6603 = vpop.f32.mrf.mxu0
      %v6604 = vadd.f32 0.0, %v6603
      %v6605 = vpop.f32.mrf.mxu0
      %6606 = vmatprep.mubr.bf16.mxu0 0
      %6607 = vmatmul.mubr.bf16.gmra.mxu0 %v6412
      %v6608 = vpop.f32.mrf.mxu0
      %v6609 = vadd.f32 0.0, %v6608
      %v6610 = vpop.f32.mrf.mxu0
      %v6611 = vpop.f32.mrf.mxu0
      %v6612 = vadd.f32 0.0, %v6611
      %v6613 = vpop.f32.mrf.mxu0
      %6614 = vmatprep.mubr.bf16.mxu0 0
      %6615 = vmatmul.mubr.bf16.gmra.mxu0 %v6414
      %v6616 = vpop.f32.mrf.mxu0
      %v6617 = vadd.f32 0.0, %v6616
      %v6618 = vpop.f32.mrf.mxu0
      %v6619 = vpop.f32.mrf.mxu0
      %v6620 = vadd.f32 0.0, %v6619
      %v6621 = vpop.f32.mrf.mxu0
      %6622 = vmatprep.mubr.bf16.mxu0 0
      %6623 = vmatmul.mubr.bf16.gmra.mxu0 %v6416
      %v6624 = vpop.f32.mrf.mxu0
      %v6625 = vadd.f32 0.0, %v6624
      %v6626 = vpop.f32.mrf.mxu0
      %v6627 = vpop.f32.mrf.mxu0
      %v6628 = vadd.f32 0.0, %v6627
      %v6629 = vpop.f32.mrf.mxu0
      %6630 = vmatprep.mubr.bf16.mxu0 0
      %6631 = vmatmul.mubr.bf16.gmra.mxu0 %v6418
      %v6632 = vpop.f32.mrf.mxu0
      %v6633 = vadd.f32 0.0, %v6632
      %v6634 = vpop.f32.mrf.mxu0
      %v6635 = vpop.f32.mrf.mxu0
      %v6636 = vadd.f32 0.0, %v6635
      %v6637 = vpop.f32.mrf.mxu0
      %6638 = vmatprep.mubr.bf16.mxu0 0
      %6639 = vmatmul.mubr.bf16.gmra.mxu0 %v6420
      %v6640 = vpop.f32.mrf.mxu0
      %v6641 = vadd.f32 0.0, %v6640
      %v6642 = vpop.f32.mrf.mxu0
      %v6643 = vpop.f32.mrf.mxu0
      %v6644 = vadd.f32 0.0, %v6643
      %v6645 = vpop.f32.mrf.mxu0
      %6646 = vmatprep.mubr.bf16.mxu0 0
      %6647 = vmatmul.mubr.bf16.gmra.mxu0 %v6422
      %v6648 = vpop.f32.mrf.mxu0
      %v6649 = vadd.f32 0.0, %v6648
      %v6650 = vpop.f32.mrf.mxu0
      %v6651 = vpop.f32.mrf.mxu0
      %v6652 = vadd.f32 0.0, %v6651
      %v6653 = vpop.f32.mrf.mxu0
      %6654 = vmatprep.mubr.bf16.mxu0 0
      %6655 = vmatmul.mubr.bf16.gmra.mxu0 %v6424
      %v6656 = vpop.f32.mrf.mxu0
      %v6657 = vadd.f32 0.0, %v6656
      %v6658 = vpop.f32.mrf.mxu0
      %v6659 = vpop.f32.mrf.mxu0
      %v6660 = vadd.f32 0.0, %v6659
      %v6661 = vpop.f32.mrf.mxu0
      %6662 = vmatprep.mubr.bf16.mxu0 0
      %6663 = vmatmul.mubr.bf16.gmra.mxu0 %v6426
      %v6664 = vpop.f32.mrf.mxu0
      %v6665 = vadd.f32 0.0, %v6664
      %v6666 = vpop.f32.mrf.mxu0
      %v6667 = vpop.f32.mrf.mxu0
      %v6668 = vadd.f32 0.0, %v6667
      %v6669 = vpop.f32.mrf.mxu0
      %6670 = vmatprep.mubr.bf16.mxu0 0
      %6671 = vmatmul.mubr.bf16.gmra.mxu0 %v6428
      %v6672 = vpop.f32.mrf.mxu0
      %v6673 = vadd.f32 0.0, %v6672
      %v6674 = vpop.f32.mrf.mxu0
      %v6675 = vpop.f32.mrf.mxu0
      %v6676 = vadd.f32 0.0, %v6675
      %v6677 = vpop.f32.mrf.mxu0
      %6678 = vmatprep.mubr.bf16.mxu0 0
      %6679 = vmatmul.mubr.bf16.gmra.mxu0 %v6430
      %v6680 = vpop.f32.mrf.mxu0
      %v6681 = vadd.f32 0.0, %v6680
      %v6682 = vpop.f32.mrf.mxu0
      %v6683 = vpop.f32.mrf.mxu0
      %v6684 = vadd.f32 0.0, %v6683
      %v6685 = vpop.f32.mrf.mxu0
      %6686 = vmatprep.mubr.bf16.mxu0 0
      %6687 = vmatmul.mubr.bf16.gmra.mxu0 %v6432
      %v6688 = vpop.f32.mrf.mxu0
      %v6689 = vadd.f32 0.0, %v6688
      %v6690 = vpop.f32.mrf.mxu0
      %v6691 = vpop.f32.mrf.mxu0
      %v6692 = vadd.f32 0.0, %v6691
      %v6693 = vpop.f32.mrf.mxu0
      %6694 = vmatprep.mubr.bf16.mxu0 0
      %6695 = vmatmul.mubr.bf16.gmra.mxu0 %v6431
      %v6696 = vpop.f32.mrf.mxu0
      %v6697 = vadd.f32 0.0, %v6696
      %v6698 = vpop.f32.mrf.mxu0
      %v6699 = vpop.f32.mrf.mxu0
      %v6700 = vpop.f32.mrf.mxu0
      %6701 = vdwg.mxu0
      %v6702 = vadd.f32 %v6206, %v6537
      %v6703 = vadd.f32 %v6209, %v6540
      %v6704 = vadd.f32 %v6214, %v6545
      %v6705 = vadd.f32 %v6217, %v6548
      %v6706 = vadd.f32 %v6222, %v6553
      %v6707 = vadd.f32 %v6225, %v6556
      %v6708 = vadd.f32 %v6230, %v6561
      %v6709 = vadd.f32 %v6233, %v6564
      %v6710 = vadd.f32 %v6238, %v6569
      %v6711 = vadd.f32 %v6241, %v6572
      %v6712 = vadd.f32 %v6246, %v6577
      %v6713 = vadd.f32 %v6249, %v6580
      %v6714 = vadd.f32 %v6254, %v6585
      %v6715 = vadd.f32 %v6257, %v6588
      %v6716 = vadd.f32 %v6262, %v6593
      %v6717 = vadd.f32 %v6265, %v6596
      %v6718 = vadd.f32 %v6270, %v6601
      %v6719 = vadd.f32 %v6273, %v6604
      %v6720 = vadd.f32 %v6278, %v6609
      %v6721 = vadd.f32 %v6281, %v6612
      %v6722 = vadd.f32 %v6286, %v6617
      %v6723 = vadd.f32 %v6289, %v6620
      %v6724 = vadd.f32 %v6294, %v6625
      %v6725 = vadd.f32 %v6297, %v6628
      %v6726 = vadd.f32 %v6302, %v6633
      %v6727 = vadd.f32 %v6305, %v6636
      %v6728 = vadd.f32 %v6310, %v6641
      %v6729 = vadd.f32 %v6313, %v6644
      %v6730 = vadd.f32 %v6318, %v6649
      %v6731 = vadd.f32 %v6321, %v6652
      %v6732 = vadd.f32 %v6326, %v6657
      %v6733 = vadd.f32 %v6329, %v6660
      %v6734 = vadd.f32 %v6334, %v6665
      %v6735 = vadd.f32 %v6337, %v6668
      %v6736 = vadd.f32 %v6342, %v6673
      %v6737 = vadd.f32 %v6345, %v6676
      %v6738 = vadd.f32 %v6350, %v6681
      %v6739 = vadd.f32 %v6353, %v6684
      %v6740 = vadd.f32 %v6358, %v6689
      %v6741 = vadd.f32 %v6361, %v6692
      %v6742 = vadd.f32 %v6366, %v6697
      %v6743 = vld [vmem:[#allocation2 + $0x8] sm:$0xe]
      %v6744 = vld [vmem:[#allocation2 + $0xc] sm:$0xf]
      %v6745 = vld [vmem:[#allocation2 + $0x10] sm:$0xf]
      %v6746 = vld [vmem:[#allocation2 + $0x14] sm:$0xf]
      %v6747 = vld [vmem:[#allocation2 + $0x18] sm:$0xf]
      %v6748 = vld [vmem:[#allocation2 + $0x1c] sm:$0xf]
      %v6749 = vld [vmem:[#allocation2 + $0x20] sm:$0xf]
      %v6750 = vld [vmem:[#allocation2 + $0x24] sm:$0xf]
      %v6751 = vld [vmem:[#allocation2 + $0x28] sm:$0xf]
      %v6752 = vld [vmem:[#allocation2 + $0x2c] sm:$0xf]
      %v6753 = vld [vmem:[#allocation2 + $0x30] sm:$0xf]
      %v6754 = vld [vmem:[#allocation2 + $0x34] sm:$0xf]
      %v6755 = vld [vmem:[#allocation2 + $0x38] sm:$0xf]
      %v6756 = vld [vmem:[#allocation2 + $0x3c] sm:$0xf]
      %v6757 = vld [vmem:[#allocation2 + $0x40] sm:$0xf]
      %v6758 = vld [vmem:[#allocation2 + $0x44] sm:$0xf]
      %v6759 = vld [vmem:[#allocation2 + $0x48] sm:$0xf]
      %v6760 = vld [vmem:[#allocation2 + $0x4c] sm:$0xf]
      %v6761 = vld [vmem:[#allocation2 + $0x50] sm:$0xf]
      %v6762 = vld [vmem:[#allocation2 + $0x54] sm:$0xf]
      %v6763 = vld [vmem:[#allocation2 + $0x58] sm:$0xf]
      %v6764 = vld [vmem:[#allocation2 + $0x5c] sm:$0xf]
      %v6765 = vld [vmem:[#allocation2 + $0x60] sm:$0xf]
      %v6766 = vld [vmem:[#allocation2 + $0x64] sm:$0xf]
      %v6767 = vld [vmem:[#allocation2 + $0x68] sm:$0xf]
      %v6768 = vld [vmem:[#allocation2 + $0x6c] sm:$0xf]
      %v6769 = vld [vmem:[#allocation2 + $0x70] sm:$0xf]
      %v6770 = vld [vmem:[#allocation2 + $0x74] sm:$0xf]
      %v6771 = vld [vmem:[#allocation2 + $0x78] sm:$0xf]
      %v6772 = vld [vmem:[#allocation2 + $0x7c] sm:$0xf]
      %v6773 = vld [vmem:[#allocation2 + $0x80] sm:$0xf]
      %v6774 = vld [vmem:[#allocation2 + $0x84] sm:$0xf]
      %v6775 = vld [vmem:[#allocation2 + $0x88] sm:$0xf]
      %v6776 = vld [vmem:[#allocation2 + $0x8c] sm:$0xf]
      %v6777 = vld [vmem:[#allocation2 + $0x90] sm:$0xf]
      %v6778 = vld [vmem:[#allocation2 + $0x94] sm:$0xf]
      %v6779 = vld [vmem:[#allocation2 + $0x98] sm:$0xf]
      %v6780 = vld [vmem:[#allocation2 + $0x9c] sm:$0xf]
      %v6781 = vld [vmem:[#allocation2 + $0xa0] sm:$0xf]
      %v6782 = vld [vmem:[#allocation2 + $0xa4] sm:$0xf]
      %v6783 = vld [vmem:[#allocation2 + $0xa8] sm:$0x7]
      %s6784 = scalar_lea.vmem %s3, 192
      %v6785 = vld [vmem:[%s6784] sm:$0xf]
      %v6786 = vld [vmem:[%s6784 + $0x4] sm:$0xf]
      %v6787 = vld [vmem:[%s6784 + $0x8] sm:$0xf]
      %v6788 = vld [vmem:[%s6784 + $0xc] sm:$0xf]
      %v6789 = vld [vmem:[%s6784 + $0x10] sm:$0xf]
      %v6790 = vld [vmem:[%s6784 + $0x14] sm:$0xf]
      %v6791 = vld [vmem:[%s6784 + $0x18] sm:$0xf]
      %v6792 = vld [vmem:[%s6784 + $0x1c] sm:$0xf]
      %v6793 = vld [vmem:[%s6784 + $0x20] sm:$0xf]
      %v6794 = vld [vmem:[%s6784 + $0x24] sm:$0xf]
      %v6795 = vld [vmem:[%s6784 + $0x28] sm:$0xf]
      %v6796 = vld [vmem:[%s6784 + $0x2c] sm:$0xf]
      %v6797 = vld [vmem:[%s6784 + $0x30] sm:$0xf]
      %v6798 = vld [vmem:[%s6784 + $0x34] sm:$0xf]
      %v6799 = vld [vmem:[%s6784 + $0x38] sm:$0xf]
      %v6800 = vld [vmem:[%s6784 + $0x3c] sm:$0xf]
      %v6842 = vunpack.c.l.b16 %v6743
      %v6843 = vunpack.c.l.b16 %v6744
      %v6844 = vunpack.c.l.b16 %v6745
      %v6845 = vunpack.c.l.b16 %v6746
      %v6846 = vunpack.c.l.b16 %v6747
      %v6847 = vunpack.c.l.b16 %v6748
      %v6848 = vunpack.c.l.b16 %v6749
      %v6849 = vunpack.c.l.b16 %v6750
      %v6850 = vunpack.c.l.b16 %v6751
      %v6851 = vunpack.c.l.b16 %v6752
      %v6852 = vunpack.c.l.b16 %v6753
      %v6853 = vunpack.c.l.b16 %v6754
      %v6854 = vunpack.c.l.b16 %v6755
      %v6855 = vunpack.c.l.b16 %v6756
      %v6856 = vunpack.c.l.b16 %v6757
      %v6857 = vunpack.c.l.b16 %v6758
      %v6858 = vunpack.c.l.b16 %v6759
      %v6859 = vunpack.c.l.b16 %v6760
      %v6860 = vunpack.c.l.b16 %v6761
      %v6861 = vunpack.c.l.b16 %v6762
      %v6862 = vunpack.c.l.b16 %v6763
      %v6863 = vunpack.c.l.b16 %v6764
      %v6864 = vunpack.c.l.b16 %v6765
      %v6865 = vunpack.c.l.b16 %v6766
      %v6866 = vunpack.c.l.b16 %v6767
      %v6867 = vunpack.c.l.b16 %v6768
      %v6868 = vunpack.c.l.b16 %v6769
      %v6869 = vunpack.c.l.b16 %v6770
      %v6870 = vunpack.c.l.b16 %v6771
      %v6871 = vunpack.c.l.b16 %v6772
      %v6872 = vunpack.c.l.b16 %v6773
      %v6873 = vunpack.c.l.b16 %v6774
      %v6874 = vunpack.c.l.b16 %v6775
      %v6875 = vunpack.c.l.b16 %v6776
      %v6876 = vunpack.c.l.b16 %v6777
      %v6877 = vunpack.c.l.b16 %v6778
      %v6878 = vunpack.c.l.b16 %v6779
      %v6879 = vunpack.c.l.b16 %v6780
      %v6880 = vunpack.c.l.b16 %v6781
      %v6881 = vunpack.c.l.b16 %v6782
      %v6882 = vunpack.c.l.b16 %v6783
      %v6883 = vpack.c.b16 %v6843, %v6842
      %v6884 = vpack.c.b16 %v6845, %v6844
      %v6885 = vpack.c.b16 %v6847, %v6846
      %v6886 = vpack.c.b16 %v6849, %v6848
      %v6887 = vpack.c.b16 %v6851, %v6850
      %v6888 = vpack.c.b16 %v6853, %v6852
      %v6889 = vpack.c.b16 %v6855, %v6854
      %v6890 = vpack.c.b16 %v6857, %v6856
      %v6891 = vpack.c.b16 %v6859, %v6858
      %v6892 = vpack.c.b16 %v6861, %v6860
      %v6893 = vpack.c.b16 %v6863, %v6862
      %v6894 = vpack.c.b16 %v6865, %v6864
      %v6895 = vpack.c.b16 %v6867, %v6866
      %v6896 = vpack.c.b16 %v6869, %v6868
      %v6897 = vpack.c.b16 %v6871, %v6870
      %v6898 = vpack.c.b16 %v6873, %v6872
      %v6899 = vpack.c.b16 %v6875, %v6874
      %v6900 = vpack.c.b16 %v6877, %v6876
      %v6901 = vpack.c.b16 %v6879, %v6878
      %v6902 = vpack.c.b16 %v6881, %v6880
      %v6903 = vpack.c.b16 %v6882, %v6882
      %v6904 = vrot.slane %v6883, 1
      %v6905 = vrot.slane %v6884, 1
      %v6906 = vsel %vm1161, %v6904, %v6905
      %v6907 = vrot.slane %v6885, 1
      %v6908 = vsel %vm1161, %v6905, %v6907
      %v6909 = vrot.slane %v6886, 1
      %v6910 = vsel %vm1161, %v6907, %v6909
      %v6911 = vrot.slane %v6887, 1
      %v6912 = vsel %vm1161, %v6909, %v6911
      %v6913 = vrot.slane %v6888, 1
      %v6914 = vsel %vm1161, %v6911, %v6913
      %v6915 = vrot.slane %v6889, 1
      %v6916 = vsel %vm1161, %v6913, %v6915
      %v6917 = vrot.slane %v6890, 1
      %v6918 = vsel %vm1161, %v6915, %v6917
      %v6919 = vrot.slane %v6891, 1
      %v6920 = vsel %vm1161, %v6917, %v6919
      %v6921 = vrot.slane %v6892, 1
      %v6922 = vsel %vm1161, %v6919, %v6921
      %v6923 = vrot.slane %v6893, 1
      %v6924 = vsel %vm1161, %v6921, %v6923
      %v6925 = vrot.slane %v6894, 1
      %v6926 = vsel %vm1161, %v6923, %v6925
      %v6927 = vrot.slane %v6895, 1
      %v6928 = vsel %vm1161, %v6925, %v6927
      %v6929 = vrot.slane %v6896, 1
      %v6930 = vsel %vm1161, %v6927, %v6929
      %v6931 = vrot.slane %v6897, 1
      %v6932 = vsel %vm1161, %v6929, %v6931
      %v6933 = vrot.slane %v6898, 1
      %v6934 = vsel %vm1161, %v6931, %v6933
      %v6935 = vrot.slane %v6899, 1
      %v6936 = vsel %vm1161, %v6933, %v6935
      %v6937 = vrot.slane %v6900, 1
      %v6938 = vsel %vm1161, %v6935, %v6937
      %v6939 = vrot.slane %v6901, 1
      %v6940 = vsel %vm1161, %v6937, %v6939
      %v6941 = vrot.slane %v6902, 1
      %v6942 = vsel %vm1161, %v6939, %v6941
      %v6943 = vrot.slane %v6903, 1
      %v6944 = vsel %vm1161, %v6941, %v6943
      %v6982 = vunpack.c.l.b16 %v6785
      %v6983 = vunpack.c.l.b16 %v6786
      %v6984 = vunpack.c.l.b16 %v6787
      %v6985 = vunpack.c.l.b16 %v6788
      %v6986 = vunpack.c.l.b16 %v6789
      %v6987 = vunpack.c.l.b16 %v6790
      %v6988 = vunpack.c.l.b16 %v6791
      %v6989 = vunpack.c.l.b16 %v6792
      %v6990 = vunpack.c.l.b16 %v6793
      %v6991 = vunpack.c.l.b16 %v6794
      %v6992 = vunpack.c.l.b16 %v6795
      %v6993 = vunpack.c.l.b16 %v6796
      %v6994 = vunpack.c.l.b16 %v6797
      %v6995 = vunpack.c.l.b16 %v6798
      %v6996 = vunpack.c.l.b16 %v6799
      %v6997 = vunpack.c.l.b16 %v6800
      %v6998 = vpack.c.b16 %v6983, %v6982
      %v6999 = vpack.c.b16 %v6985, %v6984
      %v7000 = vpack.c.b16 %v6987, %v6986
      %v7001 = vpack.c.b16 %v6989, %v6988
      %v7002 = vpack.c.b16 %v6991, %v6990
      %v7003 = vpack.c.b16 %v6993, %v6992
      %v7004 = vpack.c.b16 %v6995, %v6994
      %v7005 = vpack.c.b16 %v6997, %v6996
      %7014 = vmatprep.subr.bf16.mxu0 0
      %7015 = vmatpush1.bf16.msra.mxu0 %v7005
      %7016 = vmatprep.subr.bf16.mxu0 0
      %7017 = vmatpush1.bf16.msra.mxu0 %v7004
      %7018 = vmatprep.subr.bf16.mxu0 0
      %7019 = vmatpush1.bf16.msra.mxu0 %v7003
      %7020 = vmatprep.subr.bf16.mxu0 0
      %7021 = vmatpush1.bf16.msra.mxu0 %v7002
      %7022 = vmatprep.subr.bf16.mxu0 0
      %7023 = vmatpush1.bf16.msra.mxu0 %v7001
      %7024 = vmatprep.subr.bf16.mxu0 0
      %7025 = vmatpush1.bf16.msra.mxu0 %v7000
      %7026 = vmatprep.subr.bf16.mxu0 0
      %7027 = vmatpush1.bf16.msra.mxu0 %v6999
      %7028 = vmatprep.subr.bf16.mxu0 0
      %7029 = vmatpush1.bf16.msra.mxu0 %v6998
      %7030 = vmatprep.subr.bf16.mxu0 0
      %7031 = vmatpush2.bf16.msra.mxu0 0
      %7032 = vmatprep.subr.bf16.mxu0 0
      %7033 = vmatpush2.bf16.msra.mxu0 0
      %7034 = vmatprep.subr.bf16.mxu0 0
      %7035 = vmatpush2.bf16.msra.mxu0 0
      %7036 = vmatprep.subr.bf16.mxu0 0
      %7037 = vmatpush2.bf16.msra.mxu0 0
      %7038 = vmatprep.subr.bf16.mxu0 0
      %7039 = vmatpush2.bf16.msra.mxu0 0
      %7040 = vmatprep.subr.bf16.mxu0 0
      %7041 = vmatpush2.bf16.msra.mxu0 0
      %7042 = vmatprep.subr.bf16.mxu0 0
      %7043 = vmatpush2.bf16.msra.mxu0 0
      %7044 = vmatprep.subr.bf16.mxu0 0
      %7045 = vmatpush2.bf16.msra.mxu0 0
      %7046 = vmatprep.mubr.bf16.mxu0 0
      %7047 = vmatmul.mubr.bf16.gmra.mxu0 %v6906
      %v7048 = vpop.f32.mrf.mxu0
      %v7049 = vadd.f32 0.0, %v7048
      %v7050 = vpop.f32.mrf.mxu0
      %v7051 = vpop.f32.mrf.mxu0
      %v7052 = vadd.f32 0.0, %v7051
      %v7053 = vpop.f32.mrf.mxu0
      %7054 = vmatprep.mubr.bf16.mxu0 0
      %7055 = vmatmul.mubr.bf16.gmra.mxu0 %v6908
      %v7056 = vpop.f32.mrf.mxu0
      %v7057 = vadd.f32 0.0, %v7056
      %v7058 = vpop.f32.mrf.mxu0
      %v7059 = vpop.f32.mrf.mxu0
      %v7060 = vadd.f32 0.0, %v7059
      %v7061 = vpop.f32.mrf.mxu0
      %7062 = vmatprep.mubr.bf16.mxu0 0
      %7063 = vmatmul.mubr.bf16.gmra.mxu0 %v6910
      %v7064 = vpop.f32.mrf.mxu0
      %v7065 = vadd.f32 0.0, %v7064
      %v7066 = vpop.f32.mrf.mxu0
      %v7067 = vpop.f32.mrf.mxu0
      %v7068 = vadd.f32 0.0, %v7067
      %v7069 = vpop.f32.mrf.mxu0
      %7070 = vmatprep.mubr.bf16.mxu0 0
      %7071 = vmatmul.mubr.bf16.gmra.mxu0 %v6912
      %v7072 = vpop.f32.mrf.mxu0
      %v7073 = vadd.f32 0.0, %v7072
      %v7074 = vpop.f32.mrf.mxu0
      %v7075 = vpop.f32.mrf.mxu0
      %v7076 = vadd.f32 0.0, %v7075
      %v7077 = vpop.f32.mrf.mxu0
      %7078 = vmatprep.mubr.bf16.mxu0 0
      %7079 = vmatmul.mubr.bf16.gmra.mxu0 %v6914
      %v7080 = vpop.f32.mrf.mxu0
      %v7081 = vadd.f32 0.0, %v7080
      %v7082 = vpop.f32.mrf.mxu0
      %v7083 = vpop.f32.mrf.mxu0
      %v7084 = vadd.f32 0.0, %v7083
      %v7085 = vpop.f32.mrf.mxu0
      %7086 = vmatprep.mubr.bf16.mxu0 0
      %7087 = vmatmul.mubr.bf16.gmra.mxu0 %v6916
      %v7088 = vpop.f32.mrf.mxu0
      %v7089 = vadd.f32 0.0, %v7088
      %v7090 = vpop.f32.mrf.mxu0
      %v7091 = vpop.f32.mrf.mxu0
      %v7092 = vadd.f32 0.0, %v7091
      %v7093 = vpop.f32.mrf.mxu0
      %7094 = vmatprep.mubr.bf16.mxu0 0
      %7095 = vmatmul.mubr.bf16.gmra.mxu0 %v6918
      %v7096 = vpop.f32.mrf.mxu0
      %v7097 = vadd.f32 0.0, %v7096
      %v7098 = vpop.f32.mrf.mxu0
      %v7099 = vpop.f32.mrf.mxu0
      %v7100 = vadd.f32 0.0, %v7099
      %v7101 = vpop.f32.mrf.mxu0
      %7102 = vmatprep.mubr.bf16.mxu0 0
      %7103 = vmatmul.mubr.bf16.gmra.mxu0 %v6920
      %v7104 = vpop.f32.mrf.mxu0
      %v7105 = vadd.f32 0.0, %v7104
      %v7106 = vpop.f32.mrf.mxu0
      %v7107 = vpop.f32.mrf.mxu0
      %v7108 = vadd.f32 0.0, %v7107
      %v7109 = vpop.f32.mrf.mxu0
      %7110 = vmatprep.mubr.bf16.mxu0 0
      %7111 = vmatmul.mubr.bf16.gmra.mxu0 %v6922
      %v7112 = vpop.f32.mrf.mxu0
      %v7113 = vadd.f32 0.0, %v7112
      %v7114 = vpop.f32.mrf.mxu0
      %v7115 = vpop.f32.mrf.mxu0
      %v7116 = vadd.f32 0.0, %v7115
      %v7117 = vpop.f32.mrf.mxu0
      %7118 = vmatprep.mubr.bf16.mxu0 0
      %7119 = vmatmul.mubr.bf16.gmra.mxu0 %v6924
      %v7120 = vpop.f32.mrf.mxu0
      %v7121 = vadd.f32 0.0, %v7120
      %v7122 = vpop.f32.mrf.mxu0
      %v7123 = vpop.f32.mrf.mxu0
      %v7124 = vadd.f32 0.0, %v7123
      %v7125 = vpop.f32.mrf.mxu0
      %7126 = vmatprep.mubr.bf16.mxu0 0
      %7127 = vmatmul.mubr.bf16.gmra.mxu0 %v6926
      %v7128 = vpop.f32.mrf.mxu0
      %v7129 = vadd.f32 0.0, %v7128
      %v7130 = vpop.f32.mrf.mxu0
      %v7131 = vpop.f32.mrf.mxu0
      %v7132 = vadd.f32 0.0, %v7131
      %v7133 = vpop.f32.mrf.mxu0
      %7134 = vmatprep.mubr.bf16.mxu0 0
      %7135 = vmatmul.mubr.bf16.gmra.mxu0 %v6928
      %v7136 = vpop.f32.mrf.mxu0
      %v7137 = vadd.f32 0.0, %v7136
      %v7138 = vpop.f32.mrf.mxu0
      %v7139 = vpop.f32.mrf.mxu0
      %v7140 = vadd.f32 0.0, %v7139
      %v7141 = vpop.f32.mrf.mxu0
      %7142 = vmatprep.mubr.bf16.mxu0 0
      %7143 = vmatmul.mubr.bf16.gmra.mxu0 %v6930
      %v7144 = vpop.f32.mrf.mxu0
      %v7145 = vadd.f32 0.0, %v7144
      %v7146 = vpop.f32.mrf.mxu0
      %v7147 = vpop.f32.mrf.mxu0
      %v7148 = vadd.f32 0.0, %v7147
      %v7149 = vpop.f32.mrf.mxu0
      %7150 = vmatprep.mubr.bf16.mxu0 0
      %7151 = vmatmul.mubr.bf16.gmra.mxu0 %v6932
      %v7152 = vpop.f32.mrf.mxu0
      %v7153 = vadd.f32 0.0, %v7152
      %v7154 = vpop.f32.mrf.mxu0
      %v7155 = vpop.f32.mrf.mxu0
      %v7156 = vadd.f32 0.0, %v7155
      %v7157 = vpop.f32.mrf.mxu0
      %7158 = vmatprep.mubr.bf16.mxu0 0
      %7159 = vmatmul.mubr.bf16.gmra.mxu0 %v6934
      %v7160 = vpop.f32.mrf.mxu0
      %v7161 = vadd.f32 0.0, %v7160
      %v7162 = vpop.f32.mrf.mxu0
      %v7163 = vpop.f32.mrf.mxu0
      %v7164 = vadd.f32 0.0, %v7163
      %v7165 = vpop.f32.mrf.mxu0
      %7166 = vmatprep.mubr.bf16.mxu0 0
      %7167 = vmatmul.mubr.bf16.gmra.mxu0 %v6936
      %v7168 = vpop.f32.mrf.mxu0
      %v7169 = vadd.f32 0.0, %v7168
      %v7170 = vpop.f32.mrf.mxu0
      %v7171 = vpop.f32.mrf.mxu0
      %v7172 = vadd.f32 0.0, %v7171
      %v7173 = vpop.f32.mrf.mxu0
      %7174 = vmatprep.mubr.bf16.mxu0 0
      %7175 = vmatmul.mubr.bf16.gmra.mxu0 %v6938
      %v7176 = vpop.f32.mrf.mxu0
      %v7177 = vadd.f32 0.0, %v7176
      %v7178 = vpop.f32.mrf.mxu0
      %v7179 = vpop.f32.mrf.mxu0
      %v7180 = vadd.f32 0.0, %v7179
      %v7181 = vpop.f32.mrf.mxu0
      %7182 = vmatprep.mubr.bf16.mxu0 0
      %7183 = vmatmul.mubr.bf16.gmra.mxu0 %v6940
      %v7184 = vpop.f32.mrf.mxu0
      %v7185 = vadd.f32 0.0, %v7184
      %v7186 = vpop.f32.mrf.mxu0
      %v7187 = vpop.f32.mrf.mxu0
      %v7188 = vadd.f32 0.0, %v7187
      %v7189 = vpop.f32.mrf.mxu0
      %7190 = vmatprep.mubr.bf16.mxu0 0
      %7191 = vmatmul.mubr.bf16.gmra.mxu0 %v6942
      %v7192 = vpop.f32.mrf.mxu0
      %v7193 = vadd.f32 0.0, %v7192
      %v7194 = vpop.f32.mrf.mxu0
      %v7195 = vpop.f32.mrf.mxu0
      %v7196 = vadd.f32 0.0, %v7195
      %v7197 = vpop.f32.mrf.mxu0
      %7198 = vmatprep.mubr.bf16.mxu0 0
      %7199 = vmatmul.mubr.bf16.gmra.mxu0 %v6944
      %v7200 = vpop.f32.mrf.mxu0
      %v7201 = vadd.f32 0.0, %v7200
      %v7202 = vpop.f32.mrf.mxu0
      %v7203 = vpop.f32.mrf.mxu0
      %v7204 = vadd.f32 0.0, %v7203
      %v7205 = vpop.f32.mrf.mxu0
      %7206 = vmatprep.mubr.bf16.mxu0 0
      %7207 = vmatmul.mubr.bf16.gmra.mxu0 %v6943
      %v7208 = vpop.f32.mrf.mxu0
      %v7209 = vadd.f32 0.0, %v7208
      %v7210 = vpop.f32.mrf.mxu0
      %v7211 = vpop.f32.mrf.mxu0
      %v7212 = vpop.f32.mrf.mxu0
      %7213 = vdwg.mxu0
      %v7214 = vadd.f32 %v6702, %v7049
      %v7215 = vadd.f32 %v6703, %v7052
      %v7216 = vadd.f32 %v6704, %v7057
      %v7217 = vadd.f32 %v6705, %v7060
      %v7218 = vadd.f32 %v6706, %v7065
      %v7219 = vadd.f32 %v6707, %v7068
      %v7220 = vadd.f32 %v6708, %v7073
      %v7221 = vadd.f32 %v6709, %v7076
      %v7222 = vadd.f32 %v6710, %v7081
      %v7223 = vadd.f32 %v6711, %v7084
      %v7224 = vadd.f32 %v6712, %v7089
      %v7225 = vadd.f32 %v6713, %v7092
      %v7226 = vadd.f32 %v6714, %v7097
      %v7227 = vadd.f32 %v6715, %v7100
      %v7228 = vadd.f32 %v6716, %v7105
      %v7229 = vadd.f32 %v6717, %v7108
      %v7230 = vadd.f32 %v6718, %v7113
      %v7231 = vadd.f32 %v6719, %v7116
      %v7232 = vadd.f32 %v6720, %v7121
      %v7233 = vadd.f32 %v6721, %v7124
      %v7234 = vadd.f32 %v6722, %v7129
      %v7235 = vadd.f32 %v6723, %v7132
      %v7236 = vadd.f32 %v6724, %v7137
      %v7237 = vadd.f32 %v6725, %v7140
      %v7238 = vadd.f32 %v6726, %v7145
      %v7239 = vadd.f32 %v6727, %v7148
      %v7240 = vadd.f32 %v6728, %v7153
      %v7241 = vadd.f32 %v6729, %v7156
      %v7242 = vadd.f32 %v6730, %v7161
      %v7243 = vadd.f32 %v6731, %v7164
      %v7244 = vadd.f32 %v6732, %v7169
      %v7245 = vadd.f32 %v6733, %v7172
      %v7246 = vadd.f32 %v6734, %v7177
      %v7247 = vadd.f32 %v6735, %v7180
      %v7248 = vadd.f32 %v6736, %v7185
      %v7249 = vadd.f32 %v6737, %v7188
      %v7250 = vadd.f32 %v6738, %v7193
      %v7251 = vadd.f32 %v6739, %v7196
      %v7252 = vadd.f32 %v6740, %v7201
      %v7253 = vadd.f32 %v6741, %v7204
      %v7254 = vadd.f32 %v6742, %v7209
      %v7255 = vld [vmem:[#allocation2 + $0xa8] sm:$0xf]
      %s7256 = scalar_lea.vmem %s3, 256
      %v7257 = vld [vmem:[%s7256] sm:$0xf]
      %v7258 = vld [vmem:[%s7256 + $0x4] sm:$0xf]
      %v7259 = vld [vmem:[%s7256 + $0x8] sm:$0xf]
      %v7260 = vld [vmem:[%s7256 + $0xc] sm:$0xf]
      %v7261 = vld [vmem:[%s7256 + $0x10] sm:$0xf]
      %v7262 = vld [vmem:[%s7256 + $0x14] sm:$0xf]
      %v7263 = vld [vmem:[%s7256 + $0x18] sm:$0xf]
      %v7264 = vld [vmem:[%s7256 + $0x1c] sm:$0xf]
      %v7265 = vld [vmem:[%s7256 + $0x20] sm:$0xf]
      %v7266 = vld [vmem:[%s7256 + $0x24] sm:$0xf]
      %v7267 = vld [vmem:[%s7256 + $0x28] sm:$0xf]
      %v7268 = vld [vmem:[%s7256 + $0x2c] sm:$0xf]
      %v7269 = vld [vmem:[%s7256 + $0x30] sm:$0xf]
      %v7270 = vld [vmem:[%s7256 + $0x34] sm:$0xf]
      %v7271 = vld [vmem:[%s7256 + $0x38] sm:$0xf]
      %v7272 = vld [vmem:[%s7256 + $0x3c] sm:$0xf]
      %v7274 = vunpack.c.l.b16 %v7255
      %v7275 = vpack.c.b16 %v7274, %v7274
      %v7277 = vshrl.u32 %v6883, 16
      %v7279 = vrot.slane %v7277, 1
      %v7280 = vshll.u32 %v6883, 16
      %v7282 = vrot.slane %v7280, 2
      %v7283 = vor.u32 %v7279, %v7282
      %v7285 = vshrl.u32 %v6884, 16
      %v7287 = vrot.slane %v7285, 1
      %v7288 = vshll.u32 %v6884, 16
      %v7290 = vrot.slane %v7288, 2
      %v7291 = vor.u32 %v7287, %v7290
      %v7292 = vsel %vm2046, %v7283, %v7291
      %v7294 = vshrl.u32 %v6885, 16
      %v7296 = vrot.slane %v7294, 1
      %v7297 = vshll.u32 %v6885, 16
      %v7299 = vrot.slane %v7297, 2
      %v7300 = vor.u32 %v7296, %v7299
      %v7301 = vsel %vm2046, %v7291, %v7300
      %v7303 = vshrl.u32 %v6886, 16
      %v7305 = vrot.slane %v7303, 1
      %v7306 = vshll.u32 %v6886, 16
      %v7308 = vrot.slane %v7306, 2
      %v7309 = vor.u32 %v7305, %v7308
      %v7310 = vsel %vm2046, %v7300, %v7309
      %v7312 = vshrl.u32 %v6887, 16
      %v7314 = vrot.slane %v7312, 1
      %v7315 = vshll.u32 %v6887, 16
      %v7317 = vrot.slane %v7315, 2
      %v7318 = vor.u32 %v7314, %v7317
      %v7319 = vsel %vm2046, %v7309, %v7318
      %v7321 = vshrl.u32 %v6888, 16
      %v7323 = vrot.slane %v7321, 1
      %v7324 = vshll.u32 %v6888, 16
      %v7326 = vrot.slane %v7324, 2
      %v7327 = vor.u32 %v7323, %v7326
      %v7328 = vsel %vm2046, %v7318, %v7327
      %v7330 = vshrl.u32 %v6889, 16
      %v7332 = vrot.slane %v7330, 1
      %v7333 = vshll.u32 %v6889, 16
      %v7335 = vrot.slane %v7333, 2
      %v7336 = vor.u32 %v7332, %v7335
      %v7337 = vsel %vm2046, %v7327, %v7336
      %v7339 = vshrl.u32 %v6890, 16
      %v7341 = vrot.slane %v7339, 1
      %v7342 = vshll.u32 %v6890, 16
      %v7344 = vrot.slane %v7342, 2
      %v7345 = vor.u32 %v7341, %v7344
      %v7346 = vsel %vm2046, %v7336, %v7345
      %v7348 = vshrl.u32 %v6891, 16
      %v7350 = vrot.slane %v7348, 1
      %v7351 = vshll.u32 %v6891, 16
      %v7353 = vrot.slane %v7351, 2
      %v7354 = vor.u32 %v7350, %v7353
      %v7355 = vsel %vm2046, %v7345, %v7354
      %v7357 = vshrl.u32 %v6892, 16
      %v7359 = vrot.slane %v7357, 1
      %v7360 = vshll.u32 %v6892, 16
      %v7362 = vrot.slane %v7360, 2
      %v7363 = vor.u32 %v7359, %v7362
      %v7364 = vsel %vm2046, %v7354, %v7363
      %v7366 = vshrl.u32 %v6893, 16
      %v7368 = vrot.slane %v7366, 1
      %v7369 = vshll.u32 %v6893, 16
      %v7371 = vrot.slane %v7369, 2
      %v7372 = vor.u32 %v7368, %v7371
      %v7373 = vsel %vm2046, %v7363, %v7372
      %v7375 = vshrl.u32 %v6894, 16
      %v7377 = vrot.slane %v7375, 1
      %v7378 = vshll.u32 %v6894, 16
      %v7380 = vrot.slane %v7378, 2
      %v7381 = vor.u32 %v7377, %v7380
      %v7382 = vsel %vm2046, %v7372, %v7381
      %v7384 = vshrl.u32 %v6895, 16
      %v7386 = vrot.slane %v7384, 1
      %v7387 = vshll.u32 %v6895, 16
      %v7389 = vrot.slane %v7387, 2
      %v7390 = vor.u32 %v7386, %v7389
      %v7391 = vsel %vm2046, %v7381, %v7390
      %v7393 = vshrl.u32 %v6896, 16
      %v7395 = vrot.slane %v7393, 1
      %v7396 = vshll.u32 %v6896, 16
      %v7398 = vrot.slane %v7396, 2
      %v7399 = vor.u32 %v7395, %v7398
      %v7400 = vsel %vm2046, %v7390, %v7399
      %v7402 = vshrl.u32 %v6897, 16
      %v7404 = vrot.slane %v7402, 1
      %v7405 = vshll.u32 %v6897, 16
      %v7407 = vrot.slane %v7405, 2
      %v7408 = vor.u32 %v7404, %v7407
      %v7409 = vsel %vm2046, %v7399, %v7408
      %v7411 = vshrl.u32 %v6898, 16
      %v7413 = vrot.slane %v7411, 1
      %v7414 = vshll.u32 %v6898, 16
      %v7416 = vrot.slane %v7414, 2
      %v7417 = vor.u32 %v7413, %v7416
      %v7418 = vsel %vm2046, %v7408, %v7417
      %v7420 = vshrl.u32 %v6899, 16
      %v7422 = vrot.slane %v7420, 1
      %v7423 = vshll.u32 %v6899, 16
      %v7425 = vrot.slane %v7423, 2
      %v7426 = vor.u32 %v7422, %v7425
      %v7427 = vsel %vm2046, %v7417, %v7426
      %v7429 = vshrl.u32 %v6900, 16
      %v7431 = vrot.slane %v7429, 1
      %v7432 = vshll.u32 %v6900, 16
      %v7434 = vrot.slane %v7432, 2
      %v7435 = vor.u32 %v7431, %v7434
      %v7436 = vsel %vm2046, %v7426, %v7435
      %v7438 = vshrl.u32 %v6901, 16
      %v7440 = vrot.slane %v7438, 1
      %v7441 = vshll.u32 %v6901, 16
      %v7443 = vrot.slane %v7441, 2
      %v7444 = vor.u32 %v7440, %v7443
      %v7445 = vsel %vm2046, %v7435, %v7444
      %v7447 = vshrl.u32 %v6902, 16
      %v7449 = vrot.slane %v7447, 1
      %v7450 = vshll.u32 %v6902, 16
      %v7452 = vrot.slane %v7450, 2
      %v7453 = vor.u32 %v7449, %v7452
      %v7454 = vsel %vm2046, %v7444, %v7453
      %v7456 = vshrl.u32 %v7275, 16
      %v7458 = vrot.slane %v7456, 1
      %v7459 = vshll.u32 %v7275, 16
      %v7461 = vrot.slane %v7459, 2
      %v7462 = vor.u32 %v7458, %v7461
      %v7463 = vsel %vm2046, %v7453, %v7462
      %v7501 = vunpack.c.l.b16 %v7257
      %v7502 = vunpack.c.l.b16 %v7258
      %v7503 = vunpack.c.l.b16 %v7259
      %v7504 = vunpack.c.l.b16 %v7260
      %v7505 = vunpack.c.l.b16 %v7261
      %v7506 = vunpack.c.l.b16 %v7262
      %v7507 = vunpack.c.l.b16 %v7263
      %v7508 = vunpack.c.l.b16 %v7264
      %v7509 = vunpack.c.l.b16 %v7265
      %v7510 = vunpack.c.l.b16 %v7266
      %v7511 = vunpack.c.l.b16 %v7267
      %v7512 = vunpack.c.l.b16 %v7268
      %v7513 = vunpack.c.l.b16 %v7269
      %v7514 = vunpack.c.l.b16 %v7270
      %v7515 = vunpack.c.l.b16 %v7271
      %v7516 = vunpack.c.l.b16 %v7272
      %v7517 = vpack.c.b16 %v7502, %v7501
      %v7518 = vpack.c.b16 %v7504, %v7503
      %v7519 = vpack.c.b16 %v7506, %v7505
      %v7520 = vpack.c.b16 %v7508, %v7507
      %v7521 = vpack.c.b16 %v7510, %v7509
      %v7522 = vpack.c.b16 %v7512, %v7511
      %v7523 = vpack.c.b16 %v7514, %v7513
      %v7524 = vpack.c.b16 %v7516, %v7515
      %7533 = vmatprep.subr.bf16.mxu0 0
      %7534 = vmatpush1.bf16.msra.mxu0 %v7524
      %7535 = vmatprep.subr.bf16.mxu0 0
      %7536 = vmatpush1.bf16.msra.mxu0 %v7523
      %7537 = vmatprep.subr.bf16.mxu0 0
      %7538 = vmatpush1.bf16.msra.mxu0 %v7522
      %7539 = vmatprep.subr.bf16.mxu0 0
      %7540 = vmatpush1.bf16.msra.mxu0 %v7521
      %7541 = vmatprep.subr.bf16.mxu0 0
      %7542 = vmatpush1.bf16.msra.mxu0 %v7520
      %7543 = vmatprep.subr.bf16.mxu0 0
      %7544 = vmatpush1.bf16.msra.mxu0 %v7519
      %7545 = vmatprep.subr.bf16.mxu0 0
      %7546 = vmatpush1.bf16.msra.mxu0 %v7518
      %7547 = vmatprep.subr.bf16.mxu0 0
      %7548 = vmatpush1.bf16.msra.mxu0 %v7517
      %7549 = vmatprep.subr.bf16.mxu0 0
      %7550 = vmatpush2.bf16.msra.mxu0 0
      %7551 = vmatprep.subr.bf16.mxu0 0
      %7552 = vmatpush2.bf16.msra.mxu0 0
      %7553 = vmatprep.subr.bf16.mxu0 0
      %7554 = vmatpush2.bf16.msra.mxu0 0
      %7555 = vmatprep.subr.bf16.mxu0 0
      %7556 = vmatpush2.bf16.msra.mxu0 0
      %7557 = vmatprep.subr.bf16.mxu0 0
      %7558 = vmatpush2.bf16.msra.mxu0 0
      %7559 = vmatprep.subr.bf16.mxu0 0
      %7560 = vmatpush2.bf16.msra.mxu0 0
      %7561 = vmatprep.subr.bf16.mxu0 0
      %7562 = vmatpush2.bf16.msra.mxu0 0
      %7563 = vmatprep.subr.bf16.mxu0 0
      %7564 = vmatpush2.bf16.msra.mxu0 0
      %7565 = vmatprep.mubr.bf16.mxu0 0
      %7566 = vmatmul.mubr.bf16.gmra.mxu0 %v7292
      %v7567 = vpop.f32.mrf.mxu0
      %v7568 = vadd.f32 0.0, %v7567
      %v7569 = vpop.f32.mrf.mxu0
      %v7570 = vpop.f32.mrf.mxu0
      %v7571 = vadd.f32 0.0, %v7570
      %v7572 = vpop.f32.mrf.mxu0
      %7573 = vmatprep.mubr.bf16.mxu0 0
      %7574 = vmatmul.mubr.bf16.gmra.mxu0 %v7301
      %v7575 = vpop.f32.mrf.mxu0
      %v7576 = vadd.f32 0.0, %v7575
      %v7577 = vpop.f32.mrf.mxu0
      %v7578 = vpop.f32.mrf.mxu0
      %v7579 = vadd.f32 0.0, %v7578
      %v7580 = vpop.f32.mrf.mxu0
      %7581 = vmatprep.mubr.bf16.mxu0 0
      %7582 = vmatmul.mubr.bf16.gmra.mxu0 %v7310
      %v7583 = vpop.f32.mrf.mxu0
      %v7584 = vadd.f32 0.0, %v7583
      %v7585 = vpop.f32.mrf.mxu0
      %v7586 = vpop.f32.mrf.mxu0
      %v7587 = vadd.f32 0.0, %v7586
      %v7588 = vpop.f32.mrf.mxu0
      %7589 = vmatprep.mubr.bf16.mxu0 0
      %7590 = vmatmul.mubr.bf16.gmra.mxu0 %v7319
      %v7591 = vpop.f32.mrf.mxu0
      %v7592 = vadd.f32 0.0, %v7591
      %v7593 = vpop.f32.mrf.mxu0
      %v7594 = vpop.f32.mrf.mxu0
      %v7595 = vadd.f32 0.0, %v7594
      %v7596 = vpop.f32.mrf.mxu0
      %7597 = vmatprep.mubr.bf16.mxu0 0
      %7598 = vmatmul.mubr.bf16.gmra.mxu0 %v7328
      %v7599 = vpop.f32.mrf.mxu0
      %v7600 = vadd.f32 0.0, %v7599
      %v7601 = vpop.f32.mrf.mxu0
      %v7602 = vpop.f32.mrf.mxu0
      %v7603 = vadd.f32 0.0, %v7602
      %v7604 = vpop.f32.mrf.mxu0
      %7605 = vmatprep.mubr.bf16.mxu0 0
      %7606 = vmatmul.mubr.bf16.gmra.mxu0 %v7337
      %v7607 = vpop.f32.mrf.mxu0
      %v7608 = vadd.f32 0.0, %v7607
      %v7609 = vpop.f32.mrf.mxu0
      %v7610 = vpop.f32.mrf.mxu0
      %v7611 = vadd.f32 0.0, %v7610
      %v7612 = vpop.f32.mrf.mxu0
      %7613 = vmatprep.mubr.bf16.mxu0 0
      %7614 = vmatmul.mubr.bf16.gmra.mxu0 %v7346
      %v7615 = vpop.f32.mrf.mxu0
      %v7616 = vadd.f32 0.0, %v7615
      %v7617 = vpop.f32.mrf.mxu0
      %v7618 = vpop.f32.mrf.mxu0
      %v7619 = vadd.f32 0.0, %v7618
      %v7620 = vpop.f32.mrf.mxu0
      %7621 = vmatprep.mubr.bf16.mxu0 0
      %7622 = vmatmul.mubr.bf16.gmra.mxu0 %v7355
      %v7623 = vpop.f32.mrf.mxu0
      %v7624 = vadd.f32 0.0, %v7623
      %v7625 = vpop.f32.mrf.mxu0
      %v7626 = vpop.f32.mrf.mxu0
      %v7627 = vadd.f32 0.0, %v7626
      %v7628 = vpop.f32.mrf.mxu0
      %7629 = vmatprep.mubr.bf16.mxu0 0
      %7630 = vmatmul.mubr.bf16.gmra.mxu0 %v7364
      %v7631 = vpop.f32.mrf.mxu0
      %v7632 = vadd.f32 0.0, %v7631
      %v7633 = vpop.f32.mrf.mxu0
      %v7634 = vpop.f32.mrf.mxu0
      %v7635 = vadd.f32 0.0, %v7634
      %v7636 = vpop.f32.mrf.mxu0
      %7637 = vmatprep.mubr.bf16.mxu0 0
      %7638 = vmatmul.mubr.bf16.gmra.mxu0 %v7373
      %v7639 = vpop.f32.mrf.mxu0
      %v7640 = vadd.f32 0.0, %v7639
      %v7641 = vpop.f32.mrf.mxu0
      %v7642 = vpop.f32.mrf.mxu0
      %v7643 = vadd.f32 0.0, %v7642
      %v7644 = vpop.f32.mrf.mxu0
      %7645 = vmatprep.mubr.bf16.mxu0 0
      %7646 = vmatmul.mubr.bf16.gmra.mxu0 %v7382
      %v7647 = vpop.f32.mrf.mxu0
      %v7648 = vadd.f32 0.0, %v7647
      %v7649 = vpop.f32.mrf.mxu0
      %v7650 = vpop.f32.mrf.mxu0
      %v7651 = vadd.f32 0.0, %v7650
      %v7652 = vpop.f32.mrf.mxu0
      %7653 = vmatprep.mubr.bf16.mxu0 0
      %7654 = vmatmul.mubr.bf16.gmra.mxu0 %v7391
      %v7655 = vpop.f32.mrf.mxu0
      %v7656 = vadd.f32 0.0, %v7655
      %v7657 = vpop.f32.mrf.mxu0
      %v7658 = vpop.f32.mrf.mxu0
      %v7659 = vadd.f32 0.0, %v7658
      %v7660 = vpop.f32.mrf.mxu0
      %7661 = vmatprep.mubr.bf16.mxu0 0
      %7662 = vmatmul.mubr.bf16.gmra.mxu0 %v7400
      %v7663 = vpop.f32.mrf.mxu0
      %v7664 = vadd.f32 0.0, %v7663
      %v7665 = vpop.f32.mrf.mxu0
      %v7666 = vpop.f32.mrf.mxu0
      %v7667 = vadd.f32 0.0, %v7666
      %v7668 = vpop.f32.mrf.mxu0
      %7669 = vmatprep.mubr.bf16.mxu0 0
      %7670 = vmatmul.mubr.bf16.gmra.mxu0 %v7409
      %v7671 = vpop.f32.mrf.mxu0
      %v7672 = vadd.f32 0.0, %v7671
      %v7673 = vpop.f32.mrf.mxu0
      %v7674 = vpop.f32.mrf.mxu0
      %v7675 = vadd.f32 0.0, %v7674
      %v7676 = vpop.f32.mrf.mxu0
      %7677 = vmatprep.mubr.bf16.mxu0 0
      %7678 = vmatmul.mubr.bf16.gmra.mxu0 %v7418
      %v7679 = vpop.f32.mrf.mxu0
      %v7680 = vadd.f32 0.0, %v7679
      %v7681 = vpop.f32.mrf.mxu0
      %v7682 = vpop.f32.mrf.mxu0
      %v7683 = vadd.f32 0.0, %v7682
      %v7684 = vpop.f32.mrf.mxu0
      %7685 = vmatprep.mubr.bf16.mxu0 0
      %7686 = vmatmul.mubr.bf16.gmra.mxu0 %v7427
      %v7687 = vpop.f32.mrf.mxu0
      %v7688 = vadd.f32 0.0, %v7687
      %v7689 = vpop.f32.mrf.mxu0
      %v7690 = vpop.f32.mrf.mxu0
      %v7691 = vadd.f32 0.0, %v7690
      %v7692 = vpop.f32.mrf.mxu0
      %7693 = vmatprep.mubr.bf16.mxu0 0
      %7694 = vmatmul.mubr.bf16.gmra.mxu0 %v7436
      %v7695 = vpop.f32.mrf.mxu0
      %v7696 = vadd.f32 0.0, %v7695
      %v7697 = vpop.f32.mrf.mxu0
      %v7698 = vpop.f32.mrf.mxu0
      %v7699 = vadd.f32 0.0, %v7698
      %v7700 = vpop.f32.mrf.mxu0
      %7701 = vmatprep.mubr.bf16.mxu0 0
      %7702 = vmatmul.mubr.bf16.gmra.mxu0 %v7445
      %v7703 = vpop.f32.mrf.mxu0
      %v7704 = vadd.f32 0.0, %v7703
      %v7705 = vpop.f32.mrf.mxu0
      %v7706 = vpop.f32.mrf.mxu0
      %v7707 = vadd.f32 0.0, %v7706
      %v7708 = vpop.f32.mrf.mxu0
      %7709 = vmatprep.mubr.bf16.mxu0 0
      %7710 = vmatmul.mubr.bf16.gmra.mxu0 %v7454
      %v7711 = vpop.f32.mrf.mxu0
      %v7712 = vadd.f32 0.0, %v7711
      %v7713 = vpop.f32.mrf.mxu0
      %v7714 = vpop.f32.mrf.mxu0
      %v7715 = vadd.f32 0.0, %v7714
      %v7716 = vpop.f32.mrf.mxu0
      %7717 = vmatprep.mubr.bf16.mxu0 0
      %7718 = vmatmul.mubr.bf16.gmra.mxu0 %v7463
      %v7719 = vpop.f32.mrf.mxu0
      %v7720 = vadd.f32 0.0, %v7719
      %v7721 = vpop.f32.mrf.mxu0
      %v7722 = vpop.f32.mrf.mxu0
      %v7723 = vadd.f32 0.0, %v7722
      %v7724 = vpop.f32.mrf.mxu0
      %7725 = vmatprep.mubr.bf16.mxu0 0
      %7726 = vmatmul.mubr.bf16.gmra.mxu0 %v7462
      %v7727 = vpop.f32.mrf.mxu0
      %v7728 = vadd.f32 0.0, %v7727
      %v7729 = vpop.f32.mrf.mxu0
      %v7730 = vpop.f32.mrf.mxu0
      %v7731 = vpop.f32.mrf.mxu0
      %7732 = vdwg.mxu0
      %v7733 = vadd.f32 %v7214, %v7568
      %v7734 = vadd.f32 %v7215, %v7571
      %v7735 = vadd.f32 %v7216, %v7576
      %v7736 = vadd.f32 %v7217, %v7579
      %v7737 = vadd.f32 %v7218, %v7584
      %v7738 = vadd.f32 %v7219, %v7587
      %v7739 = vadd.f32 %v7220, %v7592
      %v7740 = vadd.f32 %v7221, %v7595
      %v7741 = vadd.f32 %v7222, %v7600
      %v7742 = vadd.f32 %v7223, %v7603
      %v7743 = vadd.f32 %v7224, %v7608
      %v7744 = vadd.f32 %v7225, %v7611
      %v7745 = vadd.f32 %v7226, %v7616
      %v7746 = vadd.f32 %v7227, %v7619
      %v7747 = vadd.f32 %v7228, %v7624
      %v7748 = vadd.f32 %v7229, %v7627
      %v7749 = vadd.f32 %v7230, %v7632
      %v7750 = vadd.f32 %v7231, %v7635
      %v7751 = vadd.f32 %v7232, %v7640
      %v7752 = vadd.f32 %v7233, %v7643
      %v7753 = vadd.f32 %v7234, %v7648
      %v7754 = vadd.f32 %v7235, %v7651
      %v7755 = vadd.f32 %v7236, %v7656
      %v7756 = vadd.f32 %v7237, %v7659
      %v7757 = vadd.f32 %v7238, %v7664
      %v7758 = vadd.f32 %v7239, %v7667
      %v7759 = vadd.f32 %v7240, %v7672
      %v7760 = vadd.f32 %v7241, %v7675
      %v7761 = vadd.f32 %v7242, %v7680
      %v7762 = vadd.f32 %v7243, %v7683
      %v7763 = vadd.f32 %v7244, %v7688
      %v7764 = vadd.f32 %v7245, %v7691
      %v7765 = vadd.f32 %v7246, %v7696
      %v7766 = vadd.f32 %v7247, %v7699
      %v7767 = vadd.f32 %v7248, %v7704
      %v7768 = vadd.f32 %v7249, %v7707
      %v7769 = vadd.f32 %v7250, %v7712
      %v7770 = vadd.f32 %v7251, %v7715
      %v7771 = vadd.f32 %v7252, %v7720
      %v7772 = vadd.f32 %v7253, %v7723
      %v7773 = vadd.f32 %v7254, %v7728
      %v7774 = vld [vmem:[#allocation2 + $0x8] sm:$0xc]
      %s7775 = scalar_lea.vmem %s3, 320
      %v7776 = vld [vmem:[%s7775] sm:$0xf]
      %v7777 = vld [vmem:[%s7775 + $0x4] sm:$0xf]
      %v7778 = vld [vmem:[%s7775 + $0x8] sm:$0xf]
      %v7779 = vld [vmem:[%s7775 + $0xc] sm:$0xf]
      %v7780 = vld [vmem:[%s7775 + $0x10] sm:$0xf]
      %v7781 = vld [vmem:[%s7775 + $0x14] sm:$0xf]
      %v7782 = vld [vmem:[%s7775 + $0x18] sm:$0xf]
      %v7783 = vld [vmem:[%s7775 + $0x1c] sm:$0xf]
      %v7784 = vld [vmem:[%s7775 + $0x20] sm:$0xf]
      %v7785 = vld [vmem:[%s7775 + $0x24] sm:$0xf]
      %v7786 = vld [vmem:[%s7775 + $0x28] sm:$0xf]
      %v7787 = vld [vmem:[%s7775 + $0x2c] sm:$0xf]
      %v7788 = vld [vmem:[%s7775 + $0x30] sm:$0xf]
      %v7789 = vld [vmem:[%s7775 + $0x34] sm:$0xf]
      %v7790 = vld [vmem:[%s7775 + $0x38] sm:$0xf]
      %v7791 = vld [vmem:[%s7775 + $0x3c] sm:$0xf]
      %v7793 = vunpack.c.l.b16 %v7774
      %v7794 = vpack.c.b16 %v6843, %v7793
      %v7795 = vrot.slane %v7794, 2
      %v7796 = vrot.slane %v6884, 2
      %v7797 = vsel %vm2566, %v7795, %v7796
      %v7798 = vrot.slane %v6885, 2
      %v7799 = vsel %vm2566, %v7796, %v7798
      %v7800 = vrot.slane %v6886, 2
      %v7801 = vsel %vm2566, %v7798, %v7800
      %v7802 = vrot.slane %v6887, 2
      %v7803 = vsel %vm2566, %v7800, %v7802
      %v7804 = vrot.slane %v6888, 2
      %v7805 = vsel %vm2566, %v7802, %v7804
      %v7806 = vrot.slane %v6889, 2
      %v7807 = vsel %vm2566, %v7804, %v7806
      %v7808 = vrot.slane %v6890, 2
      %v7809 = vsel %vm2566, %v7806, %v7808
      %v7810 = vrot.slane %v6891, 2
      %v7811 = vsel %vm2566, %v7808, %v7810
      %v7812 = vrot.slane %v6892, 2
      %v7813 = vsel %vm2566, %v7810, %v7812
      %v7814 = vrot.slane %v6893, 2
      %v7815 = vsel %vm2566, %v7812, %v7814
      %v7816 = vrot.slane %v6894, 2
      %v7817 = vsel %vm2566, %v7814, %v7816
      %v7818 = vrot.slane %v6895, 2
      %v7819 = vsel %vm2566, %v7816, %v7818
      %v7820 = vrot.slane %v6896, 2
      %v7821 = vsel %vm2566, %v7818, %v7820
      %v7822 = vrot.slane %v6897, 2
      %v7823 = vsel %vm2566, %v7820, %v7822
      %v7824 = vrot.slane %v6898, 2
      %v7825 = vsel %vm2566, %v7822, %v7824
      %v7826 = vrot.slane %v6899, 2
      %v7827 = vsel %vm2566, %v7824, %v7826
      %v7828 = vrot.slane %v6900, 2
      %v7829 = vsel %vm2566, %v7826, %v7828
      %v7830 = vrot.slane %v6901, 2
      %v7831 = vsel %vm2566, %v7828, %v7830
      %v7832 = vrot.slane %v6902, 2
      %v7833 = vsel %vm2566, %v7830, %v7832
      %v7834 = vrot.slane %v7275, 2
      %v7835 = vsel %vm2566, %v7832, %v7834
      %v7873 = vunpack.c.l.b16 %v7776
      %v7874 = vunpack.c.l.b16 %v7777
      %v7875 = vunpack.c.l.b16 %v7778
      %v7876 = vunpack.c.l.b16 %v7779
      %v7877 = vunpack.c.l.b16 %v7780
      %v7878 = vunpack.c.l.b16 %v7781
      %v7879 = vunpack.c.l.b16 %v7782
      %v7880 = vunpack.c.l.b16 %v7783
      %v7881 = vunpack.c.l.b16 %v7784
      %v7882 = vunpack.c.l.b16 %v7785
      %v7883 = vunpack.c.l.b16 %v7786
      %v7884 = vunpack.c.l.b16 %v7787
      %v7885 = vunpack.c.l.b16 %v7788
      %v7886 = vunpack.c.l.b16 %v7789
      %v7887 = vunpack.c.l.b16 %v7790
      %v7888 = vunpack.c.l.b16 %v7791
      %v7889 = vpack.c.b16 %v7874, %v7873
      %v7890 = vpack.c.b16 %v7876, %v7875
      %v7891 = vpack.c.b16 %v7878, %v7877
      %v7892 = vpack.c.b16 %v7880, %v7879
      %v7893 = vpack.c.b16 %v7882, %v7881
      %v7894 = vpack.c.b16 %v7884, %v7883
      %v7895 = vpack.c.b16 %v7886, %v7885
      %v7896 = vpack.c.b16 %v7888, %v7887
      %7905 = vmatprep.subr.bf16.mxu0 0
      %7906 = vmatpush1.bf16.msra.mxu0 %v7896
      %7907 = vmatprep.subr.bf16.mxu0 0
      %7908 = vmatpush1.bf16.msra.mxu0 %v7895
      %7909 = vmatprep.subr.bf16.mxu0 0
      %7910 = vmatpush1.bf16.msra.mxu0 %v7894
      %7911 = vmatprep.subr.bf16.mxu0 0
      %7912 = vmatpush1.bf16.msra.mxu0 %v7893
      %7913 = vmatprep.subr.bf16.mxu0 0
      %7914 = vmatpush1.bf16.msra.mxu0 %v7892
      %7915 = vmatprep.subr.bf16.mxu0 0
      %7916 = vmatpush1.bf16.msra.mxu0 %v7891
      %7917 = vmatprep.subr.bf16.mxu0 0
      %7918 = vmatpush1.bf16.msra.mxu0 %v7890
      %7919 = vmatprep.subr.bf16.mxu0 0
      %7920 = vmatpush1.bf16.msra.mxu0 %v7889
      %7921 = vmatprep.subr.bf16.mxu0 0
      %7922 = vmatpush2.bf16.msra.mxu0 0
      %7923 = vmatprep.subr.bf16.mxu0 0
      %7924 = vmatpush2.bf16.msra.mxu0 0
      %7925 = vmatprep.subr.bf16.mxu0 0
      %7926 = vmatpush2.bf16.msra.mxu0 0
      %7927 = vmatprep.subr.bf16.mxu0 0
      %7928 = vmatpush2.bf16.msra.mxu0 0
      %7929 = vmatprep.subr.bf16.mxu0 0
      %7930 = vmatpush2.bf16.msra.mxu0 0
      %7931 = vmatprep.subr.bf16.mxu0 0
      %7932 = vmatpush2.bf16.msra.mxu0 0
      %7933 = vmatprep.subr.bf16.mxu0 0
      %7934 = vmatpush2.bf16.msra.mxu0 0
      %7935 = vmatprep.subr.bf16.mxu0 0
      %7936 = vmatpush2.bf16.msra.mxu0 0
      %7937 = vmatprep.mubr.bf16.mxu0 0
      %7938 = vmatmul.mubr.bf16.gmra.mxu0 %v7797
      %v7939 = vpop.f32.mrf.mxu0
      %v7940 = vadd.f32 0.0, %v7939
      %v7941 = vpop.f32.mrf.mxu0
      %v7942 = vpop.f32.mrf.mxu0
      %v7943 = vadd.f32 0.0, %v7942
      %v7944 = vpop.f32.mrf.mxu0
      %7945 = vmatprep.mubr.bf16.mxu0 0
      %7946 = vmatmul.mubr.bf16.gmra.mxu0 %v7799
      %v7947 = vpop.f32.mrf.mxu0
      %v7948 = vadd.f32 0.0, %v7947
      %v7949 = vpop.f32.mrf.mxu0
      %v7950 = vpop.f32.mrf.mxu0
      %v7951 = vadd.f32 0.0, %v7950
      %v7952 = vpop.f32.mrf.mxu0
      %7953 = vmatprep.mubr.bf16.mxu0 0
      %7954 = vmatmul.mubr.bf16.gmra.mxu0 %v7801
      %v7955 = vpop.f32.mrf.mxu0
      %v7956 = vadd.f32 0.0, %v7955
      %v7957 = vpop.f32.mrf.mxu0
      %v7958 = vpop.f32.mrf.mxu0
      %v7959 = vadd.f32 0.0, %v7958
      %v7960 = vpop.f32.mrf.mxu0
      %7961 = vmatprep.mubr.bf16.mxu0 0
      %7962 = vmatmul.mubr.bf16.gmra.mxu0 %v7803
      %v7963 = vpop.f32.mrf.mxu0
      %v7964 = vadd.f32 0.0, %v7963
      %v7965 = vpop.f32.mrf.mxu0
      %v7966 = vpop.f32.mrf.mxu0
      %v7967 = vadd.f32 0.0, %v7966
      %v7968 = vpop.f32.mrf.mxu0
      %7969 = vmatprep.mubr.bf16.mxu0 0
      %7970 = vmatmul.mubr.bf16.gmra.mxu0 %v7805
      %v7971 = vpop.f32.mrf.mxu0
      %v7972 = vadd.f32 0.0, %v7971
      %v7973 = vpop.f32.mrf.mxu0
      %v7974 = vpop.f32.mrf.mxu0
      %v7975 = vadd.f32 0.0, %v7974
      %v7976 = vpop.f32.mrf.mxu0
      %7977 = vmatprep.mubr.bf16.mxu0 0
      %7978 = vmatmul.mubr.bf16.gmra.mxu0 %v7807
      %v7979 = vpop.f32.mrf.mxu0
      %v7980 = vadd.f32 0.0, %v7979
      %v7981 = vpop.f32.mrf.mxu0
      %v7982 = vpop.f32.mrf.mxu0
      %v7983 = vadd.f32 0.0, %v7982
      %v7984 = vpop.f32.mrf.mxu0
      %7985 = vmatprep.mubr.bf16.mxu0 0
      %7986 = vmatmul.mubr.bf16.gmra.mxu0 %v7809
      %v7987 = vpop.f32.mrf.mxu0
      %v7988 = vadd.f32 0.0, %v7987
      %v7989 = vpop.f32.mrf.mxu0
      %v7990 = vpop.f32.mrf.mxu0
      %v7991 = vadd.f32 0.0, %v7990
      %v7992 = vpop.f32.mrf.mxu0
      %7993 = vmatprep.mubr.bf16.mxu0 0
      %7994 = vmatmul.mubr.bf16.gmra.mxu0 %v7811
      %v7995 = vpop.f32.mrf.mxu0
      %v7996 = vadd.f32 0.0, %v7995
      %v7997 = vpop.f32.mrf.mxu0
      %v7998 = vpop.f32.mrf.mxu0
      %v7999 = vadd.f32 0.0, %v7998
      %v8000 = vpop.f32.mrf.mxu0
      %8001 = vmatprep.mubr.bf16.mxu0 0
      %8002 = vmatmul.mubr.bf16.gmra.mxu0 %v7813
      %v8003 = vpop.f32.mrf.mxu0
      %v8004 = vadd.f32 0.0, %v8003
      %v8005 = vpop.f32.mrf.mxu0
      %v8006 = vpop.f32.mrf.mxu0
      %v8007 = vadd.f32 0.0, %v8006
      %v8008 = vpop.f32.mrf.mxu0
      %8009 = vmatprep.mubr.bf16.mxu0 0
      %8010 = vmatmul.mubr.bf16.gmra.mxu0 %v7815
      %v8011 = vpop.f32.mrf.mxu0
      %v8012 = vadd.f32 0.0, %v8011
      %v8013 = vpop.f32.mrf.mxu0
      %v8014 = vpop.f32.mrf.mxu0
      %v8015 = vadd.f32 0.0, %v8014
      %v8016 = vpop.f32.mrf.mxu0
      %8017 = vmatprep.mubr.bf16.mxu0 0
      %8018 = vmatmul.mubr.bf16.gmra.mxu0 %v7817
      %v8019 = vpop.f32.mrf.mxu0
      %v8020 = vadd.f32 0.0, %v8019
      %v8021 = vpop.f32.mrf.mxu0
      %v8022 = vpop.f32.mrf.mxu0
      %v8023 = vadd.f32 0.0, %v8022
      %v8024 = vpop.f32.mrf.mxu0
      %8025 = vmatprep.mubr.bf16.mxu0 0
      %8026 = vmatmul.mubr.bf16.gmra.mxu0 %v7819
      %v8027 = vpop.f32.mrf.mxu0
      %v8028 = vadd.f32 0.0, %v8027
      %v8029 = vpop.f32.mrf.mxu0
      %v8030 = vpop.f32.mrf.mxu0
      %v8031 = vadd.f32 0.0, %v8030
      %v8032 = vpop.f32.mrf.mxu0
      %8033 = vmatprep.mubr.bf16.mxu0 0
      %8034 = vmatmul.mubr.bf16.gmra.mxu0 %v7821
      %v8035 = vpop.f32.mrf.mxu0
      %v8036 = vadd.f32 0.0, %v8035
      %v8037 = vpop.f32.mrf.mxu0
      %v8038 = vpop.f32.mrf.mxu0
      %v8039 = vadd.f32 0.0, %v8038
      %v8040 = vpop.f32.mrf.mxu0
      %8041 = vmatprep.mubr.bf16.mxu0 0
      %8042 = vmatmul.mubr.bf16.gmra.mxu0 %v7823
      %v8043 = vpop.f32.mrf.mxu0
      %v8044 = vadd.f32 0.0, %v8043
      %v8045 = vpop.f32.mrf.mxu0
      %v8046 = vpop.f32.mrf.mxu0
      %v8047 = vadd.f32 0.0, %v8046
      %v8048 = vpop.f32.mrf.mxu0
      %8049 = vmatprep.mubr.bf16.mxu0 0
      %8050 = vmatmul.mubr.bf16.gmra.mxu0 %v7825
      %v8051 = vpop.f32.mrf.mxu0
      %v8052 = vadd.f32 0.0, %v8051
      %v8053 = vpop.f32.mrf.mxu0
      %v8054 = vpop.f32.mrf.mxu0
      %v8055 = vadd.f32 0.0, %v8054
      %v8056 = vpop.f32.mrf.mxu0
      %8057 = vmatprep.mubr.bf16.mxu0 0
      %8058 = vmatmul.mubr.bf16.gmra.mxu0 %v7827
      %v8059 = vpop.f32.mrf.mxu0
      %v8060 = vadd.f32 0.0, %v8059
      %v8061 = vpop.f32.mrf.mxu0
      %v8062 = vpop.f32.mrf.mxu0
      %v8063 = vadd.f32 0.0, %v8062
      %v8064 = vpop.f32.mrf.mxu0
      %8065 = vmatprep.mubr.bf16.mxu0 0
      %8066 = vmatmul.mubr.bf16.gmra.mxu0 %v7829
      %v8067 = vpop.f32.mrf.mxu0
      %v8068 = vadd.f32 0.0, %v8067
      %v8069 = vpop.f32.mrf.mxu0
      %v8070 = vpop.f32.mrf.mxu0
      %v8071 = vadd.f32 0.0, %v8070
      %v8072 = vpop.f32.mrf.mxu0
      %8073 = vmatprep.mubr.bf16.mxu0 0
      %8074 = vmatmul.mubr.bf16.gmra.mxu0 %v7831
      %v8075 = vpop.f32.mrf.mxu0
      %v8076 = vadd.f32 0.0, %v8075
      %v8077 = vpop.f32.mrf.mxu0
      %v8078 = vpop.f32.mrf.mxu0
      %v8079 = vadd.f32 0.0, %v8078
      %v8080 = vpop.f32.mrf.mxu0
      %8081 = vmatprep.mubr.bf16.mxu0 0
      %8082 = vmatmul.mubr.bf16.gmra.mxu0 %v7833
      %v8083 = vpop.f32.mrf.mxu0
      %v8084 = vadd.f32 0.0, %v8083
      %v8085 = vpop.f32.mrf.mxu0
      %v8086 = vpop.f32.mrf.mxu0
      %v8087 = vadd.f32 0.0, %v8086
      %v8088 = vpop.f32.mrf.mxu0
      %8089 = vmatprep.mubr.bf16.mxu0 0
      %8090 = vmatmul.mubr.bf16.gmra.mxu0 %v7835
      %v8091 = vpop.f32.mrf.mxu0
      %v8092 = vadd.f32 0.0, %v8091
      %v8093 = vpop.f32.mrf.mxu0
      %v8094 = vpop.f32.mrf.mxu0
      %v8095 = vadd.f32 0.0, %v8094
      %v8096 = vpop.f32.mrf.mxu0
      %8097 = vmatprep.mubr.bf16.mxu0 0
      %8098 = vmatmul.mubr.bf16.gmra.mxu0 %v7834
      %v8099 = vpop.f32.mrf.mxu0
      %v8100 = vadd.f32 0.0, %v8099
      %v8101 = vpop.f32.mrf.mxu0
      %v8102 = vpop.f32.mrf.mxu0
      %v8103 = vpop.f32.mrf.mxu0
      %8104 = vdwg.mxu0
      %v8105 = vadd.f32 %v7733, %v7940
      %v8106 = vadd.f32 %v7734, %v7943
      %v8107 = vadd.f32 %v7735, %v7948
      %v8108 = vadd.f32 %v7736, %v7951
      %v8109 = vadd.f32 %v7737, %v7956
      %v8110 = vadd.f32 %v7738, %v7959
      %v8111 = vadd.f32 %v7739, %v7964
      %v8112 = vadd.f32 %v7740, %v7967
      %v8113 = vadd.f32 %v7741, %v7972
      %v8114 = vadd.f32 %v7742, %v7975
      %v8115 = vadd.f32 %v7743, %v7980
      %v8116 = vadd.f32 %v7744, %v7983
      %v8117 = vadd.f32 %v7745, %v7988
      %v8118 = vadd.f32 %v7746, %v7991
      %v8119 = vadd.f32 %v7747, %v7996
      %v8120 = vadd.f32 %v7748, %v7999
      %v8121 = vadd.f32 %v7749, %v8004
      %v8122 = vadd.f32 %v7750, %v8007
      %v8123 = vadd.f32 %v7751, %v8012
      %v8124 = vadd.f32 %v7752, %v8015
      %v8125 = vadd.f32 %v7753, %v8020
      %v8126 = vadd.f32 %v7754, %v8023
      %v8127 = vadd.f32 %v7755, %v8028
      %v8128 = vadd.f32 %v7756, %v8031
      %v8129 = vadd.f32 %v7757, %v8036
      %v8130 = vadd.f32 %v7758, %v8039
      %v8131 = vadd.f32 %v7759, %v8044
      %v8132 = vadd.f32 %v7760, %v8047
      %v8133 = vadd.f32 %v7761, %v8052
      %v8134 = vadd.f32 %v7762, %v8055
      %v8135 = vadd.f32 %v7763, %v8060
      %v8136 = vadd.f32 %v7764, %v8063
      %v8137 = vadd.f32 %v7765, %v8068
      %v8138 = vadd.f32 %v7766, %v8071
      %v8139 = vadd.f32 %v7767, %v8076
      %v8140 = vadd.f32 %v7768, %v8079
      %v8141 = vadd.f32 %v7769, %v8084
      %v8142 = vadd.f32 %v7770, %v8087
      %v8143 = vadd.f32 %v7771, %v8092
      %v8144 = vadd.f32 %v7772, %v8095
      %v8145 = vadd.f32 %v7773, %v8100
      %v8146 = vld [vmem:[#allocation2 + $0x10] sm:$0xc]
      %v8147 = vld [vmem:[#allocation2 + $0x14] sm:$0xf]
      %v8148 = vld [vmem:[#allocation2 + $0x18] sm:$0xf]
      %v8149 = vld [vmem:[#allocation2 + $0x1c] sm:$0xf]
      %v8150 = vld [vmem:[#allocation2 + $0x20] sm:$0xf]
      %v8151 = vld [vmem:[#allocation2 + $0x24] sm:$0xf]
      %v8152 = vld [vmem:[#allocation2 + $0x28] sm:$0xf]
      %v8153 = vld [vmem:[#allocation2 + $0x2c] sm:$0xf]
      %v8154 = vld [vmem:[#allocation2 + $0x30] sm:$0xf]
      %v8155 = vld [vmem:[#allocation2 + $0x34] sm:$0xf]
      %v8156 = vld [vmem:[#allocation2 + $0x38] sm:$0xf]
      %v8157 = vld [vmem:[#allocation2 + $0x3c] sm:$0xf]
      %v8158 = vld [vmem:[#allocation2 + $0x40] sm:$0xf]
      %v8159 = vld [vmem:[#allocation2 + $0x44] sm:$0xf]
      %v8160 = vld [vmem:[#allocation2 + $0x48] sm:$0xf]
      %v8161 = vld [vmem:[#allocation2 + $0x4c] sm:$0xf]
      %v8162 = vld [vmem:[#allocation2 + $0x50] sm:$0xf]
      %v8163 = vld [vmem:[#allocation2 + $0x54] sm:$0xf]
      %v8164 = vld [vmem:[#allocation2 + $0x58] sm:$0xf]
      %v8165 = vld [vmem:[#allocation2 + $0x5c] sm:$0xf]
      %v8166 = vld [vmem:[#allocation2 + $0x60] sm:$0xf]
      %v8167 = vld [vmem:[#allocation2 + $0x64] sm:$0xf]
      %v8168 = vld [vmem:[#allocation2 + $0x68] sm:$0xf]
      %v8169 = vld [vmem:[#allocation2 + $0x6c] sm:$0xf]
      %v8170 = vld [vmem:[#allocation2 + $0x70] sm:$0xf]
      %v8171 = vld [vmem:[#allocation2 + $0x74] sm:$0xf]
      %v8172 = vld [vmem:[#allocation2 + $0x78] sm:$0xf]
      %v8173 = vld [vmem:[#allocation2 + $0x7c] sm:$0xf]
      %v8174 = vld [vmem:[#allocation2 + $0x80] sm:$0xf]
      %v8175 = vld [vmem:[#allocation2 + $0x84] sm:$0xf]
      %v8176 = vld [vmem:[#allocation2 + $0x88] sm:$0xf]
      %v8177 = vld [vmem:[#allocation2 + $0x8c] sm:$0xf]
      %v8178 = vld [vmem:[#allocation2 + $0x90] sm:$0xf]
      %v8179 = vld [vmem:[#allocation2 + $0x94] sm:$0xf]
      %v8180 = vld [vmem:[#allocation2 + $0x98] sm:$0xf]
      %v8181 = vld [vmem:[#allocation2 + $0x9c] sm:$0xf]
      %v8182 = vld [vmem:[#allocation2 + $0xa0] sm:$0xf]
      %v8183 = vld [vmem:[#allocation2 + $0xa4] sm:$0xf]
      %v8184 = vld [vmem:[#allocation2 + $0xa8] sm:$0xf]
      %v8185 = vld [vmem:[#allocation2 + $0xac] sm:$0xf]
      %v8186 = vld [vmem:[#allocation2 + $0xb0] sm:$0xf]
      %s8187 = scalar_lea.vmem %s3, 384
      %v8188 = vld [vmem:[%s8187] sm:$0xf]
      %v8189 = vld [vmem:[%s8187 + $0x4] sm:$0xf]
      %v8190 = vld [vmem:[%s8187 + $0x8] sm:$0xf]
      %v8191 = vld [vmem:[%s8187 + $0xc] sm:$0xf]
      %v8192 = vld [vmem:[%s8187 + $0x10] sm:$0xf]
      %v8193 = vld [vmem:[%s8187 + $0x14] sm:$0xf]
      %v8194 = vld [vmem:[%s8187 + $0x18] sm:$0xf]
      %v8195 = vld [vmem:[%s8187 + $0x1c] sm:$0xf]
      %v8196 = vld [vmem:[%s8187 + $0x20] sm:$0xf]
      %v8197 = vld [vmem:[%s8187 + $0x24] sm:$0xf]
      %v8198 = vld [vmem:[%s8187 + $0x28] sm:$0xf]
      %v8199 = vld [vmem:[%s8187 + $0x2c] sm:$0xf]
      %v8200 = vld [vmem:[%s8187 + $0x30] sm:$0xf]
      %v8201 = vld [vmem:[%s8187 + $0x34] sm:$0xf]
      %v8202 = vld [vmem:[%s8187 + $0x38] sm:$0xf]
      %v8203 = vld [vmem:[%s8187 + $0x3c] sm:$0xf]
      %v8245 = vunpack.c.l.b16 %v8146
      %v8246 = vunpack.c.l.b16 %v8147
      %v8247 = vunpack.c.l.b16 %v8148
      %v8248 = vunpack.c.l.b16 %v8149
      %v8249 = vunpack.c.l.b16 %v8150
      %v8250 = vunpack.c.l.b16 %v8151
      %v8251 = vunpack.c.l.b16 %v8152
      %v8252 = vunpack.c.l.b16 %v8153
      %v8253 = vunpack.c.l.b16 %v8154
      %v8254 = vunpack.c.l.b16 %v8155
      %v8255 = vunpack.c.l.b16 %v8156
      %v8256 = vunpack.c.l.b16 %v8157
      %v8257 = vunpack.c.l.b16 %v8158
      %v8258 = vunpack.c.l.b16 %v8159
      %v8259 = vunpack.c.l.b16 %v8160
      %v8260 = vunpack.c.l.b16 %v8161
      %v8261 = vunpack.c.l.b16 %v8162
      %v8262 = vunpack.c.l.b16 %v8163
      %v8263 = vunpack.c.l.b16 %v8164
      %v8264 = vunpack.c.l.b16 %v8165
      %v8265 = vunpack.c.l.b16 %v8166
      %v8266 = vunpack.c.l.b16 %v8167
      %v8267 = vunpack.c.l.b16 %v8168
      %v8268 = vunpack.c.l.b16 %v8169
      %v8269 = vunpack.c.l.b16 %v8170
      %v8270 = vunpack.c.l.b16 %v8171
      %v8271 = vunpack.c.l.b16 %v8172
      %v8272 = vunpack.c.l.b16 %v8173
      %v8273 = vunpack.c.l.b16 %v8174
      %v8274 = vunpack.c.l.b16 %v8175
      %v8275 = vunpack.c.l.b16 %v8176
      %v8276 = vunpack.c.l.b16 %v8177
      %v8277 = vunpack.c.l.b16 %v8178
      %v8278 = vunpack.c.l.b16 %v8179
      %v8279 = vunpack.c.l.b16 %v8180
      %v8280 = vunpack.c.l.b16 %v8181
      %v8281 = vunpack.c.l.b16 %v8182
      %v8282 = vunpack.c.l.b16 %v8183
      %v8283 = vunpack.c.l.b16 %v8184
      %v8284 = vunpack.c.l.b16 %v8185
      %v8285 = vunpack.c.l.b16 %v8186
      %v8286 = vpack.c.b16 %v8246, %v8245
      %v8287 = vpack.c.b16 %v8248, %v8247
      %v8288 = vpack.c.b16 %v8250, %v8249
      %v8289 = vpack.c.b16 %v8252, %v8251
      %v8290 = vpack.c.b16 %v8254, %v8253
      %v8291 = vpack.c.b16 %v8256, %v8255
      %v8292 = vpack.c.b16 %v8258, %v8257
      %v8293 = vpack.c.b16 %v8260, %v8259
      %v8294 = vpack.c.b16 %v8262, %v8261
      %v8295 = vpack.c.b16 %v8264, %v8263
      %v8296 = vpack.c.b16 %v8266, %v8265
      %v8297 = vpack.c.b16 %v8268, %v8267
      %v8298 = vpack.c.b16 %v8270, %v8269
      %v8299 = vpack.c.b16 %v8272, %v8271
      %v8300 = vpack.c.b16 %v8274, %v8273
      %v8301 = vpack.c.b16 %v8276, %v8275
      %v8302 = vpack.c.b16 %v8278, %v8277
      %v8303 = vpack.c.b16 %v8280, %v8279
      %v8304 = vpack.c.b16 %v8282, %v8281
      %v8305 = vpack.c.b16 %v8284, %v8283
      %v8306 = vpack.c.b16 %v8285, %v8285
      %v8307 = vrot.slane %v8286, 2
      %v8308 = vrot.slane %v8287, 2
      %v8309 = vsel %vm2566, %v8307, %v8308
      %v8310 = vrot.slane %v8288, 2
      %v8311 = vsel %vm2566, %v8308, %v8310
      %v8312 = vrot.slane %v8289, 2
      %v8313 = vsel %vm2566, %v8310, %v8312
      %v8314 = vrot.slane %v8290, 2
      %v8315 = vsel %vm2566, %v8312, %v8314
      %v8316 = vrot.slane %v8291, 2
      %v8317 = vsel %vm2566, %v8314, %v8316
      %v8318 = vrot.slane %v8292, 2
      %v8319 = vsel %vm2566, %v8316, %v8318
      %v8320 = vrot.slane %v8293, 2
      %v8321 = vsel %vm2566, %v8318, %v8320
      %v8322 = vrot.slane %v8294, 2
      %v8323 = vsel %vm2566, %v8320, %v8322
      %v8324 = vrot.slane %v8295, 2
      %v8325 = vsel %vm2566, %v8322, %v8324
      %v8326 = vrot.slane %v8296, 2
      %v8327 = vsel %vm2566, %v8324, %v8326
      %v8328 = vrot.slane %v8297, 2
      %v8329 = vsel %vm2566, %v8326, %v8328
      %v8330 = vrot.slane %v8298, 2
      %v8331 = vsel %vm2566, %v8328, %v8330
      %v8332 = vrot.slane %v8299, 2
      %v8333 = vsel %vm2566, %v8330, %v8332
      %v8334 = vrot.slane %v8300, 2
      %v8335 = vsel %vm2566, %v8332, %v8334
      %v8336 = vrot.slane %v8301, 2
      %v8337 = vsel %vm2566, %v8334, %v8336
      %v8338 = vrot.slane %v8302, 2
      %v8339 = vsel %vm2566, %v8336, %v8338
      %v8340 = vrot.slane %v8303, 2
      %v8341 = vsel %vm2566, %v8338, %v8340
      %v8342 = vrot.slane %v8304, 2
      %v8343 = vsel %vm2566, %v8340, %v8342
      %v8344 = vrot.slane %v8305, 2
      %v8345 = vsel %vm2566, %v8342, %v8344
      %v8346 = vrot.slane %v8306, 2
      %v8347 = vsel %vm2566, %v8344, %v8346
      %v8385 = vunpack.c.l.b16 %v8188
      %v8386 = vunpack.c.l.b16 %v8189
      %v8387 = vunpack.c.l.b16 %v8190
      %v8388 = vunpack.c.l.b16 %v8191
      %v8389 = vunpack.c.l.b16 %v8192
      %v8390 = vunpack.c.l.b16 %v8193
      %v8391 = vunpack.c.l.b16 %v8194
      %v8392 = vunpack.c.l.b16 %v8195
      %v8393 = vunpack.c.l.b16 %v8196
      %v8394 = vunpack.c.l.b16 %v8197
      %v8395 = vunpack.c.l.b16 %v8198
      %v8396 = vunpack.c.l.b16 %v8199
      %v8397 = vunpack.c.l.b16 %v8200
      %v8398 = vunpack.c.l.b16 %v8201
      %v8399 = vunpack.c.l.b16 %v8202
      %v8400 = vunpack.c.l.b16 %v8203
      %v8401 = vpack.c.b16 %v8386, %v8385
      %v8402 = vpack.c.b16 %v8388, %v8387
      %v8403 = vpack.c.b16 %v8390, %v8389
      %v8404 = vpack.c.b16 %v8392, %v8391
      %v8405 = vpack.c.b16 %v8394, %v8393
      %v8406 = vpack.c.b16 %v8396, %v8395
      %v8407 = vpack.c.b16 %v8398, %v8397
      %v8408 = vpack.c.b16 %v8400, %v8399
      %8417 = vmatprep.subr.bf16.mxu0 0
      %8418 = vmatpush1.bf16.msra.mxu0 %v8408
      %8419 = vmatprep.subr.bf16.mxu0 0
      %8420 = vmatpush1.bf16.msra.mxu0 %v8407
      %8421 = vmatprep.subr.bf16.mxu0 0
      %8422 = vmatpush1.bf16.msra.mxu0 %v8406
      %8423 = vmatprep.subr.bf16.mxu0 0
      %8424 = vmatpush1.bf16.msra.mxu0 %v8405
      %8425 = vmatprep.subr.bf16.mxu0 0
      %8426 = vmatpush1.bf16.msra.mxu0 %v8404
      %8427 = vmatprep.subr.bf16.mxu0 0
      %8428 = vmatpush1.bf16.msra.mxu0 %v8403
      %8429 = vmatprep.subr.bf16.mxu0 0
      %8430 = vmatpush1.bf16.msra.mxu0 %v8402
      %8431 = vmatprep.subr.bf16.mxu0 0
      %8432 = vmatpush1.bf16.msra.mxu0 %v8401
      %8433 = vmatprep.subr.bf16.mxu0 0
      %8434 = vmatpush2.bf16.msra.mxu0 0
      %8435 = vmatprep.subr.bf16.mxu0 0
      %8436 = vmatpush2.bf16.msra.mxu0 0
      %8437 = vmatprep.subr.bf16.mxu0 0
      %8438 = vmatpush2.bf16.msra.mxu0 0
      %8439 = vmatprep.subr.bf16.mxu0 0
      %8440 = vmatpush2.bf16.msra.mxu0 0
      %8441 = vmatprep.subr.bf16.mxu0 0
      %8442 = vmatpush2.bf16.msra.mxu0 0
      %8443 = vmatprep.subr.bf16.mxu0 0
      %8444 = vmatpush2.bf16.msra.mxu0 0
      %8445 = vmatprep.subr.bf16.mxu0 0
      %8446 = vmatpush2.bf16.msra.mxu0 0
      %8447 = vmatprep.subr.bf16.mxu0 0
      %8448 = vmatpush2.bf16.msra.mxu0 0
      %8449 = vmatprep.mubr.bf16.mxu0 0
      %8450 = vmatmul.mubr.bf16.gmra.mxu0 %v8309
      %v8451 = vpop.f32.mrf.mxu0
      %v8452 = vadd.f32 0.0, %v8451
      %v8453 = vpop.f32.mrf.mxu0
      %v8454 = vpop.f32.mrf.mxu0
      %v8455 = vadd.f32 0.0, %v8454
      %v8456 = vpop.f32.mrf.mxu0
      %8457 = vmatprep.mubr.bf16.mxu0 0
      %8458 = vmatmul.mubr.bf16.gmra.mxu0 %v8311
      %v8459 = vpop.f32.mrf.mxu0
      %v8460 = vadd.f32 0.0, %v8459
      %v8461 = vpop.f32.mrf.mxu0
      %v8462 = vpop.f32.mrf.mxu0
      %v8463 = vadd.f32 0.0, %v8462
      %v8464 = vpop.f32.mrf.mxu0
      %8465 = vmatprep.mubr.bf16.mxu0 0
      %8466 = vmatmul.mubr.bf16.gmra.mxu0 %v8313
      %v8467 = vpop.f32.mrf.mxu0
      %v8468 = vadd.f32 0.0, %v8467
      %v8469 = vpop.f32.mrf.mxu0
      %v8470 = vpop.f32.mrf.mxu0
      %v8471 = vadd.f32 0.0, %v8470
      %v8472 = vpop.f32.mrf.mxu0
      %8473 = vmatprep.mubr.bf16.mxu0 0
      %8474 = vmatmul.mubr.bf16.gmra.mxu0 %v8315
      %v8475 = vpop.f32.mrf.mxu0
      %v8476 = vadd.f32 0.0, %v8475
      %v8477 = vpop.f32.mrf.mxu0
      %v8478 = vpop.f32.mrf.mxu0
      %v8479 = vadd.f32 0.0, %v8478
      %v8480 = vpop.f32.mrf.mxu0
      %8481 = vmatprep.mubr.bf16.mxu0 0
      %8482 = vmatmul.mubr.bf16.gmra.mxu0 %v8317
      %v8483 = vpop.f32.mrf.mxu0
      %v8484 = vadd.f32 0.0, %v8483
      %v8485 = vpop.f32.mrf.mxu0
      %v8486 = vpop.f32.mrf.mxu0
      %v8487 = vadd.f32 0.0, %v8486
      %v8488 = vpop.f32.mrf.mxu0
      %8489 = vmatprep.mubr.bf16.mxu0 0
      %8490 = vmatmul.mubr.bf16.gmra.mxu0 %v8319
      %v8491 = vpop.f32.mrf.mxu0
      %v8492 = vadd.f32 0.0, %v8491
      %v8493 = vpop.f32.mrf.mxu0
      %v8494 = vpop.f32.mrf.mxu0
      %v8495 = vadd.f32 0.0, %v8494
      %v8496 = vpop.f32.mrf.mxu0
      %8497 = vmatprep.mubr.bf16.mxu0 0
      %8498 = vmatmul.mubr.bf16.gmra.mxu0 %v8321
      %v8499 = vpop.f32.mrf.mxu0
      %v8500 = vadd.f32 0.0, %v8499
      %v8501 = vpop.f32.mrf.mxu0
      %v8502 = vpop.f32.mrf.mxu0
      %v8503 = vadd.f32 0.0, %v8502
      %v8504 = vpop.f32.mrf.mxu0
      %8505 = vmatprep.mubr.bf16.mxu0 0
      %8506 = vmatmul.mubr.bf16.gmra.mxu0 %v8323
      %v8507 = vpop.f32.mrf.mxu0
      %v8508 = vadd.f32 0.0, %v8507
      %v8509 = vpop.f32.mrf.mxu0
      %v8510 = vpop.f32.mrf.mxu0
      %v8511 = vadd.f32 0.0, %v8510
      %v8512 = vpop.f32.mrf.mxu0
      %8513 = vmatprep.mubr.bf16.mxu0 0
      %8514 = vmatmul.mubr.bf16.gmra.mxu0 %v8325
      %v8515 = vpop.f32.mrf.mxu0
      %v8516 = vadd.f32 0.0, %v8515
      %v8517 = vpop.f32.mrf.mxu0
      %v8518 = vpop.f32.mrf.mxu0
      %v8519 = vadd.f32 0.0, %v8518
      %v8520 = vpop.f32.mrf.mxu0
      %8521 = vmatprep.mubr.bf16.mxu0 0
      %8522 = vmatmul.mubr.bf16.gmra.mxu0 %v8327
      %v8523 = vpop.f32.mrf.mxu0
      %v8524 = vadd.f32 0.0, %v8523
      %v8525 = vpop.f32.mrf.mxu0
      %v8526 = vpop.f32.mrf.mxu0
      %v8527 = vadd.f32 0.0, %v8526
      %v8528 = vpop.f32.mrf.mxu0
      %8529 = vmatprep.mubr.bf16.mxu0 0
      %8530 = vmatmul.mubr.bf16.gmra.mxu0 %v8329
      %v8531 = vpop.f32.mrf.mxu0
      %v8532 = vadd.f32 0.0, %v8531
      %v8533 = vpop.f32.mrf.mxu0
      %v8534 = vpop.f32.mrf.mxu0
      %v8535 = vadd.f32 0.0, %v8534
      %v8536 = vpop.f32.mrf.mxu0
      %8537 = vmatprep.mubr.bf16.mxu0 0
      %8538 = vmatmul.mubr.bf16.gmra.mxu0 %v8331
      %v8539 = vpop.f32.mrf.mxu0
      %v8540 = vadd.f32 0.0, %v8539
      %v8541 = vpop.f32.mrf.mxu0
      %v8542 = vpop.f32.mrf.mxu0
      %v8543 = vadd.f32 0.0, %v8542
      %v8544 = vpop.f32.mrf.mxu0
      %8545 = vmatprep.mubr.bf16.mxu0 0
      %8546 = vmatmul.mubr.bf16.gmra.mxu0 %v8333
      %v8547 = vpop.f32.mrf.mxu0
      %v8548 = vadd.f32 0.0, %v8547
      %v8549 = vpop.f32.mrf.mxu0
      %v8550 = vpop.f32.mrf.mxu0
      %v8551 = vadd.f32 0.0, %v8550
      %v8552 = vpop.f32.mrf.mxu0
      %8553 = vmatprep.mubr.bf16.mxu0 0
      %8554 = vmatmul.mubr.bf16.gmra.mxu0 %v8335
      %v8555 = vpop.f32.mrf.mxu0
      %v8556 = vadd.f32 0.0, %v8555
      %v8557 = vpop.f32.mrf.mxu0
      %v8558 = vpop.f32.mrf.mxu0
      %v8559 = vadd.f32 0.0, %v8558
      %v8560 = vpop.f32.mrf.mxu0
      %8561 = vmatprep.mubr.bf16.mxu0 0
      %8562 = vmatmul.mubr.bf16.gmra.mxu0 %v8337
      %v8563 = vpop.f32.mrf.mxu0
      %v8564 = vadd.f32 0.0, %v8563
      %v8565 = vpop.f32.mrf.mxu0
      %v8566 = vpop.f32.mrf.mxu0
      %v8567 = vadd.f32 0.0, %v8566
      %v8568 = vpop.f32.mrf.mxu0
      %8569 = vmatprep.mubr.bf16.mxu0 0
      %8570 = vmatmul.mubr.bf16.gmra.mxu0 %v8339
      %v8571 = vpop.f32.mrf.mxu0
      %v8572 = vadd.f32 0.0, %v8571
      %v8573 = vpop.f32.mrf.mxu0
      %v8574 = vpop.f32.mrf.mxu0
      %v8575 = vadd.f32 0.0, %v8574
      %v8576 = vpop.f32.mrf.mxu0
      %8577 = vmatprep.mubr.bf16.mxu0 0
      %8578 = vmatmul.mubr.bf16.gmra.mxu0 %v8341
      %v8579 = vpop.f32.mrf.mxu0
      %v8580 = vadd.f32 0.0, %v8579
      %v8581 = vpop.f32.mrf.mxu0
      %v8582 = vpop.f32.mrf.mxu0
      %v8583 = vadd.f32 0.0, %v8582
      %v8584 = vpop.f32.mrf.mxu0
      %8585 = vmatprep.mubr.bf16.mxu0 0
      %8586 = vmatmul.mubr.bf16.gmra.mxu0 %v8343
      %v8587 = vpop.f32.mrf.mxu0
      %v8588 = vadd.f32 0.0, %v8587
      %v8589 = vpop.f32.mrf.mxu0
      %v8590 = vpop.f32.mrf.mxu0
      %v8591 = vadd.f32 0.0, %v8590
      %v8592 = vpop.f32.mrf.mxu0
      %8593 = vmatprep.mubr.bf16.mxu0 0
      %8594 = vmatmul.mubr.bf16.gmra.mxu0 %v8345
      %v8595 = vpop.f32.mrf.mxu0
      %v8596 = vadd.f32 0.0, %v8595
      %v8597 = vpop.f32.mrf.mxu0
      %v8598 = vpop.f32.mrf.mxu0
      %v8599 = vadd.f32 0.0, %v8598
      %v8600 = vpop.f32.mrf.mxu0
      %8601 = vmatprep.mubr.bf16.mxu0 0
      %8602 = vmatmul.mubr.bf16.gmra.mxu0 %v8347
      %v8603 = vpop.f32.mrf.mxu0
      %v8604 = vadd.f32 0.0, %v8603
      %v8605 = vpop.f32.mrf.mxu0
      %v8606 = vpop.f32.mrf.mxu0
      %v8607 = vadd.f32 0.0, %v8606
      %v8608 = vpop.f32.mrf.mxu0
      %8609 = vmatprep.mubr.bf16.mxu0 0
      %8610 = vmatmul.mubr.bf16.gmra.mxu0 %v8346
      %v8611 = vpop.f32.mrf.mxu0
      %v8612 = vadd.f32 0.0, %v8611
      %v8613 = vpop.f32.mrf.mxu0
      %v8614 = vpop.f32.mrf.mxu0
      %v8615 = vpop.f32.mrf.mxu0
      %8616 = vdwg.mxu0
      %v8617 = vadd.f32 %v8105, %v8452
      %v8618 = vadd.f32 %v8106, %v8455
      %v8619 = vadd.f32 %v8107, %v8460
      %v8620 = vadd.f32 %v8108, %v8463
      %v8621 = vadd.f32 %v8109, %v8468
      %v8622 = vadd.f32 %v8110, %v8471
      %v8623 = vadd.f32 %v8111, %v8476
      %v8624 = vadd.f32 %v8112, %v8479
      %v8625 = vadd.f32 %v8113, %v8484
      %v8626 = vadd.f32 %v8114, %v8487
      %v8627 = vadd.f32 %v8115, %v8492
      %v8628 = vadd.f32 %v8116, %v8495
      %v8629 = vadd.f32 %v8117, %v8500
      %v8630 = vadd.f32 %v8118, %v8503
      %v8631 = vadd.f32 %v8119, %v8508
      %v8632 = vadd.f32 %v8120, %v8511
      %v8633 = vadd.f32 %v8121, %v8516
      %v8634 = vadd.f32 %v8122, %v8519
      %v8635 = vadd.f32 %v8123, %v8524
      %v8636 = vadd.f32 %v8124, %v8527
      %v8637 = vadd.f32 %v8125, %v8532
      %v8638 = vadd.f32 %v8126, %v8535
      %v8639 = vadd.f32 %v8127, %v8540
      %v8640 = vadd.f32 %v8128, %v8543
      %v8641 = vadd.f32 %v8129, %v8548
      %v8642 = vadd.f32 %v8130, %v8551
      %v8643 = vadd.f32 %v8131, %v8556
      %v8644 = vadd.f32 %v8132, %v8559
      %v8645 = vadd.f32 %v8133, %v8564
      %v8646 = vadd.f32 %v8134, %v8567
      %v8647 = vadd.f32 %v8135, %v8572
      %v8648 = vadd.f32 %v8136, %v8575
      %v8649 = vadd.f32 %v8137, %v8580
      %v8650 = vadd.f32 %v8138, %v8583
      %v8651 = vadd.f32 %v8139, %v8588
      %v8652 = vadd.f32 %v8140, %v8591
      %v8653 = vadd.f32 %v8141, %v8596
      %v8654 = vadd.f32 %v8142, %v8599
      %v8655 = vadd.f32 %v8143, %v8604
      %v8656 = vadd.f32 %v8144, %v8607
      %v8657 = vadd.f32 %v8145, %v8612
      %v8658 = vld [vmem:[#allocation2 + $0x10] sm:$0xc]
      %v8659 = vld [vmem:[#allocation2 + $0x14] sm:$0xf]
      %v8660 = vld [vmem:[#allocation2 + $0x18] sm:$0xf]
      %v8661 = vld [vmem:[#allocation2 + $0x1c] sm:$0xf]
      %v8662 = vld [vmem:[#allocation2 + $0x20] sm:$0xf]
      %v8663 = vld [vmem:[#allocation2 + $0x24] sm:$0xf]
      %v8664 = vld [vmem:[#allocation2 + $0x28] sm:$0xf]
      %v8665 = vld [vmem:[#allocation2 + $0x2c] sm:$0xf]
      %v8666 = vld [vmem:[#allocation2 + $0x30] sm:$0xf]
      %v8667 = vld [vmem:[#allocation2 + $0x34] sm:$0xf]
      %v8668 = vld [vmem:[#allocation2 + $0x38] sm:$0xf]
      %v8669 = vld [vmem:[#allocation2 + $0x3c] sm:$0xf]
      %v8670 = vld [vmem:[#allocation2 + $0x40] sm:$0xf]
      %v8671 = vld [vmem:[#allocation2 + $0x44] sm:$0xf]
      %v8672 = vld [vmem:[#allocation2 + $0x48] sm:$0xf]
      %v8673 = vld [vmem:[#allocation2 + $0x4c] sm:$0xf]
      %v8674 = vld [vmem:[#allocation2 + $0x50] sm:$0xf]
      %v8675 = vld [vmem:[#allocation2 + $0x54] sm:$0xf]
      %v8676 = vld [vmem:[#allocation2 + $0x58] sm:$0xf]
      %v8677 = vld [vmem:[#allocation2 + $0x5c] sm:$0xf]
      %v8678 = vld [vmem:[#allocation2 + $0x60] sm:$0xf]
      %v8679 = vld [vmem:[#allocation2 + $0x64] sm:$0xf]
      %v8680 = vld [vmem:[#allocation2 + $0x68] sm:$0xf]
      %v8681 = vld [vmem:[#allocation2 + $0x6c] sm:$0xf]
      %v8682 = vld [vmem:[#allocation2 + $0x70] sm:$0xf]
      %v8683 = vld [vmem:[#allocation2 + $0x74] sm:$0xf]
      %v8684 = vld [vmem:[#allocation2 + $0x78] sm:$0xf]
      %v8685 = vld [vmem:[#allocation2 + $0x7c] sm:$0xf]
      %v8686 = vld [vmem:[#allocation2 + $0x80] sm:$0xf]
      %v8687 = vld [vmem:[#allocation2 + $0x84] sm:$0xf]
      %v8688 = vld [vmem:[#allocation2 + $0x88] sm:$0xf]
      %v8689 = vld [vmem:[#allocation2 + $0x8c] sm:$0xf]
      %v8690 = vld [vmem:[#allocation2 + $0x90] sm:$0xf]
      %v8691 = vld [vmem:[#allocation2 + $0x94] sm:$0xf]
      %v8692 = vld [vmem:[#allocation2 + $0x98] sm:$0xf]
      %v8693 = vld [vmem:[#allocation2 + $0x9c] sm:$0xf]
      %v8694 = vld [vmem:[#allocation2 + $0xa0] sm:$0xf]
      %v8695 = vld [vmem:[#allocation2 + $0xa4] sm:$0xf]
      %v8696 = vld [vmem:[#allocation2 + $0xa8] sm:$0xf]
      %v8697 = vld [vmem:[#allocation2 + $0xac] sm:$0xf]
      %v8698 = vld [vmem:[#allocation2 + $0xb0] sm:$0xf]
      %v8699 = vld [vmem:[#allocation2 + $0xb4] sm:$0x1]
      %s8700 = scalar_lea.vmem %s3, 448
      %v8701 = vld [vmem:[%s8700] sm:$0xf]
      %v8702 = vld [vmem:[%s8700 + $0x4] sm:$0xf]
      %v8703 = vld [vmem:[%s8700 + $0x8] sm:$0xf]
      %v8704 = vld [vmem:[%s8700 + $0xc] sm:$0xf]
      %v8705 = vld [vmem:[%s8700 + $0x10] sm:$0xf]
      %v8706 = vld [vmem:[%s8700 + $0x14] sm:$0xf]
      %v8707 = vld [vmem:[%s8700 + $0x18] sm:$0xf]
      %v8708 = vld [vmem:[%s8700 + $0x1c] sm:$0xf]
      %v8709 = vld [vmem:[%s8700 + $0x20] sm:$0xf]
      %v8710 = vld [vmem:[%s8700 + $0x24] sm:$0xf]
      %v8711 = vld [vmem:[%s8700 + $0x28] sm:$0xf]
      %v8712 = vld [vmem:[%s8700 + $0x2c] sm:$0xf]
      %v8713 = vld [vmem:[%s8700 + $0x30] sm:$0xf]
      %v8714 = vld [vmem:[%s8700 + $0x34] sm:$0xf]
      %v8715 = vld [vmem:[%s8700 + $0x38] sm:$0xf]
      %v8716 = vld [vmem:[%s8700 + $0x3c] sm:$0xf]
      %v8759 = vunpack.c.l.b16 %v8658
      %v8760 = vunpack.c.l.b16 %v8659
      %v8761 = vunpack.c.l.b16 %v8660
      %v8762 = vunpack.c.l.b16 %v8661
      %v8763 = vunpack.c.l.b16 %v8662
      %v8764 = vunpack.c.l.b16 %v8663
      %v8765 = vunpack.c.l.b16 %v8664
      %v8766 = vunpack.c.l.b16 %v8665
      %v8767 = vunpack.c.l.b16 %v8666
      %v8768 = vunpack.c.l.b16 %v8667
      %v8769 = vunpack.c.l.b16 %v8668
      %v8770 = vunpack.c.l.b16 %v8669
      %v8771 = vunpack.c.l.b16 %v8670
      %v8772 = vunpack.c.l.b16 %v8671
      %v8773 = vunpack.c.l.b16 %v8672
      %v8774 = vunpack.c.l.b16 %v8673
      %v8775 = vunpack.c.l.b16 %v8674
      %v8776 = vunpack.c.l.b16 %v8675
      %v8777 = vunpack.c.l.b16 %v8676
      %v8778 = vunpack.c.l.b16 %v8677
      %v8779 = vunpack.c.l.b16 %v8678
      %v8780 = vunpack.c.l.b16 %v8679
      %v8781 = vunpack.c.l.b16 %v8680
      %v8782 = vunpack.c.l.b16 %v8681
      %v8783 = vunpack.c.l.b16 %v8682
      %v8784 = vunpack.c.l.b16 %v8683
      %v8785 = vunpack.c.l.b16 %v8684
      %v8786 = vunpack.c.l.b16 %v8685
      %v8787 = vunpack.c.l.b16 %v8686
      %v8788 = vunpack.c.l.b16 %v8687
      %v8789 = vunpack.c.l.b16 %v8688
      %v8790 = vunpack.c.l.b16 %v8689
      %v8791 = vunpack.c.l.b16 %v8690
      %v8792 = vunpack.c.l.b16 %v8691
      %v8793 = vunpack.c.l.b16 %v8692
      %v8794 = vunpack.c.l.b16 %v8693
      %v8795 = vunpack.c.l.b16 %v8694
      %v8796 = vunpack.c.l.b16 %v8695
      %v8797 = vunpack.c.l.b16 %v8696
      %v8798 = vunpack.c.l.b16 %v8697
      %v8799 = vunpack.c.l.b16 %v8698
      %v8800 = vunpack.c.l.b16 %v8699
      %v8801 = vpack.c.b16 %v8760, %v8759
      %v8802 = vpack.c.b16 %v8762, %v8761
      %v8803 = vpack.c.b16 %v8764, %v8763
      %v8804 = vpack.c.b16 %v8766, %v8765
      %v8805 = vpack.c.b16 %v8768, %v8767
      %v8806 = vpack.c.b16 %v8770, %v8769
      %v8807 = vpack.c.b16 %v8772, %v8771
      %v8808 = vpack.c.b16 %v8774, %v8773
      %v8809 = vpack.c.b16 %v8776, %v8775
      %v8810 = vpack.c.b16 %v8778, %v8777
      %v8811 = vpack.c.b16 %v8780, %v8779
      %v8812 = vpack.c.b16 %v8782, %v8781
      %v8813 = vpack.c.b16 %v8784, %v8783
      %v8814 = vpack.c.b16 %v8786, %v8785
      %v8815 = vpack.c.b16 %v8788, %v8787
      %v8816 = vpack.c.b16 %v8790, %v8789
      %v8817 = vpack.c.b16 %v8792, %v8791
      %v8818 = vpack.c.b16 %v8794, %v8793
      %v8819 = vpack.c.b16 %v8796, %v8795
      %v8820 = vpack.c.b16 %v8798, %v8797
      %v8821 = vpack.c.b16 %v8800, %v8799
      %v8823 = vshrl.u32 %v8801, 16
      %v8825 = vrot.slane %v8823, 2
      %v8826 = vshll.u32 %v8801, 16
      %v8828 = vrot.slane %v8826, 3
      %v8829 = vor.u32 %v8825, %v8828
      %v8831 = vshrl.u32 %v8802, 16
      %v8833 = vrot.slane %v8831, 2
      %v8834 = vshll.u32 %v8802, 16
      %v8836 = vrot.slane %v8834, 3
      %v8837 = vor.u32 %v8833, %v8836
      %v8838 = vsel %vm3594, %v8829, %v8837
      %v8840 = vshrl.u32 %v8803, 16
      %v8842 = vrot.slane %v8840, 2
      %v8843 = vshll.u32 %v8803, 16
      %v8845 = vrot.slane %v8843, 3
      %v8846 = vor.u32 %v8842, %v8845
      %v8847 = vsel %vm3594, %v8837, %v8846
      %v8849 = vshrl.u32 %v8804, 16
      %v8851 = vrot.slane %v8849, 2
      %v8852 = vshll.u32 %v8804, 16
      %v8854 = vrot.slane %v8852, 3
      %v8855 = vor.u32 %v8851, %v8854
      %v8856 = vsel %vm3594, %v8846, %v8855
      %v8858 = vshrl.u32 %v8805, 16
      %v8860 = vrot.slane %v8858, 2
      %v8861 = vshll.u32 %v8805, 16
      %v8863 = vrot.slane %v8861, 3
      %v8864 = vor.u32 %v8860, %v8863
      %v8865 = vsel %vm3594, %v8855, %v8864
      %v8867 = vshrl.u32 %v8806, 16
      %v8869 = vrot.slane %v8867, 2
      %v8870 = vshll.u32 %v8806, 16
      %v8872 = vrot.slane %v8870, 3
      %v8873 = vor.u32 %v8869, %v8872
      %v8874 = vsel %vm3594, %v8864, %v8873
      %v8876 = vshrl.u32 %v8807, 16
      %v8878 = vrot.slane %v8876, 2
      %v8879 = vshll.u32 %v8807, 16
      %v8881 = vrot.slane %v8879, 3
      %v8882 = vor.u32 %v8878, %v8881
      %v8883 = vsel %vm3594, %v8873, %v8882
      %v8885 = vshrl.u32 %v8808, 16
      %v8887 = vrot.slane %v8885, 2
      %v8888 = vshll.u32 %v8808, 16
      %v8890 = vrot.slane %v8888, 3
      %v8891 = vor.u32 %v8887, %v8890
      %v8892 = vsel %vm3594, %v8882, %v8891
      %v8894 = vshrl.u32 %v8809, 16
      %v8896 = vrot.slane %v8894, 2
      %v8897 = vshll.u32 %v8809, 16
      %v8899 = vrot.slane %v8897, 3
      %v8900 = vor.u32 %v8896, %v8899
      %v8901 = vsel %vm3594, %v8891, %v8900
      %v8903 = vshrl.u32 %v8810, 16
      %v8905 = vrot.slane %v8903, 2
      %v8906 = vshll.u32 %v8810, 16
      %v8908 = vrot.slane %v8906, 3
      %v8909 = vor.u32 %v8905, %v8908
      %v8910 = vsel %vm3594, %v8900, %v8909
      %v8912 = vshrl.u32 %v8811, 16
      %v8914 = vrot.slane %v8912, 2
      %v8915 = vshll.u32 %v8811, 16
      %v8917 = vrot.slane %v8915, 3
      %v8918 = vor.u32 %v8914, %v8917
      %v8919 = vsel %vm3594, %v8909, %v8918
      %v8921 = vshrl.u32 %v8812, 16
      %v8923 = vrot.slane %v8921, 2
      %v8924 = vshll.u32 %v8812, 16
      %v8926 = vrot.slane %v8924, 3
      %v8927 = vor.u32 %v8923, %v8926
      %v8928 = vsel %vm3594, %v8918, %v8927
      %v8930 = vshrl.u32 %v8813, 16
      %v8932 = vrot.slane %v8930, 2
      %v8933 = vshll.u32 %v8813, 16
      %v8935 = vrot.slane %v8933, 3
      %v8936 = vor.u32 %v8932, %v8935
      %v8937 = vsel %vm3594, %v8927, %v8936
      %v8939 = vshrl.u32 %v8814, 16
      %v8941 = vrot.slane %v8939, 2
      %v8942 = vshll.u32 %v8814, 16
      %v8944 = vrot.slane %v8942, 3
      %v8945 = vor.u32 %v8941, %v8944
      %v8946 = vsel %vm3594, %v8936, %v8945
      %v8948 = vshrl.u32 %v8815, 16
      %v8950 = vrot.slane %v8948, 2
      %v8951 = vshll.u32 %v8815, 16
      %v8953 = vrot.slane %v8951, 3
      %v8954 = vor.u32 %v8950, %v8953
      %v8955 = vsel %vm3594, %v8945, %v8954
      %v8957 = vshrl.u32 %v8816, 16
      %v8959 = vrot.slane %v8957, 2
      %v8960 = vshll.u32 %v8816, 16
      %v8962 = vrot.slane %v8960, 3
      %v8963 = vor.u32 %v8959, %v8962
      %v8964 = vsel %vm3594, %v8954, %v8963
      %v8966 = vshrl.u32 %v8817, 16
      %v8968 = vrot.slane %v8966, 2
      %v8969 = vshll.u32 %v8817, 16
      %v8971 = vrot.slane %v8969, 3
      %v8972 = vor.u32 %v8968, %v8971
      %v8973 = vsel %vm3594, %v8963, %v8972
      %v8975 = vshrl.u32 %v8818, 16
      %v8977 = vrot.slane %v8975, 2
      %v8978 = vshll.u32 %v8818, 16
      %v8980 = vrot.slane %v8978, 3
      %v8981 = vor.u32 %v8977, %v8980
      %v8982 = vsel %vm3594, %v8972, %v8981
      %v8984 = vshrl.u32 %v8819, 16
      %v8986 = vrot.slane %v8984, 2
      %v8987 = vshll.u32 %v8819, 16
      %v8989 = vrot.slane %v8987, 3
      %v8990 = vor.u32 %v8986, %v8989
      %v8991 = vsel %vm3594, %v8981, %v8990
      %v8993 = vshrl.u32 %v8820, 16
      %v8995 = vrot.slane %v8993, 2
      %v8996 = vshll.u32 %v8820, 16
      %v8998 = vrot.slane %v8996, 3
      %v8999 = vor.u32 %v8995, %v8998
      %v9000 = vsel %vm3594, %v8990, %v8999
      %v9002 = vshrl.u32 %v8821, 16
      %v9004 = vrot.slane %v9002, 2
      %v9005 = vshll.u32 %v8821, 16
      %v9007 = vrot.slane %v9005, 3
      %v9008 = vor.u32 %v9004, %v9007
      %v9009 = vsel %vm3594, %v8999, %v9008
      %v9047 = vunpack.c.l.b16 %v8701
      %v9048 = vunpack.c.l.b16 %v8702
      %v9049 = vunpack.c.l.b16 %v8703
      %v9050 = vunpack.c.l.b16 %v8704
      %v9051 = vunpack.c.l.b16 %v8705
      %v9052 = vunpack.c.l.b16 %v8706
      %v9053 = vunpack.c.l.b16 %v8707
      %v9054 = vunpack.c.l.b16 %v8708
      %v9055 = vunpack.c.l.b16 %v8709
      %v9056 = vunpack.c.l.b16 %v8710
      %v9057 = vunpack.c.l.b16 %v8711
      %v9058 = vunpack.c.l.b16 %v8712
      %v9059 = vunpack.c.l.b16 %v8713
      %v9060 = vunpack.c.l.b16 %v8714
      %v9061 = vunpack.c.l.b16 %v8715
      %v9062 = vunpack.c.l.b16 %v8716
      %v9063 = vpack.c.b16 %v9048, %v9047
      %v9064 = vpack.c.b16 %v9050, %v9049
      %v9065 = vpack.c.b16 %v9052, %v9051
      %v9066 = vpack.c.b16 %v9054, %v9053
      %v9067 = vpack.c.b16 %v9056, %v9055
      %v9068 = vpack.c.b16 %v9058, %v9057
      %v9069 = vpack.c.b16 %v9060, %v9059
      %v9070 = vpack.c.b16 %v9062, %v9061
      %9079 = vmatprep.subr.bf16.mxu0 0
      %9080 = vmatpush1.bf16.msra.mxu0 %v9070
      %9081 = vmatprep.subr.bf16.mxu0 0
      %9082 = vmatpush1.bf16.msra.mxu0 %v9069
      %9083 = vmatprep.subr.bf16.mxu0 0
      %9084 = vmatpush1.bf16.msra.mxu0 %v9068
      %9085 = vmatprep.subr.bf16.mxu0 0
      %9086 = vmatpush1.bf16.msra.mxu0 %v9067
      %9087 = vmatprep.subr.bf16.mxu0 0
      %9088 = vmatpush1.bf16.msra.mxu0 %v9066
      %9089 = vmatprep.subr.bf16.mxu0 0
      %9090 = vmatpush1.bf16.msra.mxu0 %v9065
      %9091 = vmatprep.subr.bf16.mxu0 0
      %9092 = vmatpush1.bf16.msra.mxu0 %v9064
      %9093 = vmatprep.subr.bf16.mxu0 0
      %9094 = vmatpush1.bf16.msra.mxu0 %v9063
      %9095 = vmatprep.subr.bf16.mxu0 0
      %9096 = vmatpush2.bf16.msra.mxu0 0
      %9097 = vmatprep.subr.bf16.mxu0 0
      %9098 = vmatpush2.bf16.msra.mxu0 0
      %9099 = vmatprep.subr.bf16.mxu0 0
      %9100 = vmatpush2.bf16.msra.mxu0 0
      %9101 = vmatprep.subr.bf16.mxu0 0
      %9102 = vmatpush2.bf16.msra.mxu0 0
      %9103 = vmatprep.subr.bf16.mxu0 0
      %9104 = vmatpush2.bf16.msra.mxu0 0
      %9105 = vmatprep.subr.bf16.mxu0 0
      %9106 = vmatpush2.bf16.msra.mxu0 0
      %9107 = vmatprep.subr.bf16.mxu0 0
      %9108 = vmatpush2.bf16.msra.mxu0 0
      %9109 = vmatprep.subr.bf16.mxu0 0
      %9110 = vmatpush2.bf16.msra.mxu0 0
      %9111 = vmatprep.mubr.bf16.mxu0 0
      %9112 = vmatmul.mubr.bf16.gmra.mxu0 %v8838
      %v9113 = vpop.f32.mrf.mxu0
      %v9114 = vadd.f32 0.0, %v9113
      %v9115 = vpop.f32.mrf.mxu0
      %v9116 = vpop.f32.mrf.mxu0
      %v9117 = vadd.f32 0.0, %v9116
      %v9118 = vpop.f32.mrf.mxu0
      %9119 = vmatprep.mubr.bf16.mxu0 0
      %9120 = vmatmul.mubr.bf16.gmra.mxu0 %v8847
      %v9121 = vpop.f32.mrf.mxu0
      %v9122 = vadd.f32 0.0, %v9121
      %v9123 = vpop.f32.mrf.mxu0
      %v9124 = vpop.f32.mrf.mxu0
      %v9125 = vadd.f32 0.0, %v9124
      %v9126 = vpop.f32.mrf.mxu0
      %9127 = vmatprep.mubr.bf16.mxu0 0
      %9128 = vmatmul.mubr.bf16.gmra.mxu0 %v8856
      %v9129 = vpop.f32.mrf.mxu0
      %v9130 = vadd.f32 0.0, %v9129
      %v9131 = vpop.f32.mrf.mxu0
      %v9132 = vpop.f32.mrf.mxu0
      %v9133 = vadd.f32 0.0, %v9132
      %v9134 = vpop.f32.mrf.mxu0
      %9135 = vmatprep.mubr.bf16.mxu0 0
      %9136 = vmatmul.mubr.bf16.gmra.mxu0 %v8865
      %v9137 = vpop.f32.mrf.mxu0
      %v9138 = vadd.f32 0.0, %v9137
      %v9139 = vpop.f32.mrf.mxu0
      %v9140 = vpop.f32.mrf.mxu0
      %v9141 = vadd.f32 0.0, %v9140
      %v9142 = vpop.f32.mrf.mxu0
      %9143 = vmatprep.mubr.bf16.mxu0 0
      %9144 = vmatmul.mubr.bf16.gmra.mxu0 %v8874
      %v9145 = vpop.f32.mrf.mxu0
      %v9146 = vadd.f32 0.0, %v9145
      %v9147 = vpop.f32.mrf.mxu0
      %v9148 = vpop.f32.mrf.mxu0
      %v9149 = vadd.f32 0.0, %v9148
      %v9150 = vpop.f32.mrf.mxu0
      %9151 = vmatprep.mubr.bf16.mxu0 0
      %9152 = vmatmul.mubr.bf16.gmra.mxu0 %v8883
      %v9153 = vpop.f32.mrf.mxu0
      %v9154 = vadd.f32 0.0, %v9153
      %v9155 = vpop.f32.mrf.mxu0
      %v9156 = vpop.f32.mrf.mxu0
      %v9157 = vadd.f32 0.0, %v9156
      %v9158 = vpop.f32.mrf.mxu0
      %9159 = vmatprep.mubr.bf16.mxu0 0
      %9160 = vmatmul.mubr.bf16.gmra.mxu0 %v8892
      %v9161 = vpop.f32.mrf.mxu0
      %v9162 = vadd.f32 0.0, %v9161
      %v9163 = vpop.f32.mrf.mxu0
      %v9164 = vpop.f32.mrf.mxu0
      %v9165 = vadd.f32 0.0, %v9164
      %v9166 = vpop.f32.mrf.mxu0
      %9167 = vmatprep.mubr.bf16.mxu0 0
      %9168 = vmatmul.mubr.bf16.gmra.mxu0 %v8901
      %v9169 = vpop.f32.mrf.mxu0
      %v9170 = vadd.f32 0.0, %v9169
      %v9171 = vpop.f32.mrf.mxu0
      %v9172 = vpop.f32.mrf.mxu0
      %v9173 = vadd.f32 0.0, %v9172
      %v9174 = vpop.f32.mrf.mxu0
      %9175 = vmatprep.mubr.bf16.mxu0 0
      %9176 = vmatmul.mubr.bf16.gmra.mxu0 %v8910
      %v9177 = vpop.f32.mrf.mxu0
      %v9178 = vadd.f32 0.0, %v9177
      %v9179 = vpop.f32.mrf.mxu0
      %v9180 = vpop.f32.mrf.mxu0
      %v9181 = vadd.f32 0.0, %v9180
      %v9182 = vpop.f32.mrf.mxu0
      %9183 = vmatprep.mubr.bf16.mxu0 0
      %9184 = vmatmul.mubr.bf16.gmra.mxu0 %v8919
      %v9185 = vpop.f32.mrf.mxu0
      %v9186 = vadd.f32 0.0, %v9185
      %v9187 = vpop.f32.mrf.mxu0
      %v9188 = vpop.f32.mrf.mxu0
      %v9189 = vadd.f32 0.0, %v9188
      %v9190 = vpop.f32.mrf.mxu0
      %9191 = vmatprep.mubr.bf16.mxu0 0
      %9192 = vmatmul.mubr.bf16.gmra.mxu0 %v8928
      %v9193 = vpop.f32.mrf.mxu0
      %v9194 = vadd.f32 0.0, %v9193
      %v9195 = vpop.f32.mrf.mxu0
      %v9196 = vpop.f32.mrf.mxu0
      %v9197 = vadd.f32 0.0, %v9196
      %v9198 = vpop.f32.mrf.mxu0
      %9199 = vmatprep.mubr.bf16.mxu0 0
      %9200 = vmatmul.mubr.bf16.gmra.mxu0 %v8937
      %v9201 = vpop.f32.mrf.mxu0
      %v9202 = vadd.f32 0.0, %v9201
      %v9203 = vpop.f32.mrf.mxu0
      %v9204 = vpop.f32.mrf.mxu0
      %v9205 = vadd.f32 0.0, %v9204
      %v9206 = vpop.f32.mrf.mxu0
      %9207 = vmatprep.mubr.bf16.mxu0 0
      %9208 = vmatmul.mubr.bf16.gmra.mxu0 %v8946
      %v9209 = vpop.f32.mrf.mxu0
      %v9210 = vadd.f32 0.0, %v9209
      %v9211 = vpop.f32.mrf.mxu0
      %v9212 = vpop.f32.mrf.mxu0
      %v9213 = vadd.f32 0.0, %v9212
      %v9214 = vpop.f32.mrf.mxu0
      %9215 = vmatprep.mubr.bf16.mxu0 0
      %9216 = vmatmul.mubr.bf16.gmra.mxu0 %v8955
      %v9217 = vpop.f32.mrf.mxu0
      %v9218 = vadd.f32 0.0, %v9217
      %v9219 = vpop.f32.mrf.mxu0
      %v9220 = vpop.f32.mrf.mxu0
      %v9221 = vadd.f32 0.0, %v9220
      %v9222 = vpop.f32.mrf.mxu0
      %9223 = vmatprep.mubr.bf16.mxu0 0
      %9224 = vmatmul.mubr.bf16.gmra.mxu0 %v8964
      %v9225 = vpop.f32.mrf.mxu0
      %v9226 = vadd.f32 0.0, %v9225
      %v9227 = vpop.f32.mrf.mxu0
      %v9228 = vpop.f32.mrf.mxu0
      %v9229 = vadd.f32 0.0, %v9228
      %v9230 = vpop.f32.mrf.mxu0
      %9231 = vmatprep.mubr.bf16.mxu0 0
      %9232 = vmatmul.mubr.bf16.gmra.mxu0 %v8973
      %v9233 = vpop.f32.mrf.mxu0
      %v9234 = vadd.f32 0.0, %v9233
      %v9235 = vpop.f32.mrf.mxu0
      %v9236 = vpop.f32.mrf.mxu0
      %v9237 = vadd.f32 0.0, %v9236
      %v9238 = vpop.f32.mrf.mxu0
      %9239 = vmatprep.mubr.bf16.mxu0 0
      %9240 = vmatmul.mubr.bf16.gmra.mxu0 %v8982
      %v9241 = vpop.f32.mrf.mxu0
      %v9242 = vadd.f32 0.0, %v9241
      %v9243 = vpop.f32.mrf.mxu0
      %v9244 = vpop.f32.mrf.mxu0
      %v9245 = vadd.f32 0.0, %v9244
      %v9246 = vpop.f32.mrf.mxu0
      %9247 = vmatprep.mubr.bf16.mxu0 0
      %9248 = vmatmul.mubr.bf16.gmra.mxu0 %v8991
      %v9249 = vpop.f32.mrf.mxu0
      %v9250 = vadd.f32 0.0, %v9249
      %v9251 = vpop.f32.mrf.mxu0
      %v9252 = vpop.f32.mrf.mxu0
      %v9253 = vadd.f32 0.0, %v9252
      %v9254 = vpop.f32.mrf.mxu0
      %9255 = vmatprep.mubr.bf16.mxu0 0
      %9256 = vmatmul.mubr.bf16.gmra.mxu0 %v9000
      %v9257 = vpop.f32.mrf.mxu0
      %v9258 = vadd.f32 0.0, %v9257
      %v9259 = vpop.f32.mrf.mxu0
      %v9260 = vpop.f32.mrf.mxu0
      %v9261 = vadd.f32 0.0, %v9260
      %v9262 = vpop.f32.mrf.mxu0
      %9263 = vmatprep.mubr.bf16.mxu0 0
      %9264 = vmatmul.mubr.bf16.gmra.mxu0 %v9009
      %v9265 = vpop.f32.mrf.mxu0
      %v9266 = vadd.f32 0.0, %v9265
      %v9267 = vpop.f32.mrf.mxu0
      %v9268 = vpop.f32.mrf.mxu0
      %v9269 = vadd.f32 0.0, %v9268
      %v9270 = vpop.f32.mrf.mxu0
      %9271 = vmatprep.mubr.bf16.mxu0 0
      %9272 = vmatmul.mubr.bf16.gmra.mxu0 %v9008
      %v9273 = vpop.f32.mrf.mxu0
      %v9274 = vadd.f32 0.0, %v9273
      %v9275 = vpop.f32.mrf.mxu0
      %v9276 = vpop.f32.mrf.mxu0
      %v9277 = vpop.f32.mrf.mxu0
      %9278 = vdwg.mxu0
      %v9279 = vadd.f32 %v8617, %v9114
      %v9280 = vadd.f32 %v8618, %v9117
      %v9281 = vadd.f32 %v8619, %v9122
      %v9282 = vadd.f32 %v8620, %v9125
      %v9283 = vadd.f32 %v8621, %v9130
      %v9284 = vadd.f32 %v8622, %v9133
      %v9285 = vadd.f32 %v8623, %v9138
      %v9286 = vadd.f32 %v8624, %v9141
      %v9287 = vadd.f32 %v8625, %v9146
      %v9288 = vadd.f32 %v8626, %v9149
      %v9289 = vadd.f32 %v8627, %v9154
      %v9290 = vadd.f32 %v8628, %v9157
      %v9291 = vadd.f32 %v8629, %v9162
      %v9292 = vadd.f32 %v8630, %v9165
      %v9293 = vadd.f32 %v8631, %v9170
      %v9294 = vadd.f32 %v8632, %v9173
      %v9295 = vadd.f32 %v8633, %v9178
      %v9296 = vadd.f32 %v8634, %v9181
      %v9297 = vadd.f32 %v8635, %v9186
      %v9298 = vadd.f32 %v8636, %v9189
      %v9299 = vadd.f32 %v8637, %v9194
      %v9300 = vadd.f32 %v8638, %v9197
      %v9301 = vadd.f32 %v8639, %v9202
      %v9302 = vadd.f32 %v8640, %v9205
      %v9303 = vadd.f32 %v8641, %v9210
      %v9304 = vadd.f32 %v8642, %v9213
      %v9305 = vadd.f32 %v8643, %v9218
      %v9306 = vadd.f32 %v8644, %v9221
      %v9307 = vadd.f32 %v8645, %v9226
      %v9308 = vadd.f32 %v8646, %v9229
      %v9309 = vadd.f32 %v8647, %v9234
      %v9310 = vadd.f32 %v8648, %v9237
      %v9311 = vadd.f32 %v8649, %v9242
      %v9312 = vadd.f32 %v8650, %v9245
      %v9313 = vadd.f32 %v8651, %v9250
      %v9314 = vadd.f32 %v8652, %v9253
      %v9315 = vadd.f32 %v8653, %v9258
      %v9316 = vadd.f32 %v8654, %v9261
      %v9317 = vadd.f32 %v8655, %v9266
      %v9318 = vadd.f32 %v8656, %v9269
      %v9319 = vadd.f32 %v8657, %v9274
      %v9320 = vld [vmem:[#allocation2 + $0x10] sm:$0x8]
      %s9321 = scalar_lea.vmem %s3, 512
      %v9322 = vld [vmem:[%s9321] sm:$0xf]
      %v9323 = vld [vmem:[%s9321 + $0x4] sm:$0xf]
      %v9324 = vld [vmem:[%s9321 + $0x8] sm:$0xf]
      %v9325 = vld [vmem:[%s9321 + $0xc] sm:$0xf]
      %v9326 = vld [vmem:[%s9321 + $0x10] sm:$0xf]
      %v9327 = vld [vmem:[%s9321 + $0x14] sm:$0xf]
      %v9328 = vld [vmem:[%s9321 + $0x18] sm:$0xf]
      %v9329 = vld [vmem:[%s9321 + $0x1c] sm:$0xf]
      %v9330 = vld [vmem:[%s9321 + $0x20] sm:$0xf]
      %v9331 = vld [vmem:[%s9321 + $0x24] sm:$0xf]
      %v9332 = vld [vmem:[%s9321 + $0x28] sm:$0xf]
      %v9333 = vld [vmem:[%s9321 + $0x2c] sm:$0xf]
      %v9334 = vld [vmem:[%s9321 + $0x30] sm:$0xf]
      %v9335 = vld [vmem:[%s9321 + $0x34] sm:$0xf]
      %v9336 = vld [vmem:[%s9321 + $0x38] sm:$0xf]
      %v9337 = vld [vmem:[%s9321 + $0x3c] sm:$0xf]
      %v9339 = vunpack.c.l.b16 %v9320
      %v9340 = vpack.c.b16 %v8760, %v9339
      %v9341 = vrot.slane %v9340, 3
      %v9342 = vrot.slane %v8802, 3
      %v9343 = vsel %vm4114, %v9341, %v9342
      %v9344 = vrot.slane %v8803, 3
      %v9345 = vsel %vm4114, %v9342, %v9344
      %v9346 = vrot.slane %v8804, 3
      %v9347 = vsel %vm4114, %v9344, %v9346
      %v9348 = vrot.slane %v8805, 3
      %v9349 = vsel %vm4114, %v9346, %v9348
      %v9350 = vrot.slane %v8806, 3
      %v9351 = vsel %vm4114, %v9348, %v9350
      %v9352 = vrot.slane %v8807, 3
      %v9353 = vsel %vm4114, %v9350, %v9352
      %v9354 = vrot.slane %v8808, 3
      %v9355 = vsel %vm4114, %v9352, %v9354
      %v9356 = vrot.slane %v8809, 3
      %v9357 = vsel %vm4114, %v9354, %v9356
      %v9358 = vrot.slane %v8810, 3
      %v9359 = vsel %vm4114, %v9356, %v9358
      %v9360 = vrot.slane %v8811, 3
      %v9361 = vsel %vm4114, %v9358, %v9360
      %v9362 = vrot.slane %v8812, 3
      %v9363 = vsel %vm4114, %v9360, %v9362
      %v9364 = vrot.slane %v8813, 3
      %v9365 = vsel %vm4114, %v9362, %v9364
      %v9366 = vrot.slane %v8814, 3
      %v9367 = vsel %vm4114, %v9364, %v9366
      %v9368 = vrot.slane %v8815, 3
      %v9369 = vsel %vm4114, %v9366, %v9368
      %v9370 = vrot.slane %v8816, 3
      %v9371 = vsel %vm4114, %v9368, %v9370
      %v9372 = vrot.slane %v8817, 3
      %v9373 = vsel %vm4114, %v9370, %v9372
      %v9374 = vrot.slane %v8818, 3
      %v9375 = vsel %vm4114, %v9372, %v9374
      %v9376 = vrot.slane %v8819, 3
      %v9377 = vsel %vm4114, %v9374, %v9376
      %v9378 = vrot.slane %v8820, 3
      %v9379 = vsel %vm4114, %v9376, %v9378
      %v9380 = vrot.slane %v8821, 3
      %v9381 = vsel %vm4114, %v9378, %v9380
      %v9419 = vunpack.c.l.b16 %v9322
      %v9420 = vunpack.c.l.b16 %v9323
      %v9421 = vunpack.c.l.b16 %v9324
      %v9422 = vunpack.c.l.b16 %v9325
      %v9423 = vunpack.c.l.b16 %v9326
      %v9424 = vunpack.c.l.b16 %v9327
      %v9425 = vunpack.c.l.b16 %v9328
      %v9426 = vunpack.c.l.b16 %v9329
      %v9427 = vunpack.c.l.b16 %v9330
      %v9428 = vunpack.c.l.b16 %v9331
      %v9429 = vunpack.c.l.b16 %v9332
      %v9430 = vunpack.c.l.b16 %v9333
      %v9431 = vunpack.c.l.b16 %v9334
      %v9432 = vunpack.c.l.b16 %v9335
      %v9433 = vunpack.c.l.b16 %v9336
      %v9434 = vunpack.c.l.b16 %v9337
      %v9435 = vpack.c.b16 %v9420, %v9419
      %v9436 = vpack.c.b16 %v9422, %v9421
      %v9437 = vpack.c.b16 %v9424, %v9423
      %v9438 = vpack.c.b16 %v9426, %v9425
      %v9439 = vpack.c.b16 %v9428, %v9427
      %v9440 = vpack.c.b16 %v9430, %v9429
      %v9441 = vpack.c.b16 %v9432, %v9431
      %v9442 = vpack.c.b16 %v9434, %v9433
      %9451 = vmatprep.subr.bf16.mxu0 0
      %9452 = vmatpush1.bf16.msra.mxu0 %v9442
      %9453 = vmatprep.subr.bf16.mxu0 0
      %9454 = vmatpush1.bf16.msra.mxu0 %v9441
      %9455 = vmatprep.subr.bf16.mxu0 0
      %9456 = vmatpush1.bf16.msra.mxu0 %v9440
      %9457 = vmatprep.subr.bf16.mxu0 0
      %9458 = vmatpush1.bf16.msra.mxu0 %v9439
      %9459 = vmatprep.subr.bf16.mxu0 0
      %9460 = vmatpush1.bf16.msra.mxu0 %v9438
      %9461 = vmatprep.subr.bf16.mxu0 0
      %9462 = vmatpush1.bf16.msra.mxu0 %v9437
      %9463 = vmatprep.subr.bf16.mxu0 0
      %9464 = vmatpush1.bf16.msra.mxu0 %v9436
      %9465 = vmatprep.subr.bf16.mxu0 0
      %9466 = vmatpush1.bf16.msra.mxu0 %v9435
      %9467 = vmatprep.subr.bf16.mxu0 0
      %9468 = vmatpush2.bf16.msra.mxu0 0
      %9469 = vmatprep.subr.bf16.mxu0 0
      %9470 = vmatpush2.bf16.msra.mxu0 0
      %9471 = vmatprep.subr.bf16.mxu0 0
      %9472 = vmatpush2.bf16.msra.mxu0 0
      %9473 = vmatprep.subr.bf16.mxu0 0
      %9474 = vmatpush2.bf16.msra.mxu0 0
      %9475 = vmatprep.subr.bf16.mxu0 0
      %9476 = vmatpush2.bf16.msra.mxu0 0
      %9477 = vmatprep.subr.bf16.mxu0 0
      %9478 = vmatpush2.bf16.msra.mxu0 0
      %9479 = vmatprep.subr.bf16.mxu0 0
      %9480 = vmatpush2.bf16.msra.mxu0 0
      %9481 = vmatprep.subr.bf16.mxu0 0
      %9482 = vmatpush2.bf16.msra.mxu0 0
      %9483 = vmatprep.mubr.bf16.mxu0 0
      %9484 = vmatmul.mubr.bf16.gmra.mxu0 %v9343
      %v9485 = vpop.f32.mrf.mxu0
      %v9486 = vadd.f32 0.0, %v9485
      %v9487 = vpop.f32.mrf.mxu0
      %v9488 = vpop.f32.mrf.mxu0
      %v9489 = vadd.f32 0.0, %v9488
      %v9490 = vpop.f32.mrf.mxu0
      %9491 = vmatprep.mubr.bf16.mxu0 0
      %9492 = vmatmul.mubr.bf16.gmra.mxu0 %v9345
      %v9493 = vpop.f32.mrf.mxu0
      %v9494 = vadd.f32 0.0, %v9493
      %v9495 = vpop.f32.mrf.mxu0
      %v9496 = vpop.f32.mrf.mxu0
      %v9497 = vadd.f32 0.0, %v9496
      %v9498 = vpop.f32.mrf.mxu0
      %9499 = vmatprep.mubr.bf16.mxu0 0
      %9500 = vmatmul.mubr.bf16.gmra.mxu0 %v9347
      %v9501 = vpop.f32.mrf.mxu0
      %v9502 = vadd.f32 0.0, %v9501
      %v9503 = vpop.f32.mrf.mxu0
      %v9504 = vpop.f32.mrf.mxu0
      %v9505 = vadd.f32 0.0, %v9504
      %v9506 = vpop.f32.mrf.mxu0
      %9507 = vmatprep.mubr.bf16.mxu0 0
      %9508 = vmatmul.mubr.bf16.gmra.mxu0 %v9349
      %v9509 = vpop.f32.mrf.mxu0
      %v9510 = vadd.f32 0.0, %v9509
      %v9511 = vpop.f32.mrf.mxu0
      %v9512 = vpop.f32.mrf.mxu0
      %v9513 = vadd.f32 0.0, %v9512
      %v9514 = vpop.f32.mrf.mxu0
      %9515 = vmatprep.mubr.bf16.mxu0 0
      %9516 = vmatmul.mubr.bf16.gmra.mxu0 %v9351
      %v9517 = vpop.f32.mrf.mxu0
      %v9518 = vadd.f32 0.0, %v9517
      %v9519 = vpop.f32.mrf.mxu0
      %v9520 = vpop.f32.mrf.mxu0
      %v9521 = vadd.f32 0.0, %v9520
      %v9522 = vpop.f32.mrf.mxu0
      %9523 = vmatprep.mubr.bf16.mxu0 0
      %9524 = vmatmul.mubr.bf16.gmra.mxu0 %v9353
      %v9525 = vpop.f32.mrf.mxu0
      %v9526 = vadd.f32 0.0, %v9525
      %v9527 = vpop.f32.mrf.mxu0
      %v9528 = vpop.f32.mrf.mxu0
      %v9529 = vadd.f32 0.0, %v9528
      %v9530 = vpop.f32.mrf.mxu0
      %9531 = vmatprep.mubr.bf16.mxu0 0
      %9532 = vmatmul.mubr.bf16.gmra.mxu0 %v9355
      %v9533 = vpop.f32.mrf.mxu0
      %v9534 = vadd.f32 0.0, %v9533
      %v9535 = vpop.f32.mrf.mxu0
      %v9536 = vpop.f32.mrf.mxu0
      %v9537 = vadd.f32 0.0, %v9536
      %v9538 = vpop.f32.mrf.mxu0
      %9539 = vmatprep.mubr.bf16.mxu0 0
      %9540 = vmatmul.mubr.bf16.gmra.mxu0 %v9357
      %v9541 = vpop.f32.mrf.mxu0
      %v9542 = vadd.f32 0.0, %v9541
      %v9543 = vpop.f32.mrf.mxu0
      %v9544 = vpop.f32.mrf.mxu0
      %v9545 = vadd.f32 0.0, %v9544
      %v9546 = vpop.f32.mrf.mxu0
      %9547 = vmatprep.mubr.bf16.mxu0 0
      %9548 = vmatmul.mubr.bf16.gmra.mxu0 %v9359
      %v9549 = vpop.f32.mrf.mxu0
      %v9550 = vadd.f32 0.0, %v9549
      %v9551 = vpop.f32.mrf.mxu0
      %v9552 = vpop.f32.mrf.mxu0
      %v9553 = vadd.f32 0.0, %v9552
      %v9554 = vpop.f32.mrf.mxu0
      %9555 = vmatprep.mubr.bf16.mxu0 0
      %9556 = vmatmul.mubr.bf16.gmra.mxu0 %v9361
      %v9557 = vpop.f32.mrf.mxu0
      %v9558 = vadd.f32 0.0, %v9557
      %v9559 = vpop.f32.mrf.mxu0
      %v9560 = vpop.f32.mrf.mxu0
      %v9561 = vadd.f32 0.0, %v9560
      %v9562 = vpop.f32.mrf.mxu0
      %9563 = vmatprep.mubr.bf16.mxu0 0
      %9564 = vmatmul.mubr.bf16.gmra.mxu0 %v9363
      %v9565 = vpop.f32.mrf.mxu0
      %v9566 = vadd.f32 0.0, %v9565
      %v9567 = vpop.f32.mrf.mxu0
      %v9568 = vpop.f32.mrf.mxu0
      %v9569 = vadd.f32 0.0, %v9568
      %v9570 = vpop.f32.mrf.mxu0
      %9571 = vmatprep.mubr.bf16.mxu0 0
      %9572 = vmatmul.mubr.bf16.gmra.mxu0 %v9365
      %v9573 = vpop.f32.mrf.mxu0
      %v9574 = vadd.f32 0.0, %v9573
      %v9575 = vpop.f32.mrf.mxu0
      %v9576 = vpop.f32.mrf.mxu0
      %v9577 = vadd.f32 0.0, %v9576
      %v9578 = vpop.f32.mrf.mxu0
      %9579 = vmatprep.mubr.bf16.mxu0 0
      %9580 = vmatmul.mubr.bf16.gmra.mxu0 %v9367
      %v9581 = vpop.f32.mrf.mxu0
      %v9582 = vadd.f32 0.0, %v9581
      %v9583 = vpop.f32.mrf.mxu0
      %v9584 = vpop.f32.mrf.mxu0
      %v9585 = vadd.f32 0.0, %v9584
      %v9586 = vpop.f32.mrf.mxu0
      %9587 = vmatprep.mubr.bf16.mxu0 0
      %9588 = vmatmul.mubr.bf16.gmra.mxu0 %v9369
      %v9589 = vpop.f32.mrf.mxu0
      %v9590 = vadd.f32 0.0, %v9589
      %v9591 = vpop.f32.mrf.mxu0
      %v9592 = vpop.f32.mrf.mxu0
      %v9593 = vadd.f32 0.0, %v9592
      %v9594 = vpop.f32.mrf.mxu0
      %9595 = vmatprep.mubr.bf16.mxu0 0
      %9596 = vmatmul.mubr.bf16.gmra.mxu0 %v9371
      %v9597 = vpop.f32.mrf.mxu0
      %v9598 = vadd.f32 0.0, %v9597
      %v9599 = vpop.f32.mrf.mxu0
      %v9600 = vpop.f32.mrf.mxu0
      %v9601 = vadd.f32 0.0, %v9600
      %v9602 = vpop.f32.mrf.mxu0
      %9603 = vmatprep.mubr.bf16.mxu0 0
      %9604 = vmatmul.mubr.bf16.gmra.mxu0 %v9373
      %v9605 = vpop.f32.mrf.mxu0
      %v9606 = vadd.f32 0.0, %v9605
      %v9607 = vpop.f32.mrf.mxu0
      %v9608 = vpop.f32.mrf.mxu0
      %v9609 = vadd.f32 0.0, %v9608
      %v9610 = vpop.f32.mrf.mxu0
      %9611 = vmatprep.mubr.bf16.mxu0 0
      %9612 = vmatmul.mubr.bf16.gmra.mxu0 %v9375
      %v9613 = vpop.f32.mrf.mxu0
      %v9614 = vadd.f32 0.0, %v9613
      %v9615 = vpop.f32.mrf.mxu0
      %v9616 = vpop.f32.mrf.mxu0
      %v9617 = vadd.f32 0.0, %v9616
      %v9618 = vpop.f32.mrf.mxu0
      %9619 = vmatprep.mubr.bf16.mxu0 0
      %9620 = vmatmul.mubr.bf16.gmra.mxu0 %v9377
      %v9621 = vpop.f32.mrf.mxu0
      %v9622 = vadd.f32 0.0, %v9621
      %v9623 = vpop.f32.mrf.mxu0
      %v9624 = vpop.f32.mrf.mxu0
      %v9625 = vadd.f32 0.0, %v9624
      %v9626 = vpop.f32.mrf.mxu0
      %9627 = vmatprep.mubr.bf16.mxu0 0
      %9628 = vmatmul.mubr.bf16.gmra.mxu0 %v9379
      %v9629 = vpop.f32.mrf.mxu0
      %v9630 = vadd.f32 0.0, %v9629
      %v9631 = vpop.f32.mrf.mxu0
      %v9632 = vpop.f32.mrf.mxu0
      %v9633 = vadd.f32 0.0, %v9632
      %v9634 = vpop.f32.mrf.mxu0
      %9635 = vmatprep.mubr.bf16.mxu0 0
      %9636 = vmatmul.mubr.bf16.gmra.mxu0 %v9381
      %v9637 = vpop.f32.mrf.mxu0
      %v9638 = vadd.f32 0.0, %v9637
      %v9639 = vpop.f32.mrf.mxu0
      %v9640 = vpop.f32.mrf.mxu0
      %v9641 = vadd.f32 0.0, %v9640
      %v9642 = vpop.f32.mrf.mxu0
      %9643 = vmatprep.mubr.bf16.mxu0 0
      %9644 = vmatmul.mubr.bf16.gmra.mxu0 %v9380
      %v9645 = vpop.f32.mrf.mxu0
      %v9646 = vadd.f32 0.0, %v9645
      %v9647 = vpop.f32.mrf.mxu0
      %v9648 = vpop.f32.mrf.mxu0
      %v9649 = vpop.f32.mrf.mxu0
      %9650 = vdwg.mxu0
      %v9651 = vadd.f32 %v9279, %v9486
      %v9652 = vadd.f32 %v9280, %v9489
      %v9653 = vadd.f32 %v9281, %v9494
      %v9654 = vadd.f32 %v9282, %v9497
      %v9655 = vadd.f32 %v9283, %v9502
      %v9656 = vadd.f32 %v9284, %v9505
      %v9657 = vadd.f32 %v9285, %v9510
      %v9658 = vadd.f32 %v9286, %v9513
      %v9659 = vadd.f32 %v9287, %v9518
      %v9660 = vadd.f32 %v9288, %v9521
      %v9661 = vadd.f32 %v9289, %v9526
      %v9662 = vadd.f32 %v9290, %v9529
      %v9663 = vadd.f32 %v9291, %v9534
      %v9664 = vadd.f32 %v9292, %v9537
      %v9665 = vadd.f32 %v9293, %v9542
      %v9666 = vadd.f32 %v9294, %v9545
      %v9667 = vadd.f32 %v9295, %v9550
      %v9668 = vadd.f32 %v9296, %v9553
      %v9669 = vadd.f32 %v9297, %v9558
      %v9670 = vadd.f32 %v9298, %v9561
      %v9671 = vadd.f32 %v9299, %v9566
      %v9672 = vadd.f32 %v9300, %v9569
      %v9673 = vadd.f32 %v9301, %v9574
      %v9674 = vadd.f32 %v9302, %v9577
      %v9675 = vadd.f32 %v9303, %v9582
      %v9676 = vadd.f32 %v9304, %v9585
      %v9677 = vadd.f32 %v9305, %v9590
      %v9678 = vadd.f32 %v9306, %v9593
      %v9679 = vadd.f32 %v9307, %v9598
      %v9680 = vadd.f32 %v9308, %v9601
      %v9681 = vadd.f32 %v9309, %v9606
      %v9682 = vadd.f32 %v9310, %v9609
      %v9683 = vadd.f32 %v9311, %v9614
      %v9684 = vadd.f32 %v9312, %v9617
      %v9685 = vadd.f32 %v9313, %v9622
      %v9686 = vadd.f32 %v9314, %v9625
      %v9687 = vadd.f32 %v9315, %v9630
      %v9688 = vadd.f32 %v9316, %v9633
      %v9689 = vadd.f32 %v9317, %v9638
      %v9690 = vadd.f32 %v9318, %v9641
      %v9691 = vadd.f32 %v9319, %v9646
      %v9692 = vld [vmem:[%s246 + $0x8] sm:$0xe]
      %v9693 = vld [vmem:[%s246 + $0xc] sm:$0xf]
      %v9694 = vld [vmem:[%s246 + $0x10] sm:$0xf]
      %v9695 = vld [vmem:[%s246 + $0x14] sm:$0xf]
      %v9696 = vld [vmem:[%s246 + $0x18] sm:$0xf]
      %v9697 = vld [vmem:[%s246 + $0x1c] sm:$0xf]
      %v9698 = vld [vmem:[%s246 + $0x20] sm:$0xf]
      %v9699 = vld [vmem:[%s246 + $0x24] sm:$0xf]
      %v9700 = vld [vmem:[%s246 + $0x28] sm:$0xf]
      %v9701 = vld [vmem:[%s246 + $0x2c] sm:$0xf]
      %v9702 = vld [vmem:[%s246 + $0x30] sm:$0xf]
      %v9703 = vld [vmem:[%s246 + $0x34] sm:$0xf]
      %v9704 = vld [vmem:[%s246 + $0x38] sm:$0xf]
      %v9705 = vld [vmem:[%s246 + $0x3c] sm:$0xf]
      %v9706 = vld [vmem:[%s246 + $0x40] sm:$0xf]
      %v9707 = vld [vmem:[%s246 + $0x44] sm:$0xf]
      %v9708 = vld [vmem:[%s246 + $0x48] sm:$0xf]
      %v9709 = vld [vmem:[%s246 + $0x4c] sm:$0xf]
      %v9710 = vld [vmem:[%s246 + $0x50] sm:$0xf]
      %v9711 = vld [vmem:[%s246 + $0x54] sm:$0xf]
      %v9712 = vld [vmem:[%s246 + $0x58] sm:$0xf]
      %v9713 = vld [vmem:[%s246 + $0x5c] sm:$0xf]
      %v9714 = vld [vmem:[%s246 + $0x60] sm:$0xf]
      %v9715 = vld [vmem:[%s246 + $0x64] sm:$0xf]
      %v9716 = vld [vmem:[%s246 + $0x68] sm:$0xf]
      %v9717 = vld [vmem:[%s246 + $0x6c] sm:$0xf]
      %v9718 = vld [vmem:[%s246 + $0x70] sm:$0xf]
      %v9719 = vld [vmem:[%s246 + $0x74] sm:$0xf]
      %v9720 = vld [vmem:[%s246 + $0x78] sm:$0xf]
      %v9721 = vld [vmem:[%s246 + $0x7c] sm:$0xf]
      %v9722 = vld [vmem:[%s246 + $0x80] sm:$0xf]
      %v9723 = vld [vmem:[%s246 + $0x84] sm:$0xf]
      %v9724 = vld [vmem:[%s246 + $0x88] sm:$0xf]
      %v9725 = vld [vmem:[%s246 + $0x8c] sm:$0xf]
      %v9726 = vld [vmem:[%s246 + $0x90] sm:$0xf]
      %v9727 = vld [vmem:[%s246 + $0x94] sm:$0xf]
      %v9728 = vld [vmem:[%s246 + $0x98] sm:$0xf]
      %v9729 = vld [vmem:[%s246 + $0x9c] sm:$0xf]
      %v9730 = vld [vmem:[%s246 + $0xa0] sm:$0xf]
      %v9731 = vld [vmem:[%s246 + $0xa4] sm:$0xf]
      %v9732 = vld [vmem:[%s246 + $0xa8] sm:$0xf]
      %v9733 = vunpack.c.l.bf16 %v9692
      %v9734 = vunpack.c.l.bf16 %v9693
      %v9735 = vunpack.c.l.bf16 %v9694
      %v9736 = vunpack.c.l.bf16 %v9695
      %v9737 = vunpack.c.l.bf16 %v9696
      %v9738 = vunpack.c.l.bf16 %v9697
      %v9739 = vunpack.c.l.bf16 %v9698
      %v9740 = vunpack.c.l.bf16 %v9699
      %v9741 = vunpack.c.l.bf16 %v9700
      %v9742 = vunpack.c.l.bf16 %v9701
      %v9743 = vunpack.c.l.bf16 %v9702
      %v9744 = vunpack.c.l.bf16 %v9703
      %v9745 = vunpack.c.l.bf16 %v9704
      %v9746 = vunpack.c.l.bf16 %v9705
      %v9747 = vunpack.c.l.bf16 %v9706
      %v9748 = vunpack.c.l.bf16 %v9707
      %v9749 = vunpack.c.l.bf16 %v9708
      %v9750 = vunpack.c.l.bf16 %v9709
      %v9751 = vunpack.c.l.bf16 %v9710
      %v9752 = vunpack.c.l.bf16 %v9711
      %v9753 = vunpack.c.l.bf16 %v9712
      %v9754 = vunpack.c.l.bf16 %v9713
      %v9755 = vunpack.c.l.bf16 %v9714
      %v9756 = vunpack.c.l.bf16 %v9715
      %v9757 = vunpack.c.l.bf16 %v9716
      %v9758 = vunpack.c.l.bf16 %v9717
      %v9759 = vunpack.c.l.bf16 %v9718
      %v9760 = vunpack.c.l.bf16 %v9719
      %v9761 = vunpack.c.l.bf16 %v9720
      %v9762 = vunpack.c.l.bf16 %v9721
      %v9763 = vunpack.c.l.bf16 %v9722
      %v9764 = vunpack.c.l.bf16 %v9723
      %v9765 = vunpack.c.l.bf16 %v9724
      %v9766 = vunpack.c.l.bf16 %v9725
      %v9767 = vunpack.c.l.bf16 %v9726
      %v9768 = vunpack.c.l.bf16 %v9727
      %v9769 = vunpack.c.l.bf16 %v9728
      %v9770 = vunpack.c.l.bf16 %v9729
      %v9771 = vunpack.c.l.bf16 %v9730
      %v9772 = vunpack.c.l.bf16 %v9731
      %v9773 = vunpack.c.l.bf16 %v9732
      %v9774 = vld [vmem:[%s4] sm:$0x1]
      %v9776 = vlaneseq
      %v9777 = vshrl.u32 %v9776, 7
      %v9778 = vsub.s32 0, %v9777
      %v9779 = vrot.slane %v9774, %v9778
      %v9781 = vadd.f32 %v9651, %v9779
      %v9782 = vadd.f32 %v9652, %v9779
      %v9783 = vadd.f32 %v9653, %v9779
      %v9784 = vadd.f32 %v9654, %v9779
      %v9785 = vadd.f32 %v9655, %v9779
      %v9786 = vadd.f32 %v9656, %v9779
      %v9787 = vadd.f32 %v9657, %v9779
      %v9788 = vadd.f32 %v9658, %v9779
      %v9789 = vadd.f32 %v9659, %v9779
      %v9790 = vadd.f32 %v9660, %v9779
      %v9791 = vadd.f32 %v9661, %v9779
      %v9792 = vadd.f32 %v9662, %v9779
      %v9793 = vadd.f32 %v9663, %v9779
      %v9794 = vadd.f32 %v9664, %v9779
      %v9795 = vadd.f32 %v9665, %v9779
      %v9796 = vadd.f32 %v9666, %v9779
      %v9797 = vadd.f32 %v9667, %v9779
      %v9798 = vadd.f32 %v9668, %v9779
      %v9799 = vadd.f32 %v9669, %v9779
      %v9800 = vadd.f32 %v9670, %v9779
      %v9801 = vadd.f32 %v9671, %v9779
      %v9802 = vadd.f32 %v9672, %v9779
      %v9803 = vadd.f32 %v9673, %v9779
      %v9804 = vadd.f32 %v9674, %v9779
      %v9805 = vadd.f32 %v9675, %v9779
      %v9806 = vadd.f32 %v9676, %v9779
      %v9807 = vadd.f32 %v9677, %v9779
      %v9808 = vadd.f32 %v9678, %v9779
      %v9809 = vadd.f32 %v9679, %v9779
      %v9810 = vadd.f32 %v9680, %v9779
      %v9811 = vadd.f32 %v9681, %v9779
      %v9812 = vadd.f32 %v9682, %v9779
      %v9813 = vadd.f32 %v9683, %v9779
      %v9814 = vadd.f32 %v9684, %v9779
      %v9815 = vadd.f32 %v9685, %v9779
      %v9816 = vadd.f32 %v9686, %v9779
      %v9817 = vadd.f32 %v9687, %v9779
      %v9818 = vadd.f32 %v9688, %v9779
      %v9819 = vadd.f32 %v9689, %v9779
      %v9820 = vadd.f32 %v9690, %v9779
      %v9821 = vadd.f32 %v9691, %v9779
      %vm9863 = vcmask 1044480
      %v9864 = vrot.slane %v9733, 3
      %v9865 = vrot.slane %v9734, 3
      %v9866 = vsel %vm9863, %v9864, %v9865
      %v9867 = vrot.slane %v9735, 3
      %v9868 = vsel %vm9863, %v9865, %v9867
      %v9869 = vrot.slane %v9736, 3
      %v9870 = vsel %vm9863, %v9867, %v9869
      %v9871 = vrot.slane %v9737, 3
      %v9872 = vsel %vm9863, %v9869, %v9871
      %v9873 = vrot.slane %v9738, 3
      %v9874 = vsel %vm9863, %v9871, %v9873
      %v9875 = vrot.slane %v9739, 3
      %v9876 = vsel %vm9863, %v9873, %v9875
      %v9877 = vrot.slane %v9740, 3
      %v9878 = vsel %vm9863, %v9875, %v9877
      %v9879 = vrot.slane %v9741, 3
      %v9880 = vsel %vm9863, %v9877, %v9879
      %v9881 = vrot.slane %v9742, 3
      %v9882 = vsel %vm9863, %v9879, %v9881
      %v9883 = vrot.slane %v9743, 3
      %v9884 = vsel %vm9863, %v9881, %v9883
      %v9885 = vrot.slane %v9744, 3
      %v9886 = vsel %vm9863, %v9883, %v9885
      %v9887 = vrot.slane %v9745, 3
      %v9888 = vsel %vm9863, %v9885, %v9887
      %v9889 = vrot.slane %v9746, 3
      %v9890 = vsel %vm9863, %v9887, %v9889
      %v9891 = vrot.slane %v9747, 3
      %v9892 = vsel %vm9863, %v9889, %v9891
      %v9893 = vrot.slane %v9748, 3
      %v9894 = vsel %vm9863, %v9891, %v9893
      %v9895 = vrot.slane %v9749, 3
      %v9896 = vsel %vm9863, %v9893, %v9895
      %v9897 = vrot.slane %v9750, 3
      %v9898 = vsel %vm9863, %v9895, %v9897
      %v9899 = vrot.slane %v9751, 3
      %v9900 = vsel %vm9863, %v9897, %v9899
      %v9901 = vrot.slane %v9752, 3
      %v9902 = vsel %vm9863, %v9899, %v9901
      %v9903 = vrot.slane %v9753, 3
      %v9904 = vsel %vm9863, %v9901, %v9903
      %v9905 = vrot.slane %v9754, 3
      %v9906 = vsel %vm9863, %v9903, %v9905
      %v9907 = vrot.slane %v9755, 3
      %v9908 = vsel %vm9863, %v9905, %v9907
      %v9909 = vrot.slane %v9756, 3
      %v9910 = vsel %vm9863, %v9907, %v9909
      %v9911 = vrot.slane %v9757, 3
      %v9912 = vsel %vm9863, %v9909, %v9911
      %v9913 = vrot.slane %v9758, 3
      %v9914 = vsel %vm9863, %v9911, %v9913
      %v9915 = vrot.slane %v9759, 3
      %v9916 = vsel %vm9863, %v9913, %v9915
      %v9917 = vrot.slane %v9760, 3
      %v9918 = vsel %vm9863, %v9915, %v9917
      %v9919 = vrot.slane %v9761, 3
      %v9920 = vsel %vm9863, %v9917, %v9919
      %v9921 = vrot.slane %v9762, 3
      %v9922 = vsel %vm9863, %v9919, %v9921
      %v9923 = vrot.slane %v9763, 3
      %v9924 = vsel %vm9863, %v9921, %v9923
      %v9925 = vrot.slane %v9764, 3
      %v9926 = vsel %vm9863, %v9923, %v9925
      %v9927 = vrot.slane %v9765, 3
      %v9928 = vsel %vm9863, %v9925, %v9927
      %v9929 = vrot.slane %v9766, 3
      %v9930 = vsel %vm9863, %v9927, %v9929
      %v9931 = vrot.slane %v9767, 3
      %v9932 = vsel %vm9863, %v9929, %v9931
      %v9933 = vrot.slane %v9768, 3
      %v9934 = vsel %vm9863, %v9931, %v9933
      %v9935 = vrot.slane %v9769, 3
      %v9936 = vsel %vm9863, %v9933, %v9935
      %v9937 = vrot.slane %v9770, 3
      %v9938 = vsel %vm9863, %v9935, %v9937
      %v9939 = vrot.slane %v9771, 3
      %v9940 = vsel %vm9863, %v9937, %v9939
      %v9941 = vrot.slane %v9772, 3
      %v9942 = vsel %vm9863, %v9939, %v9941
      %v9943 = vrot.slane %v9773, 3
      %v9944 = vsel %vm9863, %v9941, %v9943
      %v9986 = vadd.f32 %v9781, %v9866
      %v9987 = vadd.f32 %v9782, %v9868
      %v9988 = vadd.f32 %v9783, %v9870
      %v9989 = vadd.f32 %v9784, %v9872
      %v9990 = vadd.f32 %v9785, %v9874
      %v9991 = vadd.f32 %v9786, %v9876
      %v9992 = vadd.f32 %v9787, %v9878
      %v9993 = vadd.f32 %v9788, %v9880
      %v9994 = vadd.f32 %v9789, %v9882
      %v9995 = vadd.f32 %v9790, %v9884
      %v9996 = vadd.f32 %v9791, %v9886
      %v9997 = vadd.f32 %v9792, %v9888
      %v9998 = vadd.f32 %v9793, %v9890
      %v9999 = vadd.f32 %v9794, %v9892
      %v10000 = vadd.f32 %v9795, %v9894
      %v10001 = vadd.f32 %v9796, %v9896
      %v10002 = vadd.f32 %v9797, %v9898
      %v10003 = vadd.f32 %v9798, %v9900
      %v10004 = vadd.f32 %v9799, %v9902
      %v10005 = vadd.f32 %v9800, %v9904
      %v10006 = vadd.f32 %v9801, %v9906
      %v10007 = vadd.f32 %v9802, %v9908
      %v10008 = vadd.f32 %v9803, %v9910
      %v10009 = vadd.f32 %v9804, %v9912
      %v10010 = vadd.f32 %v9805, %v9914
      %v10011 = vadd.f32 %v9806, %v9916
      %v10012 = vadd.f32 %v9807, %v9918
      %v10013 = vadd.f32 %v9808, %v9920
      %v10014 = vadd.f32 %v9809, %v9922
      %v10015 = vadd.f32 %v9810, %v9924
      %v10016 = vadd.f32 %v9811, %v9926
      %v10017 = vadd.f32 %v9812, %v9928
      %v10018 = vadd.f32 %v9813, %v9930
      %v10019 = vadd.f32 %v9814, %v9932
      %v10020 = vadd.f32 %v9815, %v9934
      %v10021 = vadd.f32 %v9816, %v9936
      %v10022 = vadd.f32 %v9817, %v9938
      %v10023 = vadd.f32 %v9818, %v9940
      %v10024 = vadd.f32 %v9819, %v9942
      %v10025 = vadd.f32 %v9820, %v9944
      %v10026 = vadd.f32 %v9821, %v9943
      %v10027 = vmax.f32 %v9986, 0.0
      %v10028 = vmax.f32 %v9987, 0.0
      %v10029 = vmax.f32 %v9988, 0.0
      %v10030 = vmax.f32 %v9989, 0.0
      %v10031 = vmax.f32 %v9990, 0.0
      %v10032 = vmax.f32 %v9991, 0.0
      %v10033 = vmax.f32 %v9992, 0.0
      %v10034 = vmax.f32 %v9993, 0.0
      %v10035 = vmax.f32 %v9994, 0.0
      %v10036 = vmax.f32 %v9995, 0.0
      %v10037 = vmax.f32 %v9996, 0.0
      %v10038 = vmax.f32 %v9997, 0.0
      %v10039 = vmax.f32 %v9998, 0.0
      %v10040 = vmax.f32 %v9999, 0.0
      %v10041 = vmax.f32 %v10000, 0.0
      %v10042 = vmax.f32 %v10001, 0.0
      %v10043 = vmax.f32 %v10002, 0.0
      %v10044 = vmax.f32 %v10003, 0.0
      %v10045 = vmax.f32 %v10004, 0.0
      %v10046 = vmax.f32 %v10005, 0.0
      %v10047 = vmax.f32 %v10006, 0.0
      %v10048 = vmax.f32 %v10007, 0.0
      %v10049 = vmax.f32 %v10008, 0.0
      %v10050 = vmax.f32 %v10009, 0.0
      %v10051 = vmax.f32 %v10010, 0.0
      %v10052 = vmax.f32 %v10011, 0.0
      %v10053 = vmax.f32 %v10012, 0.0
      %v10054 = vmax.f32 %v10013, 0.0
      %v10055 = vmax.f32 %v10014, 0.0
      %v10056 = vmax.f32 %v10015, 0.0
      %v10057 = vmax.f32 %v10016, 0.0
      %v10058 = vmax.f32 %v10017, 0.0
      %v10059 = vmax.f32 %v10018, 0.0
      %v10060 = vmax.f32 %v10019, 0.0
      %v10061 = vmax.f32 %v10020, 0.0
      %v10062 = vmax.f32 %v10021, 0.0
      %v10063 = vmax.f32 %v10022, 0.0
      %v10064 = vmax.f32 %v10023, 0.0
      %v10065 = vmax.f32 %v10024, 0.0
      %v10066 = vmax.f32 %v10025, 0.0
      %v10067 = vmax.f32 %v10026, 0.0
      %10068 = vst [vmem:[%s251] sm:$0xff] %v10027
      %10069 = vst [vmem:[%s251 + $0x8] sm:$0xff] %v10028
      %10070 = vst [vmem:[%s251 + $0x10] sm:$0xff] %v10029
      %10071 = vst [vmem:[%s251 + $0x18] sm:$0xff] %v10030
      %10072 = vst [vmem:[%s251 + $0x20] sm:$0xff] %v10031
      %10073 = vst [vmem:[%s251 + $0x28] sm:$0xff] %v10032
      %10074 = vst [vmem:[%s251 + $0x30] sm:$0xff] %v10033
      %10075 = vst [vmem:[%s251 + $0x38] sm:$0xff] %v10034
      %10076 = vst [vmem:[%s251 + $0x40] sm:$0xff] %v10035
      %10077 = vst [vmem:[%s251 + $0x48] sm:$0xff] %v10036
      %10078 = vst [vmem:[%s251 + $0x50] sm:$0xff] %v10037
      %10079 = vst [vmem:[%s251 + $0x58] sm:$0xff] %v10038
      %10080 = vst [vmem:[%s251 + $0x60] sm:$0xff] %v10039
      %10081 = vst [vmem:[%s251 + $0x68] sm:$0xff] %v10040
      %10082 = vst [vmem:[%s251 + $0x70] sm:$0xff] %v10041
      %10083 = vst [vmem:[%s251 + $0x78] sm:$0xff] %v10042
      %10084 = vst [vmem:[%s251 + $0x80] sm:$0xff] %v10043
      %10085 = vst [vmem:[%s251 + $0x88] sm:$0xff] %v10044
      %10086 = vst [vmem:[%s251 + $0x90] sm:$0xff] %v10045
      %10087 = vst [vmem:[%s251 + $0x98] sm:$0xff] %v10046
      %10088 = vst [vmem:[%s251 + $0xa0] sm:$0xff] %v10047
      %10089 = vst [vmem:[%s251 + $0xa8] sm:$0xff] %v10048
      %10090 = vst [vmem:[%s251 + $0xb0] sm:$0xff] %v10049
      %10091 = vst [vmem:[%s251 + $0xb8] sm:$0xff] %v10050
      %10092 = vst [vmem:[%s251 + $0xc0] sm:$0xff] %v10051
      %10093 = vst [vmem:[%s251 + $0xc8] sm:$0xff] %v10052
      %10094 = vst [vmem:[%s251 + $0xd0] sm:$0xff] %v10053
      %10095 = vst [vmem:[%s251 + $0xd8] sm:$0xff] %v10054
      %10096 = vst [vmem:[%s251 + $0xe0] sm:$0xff] %v10055
      %10097 = vst [vmem:[%s251 + $0xe8] sm:$0xff] %v10056
      %10098 = vst [vmem:[%s251 + $0xf0] sm:$0xff] %v10057
      %10099 = vst [vmem:[%s251 + $0xf8] sm:$0xff] %v10058
      %10100 = vst [vmem:[%s251 + $0x100] sm:$0xff] %v10059
      %10101 = vst [vmem:[%s251 + $0x108] sm:$0xff] %v10060
      %10102 = vst [vmem:[%s251 + $0x110] sm:$0xff] %v10061
      %10103 = vst [vmem:[%s251 + $0x118] sm:$0xff] %v10062
      %10104 = vst [vmem:[%s251 + $0x120] sm:$0xff] %v10063
      %10105 = vst [vmem:[%s251 + $0x128] sm:$0xff] %v10064
      %10106 = vst [vmem:[%s251 + $0x130] sm:$0xff] %v10065
      %10107 = vst [vmem:[%s251 + $0x138] sm:$0xff] %v10066
      %10108 = vst [vmem:[%s251 + $0x140] sm:$0xf] %v10067
      %p10109 = scmp.lt.s32.totalorder %s17, 1
      %s10110 = scalar_select %p10109, %s17, 1
      %s10111 = smul.addr %s10110, 41
      %s10112 = smul.addr %s10111, 8
      %s10113 = scalar_lea.vmem %s6, %s10112
      // Predicated region
      $region45: #{basic_block_forward.1} parent=43 // pred_check
        %p10114 = pneg %p166
      $region46: #{basic_block_forward.1} parent=43 // pred_check_branch
        %10116 = sbr.rel (%p10114) target = $region48
      $region47: #{basic_block_forward.1} parent=43 // pred_region
        _
      $region48: #{basic_block_forward.1} parent=43 // pred_fallthru
        _
    $region44: #{basic_block_forward.1} parent=5 // pred_fallthru
      _
    %p10117 = scmp.le.s32.totalorder 2, %s12
    // Predicated region
    $region49: #{basic_block_forward.1} parent=5 // pred_check
      %p10118 = pneg %p10117
    $region50: #{basic_block_forward.1} parent=5 // pred_check_branch
      %10120 = sbr.rel (%p10118) target = $region52
    $region51: #{basic_block_forward.1} parent=5 // pred_region
      %s10121 = ssub.s32 %s12, 2
      // Predicated region
      $region53: #{basic_block_forward.1} parent=51 // pred_check
        %p10122 = pneg %p172
      $region54: #{basic_block_forward.1} parent=51 // pred_check_branch
        %10124 = sbr.rel (%p10122) target = $region56
      $region55: #{basic_block_forward.1} parent=51 // pred_region
        %p10125 = scmp.lt.s32.totalorder %s18, 1
        %s10126 = scalar_select %p10125, %s18, 1
        %s10127 = smul.addr %s10126, 41
        %s10128 = smul.addr %s10127, 8
        %s10129 = scalar_lea.vmem %s6, %s10128
      $region56: #{basic_block_forward.1} parent=51 // pred_fallthru
        _
    $region52: #{basic_block_forward.1} parent=5 // pred_fallthru
      _
  $region6: #{basic_block_forward.1} parent=0 // loop_footer
    %s16 = sadd.s32 1, %s12
  $region7: #{basic_block_forward.1} parent=0 // loop_footer_branch
    %11 = sbr.rel target = $region3
  $region8: #{basic_block_forward.1} parent=0 // loop_exit
    _

</llo_original>
